<compile_context>
chip_gen: v7x
topology: tpu7x:2x2x1
jax: 0.10.0
libtpu: 0.0.40
codegen_flags: <defaults>
</compile_context>

<pallas_src>
import jax
import jax.numpy as jnp
from jax.experimental import pallas as pl
from jax.experimental.pallas import tpu as pltpu

NUM_CLASSES = 26
K1_PAD = 896     # 784 rounded up to a multiple of 128 (lane-aligned K for layer 1)
HIDDEN = 2048
TN = 1024        # N-tile for the 2048-wide layers (2 tiles per layer)
NH_PAD = 128     # 26-class head padded to one full lane group
NEG_BIG = -1e30  # pad-column bias -> exp() == 0 in the softmax


def _fused_mlp_kernel(x_ref, w1_ref, b1_ref, w2_ref, b2_ref, w3_ref, b3_ref,
                      o_ref, h1_ref, h2_ref):
    """Grid step s: 0,1 -> layer-1 tiles; 2,3 -> layer-2 tiles; 4 -> head+softmax."""
    s = pl.program_id(0)

    # ---- layer 1: h1[tile s] = relu(x @ W1[:, tile] + b1[tile]),  s in {0, 1}
    @pl.when(s < 2)
    def _():
        y = jnp.dot(x_ref[...], w1_ref[...], preferred_element_type=jnp.float32)
        y = jnp.maximum(y + b1_ref[...], 0.0)
        h1_ref[s] = y.astype(h1_ref.dtype)
        # nn.Dropout(0.5): identity in eval mode.

    # ---- layer 2: h2[tile s-2] = relu(h1 @ W2[:, tile] + b2[tile]),  s in {2, 3}
    @pl.when(jnp.logical_and(s >= 2, s < 4))
    def _():
        y = jnp.dot(h1_ref[0], w2_ref[:TN, :], preferred_element_type=jnp.float32)
        y = y + jnp.dot(h1_ref[1], w2_ref[TN:, :], preferred_element_type=jnp.float32)
        y = jnp.maximum(y + b2_ref[...], 0.0)
        h2_ref[s - 2] = y.astype(h2_ref.dtype)
        # nn.Dropout(0.5): identity in eval mode.

    # ---- layer 3 + softmax over the lane-dense (padded) 128-wide head,  s == 4
    @pl.when(s == 4)
    def _():
        logits = jnp.dot(h2_ref[0], w3_ref[:TN, :], preferred_element_type=jnp.float32)
        logits = logits + jnp.dot(h2_ref[1], w3_ref[TN:, :],
                                  preferred_element_type=jnp.float32)
        logits = logits + b3_ref[...]            # pad columns carry -1e30
        logits = logits - jnp.max(logits, axis=-1, keepdims=True)
        e = jnp.exp(logits)                      # pad columns -> exactly 0
        o_ref[...] = e / jnp.sum(e, axis=-1, keepdims=True)


def fused_forward(x_flat, prepared_params):
    """x_flat: (M, 896) bf16. Returns (M, 128) f32 softmax (pad cols are 0)."""
    (w1, b1), (w2, b2), (w3, b3) = (prepared_params["l1"],
                                    prepared_params["l2"],
                                    prepared_params["l3"])
    M = x_flat.shape[0]

    # Block-column selectors for the 5-step grid (clamped, so an already-resident
    # block is never re-fetched and upcoming blocks are prefetched early).
    def w1_idx(s):
        return (0, jnp.minimum(s, 1))            # 0,1,1,1,1

    def w2_idx(s):
        return (0, jnp.maximum(jnp.minimum(s - 2, 1), 0))   # 0,0,0,1,1

    return pl.pallas_call(
        _fused_mlp_kernel,
        out_shape=jax.ShapeDtypeStruct((M, NH_PAD), jnp.float32),
        grid_spec=pltpu.PrefetchScalarGridSpec(
            num_scalar_prefetch=0,
            grid=(5,),                                   # 2 + 2 + 1 weight tiles
            in_specs=[
                pl.BlockSpec((M, K1_PAD), lambda s: (0, 0)),        # x, resident
                pl.BlockSpec((K1_PAD, TN), w1_idx),                 # W1 tile (bf16)
                pl.BlockSpec((1, TN), w1_idx),                      # b1 tile (f32)
                pl.BlockSpec((HIDDEN, TN), w2_idx),                 # W2 tile (bf16)
                pl.BlockSpec((1, TN), w2_idx),                      # b2 tile (f32)
                pl.BlockSpec((HIDDEN, NH_PAD), lambda s: (0, 0)),   # W3 whole (bf16)
                pl.BlockSpec((1, NH_PAD), lambda s: (0, 0)),        # b3 whole (f32)
            ],
            out_specs=pl.BlockSpec((M, NH_PAD), lambda s: (0, 0)),  # written at s==4
            scratch_shapes=[
                pltpu.VMEM((2, M, TN), jnp.bfloat16),   # h1: layer-1 activations
                pltpu.VMEM((2, M, TN), jnp.bfloat16),   # h2: layer-2 activations
            ],
        ),
        compiler_params=pltpu.CompilerParams(
            # Grid steps are sequentially dependent (layer 2 reads layer 1's
            # scratch, etc.), so this axis cannot be "parallel".
            dimension_semantics=("arbitrary",),
        ),
    )(x_flat, w1, b1, w2, b2, w3, b3)


def init_params(key):
    """Deterministic PyTorch-style (uniform +/- 1/sqrt(fan_in)) init, f32."""

    def linear_init(k, fan_in, fan_out):
        kw, kb = jax.random.split(k)
        bound = 1.0 / jnp.sqrt(jnp.float32(fan_in))
        w = jax.random.uniform(kw, (fan_in, fan_out), jnp.float32, -bound, bound)
        b = jax.random.uniform(kb, (fan_out,), jnp.float32, -bound, bound)
        return w, b

    k1, k2, k3 = jax.random.split(key, 3)
    return {
        "l1": linear_init(k1, 784, HIDDEN),
        "l2": linear_init(k2, HIDDEN, HIDDEN),
        "l3": linear_init(k3, HIDDEN, NUM_CLASSES),
    }


def prepare_params(params):
    """One-time prep: pad W1's K 784->896, pad the head to 128 lane-dense
    columns (pad bias = -1e30), cast weights to bf16, biases to f32 rows."""
    w1, b1 = params["l1"]
    w2, b2 = params["l2"]
    w3, b3 = params["l3"]

    w1p = jnp.zeros((K1_PAD, w1.shape[1]), jnp.float32).at[: w1.shape[0]].set(w1)
    w3p = jnp.zeros((w3.shape[0], NH_PAD), jnp.float32).at[:, : w3.shape[1]].set(w3)
    b3p = jnp.full((NH_PAD,), NEG_BIG, jnp.float32).at[: b3.shape[0]].set(b3)

    return {
        "l1": (w1p.astype(jnp.bfloat16), b1.reshape(1, -1).astype(jnp.float32)),
        "l2": (w2.astype(jnp.bfloat16), b2.reshape(1, -1).astype(jnp.float32)),
        "l3": (w3p.astype(jnp.bfloat16), b3p.reshape(1, -1).astype(jnp.float32)),
    }


@jax.jit
def my_neural_network_forward(prepared_params, x):
    B = x.shape[0]
    h = x.reshape(B, -1)                                             # nn.Flatten()
    # Zero-pad K 784 -> 896 (multiple of 128); W1's rows are zero-padded to match,
    # so the result is mathematically identical to the unpadded linear.
    h = jnp.pad(h, ((0, 0), (0, K1_PAD - h.shape[1]))).astype(jnp.bfloat16)
    probs_padded = fused_forward(h, prepared_params)   # all 3 layers in one kernel
    return probs_padded[:, :NUM_CLASSES]               # drop the 102 pad columns


def _reference_forward(params, x):
    """Pure f32 JAX reference (PyTorch semantics)."""
    B = x.shape[0]
    h = x.reshape(B, -1)
    h = jnp.maximum(h @ params["l1"][0] + params["l1"][1], 0.0)
    h = jnp.maximum(h @ params["l2"][0] + params["l2"][1], 0.0)
    logits = h @ params["l3"][0] + params["l3"][1]
    return jax.nn.softmax(logits, axis=1)


if __name__ == "__main__":
    key = jax.random.PRNGKey(0)
    k_param, k_x = jax.random.split(key)

    params = init_params(k_param)
    prepared = prepare_params(params)
    x = jax.random.normal(k_x, (8, 1, 28, 28), dtype=jnp.float32)  # NCHW like PyTorch

    out = my_neural_network_forward(prepared, x)
    out = jax.block_until_ready(out)

    ref = _reference_forward(params, x)
    assert out.shape == (8, NUM_CLASSES)
    # bf16 weight/activation streaming -> relaxed tolerance vs. the f32 reference.
    assert jnp.allclose(out, ref, atol=2e-2, rtol=0.0), float(jnp.max(jnp.abs(out - ref)))
    assert jnp.allclose(jnp.sum(out, axis=1), 1.0, atol=1e-3)

    print("KERNEL_OK")
</pallas_src>

<mosaic_0001>
module attributes {stable_mosaic.version = 11 : i64} {
  func.func @_fused_mlp_kernel(%arg0: i32, %arg1: memref<8x896xbf16, #tpu.memory_space<vmem>>, %arg2: memref<896x1024xbf16, #tpu.memory_space<vmem>>, %arg3: memref<1x1024xf32, #tpu.memory_space<vmem>>, %arg4: memref<2048x1024xbf16, #tpu.memory_space<vmem>>, %arg5: memref<1x1024xf32, #tpu.memory_space<vmem>>, %arg6: memref<2048x128xbf16, #tpu.memory_space<vmem>>, %arg7: memref<1x128xf32, #tpu.memory_space<vmem>>, %arg8: memref<8x128xf32, #tpu.memory_space<vmem>>, %arg9: memref<2x8x1024xbf16, #tpu.memory_space<vmem>>, %arg10: memref<2x8x1024xbf16, #tpu.memory_space<vmem>>) attributes {dimension_semantics = [#tpu.dimension_semantics<arbitrary>], iteration_bounds = array<i64: 5>, scalar_prefetch = 0 : i64, scratch_operands = 2 : i64, tpu.core_type = #tpu.core_type<tc>, window_params = [{pipeline_mode = #tpu.pipeline_mode<synchronous>, transform_indices = @transform_0, window_bounds = array<i64: 8, 896>}, {transform_indices = @transform_1, window_bounds = array<i64: 896, 1024>}, {transform_indices = @transform_2, window_bounds = array<i64: 1, 1024>}, {transform_indices = @transform_3, window_bounds = array<i64: 2048, 1024>}, {transform_indices = @transform_4, window_bounds = array<i64: 1, 1024>}, {pipeline_mode = #tpu.pipeline_mode<synchronous>, transform_indices = @transform_5, window_bounds = array<i64: 2048, 128>}, {pipeline_mode = #tpu.pipeline_mode<synchronous>, transform_indices = @transform_6, window_bounds = array<i64: 1, 128>}, {pipeline_mode = #tpu.pipeline_mode<synchronous>, transform_indices = @transform_7, window_bounds = array<i64: 8, 128>}]} {
    %c2_i32 = arith.constant 2 : i32
    %0 = arith.cmpi slt, %arg0, %c2_i32 : i32
    %1 = arith.extui %0 : i1 to i32
    %c0_i32 = arith.constant 0 : i32
    %2 = arith.cmpi ne, %1, %c0_i32 : i32
    scf.if %2 {
      %c0 = arith.constant 0 : index
      %c0_4 = arith.constant 0 : index
      %11 = vector.load %arg1[%c0, %c0_4] : memref<8x896xbf16, #tpu.memory_space<vmem>>, vector<8x896xbf16>
      %c0_5 = arith.constant 0 : index
      %c0_6 = arith.constant 0 : index
      %12 = vector.load %arg2[%c0_5, %c0_6] : memref<896x1024xbf16, #tpu.memory_space<vmem>>, vector<896x1024xbf16>
      %cst = arith.constant dense<0.000000e+00> : vector<8x1024xf32>
      %13 = tpu.matmul %11, %12, %cst {dimension_numbers = #tpu.dot_dimension_numbers<[1], [0], [0], [1], [0, 0, 1, 1], [], []>} : vector<8x896xbf16>, vector<896x1024xbf16>, vector<8x1024xf32> -> vector<8x1024xf32>
      %c0_7 = arith.constant 0 : index
      %c0_8 = arith.constant 0 : index
      %14 = vector.load %arg3[%c0_7, %c0_8] : memref<1x1024xf32, #tpu.memory_space<vmem>>, vector<1x1024xf32>
      %15 = vector.broadcast %14 : vector<1x1024xf32> to vector<8x1024xf32>
      %16 = arith.addf %13, %15 : vector<8x1024xf32>
      %cst_9 = arith.constant 0.000000e+00 : f32
      %17 = vector.broadcast %cst_9 : f32 to vector<8x1024xf32>
      %18 = arith.maximumf %16, %17 : vector<8x1024xf32>
      %19 = arith.truncf %18 : vector<8x1024xf32> to vector<8x1024xbf16>
      %20 = arith.index_cast %arg0 : i32 to index
      %c0_10 = arith.constant 0 : index
      %c0_11 = arith.constant 0 : index
      %21 = vector.load %arg9[%20, %c0_10, %c0_11] : memref<2x8x1024xbf16, #tpu.memory_space<vmem>>, vector<1x8x1024xbf16>
      %22 = vector.shape_cast %21 : vector<1x8x1024xbf16> to vector<8x1024xbf16>
      %23 = vector.shape_cast %19 : vector<8x1024xbf16> to vector<1x8x1024xbf16>
      tpu.vector_store %arg9[%20, %c0_10, %c0_11], %23 {strides = array<i32>} : memref<2x8x1024xbf16, #tpu.memory_space<vmem>>, vector<1x8x1024xbf16>,
    } else {
    }
    %c2_i32_0 = arith.constant 2 : i32
    %3 = arith.cmpi sge, %arg0, %c2_i32_0 : i32
    %c4_i32 = arith.constant 4 : i32
    %4 = arith.cmpi slt, %arg0, %c4_i32 : i32
    %5 = arith.andi %3, %4 : i1
    %6 = arith.extui %5 : i1 to i32
    %c0_i32_1 = arith.constant 0 : i32
    %7 = arith.cmpi ne, %6, %c0_i32_1 : i32
    scf.if %7 {
      %c0 = arith.constant 0 : index
      %c0_4 = arith.constant 0 : index
      %c0_5 = arith.constant 0 : index
      %11 = vector.load %arg9[%c0, %c0_4, %c0_5] : memref<2x8x1024xbf16, #tpu.memory_space<vmem>>, vector<1x8x1024xbf16>
      %12 = vector.shape_cast %11 : vector<1x8x1024xbf16> to vector<8x1024xbf16>
      %c0_6 = arith.constant 0 : index
      %c0_7 = arith.constant 0 : index
      %13 = vector.load %arg4[%c0_6, %c0_7] : memref<2048x1024xbf16, #tpu.memory_space<vmem>>, vector<1024x1024xbf16>
      %cst = arith.constant dense<0.000000e+00> : vector<8x1024xf32>
      %14 = tpu.matmul %12, %13, %cst {dimension_numbers = #tpu.dot_dimension_numbers<[1], [0], [0], [1], [0, 0, 1, 1], [], []>} : vector<8x1024xbf16>, vector<1024x1024xbf16>, vector<8x1024xf32> -> vector<8x1024xf32>
      %c1 = arith.constant 1 : index
      %c0_8 = arith.constant 0 : index
      %c0_9 = arith.constant 0 : index
      %15 = vector.load %arg9[%c1, %c0_8, %c0_9] : memref<2x8x1024xbf16, #tpu.memory_space<vmem>>, vector<1x8x1024xbf16>
      %16 = vector.shape_cast %15 : vector<1x8x1024xbf16> to vector<8x1024xbf16>
      %c1024 = arith.constant 1024 : index
      %c0_10 = arith.constant 0 : index
      %17 = vector.load %arg4[%c1024, %c0_10] : memref<2048x1024xbf16, #tpu.memory_space<vmem>>, vector<1024x1024xbf16>
      %cst_11 = arith.constant dense<0.000000e+00> : vector<8x1024xf32>
      %18 = tpu.matmul %16, %17, %cst_11 {dimension_numbers = #tpu.dot_dimension_numbers<[1], [0], [0], [1], [0, 0, 1, 1], [], []>} : vector<8x1024xbf16>, vector<1024x1024xbf16>, vector<8x1024xf32> -> vector<8x1024xf32>
      %19 = arith.addf %14, %18 : vector<8x1024xf32>
      %c0_12 = arith.constant 0 : index
      %c0_13 = arith.constant 0 : index
      %20 = vector.load %arg5[%c0_12, %c0_13] : memref<1x1024xf32, #tpu.memory_space<vmem>>, vector<1x1024xf32>
      %21 = vector.broadcast %20 : vector<1x1024xf32> to vector<8x1024xf32>
      %22 = arith.addf %19, %21 : vector<8x1024xf32>
      %cst_14 = arith.constant 0.000000e+00 : f32
      %23 = vector.broadcast %cst_14 : f32 to vector<8x1024xf32>
      %24 = arith.maximumf %22, %23 : vector<8x1024xf32>
      %25 = arith.truncf %24 : vector<8x1024xf32> to vector<8x1024xbf16>
      %c2_i32_15 = arith.constant 2 : i32
      %26 = arith.subi %arg0, %c2_i32_15 : i32
      %27 = arith.index_cast %26 : i32 to index
      %c0_16 = arith.constant 0 : index
      %c0_17 = arith.constant 0 : index
      %28 = vector.load %arg10[%27, %c0_16, %c0_17] : memref<2x8x1024xbf16, #tpu.memory_space<vmem>>, vector<1x8x1024xbf16>
      %29 = vector.shape_cast %28 : vector<1x8x1024xbf16> to vector<8x1024xbf16>
      %30 = vector.shape_cast %25 : vector<8x1024xbf16> to vector<1x8x1024xbf16>
      tpu.vector_store %arg10[%27, %c0_16, %c0_17], %30 {strides = array<i32>} : memref<2x8x1024xbf16, #tpu.memory_space<vmem>>, vector<1x8x1024xbf16>,
    } else {
    }
    %c4_i32_2 = arith.constant 4 : i32
    %8 = arith.cmpi eq, %arg0, %c4_i32_2 : i32
    %9 = arith.extui %8 : i1 to i32
    %c0_i32_3 = arith.constant 0 : i32
    %10 = arith.cmpi ne, %9, %c0_i32_3 : i32
    scf.if %10 {
      %c0 = arith.constant 0 : index
      %c0_4 = arith.constant 0 : index
      %c0_5 = arith.constant 0 : index
      %11 = vector.load %arg10[%c0, %c0_4, %c0_5] : memref<2x8x1024xbf16, #tpu.memory_space<vmem>>, vector<1x8x1024xbf16>
      %12 = vector.shape_cast %11 : vector<1x8x1024xbf16> to vector<8x1024xbf16>
      %c0_6 = arith.constant 0 : index
      %c0_7 = arith.constant 0 : index
      %13 = vector.load %arg6[%c0_6, %c0_7] : memref<2048x128xbf16, #tpu.memory_space<vmem>>, vector<1024x128xbf16>
      %cst = arith.constant dense<0.000000e+00> : vector<8x128xf32>
      %14 = tpu.matmul %12, %13, %cst {dimension_numbers = #tpu.dot_dimension_numbers<[1], [0], [0], [1], [0, 0, 1, 1], [], []>} : vector<8x1024xbf16>, vector<1024x128xbf16>, vector<8x128xf32> -> vector<8x128xf32>
      %c1 = arith.constant 1 : index
      %c0_8 = arith.constant 0 : index
      %c0_9 = arith.constant 0 : index
      %15 = vector.load %arg10[%c1, %c0_8, %c0_9] : memref<2x8x1024xbf16, #tpu.memory_space<vmem>>, vector<1x8x1024xbf16>
      %16 = vector.shape_cast %15 : vector<1x8x1024xbf16> to vector<8x1024xbf16>
      %c1024 = arith.constant 1024 : index
      %c0_10 = arith.constant 0 : index
      %17 = vector.load %arg6[%c1024, %c0_10] : memref<2048x128xbf16, #tpu.memory_space<vmem>>, vector<1024x128xbf16>
      %cst_11 = arith.constant dense<0.000000e+00> : vector<8x128xf32>
      %18 = tpu.matmul %16, %17, %cst_11 {dimension_numbers = #tpu.dot_dimension_numbers<[1], [0], [0], [1], [0, 0, 1, 1], [], []>} : vector<8x1024xbf16>, vector<1024x128xbf16>, vector<8x128xf32> -> vector<8x128xf32>
      %19 = arith.addf %14, %18 : vector<8x128xf32>
      %c0_12 = arith.constant 0 : index
      %c0_13 = arith.constant 0 : index
      %20 = vector.load %arg7[%c0_12, %c0_13] : memref<1x128xf32, #tpu.memory_space<vmem>>, vector<1x128xf32>
      %21 = vector.broadcast %20 : vector<1x128xf32> to vector<8x128xf32>
      %22 = arith.addf %19, %21 : vector<8x128xf32>
      %cst_14 = arith.constant dense<0xFF800000> : vector<8xf32>
      %23 = vector.multi_reduction <maximumf>, %22, %cst_14 [1] : vector<8x128xf32> to vector<8xf32>
      %24 = vector.shape_cast %23 : vector<8xf32> to vector<8x1xf32>
      %25 = vector.broadcast %24 : vector<8x1xf32> to vector<8x128xf32>
      %26 = arith.subf %22, %25 : vector<8x128xf32>
      %27 = math.exp %26 : vector<8x128xf32>
      %cst_15 = arith.constant dense<0.000000e+00> : vector<8xf32>
      %28 = vector.multi_reduction <add>, %27, %cst_15 [1] : vector<8x128xf32> to vector<8xf32>
      %29 = vector.shape_cast %28 : vector<8xf32> to vector<8x1xf32>
      %30 = vector.broadcast %29 : vector<8x1xf32> to vector<8x128xf32>
      %31 = arith.divf %27, %30 : vector<8x128xf32>
      %c0_16 = arith.constant 0 : index
      %c0_17 = arith.constant 0 : index
      %32 = vector.load %arg8[%c0_16, %c0_17] : memref<8x128xf32, #tpu.memory_space<vmem>>, vector<8x128xf32>
      tpu.vector_store %arg8[%c0_16, %c0_17], %31 {strides = array<i32>} : memref<8x128xf32, #tpu.memory_space<vmem>>, vector<8x128xf32>,
    } else {
    }
    return
  }
  func.func @transform_0(%arg0: i32) -> (i32, i32) {
    %c0_i32 = arith.constant 0 : i32
    %c0_i32_0 = arith.constant 0 : i32
    %c0_i32_1 = arith.constant 0 : i32
    return %c0_i32, %c0_i32_0 : i32, i32
  }
  func.func @transform_1(%arg0: i32) -> (i32, i32) {
    %c1_i32 = arith.constant 1 : i32
    %0 = arith.minsi %arg0, %c1_i32 : i32
    %c0_i32 = arith.constant 0 : i32
    %c0_i32_0 = arith.constant 0 : i32
    return %c0_i32, %0 : i32, i32
  }
  func.func @transform_2(%arg0: i32) -> (i32, i32) {
    %c1_i32 = arith.constant 1 : i32
    %0 = arith.minsi %arg0, %c1_i32 : i32
    %c0_i32 = arith.constant 0 : i32
    %c0_i32_0 = arith.constant 0 : i32
    return %c0_i32, %0 : i32, i32
  }
  func.func @transform_3(%arg0: i32) -> (i32, i32) {
    %c2_i32 = arith.constant 2 : i32
    %0 = arith.subi %arg0, %c2_i32 : i32
    %c1_i32 = arith.constant 1 : i32
    %1 = arith.minsi %0, %c1_i32 : i32
    %c0_i32 = arith.constant 0 : i32
    %2 = arith.maxsi %1, %c0_i32 : i32
    %c0_i32_0 = arith.constant 0 : i32
    %c0_i32_1 = arith.constant 0 : i32
    return %c0_i32_0, %2 : i32, i32
  }
  func.func @transform_4(%arg0: i32) -> (i32, i32) {
    %c2_i32 = arith.constant 2 : i32
    %0 = arith.subi %arg0, %c2_i32 : i32
    %c1_i32 = arith.constant 1 : i32
    %1 = arith.minsi %0, %c1_i32 : i32
    %c0_i32 = arith.constant 0 : i32
    %2 = arith.maxsi %1, %c0_i32 : i32
    %c0_i32_0 = arith.constant 0 : i32
    %c0_i32_1 = arith.constant 0 : i32
    return %c0_i32_0, %2 : i32, i32
  }
  func.func @transform_5(%arg0: i32) -> (i32, i32) {
    %c0_i32 = arith.constant 0 : i32
    %c0_i32_0 = arith.constant 0 : i32
    %c0_i32_1 = arith.constant 0 : i32
    return %c0_i32, %c0_i32_0 : i32, i32
  }
  func.func @transform_6(%arg0: i32) -> (i32, i32) {
    %c0_i32 = arith.constant 0 : i32
    %c0_i32_0 = arith.constant 0 : i32
    %c0_i32_1 = arith.constant 0 : i32
    return %c0_i32, %c0_i32_0 : i32, i32
  }
  func.func @transform_7(%arg0: i32) -> (i32, i32) {
    %c0_i32 = arith.constant 0 : i32
    %c0_i32_0 = arith.constant 0 : i32
    %c0_i32_1 = arith.constant 0 : i32
    return %c0_i32, %c0_i32_0 : i32, i32
  }
}

</mosaic_0001>

<llo_original>
// kernel: my_neural_network_forward.1
$region0: #{my_neural_network_forward.1}
  #allocation0 [shape = 'u32[]', space=smem, size = 0x4, offset = 0x4, fixed_abs, tag = 'smem constant byte address 0x4 - core index']
  #allocation1 [shape = 'u32[144,128]{1,0:T(1,128)}', space=vmem, size = 0x12000, scoped, tag = 'internal scratch']
  #allocation2 [shape = 'bf16[2,8,1024]{2,1,0:T(8,128)(2,1)}', space=vmem, size = 0x8000, scoped, tag = 'scratch operand']
  #allocation3 [shape = 'bf16[2,8,1024]{2,1,0:T(8,128)(2,1)}', space=vmem, size = 0x8000, scoped, tag = 'scratch operand']
  %s0 = inlined_call_operand.vmem [shape: bf16[8,896], index: 0, kind: input, shape index: {}]
  %s1 = inlined_call_operand.hbm [shape: bf16[896,2048], index: 1, kind: input, shape index: {}]
  %s2 = inlined_call_operand.hbm [shape: f32[1,2048], index: 2, kind: input, shape index: {}]
  %s3 = inlined_call_operand.hbm [shape: bf16[2048,2048], index: 3, kind: input, shape index: {}]
  %s4 = inlined_call_operand.hbm [shape: f32[1,2048], index: 4, kind: input, shape index: {}]
  %s5 = inlined_call_operand.hbm [shape: bf16[2048,128], index: 5, kind: input, shape index: {}]
  %s6 = inlined_call_operand.hbm [shape: f32[1,128], index: 6, kind: input, shape index: {}]
  %s7 = inlined_call_operand.hbm [shape: f32[8,128], index: 7, kind: output, shape index: {}]
  %s8 = sld [smem:[#allocation0]]
  $region97: #{my_neural_network_forward.1} parent=0
    _
  %s10 = ssub.s32 1, %s8
  %s11 = scalar_select 0, %s10, %s8
  $region1: #{my_neural_network_forward.1} parent=0
    #allocation4 [shape = 'u8[3670016]{0}', space=vmem, size = 0x380000, scoped, tag = 'input window, operand 1']
    #allocation5 [shape = 's32[2]{0}', space=sflag, size = 0x8, scoped, tag = 'scoped memory for my_neural_network_forward.1']
    #allocation6 [shape = 's32[2]{0}', space=sflag, size = 0x8, scoped, tag = 'scoped memory for my_neural_network_forward.1']
    #allocation7 [shape = 'u8[8192]{0}', space=vmem, size = 0x2000, scoped, tag = 'input window, operand 2']
    #allocation8 [shape = 's32[2]{0}', space=sflag, size = 0x8, scoped, tag = 'scoped memory for my_neural_network_forward.1']
    #allocation9 [shape = 'u8[8388608]{0}', space=vmem, size = 0x800000, scoped, tag = 'input window, operand 3']
    #allocation10 [shape = 'u8[8192]{0}', space=vmem, size = 0x2000, scoped, tag = 'input window, operand 4']
    #allocation11 [shape = 's32[2]{0}', space=sflag, size = 0x8, scoped, tag = 'scoped memory for my_neural_network_forward.1']
    #allocation12 [shape = 'u8[524288]{0}', space=vmem, size = 0x80000, scoped, tag = 'input window, operand 5, single buffered']
    #allocation13 [shape = 'u8[512]{0}', space=vmem, size = 0x400, scoped, tag = 'input window, operand 6, single buffered']
    #allocation14 [shape = 's32[1]{0}', space=sflag, size = 0x4, scoped, tag = 'scoped memory for my_neural_network_forward.1']
    #allocation15 [shape = 'u8[4096]{0}', space=vmem, size = 0x1000, scoped, tag = 'output window, operand 0, single buffered']
    %12 = vsyncpa [#allocation5], 0
    %s13 = scalar_lea.sflag [#allocation5], 1
    %14 = vsyncpa %s13, 0
    %15 = vsyncpa [#allocation8], 0
    %s16 = scalar_lea.sflag [#allocation8], 1
    %17 = vsyncpa %s16, 0
    %18 = vsyncpa [#allocation11], 0
    %s19 = scalar_lea.sflag [#allocation11], 1
    %20 = vsyncpa %s19, 0
    %21 = vsyncpa [#allocation14], 0
    %22 = vsyncpa [#allocation6], 0
    loop: start=0, step=1, limit=7
    $region2: #{my_neural_network_forward.1} parent=1 // loop_pre_header
      _
    $region3: #{my_neural_network_forward.1} parent=1 // loop_header
      %s24 = sphi 0, %s28
      %p25 = scmp.ge.s32.totalorder %s24, 7
      %s32 = sphi 0, %s32
      %s34 = sphi 0, %s32
      %s35 = sphi 0, %s34
      %s49 = sphi 0, %s35
      %s59 = sphi 0, %s61
      %s62 = sphi 0, %s59
      %s63 = sphi 0, %s62
      %s79 = sphi 0, %s63
      %s89 = sphi 0, %s91
      %s92 = sphi 0, %s89
      %s93 = sphi 0, %s92
      %s109 = sphi 0, %s93
      %s125 = sphi 0, %s127
      %s128 = sphi 0, %s125
      %s129 = sphi 0, %s128
      %s145 = sphi 0, %s129
      %s161 = sphi 0, %s163
      %s164 = sphi 0, %s161
      %s165 = sphi 0, %s164
      %s181 = sphi 0, %s165
      %s185 = sphi 0, %s185
      %s187 = sphi 0, %s185
      %s188 = sphi 0, %s187
      %s202 = sphi 0, %s188
      %s206 = sphi 0, %s206
      %s208 = sphi 0, %s206
      %s209 = sphi 0, %s208
      %s223 = sphi 0, %s209
      %s227 = sphi 0, %s227
      %s229 = sphi 0, %s227
      %s230 = sphi 0, %s229
      %s244 = sphi 0, %s230
    $region4: #{my_neural_network_forward.1} parent=1 // loop_header_branch
      %27 = sbr.rel (%p25) target = $region8
    $region5: #{my_neural_network_forward.1} parent=1 // loop_body
      %s29 = ssub.s32 %s24, 1
      %s30 = ssub.s32 %s24, 2
      %s31 = sadd.s32 %s24, 1
      %s33 = sadd.s32 %s32, 1
      %p36 = scmp.eq.s32.totalorder %s24, 4
      %p37 = scmp.ne.s32.totalorder %s32, %s34
      %p38 = scmp.eq.s32.totalorder %s24, 0
      %p39 = por %p37, %p38
      %p40 = scmp.ne.s32.totalorder %s32, %s34
      %p41 = scmp.eq.s32.totalorder %s29, 4
      %p42 = por %p40, %p41
      %p43 = scmp.ne.s32.totalorder %s34, %s35
      %p44 = scmp.eq.s32.totalorder %s29, 0
      %p45 = por %p43, %p44
      %p46 = scmp.ne.s32.totalorder %s34, %s35
      %p47 = scmp.eq.s32.totalorder %s30, 4
      %p48 = por %p46, %p47
      %p50 = scmp.ne.s32.totalorder %s35, %s49
      %p51 = scmp.eq.s32.totalorder %s30, 0
      %p52 = por %p50, %p51
      %p53 = scmp.lt.s32.totalorder %s24, 1
      %s54 = scalar_select %p53, %s24, 1
      %p55 = scmp.lt.s32.totalorder %s31, 1
      %s56 = scalar_select %p55, %s31, 1
      %s57 = ssub.s32 %s54, %s56
      %p58 = scmp.eq.s32.totalorder %s57, 0
      %s60 = sadd.s32 %s59, 1
      %s61 = scalar_select %p58, %s59, %s60
      %p64 = pneg %p58
      %p65 = scmp.eq.s32.totalorder %s24, 4
      %p66 = por %p64, %p65
      %p67 = scmp.ne.s32.totalorder %s59, %s62
      %p68 = scmp.eq.s32.totalorder %s24, 0
      %p69 = por %p67, %p68
      %p70 = scmp.ne.s32.totalorder %s59, %s62
      %p71 = scmp.eq.s32.totalorder %s29, 4
      %p72 = por %p70, %p71
      %p73 = scmp.ne.s32.totalorder %s62, %s63
      %p74 = scmp.eq.s32.totalorder %s29, 0
      %p75 = por %p73, %p74
      %p76 = scmp.ne.s32.totalorder %s62, %s63
      %p77 = scmp.eq.s32.totalorder %s30, 4
      %p78 = por %p76, %p77
      %p80 = scmp.ne.s32.totalorder %s63, %s79
      %p81 = scmp.eq.s32.totalorder %s30, 0
      %p82 = por %p80, %p81
      %p83 = scmp.lt.s32.totalorder %s24, 1
      %s84 = scalar_select %p83, %s24, 1
      %p85 = scmp.lt.s32.totalorder %s31, 1
      %s86 = scalar_select %p85, %s31, 1
      %s87 = ssub.s32 %s84, %s86
      %p88 = scmp.eq.s32.totalorder %s87, 0
      %s90 = sadd.s32 %s89, 1
      %s91 = scalar_select %p88, %s89, %s90
      %p94 = pneg %p88
      %p95 = scmp.eq.s32.totalorder %s24, 4
      %p96 = por %p94, %p95
      %p97 = scmp.ne.s32.totalorder %s89, %s92
      %p98 = scmp.eq.s32.totalorder %s24, 0
      %p99 = por %p97, %p98
      %p100 = scmp.ne.s32.totalorder %s89, %s92
      %p101 = scmp.eq.s32.totalorder %s29, 4
      %p102 = por %p100, %p101
      %p103 = scmp.ne.s32.totalorder %s92, %s93
      %p104 = scmp.eq.s32.totalorder %s29, 0
      %p105 = por %p103, %p104
      %p106 = scmp.ne.s32.totalorder %s92, %s93
      %p107 = scmp.eq.s32.totalorder %s30, 4
      %p108 = por %p106, %p107
      %p110 = scmp.ne.s32.totalorder %s93, %s109
      %p111 = scmp.eq.s32.totalorder %s30, 0
      %p112 = por %p110, %p111
      %s113 = ssub.s32 %s24, 2
      %p114 = scmp.lt.s32.totalorder %s113, 1
      %s115 = scalar_select %p114, %s113, 1
      %p116 = scmp.gt.s32.totalorder %s115, 0
      %s117 = scalar_select %p116, %s115, 0
      %s118 = ssub.s32 %s31, 2
      %p119 = scmp.lt.s32.totalorder %s118, 1
      %s120 = scalar_select %p119, %s118, 1
      %p121 = scmp.gt.s32.totalorder %s120, 0
      %s122 = scalar_select %p121, %s120, 0
      %s123 = ssub.s32 %s117, %s122
      %p124 = scmp.eq.s32.totalorder %s123, 0
      %s126 = sadd.s32 %s125, 1
      %s127 = scalar_select %p124, %s125, %s126
      %p130 = pneg %p124
      %p131 = scmp.eq.s32.totalorder %s24, 4
      %p132 = por %p130, %p131
      %p133 = scmp.ne.s32.totalorder %s125, %s128
      %p134 = scmp.eq.s32.totalorder %s24, 0
      %p135 = por %p133, %p134
      %p136 = scmp.ne.s32.totalorder %s125, %s128
      %p137 = scmp.eq.s32.totalorder %s29, 4
      %p138 = por %p136, %p137
      %p139 = scmp.ne.s32.totalorder %s128, %s129
      %p140 = scmp.eq.s32.totalorder %s29, 0
      %p141 = por %p139, %p140
      %p142 = scmp.ne.s32.totalorder %s128, %s129
      %p143 = scmp.eq.s32.totalorder %s30, 4
      %p144 = por %p142, %p143
      %p146 = scmp.ne.s32.totalorder %s129, %s145
      %p147 = scmp.eq.s32.totalorder %s30, 0
      %p148 = por %p146, %p147
      %s149 = ssub.s32 %s24, 2
      %p150 = scmp.lt.s32.totalorder %s149, 1
      %s151 = scalar_select %p150, %s149, 1
      %p152 = scmp.gt.s32.totalorder %s151, 0
      %s153 = scalar_select %p152, %s151, 0
      %s154 = ssub.s32 %s31, 2
      %p155 = scmp.lt.s32.totalorder %s154, 1
      %s156 = scalar_select %p155, %s154, 1
      %p157 = scmp.gt.s32.totalorder %s156, 0
      %s158 = scalar_select %p157, %s156, 0
      %s159 = ssub.s32 %s153, %s158
      %p160 = scmp.eq.s32.totalorder %s159, 0
      %s162 = sadd.s32 %s161, 1
      %s163 = scalar_select %p160, %s161, %s162
      %p166 = pneg %p160
      %p167 = scmp.eq.s32.totalorder %s24, 4
      %p168 = por %p166, %p167
      %p169 = scmp.ne.s32.totalorder %s161, %s164
      %p170 = scmp.eq.s32.totalorder %s24, 0
      %p171 = por %p169, %p170
      %p172 = scmp.ne.s32.totalorder %s161, %s164
      %p173 = scmp.eq.s32.totalorder %s29, 4
      %p174 = por %p172, %p173
      %p175 = scmp.ne.s32.totalorder %s164, %s165
      %p176 = scmp.eq.s32.totalorder %s29, 0
      %p177 = por %p175, %p176
      %p178 = scmp.ne.s32.totalorder %s164, %s165
      %p179 = scmp.eq.s32.totalorder %s30, 4
      %p180 = por %p178, %p179
      %p182 = scmp.ne.s32.totalorder %s165, %s181
      %p183 = scmp.eq.s32.totalorder %s30, 0
      %p184 = por %p182, %p183
      %s186 = sadd.s32 %s185, 1
      %p189 = scmp.eq.s32.totalorder %s24, 4
      %p190 = scmp.ne.s32.totalorder %s185, %s187
      %p191 = scmp.eq.s32.totalorder %s24, 0
      %p192 = por %p190, %p191
      %p193 = scmp.ne.s32.totalorder %s185, %s187
      %p194 = scmp.eq.s32.totalorder %s29, 4
      %p195 = por %p193, %p194
      %p196 = scmp.ne.s32.totalorder %s187, %s188
      %p197 = scmp.eq.s32.totalorder %s29, 0
      %p198 = por %p196, %p197
      %p199 = scmp.ne.s32.totalorder %s187, %s188
      %p200 = scmp.eq.s32.totalorder %s30, 4
      %p201 = por %p199, %p200
      %p203 = scmp.ne.s32.totalorder %s188, %s202
      %p204 = scmp.eq.s32.totalorder %s30, 0
      %p205 = por %p203, %p204
      %s207 = sadd.s32 %s206, 1
      %p210 = scmp.eq.s32.totalorder %s24, 4
      %p211 = scmp.ne.s32.totalorder %s206, %s208
      %p212 = scmp.eq.s32.totalorder %s24, 0
      %p213 = por %p211, %p212
      %p214 = scmp.ne.s32.totalorder %s206, %s208
      %p215 = scmp.eq.s32.totalorder %s29, 4
      %p216 = por %p214, %p215
      %p217 = scmp.ne.s32.totalorder %s208, %s209
      %p218 = scmp.eq.s32.totalorder %s29, 0
      %p219 = por %p217, %p218
      %p220 = scmp.ne.s32.totalorder %s208, %s209
      %p221 = scmp.eq.s32.totalorder %s30, 4
      %p222 = por %p220, %p221
      %p224 = scmp.ne.s32.totalorder %s209, %s223
      %p225 = scmp.eq.s32.totalorder %s30, 0
      %p226 = por %p224, %p225
      %s228 = sadd.s32 %s227, 1
      %p231 = scmp.eq.s32.totalorder %s24, 4
      %p232 = scmp.ne.s32.totalorder %s227, %s229
      %p233 = scmp.eq.s32.totalorder %s24, 0
      %p234 = por %p232, %p233
      %p235 = scmp.ne.s32.totalorder %s227, %s229
      %p236 = scmp.eq.s32.totalorder %s29, 4
      %p237 = por %p235, %p236
      %p238 = scmp.ne.s32.totalorder %s229, %s230
      %p239 = scmp.eq.s32.totalorder %s29, 0
      %p240 = por %p238, %p239
      %p241 = scmp.ne.s32.totalorder %s229, %s230
      %p242 = scmp.eq.s32.totalorder %s30, 4
      %p243 = por %p241, %p242
      %p245 = scmp.ne.s32.totalorder %s230, %s244
      %p246 = scmp.eq.s32.totalorder %s30, 0
      %p247 = por %p245, %p246
      %p248 = scmp.le.s32.totalorder 1, %s24
      %p249 = scmp.lt.s32.totalorder %s24, 6
      %p250 = pnand %p248, %p249
      %p251 = pneg %p250
      // Predicated region
      $region9: #{my_neural_network_forward.1} parent=5 // pred_check
        _
      $region10: #{my_neural_network_forward.1} parent=5 // pred_check_branch
        %253 = sbr.rel (%p250) target = $region12
      $region11: #{my_neural_network_forward.1} parent=5 // pred_region
        %s254 = ssub.s32 %s24, 1
        // Predicated region
        $region13: #{my_neural_network_forward.1} parent=11 // pred_check
          %p255 = pneg %p45
        $region14: #{my_neural_network_forward.1} parent=11 // pred_check_branch
          %257 = sbr.rel (%p255) target = $region16
        $region15: #{my_neural_network_forward.1} parent=11 // pred_region
          _
        $region16: #{my_neural_network_forward.1} parent=11 // pred_fallthru
          _
        // Predicated region
        $region17: #{my_neural_network_forward.1} parent=11 // pred_check
          %p258 = pneg %p198
        $region18: #{my_neural_network_forward.1} parent=11 // pred_check_branch
          %260 = sbr.rel (%p258) target = $region20
        $region19: #{my_neural_network_forward.1} parent=11 // pred_region
          %s262 = ssub.s32 16384, 16384
          %263 = vsyncadd [#allocation11], %s262
          %s264 = sshll.u32 [#allocation12], 4
          %s265 = int_to_ptr.vmem [resolvable:$true] %s264
          %270 = dma.hbm_to_vmem [thread:$0]  %s5, 16384, %s265, [#allocation11], 64, 64, 4
        $region20: #{my_neural_network_forward.1} parent=11 // pred_fallthru
          _
        // Predicated region
        $region21: #{my_neural_network_forward.1} parent=11 // pred_check
          %p271 = pneg %p219
        $region22: #{my_neural_network_forward.1} parent=11 // pred_check_branch
          %273 = sbr.rel (%p271) target = $region24
        $region23: #{my_neural_network_forward.1} parent=11 // pred_region
          %s275 = ssub.s32 16, 16
          %276 = vsyncadd [#allocation14], %s275
          %s278 = sshll.u32 [#allocation13], 4
          %s279 = int_to_ptr.vmem [resolvable:$true] %s278
          %281 = dma.hbm_to_vmem [thread:$0]  %s6, 16, %s279, [#allocation14]
        $region24: #{my_neural_network_forward.1} parent=11 // pred_fallthru
          _
      $region12: #{my_neural_network_forward.1} parent=5 // pred_fallthru
        _
      %p282 = scmp.lt.s32.totalorder %s24, 5
      // Predicated region
      $region25: #{my_neural_network_forward.1} parent=5 // pred_check
        %p283 = pneg %p282
      $region26: #{my_neural_network_forward.1} parent=5 // pred_check_branch
        %285 = sbr.rel (%p283) target = $region28
      $region27: #{my_neural_network_forward.1} parent=5 // pred_region
        // Predicated region
        $region29: #{my_neural_network_forward.1} parent=27 // pred_check
          %p286 = pneg %p69
        $region30: #{my_neural_network_forward.1} parent=27 // pred_check_branch
          %288 = sbr.rel (%p286) target = $region32
        $region31: #{my_neural_network_forward.1} parent=27 // pred_region
          %s289 = sand.u32 %s59, 1
          %s290 = scalar_lea.sflag [#allocation5], %s289
          %s291 = sand.u32 %s59, 1
          %s292 = smul.addr %s291, 3584
          %s293 = scalar_lea.vmem [#allocation4], %s292
          %p294 = scmp.lt.s32.totalorder %s24, 1
          %s295 = scalar_select %p294, %s24, 1
          %s296 = smul.u32 8, %s295
          %s298 = ssub.s32 57344, 57344
          %299 = vsyncadd %s290, %s298
          %s300 = smul.addr %s296, 64
          %s301 = scalar_lea.hbm %s1, %s300
          %s302 = sshll.u32 %s293, 4
          %s303 = int_to_ptr.vmem [resolvable:$true] %s302
          %308 = dma.hbm_to_vmem [thread:$0]  %s301, 57344, %s303, %s290, 1024, 512, 32
        $region32: #{my_neural_network_forward.1} parent=27 // pred_fallthru
          _
        // Predicated region
        $region33: #{my_neural_network_forward.1} parent=27 // pred_check
          %p309 = pneg %p99
        $region34: #{my_neural_network_forward.1} parent=27 // pred_check_branch
          %311 = sbr.rel (%p309) target = $region36
        $region35: #{my_neural_network_forward.1} parent=27 // pred_region
          %s312 = sand.u32 %s24, 1
          %s313 = scalar_lea.sflag [#allocation8], %s312
          %s314 = sand.u32 %s89, 1
          %s315 = smul.addr %s314, 8
          %s316 = scalar_lea.vmem [#allocation7], %s315
          %p317 = scmp.lt.s32.totalorder %s24, 1
          %s318 = scalar_select %p317, %s24, 1
          %s319 = smul.u32 8, %s318
          %s321 = ssub.s32 128, 128
          %322 = vsyncadd %s313, %s321
          %s323 = smul.addr %s319, 16
          %s324 = scalar_lea.hbm %s2, %s323
          %s326 = sshll.u32 %s316, 4
          %s327 = int_to_ptr.vmem [resolvable:$true] %s326
          %329 = dma.hbm_to_vmem [thread:$0]  %s324, 128, %s327, %s313
        $region36: #{my_neural_network_forward.1} parent=27 // pred_fallthru
          _
        // Predicated region
        $region37: #{my_neural_network_forward.1} parent=27 // pred_check
          %p330 = pneg %p135
        $region38: #{my_neural_network_forward.1} parent=27 // pred_check_branch
          %332 = sbr.rel (%p330) target = $region40
        $region39: #{my_neural_network_forward.1} parent=27 // pred_region
          %s333 = sand.u32 %s24, 1
          %s334 = scalar_lea.sflag [#allocation8], %s333
          %s335 = sand.u32 %s125, 1
          %s336 = smul.addr %s335, 8192
          %s337 = scalar_lea.vmem [#allocation9], %s336
          %s338 = ssub.s32 %s24, 2
          %p339 = scmp.lt.s32.totalorder %s338, 1
          %s340 = scalar_select %p339, %s338, 1
          %p341 = scmp.gt.s32.totalorder %s340, 0
          %s342 = scalar_select %p341, %s340, 0
          %s343 = smul.u32 8, %s342
          %s345 = ssub.s32 131072, 131072
          %346 = vsyncadd %s334, %s345
          %s347 = smul.addr %s343, 64
          %s348 = scalar_lea.hbm %s3, %s347
          %s349 = sshll.u32 %s337, 4
          %s350 = int_to_ptr.vmem [resolvable:$true] %s349
          %355 = dma.hbm_to_vmem [thread:$0]  %s348, 131072, %s350, %s334, 1024, 512, 32
        $region40: #{my_neural_network_forward.1} parent=27 // pred_fallthru
          _
        // Predicated region
        $region41: #{my_neural_network_forward.1} parent=27 // pred_check
          %p356 = pneg %p171
        $region42: #{my_neural_network_forward.1} parent=27 // pred_check_branch
          %358 = sbr.rel (%p356) target = $region44
        $region43: #{my_neural_network_forward.1} parent=27 // pred_region
          %s359 = sand.u32 %s24, 1
          %s360 = scalar_lea.sflag [#allocation11], %s359
          %s361 = sand.u32 %s161, 1
          %s362 = smul.addr %s361, 8
          %s363 = scalar_lea.vmem [#allocation10], %s362
          %s364 = ssub.s32 %s24, 2
          %p365 = scmp.lt.s32.totalorder %s364, 1
          %s366 = scalar_select %p365, %s364, 1
          %p367 = scmp.gt.s32.totalorder %s366, 0
          %s368 = scalar_select %p367, %s366, 0
          %s369 = smul.u32 8, %s368
          %s371 = ssub.s32 128, 128
          %372 = vsyncadd %s360, %s371
          %s373 = smul.addr %s369, 16
          %s374 = scalar_lea.hbm %s4, %s373
          %s376 = sshll.u32 %s363, 4
          %s377 = int_to_ptr.vmem [resolvable:$true] %s376
          %379 = dma.hbm_to_vmem [thread:$0]  %s374, 128, %s377, %s360
        $region44: #{my_neural_network_forward.1} parent=27 // pred_fallthru
          _
      $region28: #{my_neural_network_forward.1} parent=5 // pred_fallthru
        _
      %p380 = scmp.le.s32.totalorder 1, %s24
      %p381 = scmp.lt.s32.totalorder %s24, 6
      %p382 = pnand %p380, %p381
      %p383 = pneg %p382
      // Predicated region
      $region45: #{my_neural_network_forward.1} parent=5 // pred_check
        _
      $region46: #{my_neural_network_forward.1} parent=5 // pred_check_branch
        %385 = sbr.rel (%p382) target = $region48
      $region47: #{my_neural_network_forward.1} parent=5 // pred_region
        %s386 = ssub.s32 %s24, 1
        %s387 = sand.u32 %s62, 1
        %s388 = scalar_lea.sflag [#allocation5], %s387
        %s389 = sand.u32 %s62, 1
        %s390 = smul.addr %s389, 3584
        %s391 = scalar_lea.vmem [#allocation4], %s390
        // Predicated region
        $region49: #{my_neural_network_forward.1} parent=47 // pred_check
          %p392 = pneg %p75
        $region50: #{my_neural_network_forward.1} parent=47 // pred_check_branch
          %394 = sbr.rel (%p392) target = $region52
        $region51: #{my_neural_network_forward.1} parent=47 // pred_region
          %395 = dma.done %s388, 57344
        $region52: #{my_neural_network_forward.1} parent=47 // pred_fallthru
          _
        %s396 = sand.u32 %s29, 1
        %s397 = scalar_lea.sflag [#allocation8], %s396
        %s398 = sand.u32 %s92, 1
        %s399 = smul.addr %s398, 8
        %s400 = scalar_lea.vmem [#allocation7], %s399
        // Predicated region
        $region53: #{my_neural_network_forward.1} parent=47 // pred_check
          %p401 = pneg %p105
        $region54: #{my_neural_network_forward.1} parent=47 // pred_check_branch
          %403 = sbr.rel (%p401) target = $region56
        $region55: #{my_neural_network_forward.1} parent=47 // pred_region
          %404 = dma.done %s397, 128
        $region56: #{my_neural_network_forward.1} parent=47 // pred_fallthru
          _
        %s405 = sand.u32 %s29, 1
        %s406 = scalar_lea.sflag [#allocation8], %s405
        %s407 = sand.u32 %s128, 1
        %s408 = smul.addr %s407, 8192
        %s409 = scalar_lea.vmem [#allocation9], %s408
        // Predicated region
        $region57: #{my_neural_network_forward.1} parent=47 // pred_check
          %p410 = pneg %p141
        $region58: #{my_neural_network_forward.1} parent=47 // pred_check_branch
          %412 = sbr.rel (%p410) target = $region60
        $region59: #{my_neural_network_forward.1} parent=47 // pred_region
          %413 = dma.done %s406, 131072
        $region60: #{my_neural_network_forward.1} parent=47 // pred_fallthru
          _
        %s414 = sand.u32 %s29, 1
        %s415 = scalar_lea.sflag [#allocation11], %s414
        %s416 = sand.u32 %s164, 1
        %s417 = smul.addr %s416, 8
        %s418 = scalar_lea.vmem [#allocation10], %s417
        // Predicated region
        $region61: #{my_neural_network_forward.1} parent=47 // pred_check
          %p419 = pneg %p177
        $region62: #{my_neural_network_forward.1} parent=47 // pred_check_branch
          %421 = sbr.rel (%p419) target = $region64
        $region63: #{my_neural_network_forward.1} parent=47 // pred_region
          %422 = dma.done %s415, 128
        $region64: #{my_neural_network_forward.1} parent=47 // pred_fallthru
          _
        // Predicated region
        $region65: #{my_neural_network_forward.1} parent=47 // pred_check
          %p423 = pneg %p198
        $region66: #{my_neural_network_forward.1} parent=47 // pred_check_branch
          %425 = sbr.rel (%p423) target = $region68
        $region67: #{my_neural_network_forward.1} parent=47 // pred_region
          %426 = dma.done [#allocation11], 16384
        $region68: #{my_neural_network_forward.1} parent=47 // pred_fallthru
          _
        // Predicated region
        $region69: #{my_neural_network_forward.1} parent=47 // pred_check
          %p427 = pneg %p219
        $region70: #{my_neural_network_forward.1} parent=47 // pred_check_branch
          %429 = sbr.rel (%p427) target = $region72
        $region71: #{my_neural_network_forward.1} parent=47 // pred_region
          %430 = dma.done [#allocation14], 16
        $region72: #{my_neural_network_forward.1} parent=47 // pred_fallthru
          _
        %p431 = pneg %p45
        %p432 = pneg %p42
        %s433 = sand.u32 %s62, 1
        %s434 = scalar_lea.sflag [#allocation5], %s433
        %s435 = sand.u32 %s62, 1
        %s436 = smul.addr %s435, 3584
        %s437 = scalar_lea.vmem [#allocation4], %s436
        %p438 = pneg %p75
        %p439 = pneg %p72
        %s440 = sand.u32 %s29, 1
        %s441 = scalar_lea.sflag [#allocation8], %s440
        %s442 = sand.u32 %s92, 1
        %s443 = smul.addr %s442, 8
        %s444 = scalar_lea.vmem [#allocation7], %s443
        %p445 = pneg %p105
        %p446 = pneg %p102
        %s447 = sand.u32 %s29, 1
        %s448 = scalar_lea.sflag [#allocation8], %s447
        %s449 = sand.u32 %s128, 1
        %s450 = smul.addr %s449, 8192
        %s451 = scalar_lea.vmem [#allocation9], %s450
        %p452 = pneg %p141
        %p453 = pneg %p138
        %s454 = sand.u32 %s29, 1
        %s455 = scalar_lea.sflag [#allocation11], %s454
        %s456 = sand.u32 %s164, 1
        %s457 = smul.addr %s456, 8
        %s458 = scalar_lea.vmem [#allocation10], %s457
        %p459 = pneg %p177
        %p460 = pneg %p174
        %p461 = pneg %p198
        %p462 = pneg %p195
        %p463 = pneg %p219
        %p464 = pneg %p216
        %p465 = pneg %p240
        %p466 = pneg %p237
        %p467 = scmp.lt.s32.totalorder %s29, 1
        %s468 = scalar_select %p467, %s29, 1
        %s469 = smul.u32 8, %s468
        %p470 = scmp.lt.s32.totalorder %s29, 1
        %s471 = scalar_select %p470, %s29, 1
        %s472 = smul.u32 8, %s471
        %s473 = ssub.s32 %s29, 2
        %p474 = scmp.lt.s32.totalorder %s473, 1
        %s475 = scalar_select %p474, %s473, 1
        %p476 = scmp.gt.s32.totalorder %s475, 0
        %s477 = scalar_select %p476, %s475, 0
        %s478 = smul.u32 8, %s477
        %s479 = ssub.s32 %s29, 2
        %p480 = scmp.lt.s32.totalorder %s479, 1
        %s481 = scalar_select %p480, %s479, 1
        %p482 = scmp.gt.s32.totalorder %s481, 0
        %s483 = scalar_select %p482, %s481, 0
        %s484 = smul.u32 8, %s483
        %p486 = scmp.lt.s32.totalorder %s29, 2
        // Predicated region
        $region73: #{my_neural_network_forward.1} parent=47 // pred_check
          %p487 = pneg %p486
        $region74: #{my_neural_network_forward.1} parent=47 // pred_check_branch
          %489 = sbr.rel (%p487) target = $region76
        $region75: #{my_neural_network_forward.1} parent=47 // pred_region
          %v490 = vld [vmem:[%s0] sm:$0xff]
          %v491 = vld [vmem:[%s0 + $0x8] sm:$0xff]
          %v492 = vld [vmem:[%s0 + $0x10] sm:$0xff]
          %v493 = vld [vmem:[%s0 + $0x18] sm:$0xf]
          %v494 = vld [vmem:[%s391] sm:$0xff]
          %v495 = vld [vmem:[%s391 + $0x8] sm:$0xff]
          %v496 = vld [vmem:[%s391 + $0x10] sm:$0xff]
          %v497 = vld [vmem:[%s391 + $0x18] sm:$0xff]
          %v498 = vld [vmem:[%s391 + $0x20] sm:$0xff]
          %v499 = vld [vmem:[%s391 + $0x28] sm:$0xff]
          %v500 = vld [vmem:[%s391 + $0x30] sm:$0xff]
          %v501 = vld [vmem:[%s391 + $0x38] sm:$0xff]
          %v502 = vld [vmem:[%s391 + $0x40] sm:$0xff]
          %v503 = vld [vmem:[%s391 + $0x48] sm:$0xff]
          %v504 = vld [vmem:[%s391 + $0x50] sm:$0xff]
          %v505 = vld [vmem:[%s391 + $0x58] sm:$0xff]
          %v506 = vld [vmem:[%s391 + $0x60] sm:$0xff]
          %v507 = vld [vmem:[%s391 + $0x68] sm:$0xff]
          %v508 = vld [vmem:[%s391 + $0x70] sm:$0xff]
          %v509 = vld [vmem:[%s391 + $0x78] sm:$0xff]
          %v510 = vld [vmem:[%s391 + $0x80] sm:$0xff]
          %v511 = vld [vmem:[%s391 + $0x88] sm:$0xff]
          %v512 = vld [vmem:[%s391 + $0x90] sm:$0xff]
          %v513 = vld [vmem:[%s391 + $0x98] sm:$0xff]
          %v514 = vld [vmem:[%s391 + $0xa0] sm:$0xff]
          %v515 = vld [vmem:[%s391 + $0xa8] sm:$0xff]
          %v516 = vld [vmem:[%s391 + $0xb0] sm:$0xff]
          %v517 = vld [vmem:[%s391 + $0xb8] sm:$0xff]
          %v518 = vld [vmem:[%s391 + $0xc0] sm:$0xff]
          %v519 = vld [vmem:[%s391 + $0xc8] sm:$0xff]
          %v520 = vld [vmem:[%s391 + $0xd0] sm:$0xff]
          %v521 = vld [vmem:[%s391 + $0xd8] sm:$0xff]
          %v522 = vld [vmem:[%s391 + $0xe0] sm:$0xff]
          %v523 = vld [vmem:[%s391 + $0xe8] sm:$0xff]
          %v524 = vld [vmem:[%s391 + $0xf0] sm:$0xff]
          %v525 = vld [vmem:[%s391 + $0xf8] sm:$0xff]
          %v526 = vld [vmem:[%s391 + $0x100] sm:$0xff]
          %v527 = vld [vmem:[%s391 + $0x108] sm:$0xff]
          %v528 = vld [vmem:[%s391 + $0x110] sm:$0xff]
          %v529 = vld [vmem:[%s391 + $0x118] sm:$0xff]
          %v530 = vld [vmem:[%s391 + $0x120] sm:$0xff]
          %v531 = vld [vmem:[%s391 + $0x128] sm:$0xff]
          %v532 = vld [vmem:[%s391 + $0x130] sm:$0xff]
          %v533 = vld [vmem:[%s391 + $0x138] sm:$0xff]
          %v534 = vld [vmem:[%s391 + $0x140] sm:$0xff]
          %v535 = vld [vmem:[%s391 + $0x148] sm:$0xff]
          %v536 = vld [vmem:[%s391 + $0x150] sm:$0xff]
          %v537 = vld [vmem:[%s391 + $0x158] sm:$0xff]
          %v538 = vld [vmem:[%s391 + $0x160] sm:$0xff]
          %v539 = vld [vmem:[%s391 + $0x168] sm:$0xff]
          %v540 = vld [vmem:[%s391 + $0x170] sm:$0xff]
          %v541 = vld [vmem:[%s391 + $0x178] sm:$0xff]
          %v542 = vld [vmem:[%s391 + $0x180] sm:$0xff]
          %v543 = vld [vmem:[%s391 + $0x188] sm:$0xff]
          %v544 = vld [vmem:[%s391 + $0x190] sm:$0xff]
          %v545 = vld [vmem:[%s391 + $0x198] sm:$0xff]
          %v546 = vld [vmem:[%s391 + $0x1a0] sm:$0xff]
          %v547 = vld [vmem:[%s391 + $0x1a8] sm:$0xff]
          %v548 = vld [vmem:[%s391 + $0x1b0] sm:$0xff]
          %v549 = vld [vmem:[%s391 + $0x1b8] sm:$0xff]
          %v550 = vld [vmem:[%s391 + $0x1c0] sm:$0xff]
          %v551 = vld [vmem:[%s391 + $0x1c8] sm:$0xff]
          %v552 = vld [vmem:[%s391 + $0x1d0] sm:$0xff]
          %v553 = vld [vmem:[%s391 + $0x1d8] sm:$0xff]
          %v554 = vld [vmem:[%s391 + $0x1e0] sm:$0xff]
          %v555 = vld [vmem:[%s391 + $0x1e8] sm:$0xff]
          %v556 = vld [vmem:[%s391 + $0x1f0] sm:$0xff]
          %v557 = vld [vmem:[%s391 + $0x1f8] sm:$0xff]
          %v558 = vld [vmem:[%s391 + $0x200] sm:$0xff]
          %v559 = vld [vmem:[%s391 + $0x208] sm:$0xff]
          %v560 = vld [vmem:[%s391 + $0x210] sm:$0xff]
          %v561 = vld [vmem:[%s391 + $0x218] sm:$0xff]
          %v562 = vld [vmem:[%s391 + $0x220] sm:$0xff]
          %v563 = vld [vmem:[%s391 + $0x228] sm:$0xff]
          %v564 = vld [vmem:[%s391 + $0x230] sm:$0xff]
          %v565 = vld [vmem:[%s391 + $0x238] sm:$0xff]
          %v566 = vld [vmem:[%s391 + $0x240] sm:$0xff]
          %v567 = vld [vmem:[%s391 + $0x248] sm:$0xff]
          %v568 = vld [vmem:[%s391 + $0x250] sm:$0xff]
          %v569 = vld [vmem:[%s391 + $0x258] sm:$0xff]
          %v570 = vld [vmem:[%s391 + $0x260] sm:$0xff]
          %v571 = vld [vmem:[%s391 + $0x268] sm:$0xff]
          %v572 = vld [vmem:[%s391 + $0x270] sm:$0xff]
          %v573 = vld [vmem:[%s391 + $0x278] sm:$0xff]
          %v574 = vld [vmem:[%s391 + $0x280] sm:$0xff]
          %v575 = vld [vmem:[%s391 + $0x288] sm:$0xff]
          %v576 = vld [vmem:[%s391 + $0x290] sm:$0xff]
          %v577 = vld [vmem:[%s391 + $0x298] sm:$0xff]
          %v578 = vld [vmem:[%s391 + $0x2a0] sm:$0xff]
          %v579 = vld [vmem:[%s391 + $0x2a8] sm:$0xff]
          %v580 = vld [vmem:[%s391 + $0x2b0] sm:$0xff]
          %v581 = vld [vmem:[%s391 + $0x2b8] sm:$0xff]
          %v582 = vld [vmem:[%s391 + $0x2c0] sm:$0xff]
          %v583 = vld [vmem:[%s391 + $0x2c8] sm:$0xff]
          %v584 = vld [vmem:[%s391 + $0x2d0] sm:$0xff]
          %v585 = vld [vmem:[%s391 + $0x2d8] sm:$0xff]
          %v586 = vld [vmem:[%s391 + $0x2e0] sm:$0xff]
          %v587 = vld [vmem:[%s391 + $0x2e8] sm:$0xff]
          %v588 = vld [vmem:[%s391 + $0x2f0] sm:$0xff]
          %v589 = vld [vmem:[%s391 + $0x2f8] sm:$0xff]
          %v590 = vld [vmem:[%s391 + $0x300] sm:$0xff]
          %v591 = vld [vmem:[%s391 + $0x308] sm:$0xff]
          %v592 = vld [vmem:[%s391 + $0x310] sm:$0xff]
          %v593 = vld [vmem:[%s391 + $0x318] sm:$0xff]
          %v594 = vld [vmem:[%s391 + $0x320] sm:$0xff]
          %v595 = vld [vmem:[%s391 + $0x328] sm:$0xff]
          %v596 = vld [vmem:[%s391 + $0x330] sm:$0xff]
          %v597 = vld [vmem:[%s391 + $0x338] sm:$0xff]
          %v598 = vld [vmem:[%s391 + $0x340] sm:$0xff]
          %v599 = vld [vmem:[%s391 + $0x348] sm:$0xff]
          %v600 = vld [vmem:[%s391 + $0x350] sm:$0xff]
          %v601 = vld [vmem:[%s391 + $0x358] sm:$0xff]
          %v602 = vld [vmem:[%s391 + $0x360] sm:$0xff]
          %v603 = vld [vmem:[%s391 + $0x368] sm:$0xff]
          %v604 = vld [vmem:[%s391 + $0x370] sm:$0xff]
          %v605 = vld [vmem:[%s391 + $0x378] sm:$0xff]
          %v606 = vld [vmem:[%s391 + $0x380] sm:$0xff]
          %v607 = vld [vmem:[%s391 + $0x388] sm:$0xff]
          %v608 = vld [vmem:[%s391 + $0x390] sm:$0xff]
          %v609 = vld [vmem:[%s391 + $0x398] sm:$0xff]
          %v610 = vld [vmem:[%s391 + $0x3a0] sm:$0xff]
          %v611 = vld [vmem:[%s391 + $0x3a8] sm:$0xff]
          %v612 = vld [vmem:[%s391 + $0x3b0] sm:$0xff]
          %v613 = vld [vmem:[%s391 + $0x3b8] sm:$0xff]
          %v614 = vld [vmem:[%s391 + $0x3c0] sm:$0xff]
          %v615 = vld [vmem:[%s391 + $0x3c8] sm:$0xff]
          %v616 = vld [vmem:[%s391 + $0x3d0] sm:$0xff]
          %v617 = vld [vmem:[%s391 + $0x3d8] sm:$0xff]
          %v618 = vld [vmem:[%s391 + $0x3e0] sm:$0xff]
          %v619 = vld [vmem:[%s391 + $0x3e8] sm:$0xff]
          %v620 = vld [vmem:[%s391 + $0x3f0] sm:$0xff]
          %v621 = vld [vmem:[%s391 + $0x3f8] sm:$0xff]
          %v622 = vld [vmem:[%s391 + $0x400] sm:$0xff]
          %v623 = vld [vmem:[%s391 + $0x408] sm:$0xff]
          %v624 = vld [vmem:[%s391 + $0x410] sm:$0xff]
          %v625 = vld [vmem:[%s391 + $0x418] sm:$0xff]
          %v626 = vld [vmem:[%s391 + $0x420] sm:$0xff]
          %v627 = vld [vmem:[%s391 + $0x428] sm:$0xff]
          %v628 = vld [vmem:[%s391 + $0x430] sm:$0xff]
          %v629 = vld [vmem:[%s391 + $0x438] sm:$0xff]
          %v630 = vld [vmem:[%s391 + $0x440] sm:$0xff]
          %v631 = vld [vmem:[%s391 + $0x448] sm:$0xff]
          %v632 = vld [vmem:[%s391 + $0x450] sm:$0xff]
          %v633 = vld [vmem:[%s391 + $0x458] sm:$0xff]
          %v634 = vld [vmem:[%s391 + $0x460] sm:$0xff]
          %v635 = vld [vmem:[%s391 + $0x468] sm:$0xff]
          %v636 = vld [vmem:[%s391 + $0x470] sm:$0xff]
          %v637 = vld [vmem:[%s391 + $0x478] sm:$0xff]
          %v638 = vld [vmem:[%s391 + $0x480] sm:$0xff]
          %v639 = vld [vmem:[%s391 + $0x488] sm:$0xff]
          %v640 = vld [vmem:[%s391 + $0x490] sm:$0xff]
          %v641 = vld [vmem:[%s391 + $0x498] sm:$0xff]
          %v642 = vld [vmem:[%s391 + $0x4a0] sm:$0xff]
          %v643 = vld [vmem:[%s391 + $0x4a8] sm:$0xff]
          %v644 = vld [vmem:[%s391 + $0x4b0] sm:$0xff]
          %v645 = vld [vmem:[%s391 + $0x4b8] sm:$0xff]
          %v646 = vld [vmem:[%s391 + $0x4c0] sm:$0xff]
          %v647 = vld [vmem:[%s391 + $0x4c8] sm:$0xff]
          %v648 = vld [vmem:[%s391 + $0x4d0] sm:$0xff]
          %v649 = vld [vmem:[%s391 + $0x4d8] sm:$0xff]
          %v650 = vld [vmem:[%s391 + $0x4e0] sm:$0xff]
          %v651 = vld [vmem:[%s391 + $0x4e8] sm:$0xff]
          %v652 = vld [vmem:[%s391 + $0x4f0] sm:$0xff]
          %v653 = vld [vmem:[%s391 + $0x4f8] sm:$0xff]
          %v654 = vld [vmem:[%s391 + $0x500] sm:$0xff]
          %v655 = vld [vmem:[%s391 + $0x508] sm:$0xff]
          %v656 = vld [vmem:[%s391 + $0x510] sm:$0xff]
          %v657 = vld [vmem:[%s391 + $0x518] sm:$0xff]
          %v658 = vld [vmem:[%s391 + $0x520] sm:$0xff]
          %v659 = vld [vmem:[%s391 + $0x528] sm:$0xff]
          %v660 = vld [vmem:[%s391 + $0x530] sm:$0xff]
          %v661 = vld [vmem:[%s391 + $0x538] sm:$0xff]
          %v662 = vld [vmem:[%s391 + $0x540] sm:$0xff]
          %v663 = vld [vmem:[%s391 + $0x548] sm:$0xff]
          %v664 = vld [vmem:[%s391 + $0x550] sm:$0xff]
          %v665 = vld [vmem:[%s391 + $0x558] sm:$0xff]
          %v666 = vld [vmem:[%s391 + $0x560] sm:$0xff]
          %v667 = vld [vmem:[%s391 + $0x568] sm:$0xff]
          %v668 = vld [vmem:[%s391 + $0x570] sm:$0xff]
          %v669 = vld [vmem:[%s391 + $0x578] sm:$0xff]
          %v670 = vld [vmem:[%s391 + $0x580] sm:$0xff]
          %v671 = vld [vmem:[%s391 + $0x588] sm:$0xff]
          %v672 = vld [vmem:[%s391 + $0x590] sm:$0xff]
          %v673 = vld [vmem:[%s391 + $0x598] sm:$0xff]
          %v674 = vld [vmem:[%s391 + $0x5a0] sm:$0xff]
          %v675 = vld [vmem:[%s391 + $0x5a8] sm:$0xff]
          %v676 = vld [vmem:[%s391 + $0x5b0] sm:$0xff]
          %v677 = vld [vmem:[%s391 + $0x5b8] sm:$0xff]
          %v678 = vld [vmem:[%s391 + $0x5c0] sm:$0xff]
          %v679 = vld [vmem:[%s391 + $0x5c8] sm:$0xff]
          %v680 = vld [vmem:[%s391 + $0x5d0] sm:$0xff]
          %v681 = vld [vmem:[%s391 + $0x5d8] sm:$0xff]
          %v682 = vld [vmem:[%s391 + $0x5e0] sm:$0xff]
          %v683 = vld [vmem:[%s391 + $0x5e8] sm:$0xff]
          %v684 = vld [vmem:[%s391 + $0x5f0] sm:$0xff]
          %v685 = vld [vmem:[%s391 + $0x5f8] sm:$0xff]
          %v686 = vld [vmem:[%s391 + $0x600] sm:$0xff]
          %v687 = vld [vmem:[%s391 + $0x608] sm:$0xff]
          %v688 = vld [vmem:[%s391 + $0x610] sm:$0xff]
          %v689 = vld [vmem:[%s391 + $0x618] sm:$0xff]
          %v690 = vld [vmem:[%s391 + $0x620] sm:$0xff]
          %v691 = vld [vmem:[%s391 + $0x628] sm:$0xff]
          %v692 = vld [vmem:[%s391 + $0x630] sm:$0xff]
          %v693 = vld [vmem:[%s391 + $0x638] sm:$0xff]
          %v694 = vld [vmem:[%s391 + $0x640] sm:$0xff]
          %v695 = vld [vmem:[%s391 + $0x648] sm:$0xff]
          %v696 = vld [vmem:[%s391 + $0x650] sm:$0xff]
          %v697 = vld [vmem:[%s391 + $0x658] sm:$0xff]
          %v698 = vld [vmem:[%s391 + $0x660] sm:$0xff]
          %v699 = vld [vmem:[%s391 + $0x668] sm:$0xff]
          %v700 = vld [vmem:[%s391 + $0x670] sm:$0xff]
          %v701 = vld [vmem:[%s391 + $0x678] sm:$0xff]
          %v702 = vld [vmem:[%s391 + $0x680] sm:$0xff]
          %v703 = vld [vmem:[%s391 + $0x688] sm:$0xff]
          %v704 = vld [vmem:[%s391 + $0x690] sm:$0xff]
          %v705 = vld [vmem:[%s391 + $0x698] sm:$0xff]
          %v706 = vld [vmem:[%s391 + $0x6a0] sm:$0xff]
          %v707 = vld [vmem:[%s391 + $0x6a8] sm:$0xff]
          %v708 = vld [vmem:[%s391 + $0x6b0] sm:$0xff]
          %v709 = vld [vmem:[%s391 + $0x6b8] sm:$0xff]
          %v710 = vld [vmem:[%s391 + $0x6c0] sm:$0xff]
          %v711 = vld [vmem:[%s391 + $0x6c8] sm:$0xff]
          %v712 = vld [vmem:[%s391 + $0x6d0] sm:$0xff]
          %v713 = vld [vmem:[%s391 + $0x6d8] sm:$0xff]
          %v714 = vld [vmem:[%s391 + $0x6e0] sm:$0xff]
          %v715 = vld [vmem:[%s391 + $0x6e8] sm:$0xff]
          %v716 = vld [vmem:[%s391 + $0x6f0] sm:$0xff]
          %v717 = vld [vmem:[%s391 + $0x6f8] sm:$0xff]
          %v718 = vld [vmem:[%s391 + $0x700] sm:$0xff]
          %v719 = vld [vmem:[%s391 + $0x708] sm:$0xff]
          %v720 = vld [vmem:[%s391 + $0x710] sm:$0xff]
          %v721 = vld [vmem:[%s391 + $0x718] sm:$0xff]
          %v722 = vld [vmem:[%s391 + $0x720] sm:$0xff]
          %v723 = vld [vmem:[%s391 + $0x728] sm:$0xff]
          %v724 = vld [vmem:[%s391 + $0x730] sm:$0xff]
          %v725 = vld [vmem:[%s391 + $0x738] sm:$0xff]
          %v726 = vld [vmem:[%s391 + $0x740] sm:$0xff]
          %v727 = vld [vmem:[%s391 + $0x748] sm:$0xff]
          %v728 = vld [vmem:[%s391 + $0x750] sm:$0xff]
          %v729 = vld [vmem:[%s391 + $0x758] sm:$0xff]
          %v730 = vld [vmem:[%s391 + $0x760] sm:$0xff]
          %v731 = vld [vmem:[%s391 + $0x768] sm:$0xff]
          %v732 = vld [vmem:[%s391 + $0x770] sm:$0xff]
          %v733 = vld [vmem:[%s391 + $0x778] sm:$0xff]
          %v734 = vld [vmem:[%s391 + $0x780] sm:$0xff]
          %v735 = vld [vmem:[%s391 + $0x788] sm:$0xff]
          %v736 = vld [vmem:[%s391 + $0x790] sm:$0xff]
          %v737 = vld [vmem:[%s391 + $0x798] sm:$0xff]
          %v738 = vld [vmem:[%s391 + $0x7a0] sm:$0xff]
          %v739 = vld [vmem:[%s391 + $0x7a8] sm:$0xff]
          %v740 = vld [vmem:[%s391 + $0x7b0] sm:$0xff]
          %v741 = vld [vmem:[%s391 + $0x7b8] sm:$0xff]
          %v742 = vld [vmem:[%s391 + $0x7c0] sm:$0xff]
          %v743 = vld [vmem:[%s391 + $0x7c8] sm:$0xff]
          %v744 = vld [vmem:[%s391 + $0x7d0] sm:$0xff]
          %v745 = vld [vmem:[%s391 + $0x7d8] sm:$0xff]
          %v746 = vld [vmem:[%s391 + $0x7e0] sm:$0xff]
          %v747 = vld [vmem:[%s391 + $0x7e8] sm:$0xff]
          %v748 = vld [vmem:[%s391 + $0x7f0] sm:$0xff]
          %v749 = vld [vmem:[%s391 + $0x7f8] sm:$0xff]
          %v750 = vld [vmem:[%s391 + $0x800] sm:$0xff]
          %v751 = vld [vmem:[%s391 + $0x808] sm:$0xff]
          %v752 = vld [vmem:[%s391 + $0x810] sm:$0xff]
          %v753 = vld [vmem:[%s391 + $0x818] sm:$0xff]
          %v754 = vld [vmem:[%s391 + $0x820] sm:$0xff]
          %v755 = vld [vmem:[%s391 + $0x828] sm:$0xff]
          %v756 = vld [vmem:[%s391 + $0x830] sm:$0xff]
          %v757 = vld [vmem:[%s391 + $0x838] sm:$0xff]
          %v758 = vld [vmem:[%s391 + $0x840] sm:$0xff]
          %v759 = vld [vmem:[%s391 + $0x848] sm:$0xff]
          %v760 = vld [vmem:[%s391 + $0x850] sm:$0xff]
          %v761 = vld [vmem:[%s391 + $0x858] sm:$0xff]
          %v762 = vld [vmem:[%s391 + $0x860] sm:$0xff]
          %v763 = vld [vmem:[%s391 + $0x868] sm:$0xff]
          %v764 = vld [vmem:[%s391 + $0x870] sm:$0xff]
          %v765 = vld [vmem:[%s391 + $0x878] sm:$0xff]
          %v766 = vld [vmem:[%s391 + $0x880] sm:$0xff]
          %v767 = vld [vmem:[%s391 + $0x888] sm:$0xff]
          %v768 = vld [vmem:[%s391 + $0x890] sm:$0xff]
          %v769 = vld [vmem:[%s391 + $0x898] sm:$0xff]
          %v770 = vld [vmem:[%s391 + $0x8a0] sm:$0xff]
          %v771 = vld [vmem:[%s391 + $0x8a8] sm:$0xff]
          %v772 = vld [vmem:[%s391 + $0x8b0] sm:$0xff]
          %v773 = vld [vmem:[%s391 + $0x8b8] sm:$0xff]
          %v774 = vld [vmem:[%s391 + $0x8c0] sm:$0xff]
          %v775 = vld [vmem:[%s391 + $0x8c8] sm:$0xff]
          %v776 = vld [vmem:[%s391 + $0x8d0] sm:$0xff]
          %v777 = vld [vmem:[%s391 + $0x8d8] sm:$0xff]
          %v778 = vld [vmem:[%s391 + $0x8e0] sm:$0xff]
          %v779 = vld [vmem:[%s391 + $0x8e8] sm:$0xff]
          %v780 = vld [vmem:[%s391 + $0x8f0] sm:$0xff]
          %v781 = vld [vmem:[%s391 + $0x8f8] sm:$0xff]
          %v782 = vld [vmem:[%s391 + $0x900] sm:$0xff]
          %v783 = vld [vmem:[%s391 + $0x908] sm:$0xff]
          %v784 = vld [vmem:[%s391 + $0x910] sm:$0xff]
          %v785 = vld [vmem:[%s391 + $0x918] sm:$0xff]
          %v786 = vld [vmem:[%s391 + $0x920] sm:$0xff]
          %v787 = vld [vmem:[%s391 + $0x928] sm:$0xff]
          %v788 = vld [vmem:[%s391 + $0x930] sm:$0xff]
          %v789 = vld [vmem:[%s391 + $0x938] sm:$0xff]
          %v790 = vld [vmem:[%s391 + $0x940] sm:$0xff]
          %v791 = vld [vmem:[%s391 + $0x948] sm:$0xff]
          %v792 = vld [vmem:[%s391 + $0x950] sm:$0xff]
          %v793 = vld [vmem:[%s391 + $0x958] sm:$0xff]
          %v794 = vld [vmem:[%s391 + $0x960] sm:$0xff]
          %v795 = vld [vmem:[%s391 + $0x968] sm:$0xff]
          %v796 = vld [vmem:[%s391 + $0x970] sm:$0xff]
          %v797 = vld [vmem:[%s391 + $0x978] sm:$0xff]
          %v798 = vld [vmem:[%s391 + $0x980] sm:$0xff]
          %v799 = vld [vmem:[%s391 + $0x988] sm:$0xff]
          %v800 = vld [vmem:[%s391 + $0x990] sm:$0xff]
          %v801 = vld [vmem:[%s391 + $0x998] sm:$0xff]
          %v802 = vld [vmem:[%s391 + $0x9a0] sm:$0xff]
          %v803 = vld [vmem:[%s391 + $0x9a8] sm:$0xff]
          %v804 = vld [vmem:[%s391 + $0x9b0] sm:$0xff]
          %v805 = vld [vmem:[%s391 + $0x9b8] sm:$0xff]
          %v806 = vld [vmem:[%s391 + $0x9c0] sm:$0xff]
          %v807 = vld [vmem:[%s391 + $0x9c8] sm:$0xff]
          %v808 = vld [vmem:[%s391 + $0x9d0] sm:$0xff]
          %v809 = vld [vmem:[%s391 + $0x9d8] sm:$0xff]
          %v810 = vld [vmem:[%s391 + $0x9e0] sm:$0xff]
          %v811 = vld [vmem:[%s391 + $0x9e8] sm:$0xff]
          %v812 = vld [vmem:[%s391 + $0x9f0] sm:$0xff]
          %v813 = vld [vmem:[%s391 + $0x9f8] sm:$0xff]
          %v814 = vld [vmem:[%s391 + $0xa00] sm:$0xff]
          %v815 = vld [vmem:[%s391 + $0xa08] sm:$0xff]
          %v816 = vld [vmem:[%s391 + $0xa10] sm:$0xff]
          %v817 = vld [vmem:[%s391 + $0xa18] sm:$0xff]
          %v818 = vld [vmem:[%s391 + $0xa20] sm:$0xff]
          %v819 = vld [vmem:[%s391 + $0xa28] sm:$0xff]
          %v820 = vld [vmem:[%s391 + $0xa30] sm:$0xff]
          %v821 = vld [vmem:[%s391 + $0xa38] sm:$0xff]
          %v822 = vld [vmem:[%s391 + $0xa40] sm:$0xff]
          %v823 = vld [vmem:[%s391 + $0xa48] sm:$0xff]
          %v824 = vld [vmem:[%s391 + $0xa50] sm:$0xff]
          %v825 = vld [vmem:[%s391 + $0xa58] sm:$0xff]
          %v826 = vld [vmem:[%s391 + $0xa60] sm:$0xff]
          %v827 = vld [vmem:[%s391 + $0xa68] sm:$0xff]
          %v828 = vld [vmem:[%s391 + $0xa70] sm:$0xff]
          %v829 = vld [vmem:[%s391 + $0xa78] sm:$0xff]
          %v830 = vld [vmem:[%s391 + $0xa80] sm:$0xff]
          %v831 = vld [vmem:[%s391 + $0xa88] sm:$0xff]
          %v832 = vld [vmem:[%s391 + $0xa90] sm:$0xff]
          %v833 = vld [vmem:[%s391 + $0xa98] sm:$0xff]
          %v834 = vld [vmem:[%s391 + $0xaa0] sm:$0xff]
          %v835 = vld [vmem:[%s391 + $0xaa8] sm:$0xff]
          %v836 = vld [vmem:[%s391 + $0xab0] sm:$0xff]
          %v837 = vld [vmem:[%s391 + $0xab8] sm:$0xff]
          %v838 = vld [vmem:[%s391 + $0xac0] sm:$0xff]
          %v839 = vld [vmem:[%s391 + $0xac8] sm:$0xff]
          %v840 = vld [vmem:[%s391 + $0xad0] sm:$0xff]
          %v841 = vld [vmem:[%s391 + $0xad8] sm:$0xff]
          %v842 = vld [vmem:[%s391 + $0xae0] sm:$0xff]
          %v843 = vld [vmem:[%s391 + $0xae8] sm:$0xff]
          %v844 = vld [vmem:[%s391 + $0xaf0] sm:$0xff]
          %v845 = vld [vmem:[%s391 + $0xaf8] sm:$0xff]
          %v846 = vld [vmem:[%s391 + $0xb00] sm:$0xff]
          %v847 = vld [vmem:[%s391 + $0xb08] sm:$0xff]
          %v848 = vld [vmem:[%s391 + $0xb10] sm:$0xff]
          %v849 = vld [vmem:[%s391 + $0xb18] sm:$0xff]
          %v850 = vld [vmem:[%s391 + $0xb20] sm:$0xff]
          %v851 = vld [vmem:[%s391 + $0xb28] sm:$0xff]
          %v852 = vld [vmem:[%s391 + $0xb30] sm:$0xff]
          %v853 = vld [vmem:[%s391 + $0xb38] sm:$0xff]
          %v854 = vld [vmem:[%s391 + $0xb40] sm:$0xff]
          %v855 = vld [vmem:[%s391 + $0xb48] sm:$0xff]
          %v856 = vld [vmem:[%s391 + $0xb50] sm:$0xff]
          %v857 = vld [vmem:[%s391 + $0xb58] sm:$0xff]
          %v858 = vld [vmem:[%s391 + $0xb60] sm:$0xff]
          %v859 = vld [vmem:[%s391 + $0xb68] sm:$0xff]
          %v860 = vld [vmem:[%s391 + $0xb70] sm:$0xff]
          %v861 = vld [vmem:[%s391 + $0xb78] sm:$0xff]
          %v862 = vld [vmem:[%s391 + $0xb80] sm:$0xff]
          %v863 = vld [vmem:[%s391 + $0xb88] sm:$0xff]
          %v864 = vld [vmem:[%s391 + $0xb90] sm:$0xff]
          %v865 = vld [vmem:[%s391 + $0xb98] sm:$0xff]
          %v866 = vld [vmem:[%s391 + $0xba0] sm:$0xff]
          %v867 = vld [vmem:[%s391 + $0xba8] sm:$0xff]
          %v868 = vld [vmem:[%s391 + $0xbb0] sm:$0xff]
          %v869 = vld [vmem:[%s391 + $0xbb8] sm:$0xff]
          %v870 = vld [vmem:[%s391 + $0xbc0] sm:$0xff]
          %v871 = vld [vmem:[%s391 + $0xbc8] sm:$0xff]
          %v872 = vld [vmem:[%s391 + $0xbd0] sm:$0xff]
          %v873 = vld [vmem:[%s391 + $0xbd8] sm:$0xff]
          %v874 = vld [vmem:[%s391 + $0xbe0] sm:$0xff]
          %v875 = vld [vmem:[%s391 + $0xbe8] sm:$0xff]
          %v876 = vld [vmem:[%s391 + $0xbf0] sm:$0xff]
          %v877 = vld [vmem:[%s391 + $0xbf8] sm:$0xff]
          %v878 = vld [vmem:[%s391 + $0xc00] sm:$0xff]
          %v879 = vld [vmem:[%s391 + $0xc08] sm:$0xff]
          %v880 = vld [vmem:[%s391 + $0xc10] sm:$0xff]
          %v881 = vld [vmem:[%s391 + $0xc18] sm:$0xff]
          %v882 = vld [vmem:[%s391 + $0xc20] sm:$0xff]
          %v883 = vld [vmem:[%s391 + $0xc28] sm:$0xff]
          %v884 = vld [vmem:[%s391 + $0xc30] sm:$0xff]
          %v885 = vld [vmem:[%s391 + $0xc38] sm:$0xff]
          %v886 = vld [vmem:[%s391 + $0xc40] sm:$0xff]
          %v887 = vld [vmem:[%s391 + $0xc48] sm:$0xff]
          %v888 = vld [vmem:[%s391 + $0xc50] sm:$0xff]
          %v889 = vld [vmem:[%s391 + $0xc58] sm:$0xff]
          %v890 = vld [vmem:[%s391 + $0xc60] sm:$0xff]
          %v891 = vld [vmem:[%s391 + $0xc68] sm:$0xff]
          %v892 = vld [vmem:[%s391 + $0xc70] sm:$0xff]
          %v893 = vld [vmem:[%s391 + $0xc78] sm:$0xff]
          %v894 = vld [vmem:[%s391 + $0xc80] sm:$0xff]
          %v895 = vld [vmem:[%s391 + $0xc88] sm:$0xff]
          %v896 = vld [vmem:[%s391 + $0xc90] sm:$0xff]
          %v897 = vld [vmem:[%s391 + $0xc98] sm:$0xff]
          %v898 = vld [vmem:[%s391 + $0xca0] sm:$0xff]
          %v899 = vld [vmem:[%s391 + $0xca8] sm:$0xff]
          %v900 = vld [vmem:[%s391 + $0xcb0] sm:$0xff]
          %v901 = vld [vmem:[%s391 + $0xcb8] sm:$0xff]
          %v902 = vld [vmem:[%s391 + $0xcc0] sm:$0xff]
          %v903 = vld [vmem:[%s391 + $0xcc8] sm:$0xff]
          %v904 = vld [vmem:[%s391 + $0xcd0] sm:$0xff]
          %v905 = vld [vmem:[%s391 + $0xcd8] sm:$0xff]
          %v906 = vld [vmem:[%s391 + $0xce0] sm:$0xff]
          %v907 = vld [vmem:[%s391 + $0xce8] sm:$0xff]
          %v908 = vld [vmem:[%s391 + $0xcf0] sm:$0xff]
          %v909 = vld [vmem:[%s391 + $0xcf8] sm:$0xff]
          %v910 = vld [vmem:[%s391 + $0xd00] sm:$0xff]
          %v911 = vld [vmem:[%s391 + $0xd08] sm:$0xff]
          %v912 = vld [vmem:[%s391 + $0xd10] sm:$0xff]
          %v913 = vld [vmem:[%s391 + $0xd18] sm:$0xff]
          %v914 = vld [vmem:[%s391 + $0xd20] sm:$0xff]
          %v915 = vld [vmem:[%s391 + $0xd28] sm:$0xff]
          %v916 = vld [vmem:[%s391 + $0xd30] sm:$0xff]
          %v917 = vld [vmem:[%s391 + $0xd38] sm:$0xff]
          %v918 = vld [vmem:[%s391 + $0xd40] sm:$0xff]
          %v919 = vld [vmem:[%s391 + $0xd48] sm:$0xff]
          %v920 = vld [vmem:[%s391 + $0xd50] sm:$0xff]
          %v921 = vld [vmem:[%s391 + $0xd58] sm:$0xff]
          %v922 = vld [vmem:[%s391 + $0xd60] sm:$0xff]
          %v923 = vld [vmem:[%s391 + $0xd68] sm:$0xff]
          %v924 = vld [vmem:[%s391 + $0xd70] sm:$0xff]
          %v925 = vld [vmem:[%s391 + $0xd78] sm:$0xff]
          %v926 = vld [vmem:[%s391 + $0xd80] sm:$0xff]
          %v927 = vld [vmem:[%s391 + $0xd88] sm:$0xff]
          %v928 = vld [vmem:[%s391 + $0xd90] sm:$0xff]
          %v929 = vld [vmem:[%s391 + $0xd98] sm:$0xff]
          %v930 = vld [vmem:[%s391 + $0xda0] sm:$0xff]
          %v931 = vld [vmem:[%s391 + $0xda8] sm:$0xff]
          %v932 = vld [vmem:[%s391 + $0xdb0] sm:$0xff]
          %v933 = vld [vmem:[%s391 + $0xdb8] sm:$0xff]
          %v934 = vld [vmem:[%s391 + $0xdc0] sm:$0xff]
          %v935 = vld [vmem:[%s391 + $0xdc8] sm:$0xff]
          %v936 = vld [vmem:[%s391 + $0xdd0] sm:$0xff]
          %v937 = vld [vmem:[%s391 + $0xdd8] sm:$0xff]
          %v938 = vld [vmem:[%s391 + $0xde0] sm:$0xff]
          %v939 = vld [vmem:[%s391 + $0xde8] sm:$0xff]
          %v940 = vld [vmem:[%s391 + $0xdf0] sm:$0xff]
          %v941 = vld [vmem:[%s391 + $0xdf8] sm:$0xff]
          %v942 = vld [vmem:[%s400] sm:$0xff]
          %v944 = vlaneseq
          %v945 = vshrl.u32 %v944, 7
          %v946 = vsub.s32 0, %v945
          %v947 = vrot.slane %v942, %v946
          %v948 = vlaneseq
          %v949 = vshrl.u32 %v948, 7
          %v950 = vsub.s32 1, %v949
          %v951 = vrot.slane %v942, %v950
          %v952 = vlaneseq
          %v953 = vshrl.u32 %v952, 7
          %v954 = vsub.s32 2, %v953
          %v955 = vrot.slane %v942, %v954
          %v956 = vlaneseq
          %v957 = vshrl.u32 %v956, 7
          %v958 = vsub.s32 3, %v957
          %v959 = vrot.slane %v942, %v958
          %v960 = vlaneseq
          %v961 = vshrl.u32 %v960, 7
          %v962 = vsub.s32 4, %v961
          %v963 = vrot.slane %v942, %v962
          %v964 = vlaneseq
          %v965 = vshrl.u32 %v964, 7
          %v966 = vsub.s32 5, %v965
          %v967 = vrot.slane %v942, %v966
          %v968 = vlaneseq
          %v969 = vshrl.u32 %v968, 7
          %v970 = vsub.s32 6, %v969
          %v971 = vrot.slane %v942, %v970
          %v972 = vlaneseq
          %v973 = vshrl.u32 %v972, 7
          %v974 = vsub.s32 7, %v973
          %v975 = vrot.slane %v942, %v974
          %v988 = vunpack.c.l.b16 %v490
          %v989 = vunpack.c.h.b16 %v490
          %v990 = vunpack.c.l.b16 %v491
          %v991 = vunpack.c.h.b16 %v491
          %v992 = vunpack.c.l.b16 %v492
          %v993 = vunpack.c.h.b16 %v492
          %v994 = vunpack.c.l.b16 %v493
          %v995 = vpack.c.b16 %v988, %v988
          %v996 = vpack.c.b16 %v989, %v989
          %v997 = vpack.c.b16 %v990, %v990
          %v998 = vpack.c.b16 %v991, %v991
          %v999 = vpack.c.b16 %v992, %v992
          %v1000 = vpack.c.b16 %v993, %v993
          %v1001 = vpack.c.b16 %v994, %v994
          %v1457 = vunpack.c.l.b16 %v494
          %v1458 = vunpack.c.h.b16 %v494
          %v1459 = vunpack.c.l.b16 %v495
          %v1460 = vunpack.c.h.b16 %v495
          %v1461 = vunpack.c.l.b16 %v496
          %v1462 = vunpack.c.h.b16 %v496
          %v1463 = vunpack.c.l.b16 %v497
          %v1464 = vunpack.c.h.b16 %v497
          %v1465 = vunpack.c.l.b16 %v498
          %v1466 = vunpack.c.h.b16 %v498
          %v1467 = vunpack.c.l.b16 %v499
          %v1468 = vunpack.c.h.b16 %v499
          %v1469 = vunpack.c.l.b16 %v500
          %v1470 = vunpack.c.h.b16 %v500
          %v1471 = vunpack.c.l.b16 %v501
          %v1472 = vunpack.c.h.b16 %v501
          %v1473 = vunpack.c.l.b16 %v502
          %v1474 = vunpack.c.h.b16 %v502
          %v1475 = vunpack.c.l.b16 %v503
          %v1476 = vunpack.c.h.b16 %v503
          %v1477 = vunpack.c.l.b16 %v504
          %v1478 = vunpack.c.h.b16 %v504
          %v1479 = vunpack.c.l.b16 %v505
          %v1480 = vunpack.c.h.b16 %v505
          %v1481 = vunpack.c.l.b16 %v506
          %v1482 = vunpack.c.h.b16 %v506
          %v1483 = vunpack.c.l.b16 %v507
          %v1484 = vunpack.c.h.b16 %v507
          %v1485 = vunpack.c.l.b16 %v508
          %v1486 = vunpack.c.h.b16 %v508
          %v1487 = vunpack.c.l.b16 %v509
          %v1488 = vunpack.c.h.b16 %v509
          %v1489 = vunpack.c.l.b16 %v510
          %v1490 = vunpack.c.h.b16 %v510
          %v1491 = vunpack.c.l.b16 %v511
          %v1492 = vunpack.c.h.b16 %v511
          %v1493 = vunpack.c.l.b16 %v512
          %v1494 = vunpack.c.h.b16 %v512
          %v1495 = vunpack.c.l.b16 %v513
          %v1496 = vunpack.c.h.b16 %v513
          %v1497 = vunpack.c.l.b16 %v514
          %v1498 = vunpack.c.h.b16 %v514
          %v1499 = vunpack.c.l.b16 %v515
          %v1500 = vunpack.c.h.b16 %v515
          %v1501 = vunpack.c.l.b16 %v516
          %v1502 = vunpack.c.h.b16 %v516
          %v1503 = vunpack.c.l.b16 %v517
          %v1504 = vunpack.c.h.b16 %v517
          %v1505 = vunpack.c.l.b16 %v518
          %v1506 = vunpack.c.h.b16 %v518
          %v1507 = vunpack.c.l.b16 %v519
          %v1508 = vunpack.c.h.b16 %v519
          %v1509 = vunpack.c.l.b16 %v520
          %v1510 = vunpack.c.h.b16 %v520
          %v1511 = vunpack.c.l.b16 %v521
          %v1512 = vunpack.c.h.b16 %v521
          %v1513 = vunpack.c.l.b16 %v522
          %v1514 = vunpack.c.h.b16 %v522
          %v1515 = vunpack.c.l.b16 %v523
          %v1516 = vunpack.c.h.b16 %v523
          %v1517 = vunpack.c.l.b16 %v524
          %v1518 = vunpack.c.h.b16 %v524
          %v1519 = vunpack.c.l.b16 %v525
          %v1520 = vunpack.c.h.b16 %v525
          %v1521 = vunpack.c.l.b16 %v526
          %v1522 = vunpack.c.h.b16 %v526
          %v1523 = vunpack.c.l.b16 %v527
          %v1524 = vunpack.c.h.b16 %v527
          %v1525 = vunpack.c.l.b16 %v528
          %v1526 = vunpack.c.h.b16 %v528
          %v1527 = vunpack.c.l.b16 %v529
          %v1528 = vunpack.c.h.b16 %v529
          %v1529 = vunpack.c.l.b16 %v530
          %v1530 = vunpack.c.h.b16 %v530
          %v1531 = vunpack.c.l.b16 %v531
          %v1532 = vunpack.c.h.b16 %v531
          %v1533 = vunpack.c.l.b16 %v532
          %v1534 = vunpack.c.h.b16 %v532
          %v1535 = vunpack.c.l.b16 %v533
          %v1536 = vunpack.c.h.b16 %v533
          %v1537 = vunpack.c.l.b16 %v534
          %v1538 = vunpack.c.h.b16 %v534
          %v1539 = vunpack.c.l.b16 %v535
          %v1540 = vunpack.c.h.b16 %v535
          %v1541 = vunpack.c.l.b16 %v536
          %v1542 = vunpack.c.h.b16 %v536
          %v1543 = vunpack.c.l.b16 %v537
          %v1544 = vunpack.c.h.b16 %v537
          %v1545 = vunpack.c.l.b16 %v538
          %v1546 = vunpack.c.h.b16 %v538
          %v1547 = vunpack.c.l.b16 %v539
          %v1548 = vunpack.c.h.b16 %v539
          %v1549 = vunpack.c.l.b16 %v540
          %v1550 = vunpack.c.h.b16 %v540
          %v1551 = vunpack.c.l.b16 %v541
          %v1552 = vunpack.c.h.b16 %v541
          %v1553 = vunpack.c.l.b16 %v542
          %v1554 = vunpack.c.h.b16 %v542
          %v1555 = vunpack.c.l.b16 %v543
          %v1556 = vunpack.c.h.b16 %v543
          %v1557 = vunpack.c.l.b16 %v544
          %v1558 = vunpack.c.h.b16 %v544
          %v1559 = vunpack.c.l.b16 %v545
          %v1560 = vunpack.c.h.b16 %v545
          %v1561 = vunpack.c.l.b16 %v546
          %v1562 = vunpack.c.h.b16 %v546
          %v1563 = vunpack.c.l.b16 %v547
          %v1564 = vunpack.c.h.b16 %v547
          %v1565 = vunpack.c.l.b16 %v548
          %v1566 = vunpack.c.h.b16 %v548
          %v1567 = vunpack.c.l.b16 %v549
          %v1568 = vunpack.c.h.b16 %v549
          %v1569 = vunpack.c.l.b16 %v550
          %v1570 = vunpack.c.h.b16 %v550
          %v1571 = vunpack.c.l.b16 %v551
          %v1572 = vunpack.c.h.b16 %v551
          %v1573 = vunpack.c.l.b16 %v552
          %v1574 = vunpack.c.h.b16 %v552
          %v1575 = vunpack.c.l.b16 %v553
          %v1576 = vunpack.c.h.b16 %v553
          %v1577 = vunpack.c.l.b16 %v554
          %v1578 = vunpack.c.h.b16 %v554
          %v1579 = vunpack.c.l.b16 %v555
          %v1580 = vunpack.c.h.b16 %v555
          %v1581 = vunpack.c.l.b16 %v556
          %v1582 = vunpack.c.h.b16 %v556
          %v1583 = vunpack.c.l.b16 %v557
          %v1584 = vunpack.c.h.b16 %v557
          %v1585 = vunpack.c.l.b16 %v558
          %v1586 = vunpack.c.h.b16 %v558
          %v1587 = vunpack.c.l.b16 %v559
          %v1588 = vunpack.c.h.b16 %v559
          %v1589 = vunpack.c.l.b16 %v560
          %v1590 = vunpack.c.h.b16 %v560
          %v1591 = vunpack.c.l.b16 %v561
          %v1592 = vunpack.c.h.b16 %v561
          %v1593 = vunpack.c.l.b16 %v562
          %v1594 = vunpack.c.h.b16 %v562
          %v1595 = vunpack.c.l.b16 %v563
          %v1596 = vunpack.c.h.b16 %v563
          %v1597 = vunpack.c.l.b16 %v564
          %v1598 = vunpack.c.h.b16 %v564
          %v1599 = vunpack.c.l.b16 %v565
          %v1600 = vunpack.c.h.b16 %v565
          %v1601 = vunpack.c.l.b16 %v566
          %v1602 = vunpack.c.h.b16 %v566
          %v1603 = vunpack.c.l.b16 %v567
          %v1604 = vunpack.c.h.b16 %v567
          %v1605 = vunpack.c.l.b16 %v568
          %v1606 = vunpack.c.h.b16 %v568
          %v1607 = vunpack.c.l.b16 %v569
          %v1608 = vunpack.c.h.b16 %v569
          %v1609 = vunpack.c.l.b16 %v570
          %v1610 = vunpack.c.h.b16 %v570
          %v1611 = vunpack.c.l.b16 %v571
          %v1612 = vunpack.c.h.b16 %v571
          %v1613 = vunpack.c.l.b16 %v572
          %v1614 = vunpack.c.h.b16 %v572
          %v1615 = vunpack.c.l.b16 %v573
          %v1616 = vunpack.c.h.b16 %v573
          %v1617 = vunpack.c.l.b16 %v574
          %v1618 = vunpack.c.h.b16 %v574
          %v1619 = vunpack.c.l.b16 %v575
          %v1620 = vunpack.c.h.b16 %v575
          %v1621 = vunpack.c.l.b16 %v576
          %v1622 = vunpack.c.h.b16 %v576
          %v1623 = vunpack.c.l.b16 %v577
          %v1624 = vunpack.c.h.b16 %v577
          %v1625 = vunpack.c.l.b16 %v578
          %v1626 = vunpack.c.h.b16 %v578
          %v1627 = vunpack.c.l.b16 %v579
          %v1628 = vunpack.c.h.b16 %v579
          %v1629 = vunpack.c.l.b16 %v580
          %v1630 = vunpack.c.h.b16 %v580
          %v1631 = vunpack.c.l.b16 %v581
          %v1632 = vunpack.c.h.b16 %v581
          %v1633 = vunpack.c.l.b16 %v582
          %v1634 = vunpack.c.h.b16 %v582
          %v1635 = vunpack.c.l.b16 %v583
          %v1636 = vunpack.c.h.b16 %v583
          %v1637 = vunpack.c.l.b16 %v584
          %v1638 = vunpack.c.h.b16 %v584
          %v1639 = vunpack.c.l.b16 %v585
          %v1640 = vunpack.c.h.b16 %v585
          %v1641 = vunpack.c.l.b16 %v586
          %v1642 = vunpack.c.h.b16 %v586
          %v1643 = vunpack.c.l.b16 %v587
          %v1644 = vunpack.c.h.b16 %v587
          %v1645 = vunpack.c.l.b16 %v588
          %v1646 = vunpack.c.h.b16 %v588
          %v1647 = vunpack.c.l.b16 %v589
          %v1648 = vunpack.c.h.b16 %v589
          %v1649 = vunpack.c.l.b16 %v590
          %v1650 = vunpack.c.h.b16 %v590
          %v1651 = vunpack.c.l.b16 %v591
          %v1652 = vunpack.c.h.b16 %v591
          %v1653 = vunpack.c.l.b16 %v592
          %v1654 = vunpack.c.h.b16 %v592
          %v1655 = vunpack.c.l.b16 %v593
          %v1656 = vunpack.c.h.b16 %v593
          %v1657 = vunpack.c.l.b16 %v594
          %v1658 = vunpack.c.h.b16 %v594
          %v1659 = vunpack.c.l.b16 %v595
          %v1660 = vunpack.c.h.b16 %v595
          %v1661 = vunpack.c.l.b16 %v596
          %v1662 = vunpack.c.h.b16 %v596
          %v1663 = vunpack.c.l.b16 %v597
          %v1664 = vunpack.c.h.b16 %v597
          %v1665 = vunpack.c.l.b16 %v598
          %v1666 = vunpack.c.h.b16 %v598
          %v1667 = vunpack.c.l.b16 %v599
          %v1668 = vunpack.c.h.b16 %v599
          %v1669 = vunpack.c.l.b16 %v600
          %v1670 = vunpack.c.h.b16 %v600
          %v1671 = vunpack.c.l.b16 %v601
          %v1672 = vunpack.c.h.b16 %v601
          %v1673 = vunpack.c.l.b16 %v602
          %v1674 = vunpack.c.h.b16 %v602
          %v1675 = vunpack.c.l.b16 %v603
          %v1676 = vunpack.c.h.b16 %v603
          %v1677 = vunpack.c.l.b16 %v604
          %v1678 = vunpack.c.h.b16 %v604
          %v1679 = vunpack.c.l.b16 %v605
          %v1680 = vunpack.c.h.b16 %v605
          %v1681 = vunpack.c.l.b16 %v606
          %v1682 = vunpack.c.h.b16 %v606
          %v1683 = vunpack.c.l.b16 %v607
          %v1684 = vunpack.c.h.b16 %v607
          %v1685 = vunpack.c.l.b16 %v608
          %v1686 = vunpack.c.h.b16 %v608
          %v1687 = vunpack.c.l.b16 %v609
          %v1688 = vunpack.c.h.b16 %v609
          %v1689 = vunpack.c.l.b16 %v610
          %v1690 = vunpack.c.h.b16 %v610
          %v1691 = vunpack.c.l.b16 %v611
          %v1692 = vunpack.c.h.b16 %v611
          %v1693 = vunpack.c.l.b16 %v612
          %v1694 = vunpack.c.h.b16 %v612
          %v1695 = vunpack.c.l.b16 %v613
          %v1696 = vunpack.c.h.b16 %v613
          %v1697 = vunpack.c.l.b16 %v614
          %v1698 = vunpack.c.h.b16 %v614
          %v1699 = vunpack.c.l.b16 %v615
          %v1700 = vunpack.c.h.b16 %v615
          %v1701 = vunpack.c.l.b16 %v616
          %v1702 = vunpack.c.h.b16 %v616
          %v1703 = vunpack.c.l.b16 %v617
          %v1704 = vunpack.c.h.b16 %v617
          %v1705 = vunpack.c.l.b16 %v618
          %v1706 = vunpack.c.h.b16 %v618
          %v1707 = vunpack.c.l.b16 %v619
          %v1708 = vunpack.c.h.b16 %v619
          %v1709 = vunpack.c.l.b16 %v620
          %v1710 = vunpack.c.h.b16 %v620
          %v1711 = vunpack.c.l.b16 %v621
          %v1712 = vunpack.c.h.b16 %v621
          %v1713 = vunpack.c.l.b16 %v622
          %v1714 = vunpack.c.h.b16 %v622
          %v1715 = vunpack.c.l.b16 %v623
          %v1716 = vunpack.c.h.b16 %v623
          %v1717 = vunpack.c.l.b16 %v624
          %v1718 = vunpack.c.h.b16 %v624
          %v1719 = vunpack.c.l.b16 %v625
          %v1720 = vunpack.c.h.b16 %v625
          %v1721 = vunpack.c.l.b16 %v626
          %v1722 = vunpack.c.h.b16 %v626
          %v1723 = vunpack.c.l.b16 %v627
          %v1724 = vunpack.c.h.b16 %v627
          %v1725 = vunpack.c.l.b16 %v628
          %v1726 = vunpack.c.h.b16 %v628
          %v1727 = vunpack.c.l.b16 %v629
          %v1728 = vunpack.c.h.b16 %v629
          %v1729 = vunpack.c.l.b16 %v630
          %v1730 = vunpack.c.h.b16 %v630
          %v1731 = vunpack.c.l.b16 %v631
          %v1732 = vunpack.c.h.b16 %v631
          %v1733 = vunpack.c.l.b16 %v632
          %v1734 = vunpack.c.h.b16 %v632
          %v1735 = vunpack.c.l.b16 %v633
          %v1736 = vunpack.c.h.b16 %v633
          %v1737 = vunpack.c.l.b16 %v634
          %v1738 = vunpack.c.h.b16 %v634
          %v1739 = vunpack.c.l.b16 %v635
          %v1740 = vunpack.c.h.b16 %v635
          %v1741 = vunpack.c.l.b16 %v636
          %v1742 = vunpack.c.h.b16 %v636
          %v1743 = vunpack.c.l.b16 %v637
          %v1744 = vunpack.c.h.b16 %v637
          %v1745 = vunpack.c.l.b16 %v638
          %v1746 = vunpack.c.h.b16 %v638
          %v1747 = vunpack.c.l.b16 %v639
          %v1748 = vunpack.c.h.b16 %v639
          %v1749 = vunpack.c.l.b16 %v640
          %v1750 = vunpack.c.h.b16 %v640
          %v1751 = vunpack.c.l.b16 %v641
          %v1752 = vunpack.c.h.b16 %v641
          %v1753 = vunpack.c.l.b16 %v642
          %v1754 = vunpack.c.h.b16 %v642
          %v1755 = vunpack.c.l.b16 %v643
          %v1756 = vunpack.c.h.b16 %v643
          %v1757 = vunpack.c.l.b16 %v644
          %v1758 = vunpack.c.h.b16 %v644
          %v1759 = vunpack.c.l.b16 %v645
          %v1760 = vunpack.c.h.b16 %v645
          %v1761 = vunpack.c.l.b16 %v646
          %v1762 = vunpack.c.h.b16 %v646
          %v1763 = vunpack.c.l.b16 %v647
          %v1764 = vunpack.c.h.b16 %v647
          %v1765 = vunpack.c.l.b16 %v648
          %v1766 = vunpack.c.h.b16 %v648
          %v1767 = vunpack.c.l.b16 %v649
          %v1768 = vunpack.c.h.b16 %v649
          %v1769 = vunpack.c.l.b16 %v650
          %v1770 = vunpack.c.h.b16 %v650
          %v1771 = vunpack.c.l.b16 %v651
          %v1772 = vunpack.c.h.b16 %v651
          %v1773 = vunpack.c.l.b16 %v652
          %v1774 = vunpack.c.h.b16 %v652
          %v1775 = vunpack.c.l.b16 %v653
          %v1776 = vunpack.c.h.b16 %v653
          %v1777 = vunpack.c.l.b16 %v654
          %v1778 = vunpack.c.h.b16 %v654
          %v1779 = vunpack.c.l.b16 %v655
          %v1780 = vunpack.c.h.b16 %v655
          %v1781 = vunpack.c.l.b16 %v656
          %v1782 = vunpack.c.h.b16 %v656
          %v1783 = vunpack.c.l.b16 %v657
          %v1784 = vunpack.c.h.b16 %v657
          %v1785 = vunpack.c.l.b16 %v658
          %v1786 = vunpack.c.h.b16 %v658
          %v1787 = vunpack.c.l.b16 %v659
          %v1788 = vunpack.c.h.b16 %v659
          %v1789 = vunpack.c.l.b16 %v660
          %v1790 = vunpack.c.h.b16 %v660
          %v1791 = vunpack.c.l.b16 %v661
          %v1792 = vunpack.c.h.b16 %v661
          %v1793 = vunpack.c.l.b16 %v662
          %v1794 = vunpack.c.h.b16 %v662
          %v1795 = vunpack.c.l.b16 %v663
          %v1796 = vunpack.c.h.b16 %v663
          %v1797 = vunpack.c.l.b16 %v664
          %v1798 = vunpack.c.h.b16 %v664
          %v1799 = vunpack.c.l.b16 %v665
          %v1800 = vunpack.c.h.b16 %v665
          %v1801 = vunpack.c.l.b16 %v666
          %v1802 = vunpack.c.h.b16 %v666
          %v1803 = vunpack.c.l.b16 %v667
          %v1804 = vunpack.c.h.b16 %v667
          %v1805 = vunpack.c.l.b16 %v668
          %v1806 = vunpack.c.h.b16 %v668
          %v1807 = vunpack.c.l.b16 %v669
          %v1808 = vunpack.c.h.b16 %v669
          %v1809 = vunpack.c.l.b16 %v670
          %v1810 = vunpack.c.h.b16 %v670
          %v1811 = vunpack.c.l.b16 %v671
          %v1812 = vunpack.c.h.b16 %v671
          %v1813 = vunpack.c.l.b16 %v672
          %v1814 = vunpack.c.h.b16 %v672
          %v1815 = vunpack.c.l.b16 %v673
          %v1816 = vunpack.c.h.b16 %v673
          %v1817 = vunpack.c.l.b16 %v674
          %v1818 = vunpack.c.h.b16 %v674
          %v1819 = vunpack.c.l.b16 %v675
          %v1820 = vunpack.c.h.b16 %v675
          %v1821 = vunpack.c.l.b16 %v676
          %v1822 = vunpack.c.h.b16 %v676
          %v1823 = vunpack.c.l.b16 %v677
          %v1824 = vunpack.c.h.b16 %v677
          %v1825 = vunpack.c.l.b16 %v678
          %v1826 = vunpack.c.h.b16 %v678
          %v1827 = vunpack.c.l.b16 %v679
          %v1828 = vunpack.c.h.b16 %v679
          %v1829 = vunpack.c.l.b16 %v680
          %v1830 = vunpack.c.h.b16 %v680
          %v1831 = vunpack.c.l.b16 %v681
          %v1832 = vunpack.c.h.b16 %v681
          %v1833 = vunpack.c.l.b16 %v682
          %v1834 = vunpack.c.h.b16 %v682
          %v1835 = vunpack.c.l.b16 %v683
          %v1836 = vunpack.c.h.b16 %v683
          %v1837 = vunpack.c.l.b16 %v684
          %v1838 = vunpack.c.h.b16 %v684
          %v1839 = vunpack.c.l.b16 %v685
          %v1840 = vunpack.c.h.b16 %v685
          %v1841 = vunpack.c.l.b16 %v686
          %v1842 = vunpack.c.h.b16 %v686
          %v1843 = vunpack.c.l.b16 %v687
          %v1844 = vunpack.c.h.b16 %v687
          %v1845 = vunpack.c.l.b16 %v688
          %v1846 = vunpack.c.h.b16 %v688
          %v1847 = vunpack.c.l.b16 %v689
          %v1848 = vunpack.c.h.b16 %v689
          %v1849 = vunpack.c.l.b16 %v690
          %v1850 = vunpack.c.h.b16 %v690
          %v1851 = vunpack.c.l.b16 %v691
          %v1852 = vunpack.c.h.b16 %v691
          %v1853 = vunpack.c.l.b16 %v692
          %v1854 = vunpack.c.h.b16 %v692
          %v1855 = vunpack.c.l.b16 %v693
          %v1856 = vunpack.c.h.b16 %v693
          %v1857 = vunpack.c.l.b16 %v694
          %v1858 = vunpack.c.h.b16 %v694
          %v1859 = vunpack.c.l.b16 %v695
          %v1860 = vunpack.c.h.b16 %v695
          %v1861 = vunpack.c.l.b16 %v696
          %v1862 = vunpack.c.h.b16 %v696
          %v1863 = vunpack.c.l.b16 %v697
          %v1864 = vunpack.c.h.b16 %v697
          %v1865 = vunpack.c.l.b16 %v698
          %v1866 = vunpack.c.h.b16 %v698
          %v1867 = vunpack.c.l.b16 %v699
          %v1868 = vunpack.c.h.b16 %v699
          %v1869 = vunpack.c.l.b16 %v700
          %v1870 = vunpack.c.h.b16 %v700
          %v1871 = vunpack.c.l.b16 %v701
          %v1872 = vunpack.c.h.b16 %v701
          %v1873 = vunpack.c.l.b16 %v702
          %v1874 = vunpack.c.h.b16 %v702
          %v1875 = vunpack.c.l.b16 %v703
          %v1876 = vunpack.c.h.b16 %v703
          %v1877 = vunpack.c.l.b16 %v704
          %v1878 = vunpack.c.h.b16 %v704
          %v1879 = vunpack.c.l.b16 %v705
          %v1880 = vunpack.c.h.b16 %v705
          %v1881 = vunpack.c.l.b16 %v706
          %v1882 = vunpack.c.h.b16 %v706
          %v1883 = vunpack.c.l.b16 %v707
          %v1884 = vunpack.c.h.b16 %v707
          %v1885 = vunpack.c.l.b16 %v708
          %v1886 = vunpack.c.h.b16 %v708
          %v1887 = vunpack.c.l.b16 %v709
          %v1888 = vunpack.c.h.b16 %v709
          %v1889 = vunpack.c.l.b16 %v710
          %v1890 = vunpack.c.h.b16 %v710
          %v1891 = vunpack.c.l.b16 %v711
          %v1892 = vunpack.c.h.b16 %v711
          %v1893 = vunpack.c.l.b16 %v712
          %v1894 = vunpack.c.h.b16 %v712
          %v1895 = vunpack.c.l.b16 %v713
          %v1896 = vunpack.c.h.b16 %v713
          %v1897 = vunpack.c.l.b16 %v714
          %v1898 = vunpack.c.h.b16 %v714
          %v1899 = vunpack.c.l.b16 %v715
          %v1900 = vunpack.c.h.b16 %v715
          %v1901 = vunpack.c.l.b16 %v716
          %v1902 = vunpack.c.h.b16 %v716
          %v1903 = vunpack.c.l.b16 %v717
          %v1904 = vunpack.c.h.b16 %v717
          %v1905 = vunpack.c.l.b16 %v718
          %v1906 = vunpack.c.h.b16 %v718
          %v1907 = vunpack.c.l.b16 %v719
          %v1908 = vunpack.c.h.b16 %v719
          %v1909 = vunpack.c.l.b16 %v720
          %v1910 = vunpack.c.h.b16 %v720
          %v1911 = vunpack.c.l.b16 %v721
          %v1912 = vunpack.c.h.b16 %v721
          %v1913 = vunpack.c.l.b16 %v722
          %v1914 = vunpack.c.h.b16 %v722
          %v1915 = vunpack.c.l.b16 %v723
          %v1916 = vunpack.c.h.b16 %v723
          %v1917 = vunpack.c.l.b16 %v724
          %v1918 = vunpack.c.h.b16 %v724
          %v1919 = vunpack.c.l.b16 %v725
          %v1920 = vunpack.c.h.b16 %v725
          %v1921 = vunpack.c.l.b16 %v726
          %v1922 = vunpack.c.h.b16 %v726
          %v1923 = vunpack.c.l.b16 %v727
          %v1924 = vunpack.c.h.b16 %v727
          %v1925 = vunpack.c.l.b16 %v728
          %v1926 = vunpack.c.h.b16 %v728
          %v1927 = vunpack.c.l.b16 %v729
          %v1928 = vunpack.c.h.b16 %v729
          %v1929 = vunpack.c.l.b16 %v730
          %v1930 = vunpack.c.h.b16 %v730
          %v1931 = vunpack.c.l.b16 %v731
          %v1932 = vunpack.c.h.b16 %v731
          %v1933 = vunpack.c.l.b16 %v732
          %v1934 = vunpack.c.h.b16 %v732
          %v1935 = vunpack.c.l.b16 %v733
          %v1936 = vunpack.c.h.b16 %v733
          %v1937 = vunpack.c.l.b16 %v734
          %v1938 = vunpack.c.h.b16 %v734
          %v1939 = vunpack.c.l.b16 %v735
          %v1940 = vunpack.c.h.b16 %v735
          %v1941 = vunpack.c.l.b16 %v736
          %v1942 = vunpack.c.h.b16 %v736
          %v1943 = vunpack.c.l.b16 %v737
          %v1944 = vunpack.c.h.b16 %v737
          %v1945 = vunpack.c.l.b16 %v738
          %v1946 = vunpack.c.h.b16 %v738
          %v1947 = vunpack.c.l.b16 %v739
          %v1948 = vunpack.c.h.b16 %v739
          %v1949 = vunpack.c.l.b16 %v740
          %v1950 = vunpack.c.h.b16 %v740
          %v1951 = vunpack.c.l.b16 %v741
          %v1952 = vunpack.c.h.b16 %v741
          %v1953 = vunpack.c.l.b16 %v742
          %v1954 = vunpack.c.h.b16 %v742
          %v1955 = vunpack.c.l.b16 %v743
          %v1956 = vunpack.c.h.b16 %v743
          %v1957 = vunpack.c.l.b16 %v744
          %v1958 = vunpack.c.h.b16 %v744
          %v1959 = vunpack.c.l.b16 %v745
          %v1960 = vunpack.c.h.b16 %v745
          %v1961 = vunpack.c.l.b16 %v746
          %v1962 = vunpack.c.h.b16 %v746
          %v1963 = vunpack.c.l.b16 %v747
          %v1964 = vunpack.c.h.b16 %v747
          %v1965 = vunpack.c.l.b16 %v748
          %v1966 = vunpack.c.h.b16 %v748
          %v1967 = vunpack.c.l.b16 %v749
          %v1968 = vunpack.c.h.b16 %v749
          %v1969 = vunpack.c.l.b16 %v750
          %v1970 = vunpack.c.h.b16 %v750
          %v1971 = vunpack.c.l.b16 %v751
          %v1972 = vunpack.c.h.b16 %v751
          %v1973 = vunpack.c.l.b16 %v752
          %v1974 = vunpack.c.h.b16 %v752
          %v1975 = vunpack.c.l.b16 %v753
          %v1976 = vunpack.c.h.b16 %v753
          %v1977 = vunpack.c.l.b16 %v754
          %v1978 = vunpack.c.h.b16 %v754
          %v1979 = vunpack.c.l.b16 %v755
          %v1980 = vunpack.c.h.b16 %v755
          %v1981 = vunpack.c.l.b16 %v756
          %v1982 = vunpack.c.h.b16 %v756
          %v1983 = vunpack.c.l.b16 %v757
          %v1984 = vunpack.c.h.b16 %v757
          %v1985 = vunpack.c.l.b16 %v758
          %v1986 = vunpack.c.h.b16 %v758
          %v1987 = vunpack.c.l.b16 %v759
          %v1988 = vunpack.c.h.b16 %v759
          %v1989 = vunpack.c.l.b16 %v760
          %v1990 = vunpack.c.h.b16 %v760
          %v1991 = vunpack.c.l.b16 %v761
          %v1992 = vunpack.c.h.b16 %v761
          %v1993 = vunpack.c.l.b16 %v762
          %v1994 = vunpack.c.h.b16 %v762
          %v1995 = vunpack.c.l.b16 %v763
          %v1996 = vunpack.c.h.b16 %v763
          %v1997 = vunpack.c.l.b16 %v764
          %v1998 = vunpack.c.h.b16 %v764
          %v1999 = vunpack.c.l.b16 %v765
          %v2000 = vunpack.c.h.b16 %v765
          %v2001 = vunpack.c.l.b16 %v766
          %v2002 = vunpack.c.h.b16 %v766
          %v2003 = vunpack.c.l.b16 %v767
          %v2004 = vunpack.c.h.b16 %v767
          %v2005 = vunpack.c.l.b16 %v768
          %v2006 = vunpack.c.h.b16 %v768
          %v2007 = vunpack.c.l.b16 %v769
          %v2008 = vunpack.c.h.b16 %v769
          %v2009 = vunpack.c.l.b16 %v770
          %v2010 = vunpack.c.h.b16 %v770
          %v2011 = vunpack.c.l.b16 %v771
          %v2012 = vunpack.c.h.b16 %v771
          %v2013 = vunpack.c.l.b16 %v772
          %v2014 = vunpack.c.h.b16 %v772
          %v2015 = vunpack.c.l.b16 %v773
          %v2016 = vunpack.c.h.b16 %v773
          %v2017 = vunpack.c.l.b16 %v774
          %v2018 = vunpack.c.h.b16 %v774
          %v2019 = vunpack.c.l.b16 %v775
          %v2020 = vunpack.c.h.b16 %v775
          %v2021 = vunpack.c.l.b16 %v776
          %v2022 = vunpack.c.h.b16 %v776
          %v2023 = vunpack.c.l.b16 %v777
          %v2024 = vunpack.c.h.b16 %v777
          %v2025 = vunpack.c.l.b16 %v778
          %v2026 = vunpack.c.h.b16 %v778
          %v2027 = vunpack.c.l.b16 %v779
          %v2028 = vunpack.c.h.b16 %v779
          %v2029 = vunpack.c.l.b16 %v780
          %v2030 = vunpack.c.h.b16 %v780
          %v2031 = vunpack.c.l.b16 %v781
          %v2032 = vunpack.c.h.b16 %v781
          %v2033 = vunpack.c.l.b16 %v782
          %v2034 = vunpack.c.h.b16 %v782
          %v2035 = vunpack.c.l.b16 %v783
          %v2036 = vunpack.c.h.b16 %v783
          %v2037 = vunpack.c.l.b16 %v784
          %v2038 = vunpack.c.h.b16 %v784
          %v2039 = vunpack.c.l.b16 %v785
          %v2040 = vunpack.c.h.b16 %v785
          %v2041 = vunpack.c.l.b16 %v786
          %v2042 = vunpack.c.h.b16 %v786
          %v2043 = vunpack.c.l.b16 %v787
          %v2044 = vunpack.c.h.b16 %v787
          %v2045 = vunpack.c.l.b16 %v788
          %v2046 = vunpack.c.h.b16 %v788
          %v2047 = vunpack.c.l.b16 %v789
          %v2048 = vunpack.c.h.b16 %v789
          %v2049 = vunpack.c.l.b16 %v790
          %v2050 = vunpack.c.h.b16 %v790
          %v2051 = vunpack.c.l.b16 %v791
          %v2052 = vunpack.c.h.b16 %v791
          %v2053 = vunpack.c.l.b16 %v792
          %v2054 = vunpack.c.h.b16 %v792
          %v2055 = vunpack.c.l.b16 %v793
          %v2056 = vunpack.c.h.b16 %v793
          %v2057 = vunpack.c.l.b16 %v794
          %v2058 = vunpack.c.h.b16 %v794
          %v2059 = vunpack.c.l.b16 %v795
          %v2060 = vunpack.c.h.b16 %v795
          %v2061 = vunpack.c.l.b16 %v796
          %v2062 = vunpack.c.h.b16 %v796
          %v2063 = vunpack.c.l.b16 %v797
          %v2064 = vunpack.c.h.b16 %v797
          %v2065 = vunpack.c.l.b16 %v798
          %v2066 = vunpack.c.h.b16 %v798
          %v2067 = vunpack.c.l.b16 %v799
          %v2068 = vunpack.c.h.b16 %v799
          %v2069 = vunpack.c.l.b16 %v800
          %v2070 = vunpack.c.h.b16 %v800
          %v2071 = vunpack.c.l.b16 %v801
          %v2072 = vunpack.c.h.b16 %v801
          %v2073 = vunpack.c.l.b16 %v802
          %v2074 = vunpack.c.h.b16 %v802
          %v2075 = vunpack.c.l.b16 %v803
          %v2076 = vunpack.c.h.b16 %v803
          %v2077 = vunpack.c.l.b16 %v804
          %v2078 = vunpack.c.h.b16 %v804
          %v2079 = vunpack.c.l.b16 %v805
          %v2080 = vunpack.c.h.b16 %v805
          %v2081 = vunpack.c.l.b16 %v806
          %v2082 = vunpack.c.h.b16 %v806
          %v2083 = vunpack.c.l.b16 %v807
          %v2084 = vunpack.c.h.b16 %v807
          %v2085 = vunpack.c.l.b16 %v808
          %v2086 = vunpack.c.h.b16 %v808
          %v2087 = vunpack.c.l.b16 %v809
          %v2088 = vunpack.c.h.b16 %v809
          %v2089 = vunpack.c.l.b16 %v810
          %v2090 = vunpack.c.h.b16 %v810
          %v2091 = vunpack.c.l.b16 %v811
          %v2092 = vunpack.c.h.b16 %v811
          %v2093 = vunpack.c.l.b16 %v812
          %v2094 = vunpack.c.h.b16 %v812
          %v2095 = vunpack.c.l.b16 %v813
          %v2096 = vunpack.c.h.b16 %v813
          %v2097 = vunpack.c.l.b16 %v814
          %v2098 = vunpack.c.h.b16 %v814
          %v2099 = vunpack.c.l.b16 %v815
          %v2100 = vunpack.c.h.b16 %v815
          %v2101 = vunpack.c.l.b16 %v816
          %v2102 = vunpack.c.h.b16 %v816
          %v2103 = vunpack.c.l.b16 %v817
          %v2104 = vunpack.c.h.b16 %v817
          %v2105 = vunpack.c.l.b16 %v818
          %v2106 = vunpack.c.h.b16 %v818
          %v2107 = vunpack.c.l.b16 %v819
          %v2108 = vunpack.c.h.b16 %v819
          %v2109 = vunpack.c.l.b16 %v820
          %v2110 = vunpack.c.h.b16 %v820
          %v2111 = vunpack.c.l.b16 %v821
          %v2112 = vunpack.c.h.b16 %v821
          %v2113 = vunpack.c.l.b16 %v822
          %v2114 = vunpack.c.h.b16 %v822
          %v2115 = vunpack.c.l.b16 %v823
          %v2116 = vunpack.c.h.b16 %v823
          %v2117 = vunpack.c.l.b16 %v824
          %v2118 = vunpack.c.h.b16 %v824
          %v2119 = vunpack.c.l.b16 %v825
          %v2120 = vunpack.c.h.b16 %v825
          %v2121 = vunpack.c.l.b16 %v826
          %v2122 = vunpack.c.h.b16 %v826
          %v2123 = vunpack.c.l.b16 %v827
          %v2124 = vunpack.c.h.b16 %v827
          %v2125 = vunpack.c.l.b16 %v828
          %v2126 = vunpack.c.h.b16 %v828
          %v2127 = vunpack.c.l.b16 %v829
          %v2128 = vunpack.c.h.b16 %v829
          %v2129 = vunpack.c.l.b16 %v830
          %v2130 = vunpack.c.h.b16 %v830
          %v2131 = vunpack.c.l.b16 %v831
          %v2132 = vunpack.c.h.b16 %v831
          %v2133 = vunpack.c.l.b16 %v832
          %v2134 = vunpack.c.h.b16 %v832
          %v2135 = vunpack.c.l.b16 %v833
          %v2136 = vunpack.c.h.b16 %v833
          %v2137 = vunpack.c.l.b16 %v834
          %v2138 = vunpack.c.h.b16 %v834
          %v2139 = vunpack.c.l.b16 %v835
          %v2140 = vunpack.c.h.b16 %v835
          %v2141 = vunpack.c.l.b16 %v836
          %v2142 = vunpack.c.h.b16 %v836
          %v2143 = vunpack.c.l.b16 %v837
          %v2144 = vunpack.c.h.b16 %v837
          %v2145 = vunpack.c.l.b16 %v838
          %v2146 = vunpack.c.h.b16 %v838
          %v2147 = vunpack.c.l.b16 %v839
          %v2148 = vunpack.c.h.b16 %v839
          %v2149 = vunpack.c.l.b16 %v840
          %v2150 = vunpack.c.h.b16 %v840
          %v2151 = vunpack.c.l.b16 %v841
          %v2152 = vunpack.c.h.b16 %v841
          %v2153 = vunpack.c.l.b16 %v842
          %v2154 = vunpack.c.h.b16 %v842
          %v2155 = vunpack.c.l.b16 %v843
          %v2156 = vunpack.c.h.b16 %v843
          %v2157 = vunpack.c.l.b16 %v844
          %v2158 = vunpack.c.h.b16 %v844
          %v2159 = vunpack.c.l.b16 %v845
          %v2160 = vunpack.c.h.b16 %v845
          %v2161 = vunpack.c.l.b16 %v846
          %v2162 = vunpack.c.h.b16 %v846
          %v2163 = vunpack.c.l.b16 %v847
          %v2164 = vunpack.c.h.b16 %v847
          %v2165 = vunpack.c.l.b16 %v848
          %v2166 = vunpack.c.h.b16 %v848
          %v2167 = vunpack.c.l.b16 %v849
          %v2168 = vunpack.c.h.b16 %v849
          %v2169 = vunpack.c.l.b16 %v850
          %v2170 = vunpack.c.h.b16 %v850
          %v2171 = vunpack.c.l.b16 %v851
          %v2172 = vunpack.c.h.b16 %v851
          %v2173 = vunpack.c.l.b16 %v852
          %v2174 = vunpack.c.h.b16 %v852
          %v2175 = vunpack.c.l.b16 %v853
          %v2176 = vunpack.c.h.b16 %v853
          %v2177 = vunpack.c.l.b16 %v854
          %v2178 = vunpack.c.h.b16 %v854
          %v2179 = vunpack.c.l.b16 %v855
          %v2180 = vunpack.c.h.b16 %v855
          %v2181 = vunpack.c.l.b16 %v856
          %v2182 = vunpack.c.h.b16 %v856
          %v2183 = vunpack.c.l.b16 %v857
          %v2184 = vunpack.c.h.b16 %v857
          %v2185 = vunpack.c.l.b16 %v858
          %v2186 = vunpack.c.h.b16 %v858
          %v2187 = vunpack.c.l.b16 %v859
          %v2188 = vunpack.c.h.b16 %v859
          %v2189 = vunpack.c.l.b16 %v860
          %v2190 = vunpack.c.h.b16 %v860
          %v2191 = vunpack.c.l.b16 %v861
          %v2192 = vunpack.c.h.b16 %v861
          %v2193 = vunpack.c.l.b16 %v862
          %v2194 = vunpack.c.h.b16 %v862
          %v2195 = vunpack.c.l.b16 %v863
          %v2196 = vunpack.c.h.b16 %v863
          %v2197 = vunpack.c.l.b16 %v864
          %v2198 = vunpack.c.h.b16 %v864
          %v2199 = vunpack.c.l.b16 %v865
          %v2200 = vunpack.c.h.b16 %v865
          %v2201 = vunpack.c.l.b16 %v866
          %v2202 = vunpack.c.h.b16 %v866
          %v2203 = vunpack.c.l.b16 %v867
          %v2204 = vunpack.c.h.b16 %v867
          %v2205 = vunpack.c.l.b16 %v868
          %v2206 = vunpack.c.h.b16 %v868
          %v2207 = vunpack.c.l.b16 %v869
          %v2208 = vunpack.c.h.b16 %v869
          %v2209 = vunpack.c.l.b16 %v870
          %v2210 = vunpack.c.h.b16 %v870
          %v2211 = vunpack.c.l.b16 %v871
          %v2212 = vunpack.c.h.b16 %v871
          %v2213 = vunpack.c.l.b16 %v872
          %v2214 = vunpack.c.h.b16 %v872
          %v2215 = vunpack.c.l.b16 %v873
          %v2216 = vunpack.c.h.b16 %v873
          %v2217 = vunpack.c.l.b16 %v874
          %v2218 = vunpack.c.h.b16 %v874
          %v2219 = vunpack.c.l.b16 %v875
          %v2220 = vunpack.c.h.b16 %v875
          %v2221 = vunpack.c.l.b16 %v876
          %v2222 = vunpack.c.h.b16 %v876
          %v2223 = vunpack.c.l.b16 %v877
          %v2224 = vunpack.c.h.b16 %v877
          %v2225 = vunpack.c.l.b16 %v878
          %v2226 = vunpack.c.h.b16 %v878
          %v2227 = vunpack.c.l.b16 %v879
          %v2228 = vunpack.c.h.b16 %v879
          %v2229 = vunpack.c.l.b16 %v880
          %v2230 = vunpack.c.h.b16 %v880
          %v2231 = vunpack.c.l.b16 %v881
          %v2232 = vunpack.c.h.b16 %v881
          %v2233 = vunpack.c.l.b16 %v882
          %v2234 = vunpack.c.h.b16 %v882
          %v2235 = vunpack.c.l.b16 %v883
          %v2236 = vunpack.c.h.b16 %v883
          %v2237 = vunpack.c.l.b16 %v884
          %v2238 = vunpack.c.h.b16 %v884
          %v2239 = vunpack.c.l.b16 %v885
          %v2240 = vunpack.c.h.b16 %v885
          %v2241 = vunpack.c.l.b16 %v886
          %v2242 = vunpack.c.h.b16 %v886
          %v2243 = vunpack.c.l.b16 %v887
          %v2244 = vunpack.c.h.b16 %v887
          %v2245 = vunpack.c.l.b16 %v888
          %v2246 = vunpack.c.h.b16 %v888
          %v2247 = vunpack.c.l.b16 %v889
          %v2248 = vunpack.c.h.b16 %v889
          %v2249 = vunpack.c.l.b16 %v890
          %v2250 = vunpack.c.h.b16 %v890
          %v2251 = vunpack.c.l.b16 %v891
          %v2252 = vunpack.c.h.b16 %v891
          %v2253 = vunpack.c.l.b16 %v892
          %v2254 = vunpack.c.h.b16 %v892
          %v2255 = vunpack.c.l.b16 %v893
          %v2256 = vunpack.c.h.b16 %v893
          %v2257 = vunpack.c.l.b16 %v894
          %v2258 = vunpack.c.h.b16 %v894
          %v2259 = vunpack.c.l.b16 %v895
          %v2260 = vunpack.c.h.b16 %v895
          %v2261 = vunpack.c.l.b16 %v896
          %v2262 = vunpack.c.h.b16 %v896
          %v2263 = vunpack.c.l.b16 %v897
          %v2264 = vunpack.c.h.b16 %v897
          %v2265 = vunpack.c.l.b16 %v898
          %v2266 = vunpack.c.h.b16 %v898
          %v2267 = vunpack.c.l.b16 %v899
          %v2268 = vunpack.c.h.b16 %v899
          %v2269 = vunpack.c.l.b16 %v900
          %v2270 = vunpack.c.h.b16 %v900
          %v2271 = vunpack.c.l.b16 %v901
          %v2272 = vunpack.c.h.b16 %v901
          %v2273 = vunpack.c.l.b16 %v902
          %v2274 = vunpack.c.h.b16 %v902
          %v2275 = vunpack.c.l.b16 %v903
          %v2276 = vunpack.c.h.b16 %v903
          %v2277 = vunpack.c.l.b16 %v904
          %v2278 = vunpack.c.h.b16 %v904
          %v2279 = vunpack.c.l.b16 %v905
          %v2280 = vunpack.c.h.b16 %v905
          %v2281 = vunpack.c.l.b16 %v906
          %v2282 = vunpack.c.h.b16 %v906
          %v2283 = vunpack.c.l.b16 %v907
          %v2284 = vunpack.c.h.b16 %v907
          %v2285 = vunpack.c.l.b16 %v908
          %v2286 = vunpack.c.h.b16 %v908
          %v2287 = vunpack.c.l.b16 %v909
          %v2288 = vunpack.c.h.b16 %v909
          %v2289 = vunpack.c.l.b16 %v910
          %v2290 = vunpack.c.h.b16 %v910
          %v2291 = vunpack.c.l.b16 %v911
          %v2292 = vunpack.c.h.b16 %v911
          %v2293 = vunpack.c.l.b16 %v912
          %v2294 = vunpack.c.h.b16 %v912
          %v2295 = vunpack.c.l.b16 %v913
          %v2296 = vunpack.c.h.b16 %v913
          %v2297 = vunpack.c.l.b16 %v914
          %v2298 = vunpack.c.h.b16 %v914
          %v2299 = vunpack.c.l.b16 %v915
          %v2300 = vunpack.c.h.b16 %v915
          %v2301 = vunpack.c.l.b16 %v916
          %v2302 = vunpack.c.h.b16 %v916
          %v2303 = vunpack.c.l.b16 %v917
          %v2304 = vunpack.c.h.b16 %v917
          %v2305 = vunpack.c.l.b16 %v918
          %v2306 = vunpack.c.h.b16 %v918
          %v2307 = vunpack.c.l.b16 %v919
          %v2308 = vunpack.c.h.b16 %v919
          %v2309 = vunpack.c.l.b16 %v920
          %v2310 = vunpack.c.h.b16 %v920
          %v2311 = vunpack.c.l.b16 %v921
          %v2312 = vunpack.c.h.b16 %v921
          %v2313 = vunpack.c.l.b16 %v922
          %v2314 = vunpack.c.h.b16 %v922
          %v2315 = vunpack.c.l.b16 %v923
          %v2316 = vunpack.c.h.b16 %v923
          %v2317 = vunpack.c.l.b16 %v924
          %v2318 = vunpack.c.h.b16 %v924
          %v2319 = vunpack.c.l.b16 %v925
          %v2320 = vunpack.c.h.b16 %v925
          %v2321 = vunpack.c.l.b16 %v926
          %v2322 = vunpack.c.h.b16 %v926
          %v2323 = vunpack.c.l.b16 %v927
          %v2324 = vunpack.c.h.b16 %v927
          %v2325 = vunpack.c.l.b16 %v928
          %v2326 = vunpack.c.h.b16 %v928
          %v2327 = vunpack.c.l.b16 %v929
          %v2328 = vunpack.c.h.b16 %v929
          %v2329 = vunpack.c.l.b16 %v930
          %v2330 = vunpack.c.h.b16 %v930
          %v2331 = vunpack.c.l.b16 %v931
          %v2332 = vunpack.c.h.b16 %v931
          %v2333 = vunpack.c.l.b16 %v932
          %v2334 = vunpack.c.h.b16 %v932
          %v2335 = vunpack.c.l.b16 %v933
          %v2336 = vunpack.c.h.b16 %v933
          %v2337 = vunpack.c.l.b16 %v934
          %v2338 = vunpack.c.h.b16 %v934
          %v2339 = vunpack.c.l.b16 %v935
          %v2340 = vunpack.c.h.b16 %v935
          %v2341 = vunpack.c.l.b16 %v936
          %v2342 = vunpack.c.h.b16 %v936
          %v2343 = vunpack.c.l.b16 %v937
          %v2344 = vunpack.c.h.b16 %v937
          %v2345 = vunpack.c.l.b16 %v938
          %v2346 = vunpack.c.h.b16 %v938
          %v2347 = vunpack.c.l.b16 %v939
          %v2348 = vunpack.c.h.b16 %v939
          %v2349 = vunpack.c.l.b16 %v940
          %v2350 = vunpack.c.h.b16 %v940
          %v2351 = vunpack.c.l.b16 %v941
          %v2352 = vunpack.c.h.b16 %v941
          %v2353 = vpack.c.b16 %v1465, %v1457
          %v2354 = vpack.c.b16 %v1466, %v1458
          %v2355 = vpack.c.b16 %v1467, %v1459
          %v2356 = vpack.c.b16 %v1468, %v1460
          %v2357 = vpack.c.b16 %v1469, %v1461
          %v2358 = vpack.c.b16 %v1470, %v1462
          %v2359 = vpack.c.b16 %v1471, %v1463
          %v2360 = vpack.c.b16 %v1472, %v1464
          %v2361 = vpack.c.b16 %v1481, %v1473
          %v2362 = vpack.c.b16 %v1482, %v1474
          %v2363 = vpack.c.b16 %v1483, %v1475
          %v2364 = vpack.c.b16 %v1484, %v1476
          %v2365 = vpack.c.b16 %v1485, %v1477
          %v2366 = vpack.c.b16 %v1486, %v1478
          %v2367 = vpack.c.b16 %v1487, %v1479
          %v2368 = vpack.c.b16 %v1488, %v1480
          %v2369 = vpack.c.b16 %v1497, %v1489
          %v2370 = vpack.c.b16 %v1498, %v1490
          %v2371 = vpack.c.b16 %v1499, %v1491
          %v2372 = vpack.c.b16 %v1500, %v1492
          %v2373 = vpack.c.b16 %v1501, %v1493
          %v2374 = vpack.c.b16 %v1502, %v1494
          %v2375 = vpack.c.b16 %v1503, %v1495
          %v2376 = vpack.c.b16 %v1504, %v1496
          %v2377 = vpack.c.b16 %v1513, %v1505
          %v2378 = vpack.c.b16 %v1514, %v1506
          %v2379 = vpack.c.b16 %v1515, %v1507
          %v2380 = vpack.c.b16 %v1516, %v1508
          %v2381 = vpack.c.b16 %v1517, %v1509
          %v2382 = vpack.c.b16 %v1518, %v1510
          %v2383 = vpack.c.b16 %v1519, %v1511
          %v2384 = vpack.c.b16 %v1520, %v1512
          %v2385 = vpack.c.b16 %v1529, %v1521
          %v2386 = vpack.c.b16 %v1530, %v1522
          %v2387 = vpack.c.b16 %v1531, %v1523
          %v2388 = vpack.c.b16 %v1532, %v1524
          %v2389 = vpack.c.b16 %v1533, %v1525
          %v2390 = vpack.c.b16 %v1534, %v1526
          %v2391 = vpack.c.b16 %v1535, %v1527
          %v2392 = vpack.c.b16 %v1536, %v1528
          %v2393 = vpack.c.b16 %v1545, %v1537
          %v2394 = vpack.c.b16 %v1546, %v1538
          %v2395 = vpack.c.b16 %v1547, %v1539
          %v2396 = vpack.c.b16 %v1548, %v1540
          %v2397 = vpack.c.b16 %v1549, %v1541
          %v2398 = vpack.c.b16 %v1550, %v1542
          %v2399 = vpack.c.b16 %v1551, %v1543
          %v2400 = vpack.c.b16 %v1552, %v1544
          %v2401 = vpack.c.b16 %v1561, %v1553
          %v2402 = vpack.c.b16 %v1562, %v1554
          %v2403 = vpack.c.b16 %v1563, %v1555
          %v2404 = vpack.c.b16 %v1564, %v1556
          %v2405 = vpack.c.b16 %v1565, %v1557
          %v2406 = vpack.c.b16 %v1566, %v1558
          %v2407 = vpack.c.b16 %v1567, %v1559
          %v2408 = vpack.c.b16 %v1568, %v1560
          %v2409 = vpack.c.b16 %v1577, %v1569
          %v2410 = vpack.c.b16 %v1578, %v1570
          %v2411 = vpack.c.b16 %v1579, %v1571
          %v2412 = vpack.c.b16 %v1580, %v1572
          %v2413 = vpack.c.b16 %v1581, %v1573
          %v2414 = vpack.c.b16 %v1582, %v1574
          %v2415 = vpack.c.b16 %v1583, %v1575
          %v2416 = vpack.c.b16 %v1584, %v1576
          %v2417 = vpack.c.b16 %v1593, %v1585
          %v2418 = vpack.c.b16 %v1594, %v1586
          %v2419 = vpack.c.b16 %v1595, %v1587
          %v2420 = vpack.c.b16 %v1596, %v1588
          %v2421 = vpack.c.b16 %v1597, %v1589
          %v2422 = vpack.c.b16 %v1598, %v1590
          %v2423 = vpack.c.b16 %v1599, %v1591
          %v2424 = vpack.c.b16 %v1600, %v1592
          %v2425 = vpack.c.b16 %v1609, %v1601
          %v2426 = vpack.c.b16 %v1610, %v1602
          %v2427 = vpack.c.b16 %v1611, %v1603
          %v2428 = vpack.c.b16 %v1612, %v1604
          %v2429 = vpack.c.b16 %v1613, %v1605
          %v2430 = vpack.c.b16 %v1614, %v1606
          %v2431 = vpack.c.b16 %v1615, %v1607
          %v2432 = vpack.c.b16 %v1616, %v1608
          %v2433 = vpack.c.b16 %v1625, %v1617
          %v2434 = vpack.c.b16 %v1626, %v1618
          %v2435 = vpack.c.b16 %v1627, %v1619
          %v2436 = vpack.c.b16 %v1628, %v1620
          %v2437 = vpack.c.b16 %v1629, %v1621
          %v2438 = vpack.c.b16 %v1630, %v1622
          %v2439 = vpack.c.b16 %v1631, %v1623
          %v2440 = vpack.c.b16 %v1632, %v1624
          %v2441 = vpack.c.b16 %v1641, %v1633
          %v2442 = vpack.c.b16 %v1642, %v1634
          %v2443 = vpack.c.b16 %v1643, %v1635
          %v2444 = vpack.c.b16 %v1644, %v1636
          %v2445 = vpack.c.b16 %v1645, %v1637
          %v2446 = vpack.c.b16 %v1646, %v1638
          %v2447 = vpack.c.b16 %v1647, %v1639
          %v2448 = vpack.c.b16 %v1648, %v1640
          %v2449 = vpack.c.b16 %v1657, %v1649
          %v2450 = vpack.c.b16 %v1658, %v1650
          %v2451 = vpack.c.b16 %v1659, %v1651
          %v2452 = vpack.c.b16 %v1660, %v1652
          %v2453 = vpack.c.b16 %v1661, %v1653
          %v2454 = vpack.c.b16 %v1662, %v1654
          %v2455 = vpack.c.b16 %v1663, %v1655
          %v2456 = vpack.c.b16 %v1664, %v1656
          %v2457 = vpack.c.b16 %v1673, %v1665
          %v2458 = vpack.c.b16 %v1674, %v1666
          %v2459 = vpack.c.b16 %v1675, %v1667
          %v2460 = vpack.c.b16 %v1676, %v1668
          %v2461 = vpack.c.b16 %v1677, %v1669
          %v2462 = vpack.c.b16 %v1678, %v1670
          %v2463 = vpack.c.b16 %v1679, %v1671
          %v2464 = vpack.c.b16 %v1680, %v1672
          %v2465 = vpack.c.b16 %v1689, %v1681
          %v2466 = vpack.c.b16 %v1690, %v1682
          %v2467 = vpack.c.b16 %v1691, %v1683
          %v2468 = vpack.c.b16 %v1692, %v1684
          %v2469 = vpack.c.b16 %v1693, %v1685
          %v2470 = vpack.c.b16 %v1694, %v1686
          %v2471 = vpack.c.b16 %v1695, %v1687
          %v2472 = vpack.c.b16 %v1696, %v1688
          %v2473 = vpack.c.b16 %v1705, %v1697
          %v2474 = vpack.c.b16 %v1706, %v1698
          %v2475 = vpack.c.b16 %v1707, %v1699
          %v2476 = vpack.c.b16 %v1708, %v1700
          %v2477 = vpack.c.b16 %v1709, %v1701
          %v2478 = vpack.c.b16 %v1710, %v1702
          %v2479 = vpack.c.b16 %v1711, %v1703
          %v2480 = vpack.c.b16 %v1712, %v1704
          %v2481 = vpack.c.b16 %v1721, %v1713
          %v2482 = vpack.c.b16 %v1722, %v1714
          %v2483 = vpack.c.b16 %v1723, %v1715
          %v2484 = vpack.c.b16 %v1724, %v1716
          %v2485 = vpack.c.b16 %v1725, %v1717
          %v2486 = vpack.c.b16 %v1726, %v1718
          %v2487 = vpack.c.b16 %v1727, %v1719
          %v2488 = vpack.c.b16 %v1728, %v1720
          %v2489 = vpack.c.b16 %v1737, %v1729
          %v2490 = vpack.c.b16 %v1738, %v1730
          %v2491 = vpack.c.b16 %v1739, %v1731
          %v2492 = vpack.c.b16 %v1740, %v1732
          %v2493 = vpack.c.b16 %v1741, %v1733
          %v2494 = vpack.c.b16 %v1742, %v1734
          %v2495 = vpack.c.b16 %v1743, %v1735
          %v2496 = vpack.c.b16 %v1744, %v1736
          %v2497 = vpack.c.b16 %v1753, %v1745
          %v2498 = vpack.c.b16 %v1754, %v1746
          %v2499 = vpack.c.b16 %v1755, %v1747
          %v2500 = vpack.c.b16 %v1756, %v1748
          %v2501 = vpack.c.b16 %v1757, %v1749
          %v2502 = vpack.c.b16 %v1758, %v1750
          %v2503 = vpack.c.b16 %v1759, %v1751
          %v2504 = vpack.c.b16 %v1760, %v1752
          %v2505 = vpack.c.b16 %v1769, %v1761
          %v2506 = vpack.c.b16 %v1770, %v1762
          %v2507 = vpack.c.b16 %v1771, %v1763
          %v2508 = vpack.c.b16 %v1772, %v1764
          %v2509 = vpack.c.b16 %v1773, %v1765
          %v2510 = vpack.c.b16 %v1774, %v1766
          %v2511 = vpack.c.b16 %v1775, %v1767
          %v2512 = vpack.c.b16 %v1776, %v1768
          %v2513 = vpack.c.b16 %v1785, %v1777
          %v2514 = vpack.c.b16 %v1786, %v1778
          %v2515 = vpack.c.b16 %v1787, %v1779
          %v2516 = vpack.c.b16 %v1788, %v1780
          %v2517 = vpack.c.b16 %v1789, %v1781
          %v2518 = vpack.c.b16 %v1790, %v1782
          %v2519 = vpack.c.b16 %v1791, %v1783
          %v2520 = vpack.c.b16 %v1792, %v1784
          %v2521 = vpack.c.b16 %v1801, %v1793
          %v2522 = vpack.c.b16 %v1802, %v1794
          %v2523 = vpack.c.b16 %v1803, %v1795
          %v2524 = vpack.c.b16 %v1804, %v1796
          %v2525 = vpack.c.b16 %v1805, %v1797
          %v2526 = vpack.c.b16 %v1806, %v1798
          %v2527 = vpack.c.b16 %v1807, %v1799
          %v2528 = vpack.c.b16 %v1808, %v1800
          %v2529 = vpack.c.b16 %v1817, %v1809
          %v2530 = vpack.c.b16 %v1818, %v1810
          %v2531 = vpack.c.b16 %v1819, %v1811
          %v2532 = vpack.c.b16 %v1820, %v1812
          %v2533 = vpack.c.b16 %v1821, %v1813
          %v2534 = vpack.c.b16 %v1822, %v1814
          %v2535 = vpack.c.b16 %v1823, %v1815
          %v2536 = vpack.c.b16 %v1824, %v1816
          %v2537 = vpack.c.b16 %v1833, %v1825
          %v2538 = vpack.c.b16 %v1834, %v1826
          %v2539 = vpack.c.b16 %v1835, %v1827
          %v2540 = vpack.c.b16 %v1836, %v1828
          %v2541 = vpack.c.b16 %v1837, %v1829
          %v2542 = vpack.c.b16 %v1838, %v1830
          %v2543 = vpack.c.b16 %v1839, %v1831
          %v2544 = vpack.c.b16 %v1840, %v1832
          %v2545 = vpack.c.b16 %v1849, %v1841
          %v2546 = vpack.c.b16 %v1850, %v1842
          %v2547 = vpack.c.b16 %v1851, %v1843
          %v2548 = vpack.c.b16 %v1852, %v1844
          %v2549 = vpack.c.b16 %v1853, %v1845
          %v2550 = vpack.c.b16 %v1854, %v1846
          %v2551 = vpack.c.b16 %v1855, %v1847
          %v2552 = vpack.c.b16 %v1856, %v1848
          %v2553 = vpack.c.b16 %v1865, %v1857
          %v2554 = vpack.c.b16 %v1866, %v1858
          %v2555 = vpack.c.b16 %v1867, %v1859
          %v2556 = vpack.c.b16 %v1868, %v1860
          %v2557 = vpack.c.b16 %v1869, %v1861
          %v2558 = vpack.c.b16 %v1870, %v1862
          %v2559 = vpack.c.b16 %v1871, %v1863
          %v2560 = vpack.c.b16 %v1872, %v1864
          %v2561 = vpack.c.b16 %v1881, %v1873
          %v2562 = vpack.c.b16 %v1882, %v1874
          %v2563 = vpack.c.b16 %v1883, %v1875
          %v2564 = vpack.c.b16 %v1884, %v1876
          %v2565 = vpack.c.b16 %v1885, %v1877
          %v2566 = vpack.c.b16 %v1886, %v1878
          %v2567 = vpack.c.b16 %v1887, %v1879
          %v2568 = vpack.c.b16 %v1888, %v1880
          %v2569 = vpack.c.b16 %v1897, %v1889
          %v2570 = vpack.c.b16 %v1898, %v1890
          %v2571 = vpack.c.b16 %v1899, %v1891
          %v2572 = vpack.c.b16 %v1900, %v1892
          %v2573 = vpack.c.b16 %v1901, %v1893
          %v2574 = vpack.c.b16 %v1902, %v1894
          %v2575 = vpack.c.b16 %v1903, %v1895
          %v2576 = vpack.c.b16 %v1904, %v1896
          %v2577 = vpack.c.b16 %v1913, %v1905
          %v2578 = vpack.c.b16 %v1914, %v1906
          %v2579 = vpack.c.b16 %v1915, %v1907
          %v2580 = vpack.c.b16 %v1916, %v1908
          %v2581 = vpack.c.b16 %v1917, %v1909
          %v2582 = vpack.c.b16 %v1918, %v1910
          %v2583 = vpack.c.b16 %v1919, %v1911
          %v2584 = vpack.c.b16 %v1920, %v1912
          %v2585 = vpack.c.b16 %v1929, %v1921
          %v2586 = vpack.c.b16 %v1930, %v1922
          %v2587 = vpack.c.b16 %v1931, %v1923
          %v2588 = vpack.c.b16 %v1932, %v1924
          %v2589 = vpack.c.b16 %v1933, %v1925
          %v2590 = vpack.c.b16 %v1934, %v1926
          %v2591 = vpack.c.b16 %v1935, %v1927
          %v2592 = vpack.c.b16 %v1936, %v1928
          %v2593 = vpack.c.b16 %v1945, %v1937
          %v2594 = vpack.c.b16 %v1946, %v1938
          %v2595 = vpack.c.b16 %v1947, %v1939
          %v2596 = vpack.c.b16 %v1948, %v1940
          %v2597 = vpack.c.b16 %v1949, %v1941
          %v2598 = vpack.c.b16 %v1950, %v1942
          %v2599 = vpack.c.b16 %v1951, %v1943
          %v2600 = vpack.c.b16 %v1952, %v1944
          %v2601 = vpack.c.b16 %v1961, %v1953
          %v2602 = vpack.c.b16 %v1962, %v1954
          %v2603 = vpack.c.b16 %v1963, %v1955
          %v2604 = vpack.c.b16 %v1964, %v1956
          %v2605 = vpack.c.b16 %v1965, %v1957
          %v2606 = vpack.c.b16 %v1966, %v1958
          %v2607 = vpack.c.b16 %v1967, %v1959
          %v2608 = vpack.c.b16 %v1968, %v1960
          %v2609 = vpack.c.b16 %v1977, %v1969
          %v2610 = vpack.c.b16 %v1978, %v1970
          %v2611 = vpack.c.b16 %v1979, %v1971
          %v2612 = vpack.c.b16 %v1980, %v1972
          %v2613 = vpack.c.b16 %v1981, %v1973
          %v2614 = vpack.c.b16 %v1982, %v1974
          %v2615 = vpack.c.b16 %v1983, %v1975
          %v2616 = vpack.c.b16 %v1984, %v1976
          %v2617 = vpack.c.b16 %v1993, %v1985
          %v2618 = vpack.c.b16 %v1994, %v1986
          %v2619 = vpack.c.b16 %v1995, %v1987
          %v2620 = vpack.c.b16 %v1996, %v1988
          %v2621 = vpack.c.b16 %v1997, %v1989
          %v2622 = vpack.c.b16 %v1998, %v1990
          %v2623 = vpack.c.b16 %v1999, %v1991
          %v2624 = vpack.c.b16 %v2000, %v1992
          %v2625 = vpack.c.b16 %v2009, %v2001
          %v2626 = vpack.c.b16 %v2010, %v2002
          %v2627 = vpack.c.b16 %v2011, %v2003
          %v2628 = vpack.c.b16 %v2012, %v2004
          %v2629 = vpack.c.b16 %v2013, %v2005
          %v2630 = vpack.c.b16 %v2014, %v2006
          %v2631 = vpack.c.b16 %v2015, %v2007
          %v2632 = vpack.c.b16 %v2016, %v2008
          %v2633 = vpack.c.b16 %v2025, %v2017
          %v2634 = vpack.c.b16 %v2026, %v2018
          %v2635 = vpack.c.b16 %v2027, %v2019
          %v2636 = vpack.c.b16 %v2028, %v2020
          %v2637 = vpack.c.b16 %v2029, %v2021
          %v2638 = vpack.c.b16 %v2030, %v2022
          %v2639 = vpack.c.b16 %v2031, %v2023
          %v2640 = vpack.c.b16 %v2032, %v2024
          %v2641 = vpack.c.b16 %v2041, %v2033
          %v2642 = vpack.c.b16 %v2042, %v2034
          %v2643 = vpack.c.b16 %v2043, %v2035
          %v2644 = vpack.c.b16 %v2044, %v2036
          %v2645 = vpack.c.b16 %v2045, %v2037
          %v2646 = vpack.c.b16 %v2046, %v2038
          %v2647 = vpack.c.b16 %v2047, %v2039
          %v2648 = vpack.c.b16 %v2048, %v2040
          %v2649 = vpack.c.b16 %v2057, %v2049
          %v2650 = vpack.c.b16 %v2058, %v2050
          %v2651 = vpack.c.b16 %v2059, %v2051
          %v2652 = vpack.c.b16 %v2060, %v2052
          %v2653 = vpack.c.b16 %v2061, %v2053
          %v2654 = vpack.c.b16 %v2062, %v2054
          %v2655 = vpack.c.b16 %v2063, %v2055
          %v2656 = vpack.c.b16 %v2064, %v2056
          %v2657 = vpack.c.b16 %v2073, %v2065
          %v2658 = vpack.c.b16 %v2074, %v2066
          %v2659 = vpack.c.b16 %v2075, %v2067
          %v2660 = vpack.c.b16 %v2076, %v2068
          %v2661 = vpack.c.b16 %v2077, %v2069
          %v2662 = vpack.c.b16 %v2078, %v2070
          %v2663 = vpack.c.b16 %v2079, %v2071
          %v2664 = vpack.c.b16 %v2080, %v2072
          %v2665 = vpack.c.b16 %v2089, %v2081
          %v2666 = vpack.c.b16 %v2090, %v2082
          %v2667 = vpack.c.b16 %v2091, %v2083
          %v2668 = vpack.c.b16 %v2092, %v2084
          %v2669 = vpack.c.b16 %v2093, %v2085
          %v2670 = vpack.c.b16 %v2094, %v2086
          %v2671 = vpack.c.b16 %v2095, %v2087
          %v2672 = vpack.c.b16 %v2096, %v2088
          %v2673 = vpack.c.b16 %v2105, %v2097
          %v2674 = vpack.c.b16 %v2106, %v2098
          %v2675 = vpack.c.b16 %v2107, %v2099
          %v2676 = vpack.c.b16 %v2108, %v2100
          %v2677 = vpack.c.b16 %v2109, %v2101
          %v2678 = vpack.c.b16 %v2110, %v2102
          %v2679 = vpack.c.b16 %v2111, %v2103
          %v2680 = vpack.c.b16 %v2112, %v2104
          %v2681 = vpack.c.b16 %v2121, %v2113
          %v2682 = vpack.c.b16 %v2122, %v2114
          %v2683 = vpack.c.b16 %v2123, %v2115
          %v2684 = vpack.c.b16 %v2124, %v2116
          %v2685 = vpack.c.b16 %v2125, %v2117
          %v2686 = vpack.c.b16 %v2126, %v2118
          %v2687 = vpack.c.b16 %v2127, %v2119
          %v2688 = vpack.c.b16 %v2128, %v2120
          %v2689 = vpack.c.b16 %v2137, %v2129
          %v2690 = vpack.c.b16 %v2138, %v2130
          %v2691 = vpack.c.b16 %v2139, %v2131
          %v2692 = vpack.c.b16 %v2140, %v2132
          %v2693 = vpack.c.b16 %v2141, %v2133
          %v2694 = vpack.c.b16 %v2142, %v2134
          %v2695 = vpack.c.b16 %v2143, %v2135
          %v2696 = vpack.c.b16 %v2144, %v2136
          %v2697 = vpack.c.b16 %v2153, %v2145
          %v2698 = vpack.c.b16 %v2154, %v2146
          %v2699 = vpack.c.b16 %v2155, %v2147
          %v2700 = vpack.c.b16 %v2156, %v2148
          %v2701 = vpack.c.b16 %v2157, %v2149
          %v2702 = vpack.c.b16 %v2158, %v2150
          %v2703 = vpack.c.b16 %v2159, %v2151
          %v2704 = vpack.c.b16 %v2160, %v2152
          %v2705 = vpack.c.b16 %v2169, %v2161
          %v2706 = vpack.c.b16 %v2170, %v2162
          %v2707 = vpack.c.b16 %v2171, %v2163
          %v2708 = vpack.c.b16 %v2172, %v2164
          %v2709 = vpack.c.b16 %v2173, %v2165
          %v2710 = vpack.c.b16 %v2174, %v2166
          %v2711 = vpack.c.b16 %v2175, %v2167
          %v2712 = vpack.c.b16 %v2176, %v2168
          %v2713 = vpack.c.b16 %v2185, %v2177
          %v2714 = vpack.c.b16 %v2186, %v2178
          %v2715 = vpack.c.b16 %v2187, %v2179
          %v2716 = vpack.c.b16 %v2188, %v2180
          %v2717 = vpack.c.b16 %v2189, %v2181
          %v2718 = vpack.c.b16 %v2190, %v2182
          %v2719 = vpack.c.b16 %v2191, %v2183
          %v2720 = vpack.c.b16 %v2192, %v2184
          %v2721 = vpack.c.b16 %v2201, %v2193
          %v2722 = vpack.c.b16 %v2202, %v2194
          %v2723 = vpack.c.b16 %v2203, %v2195
          %v2724 = vpack.c.b16 %v2204, %v2196
          %v2725 = vpack.c.b16 %v2205, %v2197
          %v2726 = vpack.c.b16 %v2206, %v2198
          %v2727 = vpack.c.b16 %v2207, %v2199
          %v2728 = vpack.c.b16 %v2208, %v2200
          %v2729 = vpack.c.b16 %v2217, %v2209
          %v2730 = vpack.c.b16 %v2218, %v2210
          %v2731 = vpack.c.b16 %v2219, %v2211
          %v2732 = vpack.c.b16 %v2220, %v2212
          %v2733 = vpack.c.b16 %v2221, %v2213
          %v2734 = vpack.c.b16 %v2222, %v2214
          %v2735 = vpack.c.b16 %v2223, %v2215
          %v2736 = vpack.c.b16 %v2224, %v2216
          %v2737 = vpack.c.b16 %v2233, %v2225
          %v2738 = vpack.c.b16 %v2234, %v2226
          %v2739 = vpack.c.b16 %v2235, %v2227
          %v2740 = vpack.c.b16 %v2236, %v2228
          %v2741 = vpack.c.b16 %v2237, %v2229
          %v2742 = vpack.c.b16 %v2238, %v2230
          %v2743 = vpack.c.b16 %v2239, %v2231
          %v2744 = vpack.c.b16 %v2240, %v2232
          %v2745 = vpack.c.b16 %v2249, %v2241
          %v2746 = vpack.c.b16 %v2250, %v2242
          %v2747 = vpack.c.b16 %v2251, %v2243
          %v2748 = vpack.c.b16 %v2252, %v2244
          %v2749 = vpack.c.b16 %v2253, %v2245
          %v2750 = vpack.c.b16 %v2254, %v2246
          %v2751 = vpack.c.b16 %v2255, %v2247
          %v2752 = vpack.c.b16 %v2256, %v2248
          %v2753 = vpack.c.b16 %v2265, %v2257
          %v2754 = vpack.c.b16 %v2266, %v2258
          %v2755 = vpack.c.b16 %v2267, %v2259
          %v2756 = vpack.c.b16 %v2268, %v2260
          %v2757 = vpack.c.b16 %v2269, %v2261
          %v2758 = vpack.c.b16 %v2270, %v2262
          %v2759 = vpack.c.b16 %v2271, %v2263
          %v2760 = vpack.c.b16 %v2272, %v2264
          %v2761 = vpack.c.b16 %v2281, %v2273
          %v2762 = vpack.c.b16 %v2282, %v2274
          %v2763 = vpack.c.b16 %v2283, %v2275
          %v2764 = vpack.c.b16 %v2284, %v2276
          %v2765 = vpack.c.b16 %v2285, %v2277
          %v2766 = vpack.c.b16 %v2286, %v2278
          %v2767 = vpack.c.b16 %v2287, %v2279
          %v2768 = vpack.c.b16 %v2288, %v2280
          %v2769 = vpack.c.b16 %v2297, %v2289
          %v2770 = vpack.c.b16 %v2298, %v2290
          %v2771 = vpack.c.b16 %v2299, %v2291
          %v2772 = vpack.c.b16 %v2300, %v2292
          %v2773 = vpack.c.b16 %v2301, %v2293
          %v2774 = vpack.c.b16 %v2302, %v2294
          %v2775 = vpack.c.b16 %v2303, %v2295
          %v2776 = vpack.c.b16 %v2304, %v2296
          %v2777 = vpack.c.b16 %v2313, %v2305
          %v2778 = vpack.c.b16 %v2314, %v2306
          %v2779 = vpack.c.b16 %v2315, %v2307
          %v2780 = vpack.c.b16 %v2316, %v2308
          %v2781 = vpack.c.b16 %v2317, %v2309
          %v2782 = vpack.c.b16 %v2318, %v2310
          %v2783 = vpack.c.b16 %v2319, %v2311
          %v2784 = vpack.c.b16 %v2320, %v2312
          %v2785 = vpack.c.b16 %v2329, %v2321
          %v2786 = vpack.c.b16 %v2330, %v2322
          %v2787 = vpack.c.b16 %v2331, %v2323
          %v2788 = vpack.c.b16 %v2332, %v2324
          %v2789 = vpack.c.b16 %v2333, %v2325
          %v2790 = vpack.c.b16 %v2334, %v2326
          %v2791 = vpack.c.b16 %v2335, %v2327
          %v2792 = vpack.c.b16 %v2336, %v2328
          %v2793 = vpack.c.b16 %v2345, %v2337
          %v2794 = vpack.c.b16 %v2346, %v2338
          %v2795 = vpack.c.b16 %v2347, %v2339
          %v2796 = vpack.c.b16 %v2348, %v2340
          %v2797 = vpack.c.b16 %v2349, %v2341
          %v2798 = vpack.c.b16 %v2350, %v2342
          %v2799 = vpack.c.b16 %v2351, %v2343
          %v2800 = vpack.c.b16 %v2352, %v2344
          %3249 = vmatprep.subr.bf16.mxu0 %v2354
          %3250 = vmatpush1.bf16.msra.mxu0 %v2353
          %3251 = vmatprep.subr.bf16.mxu0 %v2362
          %3252 = vmatpush1.bf16.msra.mxu0 %v2361
          %3253 = vmatprep.subr.bf16.mxu0 %v2370
          %3254 = vmatpush1.bf16.msra.mxu0 %v2369
          %3255 = vmatprep.subr.bf16.mxu0 %v2378
          %3256 = vmatpush1.bf16.msra.mxu0 %v2377
          %3257 = vmatprep.subr.bf16.mxu0 %v2386
          %3258 = vmatpush1.bf16.msra.mxu0 %v2385
          %3259 = vmatprep.subr.bf16.mxu0 %v2394
          %3260 = vmatpush1.bf16.msra.mxu0 %v2393
          %3261 = vmatprep.subr.bf16.mxu0 %v2402
          %3262 = vmatpush1.bf16.msra.mxu0 %v2401
          %3263 = vmatprep.subr.bf16.mxu0 %v2410
          %3264 = vmatpush1.bf16.msra.mxu0 %v2409
          %3265 = vmatprep.subr.bf16.mxu0 %v2418
          %3266 = vmatpush1.bf16.msra.mxu0 %v2417
          %3267 = vmatprep.subr.bf16.mxu0 %v2426
          %3268 = vmatpush1.bf16.msra.mxu0 %v2425
          %3269 = vmatprep.subr.bf16.mxu0 %v2434
          %3270 = vmatpush1.bf16.msra.mxu0 %v2433
          %3271 = vmatprep.subr.bf16.mxu0 %v2442
          %3272 = vmatpush1.bf16.msra.mxu0 %v2441
          %3273 = vmatprep.subr.bf16.mxu0 %v2450
          %3274 = vmatpush1.bf16.msra.mxu0 %v2449
          %3275 = vmatprep.subr.bf16.mxu0 %v2458
          %3276 = vmatpush1.bf16.msra.mxu0 %v2457
          %3277 = vmatprep.subr.bf16.mxu0 %v2466
          %3278 = vmatpush1.bf16.msra.mxu0 %v2465
          %3279 = vmatprep.subr.bf16.mxu0 %v2474
          %3280 = vmatpush1.bf16.msra.mxu0 %v2473
          %3281 = vmatprep.mubr.bf16.mxu0 %v996
          %3282 = vmatmul.mubr.bf16.gmra.mrb[0].mxu0 %v995
          %v3283 = vpop.f32.mrb[0].mxu0
          %v3284 = vadd.f32 %v947, %v3283
          %v3285 = vpop.f32.mrb[0].mxu0
          %v3286 = vadd.f32 %v951, %v3285
          %v3287 = vpop.f32.mrb[0].mxu0
          %v3288 = vpop.f32.mrb[0].mxu0
          %3289 = vdwg.mxu0
          %3290 = vmatprep.subr.bf16.mxu0 %v2482
          %3291 = vmatpush1.bf16.msra.mxu0 %v2481
          %3292 = vmatprep.subr.bf16.mxu0 %v2490
          %3293 = vmatpush1.bf16.msra.mxu0 %v2489
          %3294 = vmatprep.subr.bf16.mxu0 %v2498
          %3295 = vmatpush1.bf16.msra.mxu0 %v2497
          %3296 = vmatprep.subr.bf16.mxu0 %v2506
          %3297 = vmatpush1.bf16.msra.mxu0 %v2505
          %3298 = vmatprep.subr.bf16.mxu0 %v2514
          %3299 = vmatpush1.bf16.msra.mxu0 %v2513
          %3300 = vmatprep.subr.bf16.mxu0 %v2522
          %3301 = vmatpush1.bf16.msra.mxu0 %v2521
          %3302 = vmatprep.subr.bf16.mxu0 %v2530
          %3303 = vmatpush1.bf16.msra.mxu0 %v2529
          %3304 = vmatprep.subr.bf16.mxu0 %v2538
          %3305 = vmatpush1.bf16.msra.mxu0 %v2537
          %3306 = vmatprep.subr.bf16.mxu0 %v2546
          %3307 = vmatpush1.bf16.msra.mxu0 %v2545
          %3308 = vmatprep.subr.bf16.mxu0 %v2554
          %3309 = vmatpush1.bf16.msra.mxu0 %v2553
          %3310 = vmatprep.subr.bf16.mxu0 %v2562
          %3311 = vmatpush1.bf16.msra.mxu0 %v2561
          %3312 = vmatprep.subr.bf16.mxu0 %v2570
          %3313 = vmatpush1.bf16.msra.mxu0 %v2569
          %3314 = vmatprep.subr.bf16.mxu0 %v2578
          %3315 = vmatpush1.bf16.msra.mxu0 %v2577
          %3316 = vmatprep.subr.bf16.mxu0 %v2586
          %3317 = vmatpush1.bf16.msra.mxu0 %v2585
          %3318 = vmatprep.subr.bf16.mxu0 %v2594
          %3319 = vmatpush1.bf16.msra.mxu0 %v2593
          %3320 = vmatprep.subr.bf16.mxu0 %v2602
          %3321 = vmatpush1.bf16.msra.mxu0 %v2601
          %3322 = vmatprep.mubr.bf16.mxu0 %v998
          %3323 = vmatmul.mubr.bf16.gmra.mrb[0].mxu0 %v997
          %v3324 = vpop.f32.mrb[0].mxu0
          %v3325 = vadd.f32 %v3284, %v3324
          %v3326 = vpop.f32.mrb[0].mxu0
          %v3327 = vadd.f32 %v3286, %v3326
          %v3328 = vpop.f32.mrb[0].mxu0
          %v3329 = vpop.f32.mrb[0].mxu0
          %3330 = vdwg.mxu0
          %3331 = vmatprep.subr.bf16.mxu0 %v2610
          %3332 = vmatpush1.bf16.msra.mxu0 %v2609
          %3333 = vmatprep.subr.bf16.mxu0 %v2618
          %3334 = vmatpush1.bf16.msra.mxu0 %v2617
          %3335 = vmatprep.subr.bf16.mxu0 %v2626
          %3336 = vmatpush1.bf16.msra.mxu0 %v2625
          %3337 = vmatprep.subr.bf16.mxu0 %v2634
          %3338 = vmatpush1.bf16.msra.mxu0 %v2633
          %3339 = vmatprep.subr.bf16.mxu0 %v2642
          %3340 = vmatpush1.bf16.msra.mxu0 %v2641
          %3341 = vmatprep.subr.bf16.mxu0 %v2650
          %3342 = vmatpush1.bf16.msra.mxu0 %v2649
          %3343 = vmatprep.subr.bf16.mxu0 %v2658
          %3344 = vmatpush1.bf16.msra.mxu0 %v2657
          %3345 = vmatprep.subr.bf16.mxu0 %v2666
          %3346 = vmatpush1.bf16.msra.mxu0 %v2665
          %3347 = vmatprep.subr.bf16.mxu0 %v2674
          %3348 = vmatpush1.bf16.msra.mxu0 %v2673
          %3349 = vmatprep.subr.bf16.mxu0 %v2682
          %3350 = vmatpush1.bf16.msra.mxu0 %v2681
          %3351 = vmatprep.subr.bf16.mxu0 %v2690
          %3352 = vmatpush1.bf16.msra.mxu0 %v2689
          %3353 = vmatprep.subr.bf16.mxu0 %v2698
          %3354 = vmatpush1.bf16.msra.mxu0 %v2697
          %3355 = vmatprep.subr.bf16.mxu0 %v2706
          %3356 = vmatpush1.bf16.msra.mxu0 %v2705
          %3357 = vmatprep.subr.bf16.mxu0 %v2714
          %3358 = vmatpush1.bf16.msra.mxu0 %v2713
          %3359 = vmatprep.subr.bf16.mxu0 %v2722
          %3360 = vmatpush1.bf16.msra.mxu0 %v2721
          %3361 = vmatprep.subr.bf16.mxu0 %v2730
          %3362 = vmatpush1.bf16.msra.mxu0 %v2729
          %3363 = vmatprep.mubr.bf16.mxu0 %v1000
          %3364 = vmatmul.mubr.bf16.gmra.mrb[0].mxu0 %v999
          %v3365 = vpop.f32.mrb[0].mxu0
          %v3366 = vadd.f32 %v3325, %v3365
          %v3367 = vpop.f32.mrb[0].mxu0
          %v3368 = vadd.f32 %v3327, %v3367
          %v3369 = vpop.f32.mrb[0].mxu0
          %v3370 = vpop.f32.mrb[0].mxu0
          %3371 = vdwg.mxu0
          %3372 = vmatprep.subr.bf16.mxu0 %v2738
          %3373 = vmatpush1.bf16.msra.mxu0 %v2737
          %3374 = vmatprep.subr.bf16.mxu0 %v2746
          %3375 = vmatpush1.bf16.msra.mxu0 %v2745
          %3376 = vmatprep.subr.bf16.mxu0 %v2754
          %3377 = vmatpush1.bf16.msra.mxu0 %v2753
          %3378 = vmatprep.subr.bf16.mxu0 %v2762
          %3379 = vmatpush1.bf16.msra.mxu0 %v2761
          %3380 = vmatprep.subr.bf16.mxu0 %v2770
          %3381 = vmatpush1.bf16.msra.mxu0 %v2769
          %3382 = vmatprep.subr.bf16.mxu0 %v2778
          %3383 = vmatpush1.bf16.msra.mxu0 %v2777
          %3384 = vmatprep.subr.bf16.mxu0 %v2786
          %3385 = vmatpush1.bf16.msra.mxu0 %v2785
          %3386 = vmatprep.subr.bf16.mxu0 %v2794
          %3387 = vmatpush1.bf16.msra.mxu0 %v2793
          %3388 = vmatprep.subr.bf16.mxu0 0
          %3389 = vmatpush1.bf16.msra.mxu0 0
          %3390 = vmatprep.subr.bf16.mxu0 0
          %3391 = vmatpush1.bf16.msra.mxu0 0
          %3392 = vmatprep.subr.bf16.mxu0 0
          %3393 = vmatpush1.bf16.msra.mxu0 0
          %3394 = vmatprep.subr.bf16.mxu0 0
          %3395 = vmatpush1.bf16.msra.mxu0 0
          %3396 = vmatprep.subr.bf16.mxu0 0
          %3397 = vmatpush1.bf16.msra.mxu0 0
          %3398 = vmatprep.subr.bf16.mxu0 0
          %3399 = vmatpush1.bf16.msra.mxu0 0
          %3400 = vmatprep.subr.bf16.mxu0 0
          %3401 = vmatpush1.bf16.msra.mxu0 0
          %3402 = vmatprep.subr.bf16.mxu0 0
          %3403 = vmatpush1.bf16.msra.mxu0 0
          %3404 = vmatprep.mubr.bf16.mxu0 0
          %3405 = vmatmul.mubr.bf16.gmra.mrb[0].mxu0 %v1001
          %v3406 = vpop.f32.mrb[0].mxu0
          %v3407 = vadd.f32 %v3366, %v3406
          %v3408 = vpop.f32.mrb[0].mxu0
          %v3409 = vadd.f32 %v3368, %v3408
          %v3410 = vpop.f32.mrb[0].mxu0
          %v3411 = vpop.f32.mrb[0].mxu0
          %3412 = vdwg.mxu0
          %3413 = vmatprep.subr.bf16.mxu0 %v2356
          %3414 = vmatpush1.bf16.msra.mxu0 %v2355
          %3415 = vmatprep.subr.bf16.mxu0 %v2364
          %3416 = vmatpush1.bf16.msra.mxu0 %v2363
          %3417 = vmatprep.subr.bf16.mxu0 %v2372
          %3418 = vmatpush1.bf16.msra.mxu0 %v2371
          %3419 = vmatprep.subr.bf16.mxu0 %v2380
          %3420 = vmatpush1.bf16.msra.mxu0 %v2379
          %3421 = vmatprep.subr.bf16.mxu0 %v2388
          %3422 = vmatpush1.bf16.msra.mxu0 %v2387
          %3423 = vmatprep.subr.bf16.mxu0 %v2396
          %3424 = vmatpush1.bf16.msra.mxu0 %v2395
          %3425 = vmatprep.subr.bf16.mxu0 %v2404
          %3426 = vmatpush1.bf16.msra.mxu0 %v2403
          %3427 = vmatprep.subr.bf16.mxu0 %v2412
          %3428 = vmatpush1.bf16.msra.mxu0 %v2411
          %3429 = vmatprep.subr.bf16.mxu0 %v2420
          %3430 = vmatpush1.bf16.msra.mxu0 %v2419
          %3431 = vmatprep.subr.bf16.mxu0 %v2428
          %3432 = vmatpush1.bf16.msra.mxu0 %v2427
          %3433 = vmatprep.subr.bf16.mxu0 %v2436
          %3434 = vmatpush1.bf16.msra.mxu0 %v2435
          %3435 = vmatprep.subr.bf16.mxu0 %v2444
          %3436 = vmatpush1.bf16.msra.mxu0 %v2443
          %3437 = vmatprep.subr.bf16.mxu0 %v2452
          %3438 = vmatpush1.bf16.msra.mxu0 %v2451
          %3439 = vmatprep.subr.bf16.mxu0 %v2460
          %3440 = vmatpush1.bf16.msra.mxu0 %v2459
          %3441 = vmatprep.subr.bf16.mxu0 %v2468
          %3442 = vmatpush1.bf16.msra.mxu0 %v2467
          %3443 = vmatprep.subr.bf16.mxu0 %v2476
          %3444 = vmatpush1.bf16.msra.mxu0 %v2475
          %3445 = vmatprep.mubr.bf16.mxu0 %v996
          %3446 = vmatmul.mubr.bf16.gmra.mrb[0].mxu0 %v995
          %v3447 = vpop.f32.mrb[0].mxu0
          %v3448 = vadd.f32 %v955, %v3447
          %v3449 = vpop.f32.mrb[0].mxu0
          %v3450 = vadd.f32 %v959, %v3449
          %v3451 = vpop.f32.mrb[0].mxu0
          %v3452 = vpop.f32.mrb[0].mxu0
          %3453 = vdwg.mxu0
          %3454 = vmatprep.subr.bf16.mxu0 %v2484
          %3455 = vmatpush1.bf16.msra.mxu0 %v2483
          %3456 = vmatprep.subr.bf16.mxu0 %v2492
          %3457 = vmatpush1.bf16.msra.mxu0 %v2491
          %3458 = vmatprep.subr.bf16.mxu0 %v2500
          %3459 = vmatpush1.bf16.msra.mxu0 %v2499
          %3460 = vmatprep.subr.bf16.mxu0 %v2508
          %3461 = vmatpush1.bf16.msra.mxu0 %v2507
          %3462 = vmatprep.subr.bf16.mxu0 %v2516
          %3463 = vmatpush1.bf16.msra.mxu0 %v2515
          %3464 = vmatprep.subr.bf16.mxu0 %v2524
          %3465 = vmatpush1.bf16.msra.mxu0 %v2523
          %3466 = vmatprep.subr.bf16.mxu0 %v2532
          %3467 = vmatpush1.bf16.msra.mxu0 %v2531
          %3468 = vmatprep.subr.bf16.mxu0 %v2540
          %3469 = vmatpush1.bf16.msra.mxu0 %v2539
          %3470 = vmatprep.subr.bf16.mxu0 %v2548
          %3471 = vmatpush1.bf16.msra.mxu0 %v2547
          %3472 = vmatprep.subr.bf16.mxu0 %v2556
          %3473 = vmatpush1.bf16.msra.mxu0 %v2555
          %3474 = vmatprep.subr.bf16.mxu0 %v2564
          %3475 = vmatpush1.bf16.msra.mxu0 %v2563
          %3476 = vmatprep.subr.bf16.mxu0 %v2572
          %3477 = vmatpush1.bf16.msra.mxu0 %v2571
          %3478 = vmatprep.subr.bf16.mxu0 %v2580
          %3479 = vmatpush1.bf16.msra.mxu0 %v2579
          %3480 = vmatprep.subr.bf16.mxu0 %v2588
          %3481 = vmatpush1.bf16.msra.mxu0 %v2587
          %3482 = vmatprep.subr.bf16.mxu0 %v2596
          %3483 = vmatpush1.bf16.msra.mxu0 %v2595
          %3484 = vmatprep.subr.bf16.mxu0 %v2604
          %3485 = vmatpush1.bf16.msra.mxu0 %v2603
          %3486 = vmatprep.mubr.bf16.mxu0 %v998
          %3487 = vmatmul.mubr.bf16.gmra.mrb[0].mxu0 %v997
          %v3488 = vpop.f32.mrb[0].mxu0
          %v3489 = vadd.f32 %v3448, %v3488
          %v3490 = vpop.f32.mrb[0].mxu0
          %v3491 = vadd.f32 %v3450, %v3490
          %v3492 = vpop.f32.mrb[0].mxu0
          %v3493 = vpop.f32.mrb[0].mxu0
          %3494 = vdwg.mxu0
          %3495 = vmatprep.subr.bf16.mxu0 %v2612
          %3496 = vmatpush1.bf16.msra.mxu0 %v2611
          %3497 = vmatprep.subr.bf16.mxu0 %v2620
          %3498 = vmatpush1.bf16.msra.mxu0 %v2619
          %3499 = vmatprep.subr.bf16.mxu0 %v2628
          %3500 = vmatpush1.bf16.msra.mxu0 %v2627
          %3501 = vmatprep.subr.bf16.mxu0 %v2636
          %3502 = vmatpush1.bf16.msra.mxu0 %v2635
          %3503 = vmatprep.subr.bf16.mxu0 %v2644
          %3504 = vmatpush1.bf16.msra.mxu0 %v2643
          %3505 = vmatprep.subr.bf16.mxu0 %v2652
          %3506 = vmatpush1.bf16.msra.mxu0 %v2651
          %3507 = vmatprep.subr.bf16.mxu0 %v2660
          %3508 = vmatpush1.bf16.msra.mxu0 %v2659
          %3509 = vmatprep.subr.bf16.mxu0 %v2668
          %3510 = vmatpush1.bf16.msra.mxu0 %v2667
          %3511 = vmatprep.subr.bf16.mxu0 %v2676
          %3512 = vmatpush1.bf16.msra.mxu0 %v2675
          %3513 = vmatprep.subr.bf16.mxu0 %v2684
          %3514 = vmatpush1.bf16.msra.mxu0 %v2683
          %3515 = vmatprep.subr.bf16.mxu0 %v2692
          %3516 = vmatpush1.bf16.msra.mxu0 %v2691
          %3517 = vmatprep.subr.bf16.mxu0 %v2700
          %3518 = vmatpush1.bf16.msra.mxu0 %v2699
          %3519 = vmatprep.subr.bf16.mxu0 %v2708
          %3520 = vmatpush1.bf16.msra.mxu0 %v2707
          %3521 = vmatprep.subr.bf16.mxu0 %v2716
          %3522 = vmatpush1.bf16.msra.mxu0 %v2715
          %3523 = vmatprep.subr.bf16.mxu0 %v2724
          %3524 = vmatpush1.bf16.msra.mxu0 %v2723
          %3525 = vmatprep.subr.bf16.mxu0 %v2732
          %3526 = vmatpush1.bf16.msra.mxu0 %v2731
          %3527 = vmatprep.mubr.bf16.mxu0 %v1000
          %3528 = vmatmul.mubr.bf16.gmra.mrb[0].mxu0 %v999
          %v3529 = vpop.f32.mrb[0].mxu0
          %v3530 = vadd.f32 %v3489, %v3529
          %v3531 = vpop.f32.mrb[0].mxu0
          %v3532 = vadd.f32 %v3491, %v3531
          %v3533 = vpop.f32.mrb[0].mxu0
          %v3534 = vpop.f32.mrb[0].mxu0
          %3535 = vdwg.mxu0
          %3536 = vmatprep.subr.bf16.mxu0 %v2740
          %3537 = vmatpush1.bf16.msra.mxu0 %v2739
          %3538 = vmatprep.subr.bf16.mxu0 %v2748
          %3539 = vmatpush1.bf16.msra.mxu0 %v2747
          %3540 = vmatprep.subr.bf16.mxu0 %v2756
          %3541 = vmatpush1.bf16.msra.mxu0 %v2755
          %3542 = vmatprep.subr.bf16.mxu0 %v2764
          %3543 = vmatpush1.bf16.msra.mxu0 %v2763
          %3544 = vmatprep.subr.bf16.mxu0 %v2772
          %3545 = vmatpush1.bf16.msra.mxu0 %v2771
          %3546 = vmatprep.subr.bf16.mxu0 %v2780
          %3547 = vmatpush1.bf16.msra.mxu0 %v2779
          %3548 = vmatprep.subr.bf16.mxu0 %v2788
          %3549 = vmatpush1.bf16.msra.mxu0 %v2787
          %3550 = vmatprep.subr.bf16.mxu0 %v2796
          %3551 = vmatpush1.bf16.msra.mxu0 %v2795
          %3552 = vmatprep.subr.bf16.mxu0 0
          %3553 = vmatpush1.bf16.msra.mxu0 0
          %3554 = vmatprep.subr.bf16.mxu0 0
          %3555 = vmatpush1.bf16.msra.mxu0 0
          %3556 = vmatprep.subr.bf16.mxu0 0
          %3557 = vmatpush1.bf16.msra.mxu0 0
          %3558 = vmatprep.subr.bf16.mxu0 0
          %3559 = vmatpush1.bf16.msra.mxu0 0
          %3560 = vmatprep.subr.bf16.mxu0 0
          %3561 = vmatpush1.bf16.msra.mxu0 0
          %3562 = vmatprep.subr.bf16.mxu0 0
          %3563 = vmatpush1.bf16.msra.mxu0 0
          %3564 = vmatprep.subr.bf16.mxu0 0
          %3565 = vmatpush1.bf16.msra.mxu0 0
          %3566 = vmatprep.subr.bf16.mxu0 0
          %3567 = vmatpush1.bf16.msra.mxu0 0
          %3568 = vmatprep.mubr.bf16.mxu0 0
          %3569 = vmatmul.mubr.bf16.gmra.mrb[0].mxu0 %v1001
          %v3570 = vpop.f32.mrb[0].mxu0
          %v3571 = vadd.f32 %v3530, %v3570
          %v3572 = vpop.f32.mrb[0].mxu0
          %v3573 = vadd.f32 %v3532, %v3572
          %v3574 = vpop.f32.mrb[0].mxu0
          %v3575 = vpop.f32.mrb[0].mxu0
          %3576 = vdwg.mxu0
          %3577 = vmatprep.subr.bf16.mxu0 %v2358
          %3578 = vmatpush1.bf16.msra.mxu0 %v2357
          %3579 = vmatprep.subr.bf16.mxu0 %v2366
          %3580 = vmatpush1.bf16.msra.mxu0 %v2365
          %3581 = vmatprep.subr.bf16.mxu0 %v2374
          %3582 = vmatpush1.bf16.msra.mxu0 %v2373
          %3583 = vmatprep.subr.bf16.mxu0 %v2382
          %3584 = vmatpush1.bf16.msra.mxu0 %v2381
          %3585 = vmatprep.subr.bf16.mxu0 %v2390
          %3586 = vmatpush1.bf16.msra.mxu0 %v2389
          %3587 = vmatprep.subr.bf16.mxu0 %v2398
          %3588 = vmatpush1.bf16.msra.mxu0 %v2397
          %3589 = vmatprep.subr.bf16.mxu0 %v2406
          %3590 = vmatpush1.bf16.msra.mxu0 %v2405
          %3591 = vmatprep.subr.bf16.mxu0 %v2414
          %3592 = vmatpush1.bf16.msra.mxu0 %v2413
          %3593 = vmatprep.subr.bf16.mxu0 %v2422
          %3594 = vmatpush1.bf16.msra.mxu0 %v2421
          %3595 = vmatprep.subr.bf16.mxu0 %v2430
          %3596 = vmatpush1.bf16.msra.mxu0 %v2429
          %3597 = vmatprep.subr.bf16.mxu0 %v2438
          %3598 = vmatpush1.bf16.msra.mxu0 %v2437
          %3599 = vmatprep.subr.bf16.mxu0 %v2446
          %3600 = vmatpush1.bf16.msra.mxu0 %v2445
          %3601 = vmatprep.subr.bf16.mxu0 %v2454
          %3602 = vmatpush1.bf16.msra.mxu0 %v2453
          %3603 = vmatprep.subr.bf16.mxu0 %v2462
          %3604 = vmatpush1.bf16.msra.mxu0 %v2461
          %3605 = vmatprep.subr.bf16.mxu0 %v2470
          %3606 = vmatpush1.bf16.msra.mxu0 %v2469
          %3607 = vmatprep.subr.bf16.mxu0 %v2478
          %3608 = vmatpush1.bf16.msra.mxu0 %v2477
          %3609 = vmatprep.mubr.bf16.mxu0 %v996
          %3610 = vmatmul.mubr.bf16.gmra.mrb[0].mxu0 %v995
          %v3611 = vpop.f32.mrb[0].mxu0
          %v3612 = vadd.f32 %v963, %v3611
          %v3613 = vpop.f32.mrb[0].mxu0
          %v3614 = vadd.f32 %v967, %v3613
          %v3615 = vpop.f32.mrb[0].mxu0
          %v3616 = vpop.f32.mrb[0].mxu0
          %3617 = vdwg.mxu0
          %3618 = vmatprep.subr.bf16.mxu0 %v2486
          %3619 = vmatpush1.bf16.msra.mxu0 %v2485
          %3620 = vmatprep.subr.bf16.mxu0 %v2494
          %3621 = vmatpush1.bf16.msra.mxu0 %v2493
          %3622 = vmatprep.subr.bf16.mxu0 %v2502
          %3623 = vmatpush1.bf16.msra.mxu0 %v2501
          %3624 = vmatprep.subr.bf16.mxu0 %v2510
          %3625 = vmatpush1.bf16.msra.mxu0 %v2509
          %3626 = vmatprep.subr.bf16.mxu0 %v2518
          %3627 = vmatpush1.bf16.msra.mxu0 %v2517
          %3628 = vmatprep.subr.bf16.mxu0 %v2526
          %3629 = vmatpush1.bf16.msra.mxu0 %v2525
          %3630 = vmatprep.subr.bf16.mxu0 %v2534
          %3631 = vmatpush1.bf16.msra.mxu0 %v2533
          %3632 = vmatprep.subr.bf16.mxu0 %v2542
          %3633 = vmatpush1.bf16.msra.mxu0 %v2541
          %3634 = vmatprep.subr.bf16.mxu0 %v2550
          %3635 = vmatpush1.bf16.msra.mxu0 %v2549
          %3636 = vmatprep.subr.bf16.mxu0 %v2558
          %3637 = vmatpush1.bf16.msra.mxu0 %v2557
          %3638 = vmatprep.subr.bf16.mxu0 %v2566
          %3639 = vmatpush1.bf16.msra.mxu0 %v2565
          %3640 = vmatprep.subr.bf16.mxu0 %v2574
          %3641 = vmatpush1.bf16.msra.mxu0 %v2573
          %3642 = vmatprep.subr.bf16.mxu0 %v2582
          %3643 = vmatpush1.bf16.msra.mxu0 %v2581
          %3644 = vmatprep.subr.bf16.mxu0 %v2590
          %3645 = vmatpush1.bf16.msra.mxu0 %v2589
          %3646 = vmatprep.subr.bf16.mxu0 %v2598
          %3647 = vmatpush1.bf16.msra.mxu0 %v2597
          %3648 = vmatprep.subr.bf16.mxu0 %v2606
          %3649 = vmatpush1.bf16.msra.mxu0 %v2605
          %3650 = vmatprep.mubr.bf16.mxu0 %v998
          %3651 = vmatmul.mubr.bf16.gmra.mrb[0].mxu0 %v997
          %v3652 = vpop.f32.mrb[0].mxu0
          %v3653 = vadd.f32 %v3612, %v3652
          %v3654 = vpop.f32.mrb[0].mxu0
          %v3655 = vadd.f32 %v3614, %v3654
          %v3656 = vpop.f32.mrb[0].mxu0
          %v3657 = vpop.f32.mrb[0].mxu0
          %3658 = vdwg.mxu0
          %3659 = vmatprep.subr.bf16.mxu0 %v2614
          %3660 = vmatpush1.bf16.msra.mxu0 %v2613
          %3661 = vmatprep.subr.bf16.mxu0 %v2622
          %3662 = vmatpush1.bf16.msra.mxu0 %v2621
          %3663 = vmatprep.subr.bf16.mxu0 %v2630
          %3664 = vmatpush1.bf16.msra.mxu0 %v2629
          %3665 = vmatprep.subr.bf16.mxu0 %v2638
          %3666 = vmatpush1.bf16.msra.mxu0 %v2637
          %3667 = vmatprep.subr.bf16.mxu0 %v2646
          %3668 = vmatpush1.bf16.msra.mxu0 %v2645
          %3669 = vmatprep.subr.bf16.mxu0 %v2654
          %3670 = vmatpush1.bf16.msra.mxu0 %v2653
          %3671 = vmatprep.subr.bf16.mxu0 %v2662
          %3672 = vmatpush1.bf16.msra.mxu0 %v2661
          %3673 = vmatprep.subr.bf16.mxu0 %v2670
          %3674 = vmatpush1.bf16.msra.mxu0 %v2669
          %3675 = vmatprep.subr.bf16.mxu0 %v2678
          %3676 = vmatpush1.bf16.msra.mxu0 %v2677
          %3677 = vmatprep.subr.bf16.mxu0 %v2686
          %3678 = vmatpush1.bf16.msra.mxu0 %v2685
          %3679 = vmatprep.subr.bf16.mxu0 %v2694
          %3680 = vmatpush1.bf16.msra.mxu0 %v2693
          %3681 = vmatprep.subr.bf16.mxu0 %v2702
          %3682 = vmatpush1.bf16.msra.mxu0 %v2701
          %3683 = vmatprep.subr.bf16.mxu0 %v2710
          %3684 = vmatpush1.bf16.msra.mxu0 %v2709
          %3685 = vmatprep.subr.bf16.mxu0 %v2718
          %3686 = vmatpush1.bf16.msra.mxu0 %v2717
          %3687 = vmatprep.subr.bf16.mxu0 %v2726
          %3688 = vmatpush1.bf16.msra.mxu0 %v2725
          %3689 = vmatprep.subr.bf16.mxu0 %v2734
          %3690 = vmatpush1.bf16.msra.mxu0 %v2733
          %3691 = vmatprep.mubr.bf16.mxu0 %v1000
          %3692 = vmatmul.mubr.bf16.gmra.mrb[0].mxu0 %v999
          %v3693 = vpop.f32.mrb[0].mxu0
          %v3694 = vadd.f32 %v3653, %v3693
          %v3695 = vpop.f32.mrb[0].mxu0
          %v3696 = vadd.f32 %v3655, %v3695
          %v3697 = vpop.f32.mrb[0].mxu0
          %v3698 = vpop.f32.mrb[0].mxu0
          %3699 = vdwg.mxu0
          %3700 = vmatprep.subr.bf16.mxu0 %v2742
          %3701 = vmatpush1.bf16.msra.mxu0 %v2741
          %3702 = vmatprep.subr.bf16.mxu0 %v2750
          %3703 = vmatpush1.bf16.msra.mxu0 %v2749
          %3704 = vmatprep.subr.bf16.mxu0 %v2758
          %3705 = vmatpush1.bf16.msra.mxu0 %v2757
          %3706 = vmatprep.subr.bf16.mxu0 %v2766
          %3707 = vmatpush1.bf16.msra.mxu0 %v2765
          %3708 = vmatprep.subr.bf16.mxu0 %v2774
          %3709 = vmatpush1.bf16.msra.mxu0 %v2773
          %3710 = vmatprep.subr.bf16.mxu0 %v2782
          %3711 = vmatpush1.bf16.msra.mxu0 %v2781
          %3712 = vmatprep.subr.bf16.mxu0 %v2790
          %3713 = vmatpush1.bf16.msra.mxu0 %v2789
          %3714 = vmatprep.subr.bf16.mxu0 %v2798
          %3715 = vmatpush1.bf16.msra.mxu0 %v2797
          %3716 = vmatprep.subr.bf16.mxu0 0
          %3717 = vmatpush1.bf16.msra.mxu0 0
          %3718 = vmatprep.subr.bf16.mxu0 0
          %3719 = vmatpush1.bf16.msra.mxu0 0
          %3720 = vmatprep.subr.bf16.mxu0 0
          %3721 = vmatpush1.bf16.msra.mxu0 0
          %3722 = vmatprep.subr.bf16.mxu0 0
          %3723 = vmatpush1.bf16.msra.mxu0 0
          %3724 = vmatprep.subr.bf16.mxu0 0
          %3725 = vmatpush1.bf16.msra.mxu0 0
          %3726 = vmatprep.subr.bf16.mxu0 0
          %3727 = vmatpush1.bf16.msra.mxu0 0
          %3728 = vmatprep.subr.bf16.mxu0 0
          %3729 = vmatpush1.bf16.msra.mxu0 0
          %3730 = vmatprep.subr.bf16.mxu0 0
          %3731 = vmatpush1.bf16.msra.mxu0 0
          %3732 = vmatprep.mubr.bf16.mxu0 0
          %3733 = vmatmul.mubr.bf16.gmra.mrb[0].mxu0 %v1001
          %v3734 = vpop.f32.mrb[0].mxu0
          %v3735 = vadd.f32 %v3694, %v3734
          %v3736 = vpop.f32.mrb[0].mxu0
          %v3737 = vadd.f32 %v3696, %v3736
          %v3738 = vpop.f32.mrb[0].mxu0
          %v3739 = vpop.f32.mrb[0].mxu0
          %3740 = vdwg.mxu0
          %3741 = vmatprep.subr.bf16.mxu0 %v2360
          %3742 = vmatpush1.bf16.msra.mxu0 %v2359
          %3743 = vmatprep.subr.bf16.mxu0 %v2368
          %3744 = vmatpush1.bf16.msra.mxu0 %v2367
          %3745 = vmatprep.subr.bf16.mxu0 %v2376
          %3746 = vmatpush1.bf16.msra.mxu0 %v2375
          %3747 = vmatprep.subr.bf16.mxu0 %v2384
          %3748 = vmatpush1.bf16.msra.mxu0 %v2383
          %3749 = vmatprep.subr.bf16.mxu0 %v2392
          %3750 = vmatpush1.bf16.msra.mxu0 %v2391
          %3751 = vmatprep.subr.bf16.mxu0 %v2400
          %3752 = vmatpush1.bf16.msra.mxu0 %v2399
          %3753 = vmatprep.subr.bf16.mxu0 %v2408
          %3754 = vmatpush1.bf16.msra.mxu0 %v2407
          %3755 = vmatprep.subr.bf16.mxu0 %v2416
          %3756 = vmatpush1.bf16.msra.mxu0 %v2415
          %3757 = vmatprep.subr.bf16.mxu0 %v2424
          %3758 = vmatpush1.bf16.msra.mxu0 %v2423
          %3759 = vmatprep.subr.bf16.mxu0 %v2432
          %3760 = vmatpush1.bf16.msra.mxu0 %v2431
          %3761 = vmatprep.subr.bf16.mxu0 %v2440
          %3762 = vmatpush1.bf16.msra.mxu0 %v2439
          %3763 = vmatprep.subr.bf16.mxu0 %v2448
          %3764 = vmatpush1.bf16.msra.mxu0 %v2447
          %3765 = vmatprep.subr.bf16.mxu0 %v2456
          %3766 = vmatpush1.bf16.msra.mxu0 %v2455
          %3767 = vmatprep.subr.bf16.mxu0 %v2464
          %3768 = vmatpush1.bf16.msra.mxu0 %v2463
          %3769 = vmatprep.subr.bf16.mxu0 %v2472
          %3770 = vmatpush1.bf16.msra.mxu0 %v2471
          %3771 = vmatprep.subr.bf16.mxu0 %v2480
          %3772 = vmatpush1.bf16.msra.mxu0 %v2479
          %3773 = vmatprep.mubr.bf16.mxu0 %v996
          %3774 = vmatmul.mubr.bf16.gmra.mrb[0].mxu0 %v995
          %v3775 = vpop.f32.mrb[0].mxu0
          %v3776 = vadd.f32 %v971, %v3775
          %v3777 = vpop.f32.mrb[0].mxu0
          %v3778 = vadd.f32 %v975, %v3777
          %v3779 = vpop.f32.mrb[0].mxu0
          %v3780 = vpop.f32.mrb[0].mxu0
          %3781 = vdwg.mxu0
          %3782 = vmatprep.subr.bf16.mxu0 %v2488
          %3783 = vmatpush1.bf16.msra.mxu0 %v2487
          %3784 = vmatprep.subr.bf16.mxu0 %v2496
          %3785 = vmatpush1.bf16.msra.mxu0 %v2495
          %3786 = vmatprep.subr.bf16.mxu0 %v2504
          %3787 = vmatpush1.bf16.msra.mxu0 %v2503
          %3788 = vmatprep.subr.bf16.mxu0 %v2512
          %3789 = vmatpush1.bf16.msra.mxu0 %v2511
          %3790 = vmatprep.subr.bf16.mxu0 %v2520
          %3791 = vmatpush1.bf16.msra.mxu0 %v2519
          %3792 = vmatprep.subr.bf16.mxu0 %v2528
          %3793 = vmatpush1.bf16.msra.mxu0 %v2527
          %3794 = vmatprep.subr.bf16.mxu0 %v2536
          %3795 = vmatpush1.bf16.msra.mxu0 %v2535
          %3796 = vmatprep.subr.bf16.mxu0 %v2544
          %3797 = vmatpush1.bf16.msra.mxu0 %v2543
          %3798 = vmatprep.subr.bf16.mxu0 %v2552
          %3799 = vmatpush1.bf16.msra.mxu0 %v2551
          %3800 = vmatprep.subr.bf16.mxu0 %v2560
          %3801 = vmatpush1.bf16.msra.mxu0 %v2559
          %3802 = vmatprep.subr.bf16.mxu0 %v2568
          %3803 = vmatpush1.bf16.msra.mxu0 %v2567
          %3804 = vmatprep.subr.bf16.mxu0 %v2576
          %3805 = vmatpush1.bf16.msra.mxu0 %v2575
          %3806 = vmatprep.subr.bf16.mxu0 %v2584
          %3807 = vmatpush1.bf16.msra.mxu0 %v2583
          %3808 = vmatprep.subr.bf16.mxu0 %v2592
          %3809 = vmatpush1.bf16.msra.mxu0 %v2591
          %3810 = vmatprep.subr.bf16.mxu0 %v2600
          %3811 = vmatpush1.bf16.msra.mxu0 %v2599
          %3812 = vmatprep.subr.bf16.mxu0 %v2608
          %3813 = vmatpush1.bf16.msra.mxu0 %v2607
          %3814 = vmatprep.mubr.bf16.mxu0 %v998
          %3815 = vmatmul.mubr.bf16.gmra.mrb[0].mxu0 %v997
          %v3816 = vpop.f32.mrb[0].mxu0
          %v3817 = vadd.f32 %v3776, %v3816
          %v3818 = vpop.f32.mrb[0].mxu0
          %v3819 = vadd.f32 %v3778, %v3818
          %v3820 = vpop.f32.mrb[0].mxu0
          %v3821 = vpop.f32.mrb[0].mxu0
          %3822 = vdwg.mxu0
          %3823 = vmatprep.subr.bf16.mxu0 %v2616
          %3824 = vmatpush1.bf16.msra.mxu0 %v2615
          %3825 = vmatprep.subr.bf16.mxu0 %v2624
          %3826 = vmatpush1.bf16.msra.mxu0 %v2623
          %3827 = vmatprep.subr.bf16.mxu0 %v2632
          %3828 = vmatpush1.bf16.msra.mxu0 %v2631
          %3829 = vmatprep.subr.bf16.mxu0 %v2640
          %3830 = vmatpush1.bf16.msra.mxu0 %v2639
          %3831 = vmatprep.subr.bf16.mxu0 %v2648
          %3832 = vmatpush1.bf16.msra.mxu0 %v2647
          %3833 = vmatprep.subr.bf16.mxu0 %v2656
          %3834 = vmatpush1.bf16.msra.mxu0 %v2655
          %3835 = vmatprep.subr.bf16.mxu0 %v2664
          %3836 = vmatpush1.bf16.msra.mxu0 %v2663
          %3837 = vmatprep.subr.bf16.mxu0 %v2672
          %3838 = vmatpush1.bf16.msra.mxu0 %v2671
          %3839 = vmatprep.subr.bf16.mxu0 %v2680
          %3840 = vmatpush1.bf16.msra.mxu0 %v2679
          %3841 = vmatprep.subr.bf16.mxu0 %v2688
          %3842 = vmatpush1.bf16.msra.mxu0 %v2687
          %3843 = vmatprep.subr.bf16.mxu0 %v2696
          %3844 = vmatpush1.bf16.msra.mxu0 %v2695
          %3845 = vmatprep.subr.bf16.mxu0 %v2704
          %3846 = vmatpush1.bf16.msra.mxu0 %v2703
          %3847 = vmatprep.subr.bf16.mxu0 %v2712
          %3848 = vmatpush1.bf16.msra.mxu0 %v2711
          %3849 = vmatprep.subr.bf16.mxu0 %v2720
          %3850 = vmatpush1.bf16.msra.mxu0 %v2719
          %3851 = vmatprep.subr.bf16.mxu0 %v2728
          %3852 = vmatpush1.bf16.msra.mxu0 %v2727
          %3853 = vmatprep.subr.bf16.mxu0 %v2736
          %3854 = vmatpush1.bf16.msra.mxu0 %v2735
          %3855 = vmatprep.mubr.bf16.mxu0 %v1000
          %3856 = vmatmul.mubr.bf16.gmra.mrb[0].mxu0 %v999
          %v3857 = vpop.f32.mrb[0].mxu0
          %v3858 = vadd.f32 %v3817, %v3857
          %v3859 = vpop.f32.mrb[0].mxu0
          %v3860 = vadd.f32 %v3819, %v3859
          %v3861 = vpop.f32.mrb[0].mxu0
          %v3862 = vpop.f32.mrb[0].mxu0
          %3863 = vdwg.mxu0
          %3864 = vmatprep.subr.bf16.mxu0 %v2744
          %3865 = vmatpush1.bf16.msra.mxu0 %v2743
          %3866 = vmatprep.subr.bf16.mxu0 %v2752
          %3867 = vmatpush1.bf16.msra.mxu0 %v2751
          %3868 = vmatprep.subr.bf16.mxu0 %v2760
          %3869 = vmatpush1.bf16.msra.mxu0 %v2759
          %3870 = vmatprep.subr.bf16.mxu0 %v2768
          %3871 = vmatpush1.bf16.msra.mxu0 %v2767
          %3872 = vmatprep.subr.bf16.mxu0 %v2776
          %3873 = vmatpush1.bf16.msra.mxu0 %v2775
          %3874 = vmatprep.subr.bf16.mxu0 %v2784
          %3875 = vmatpush1.bf16.msra.mxu0 %v2783
          %3876 = vmatprep.subr.bf16.mxu0 %v2792
          %3877 = vmatpush1.bf16.msra.mxu0 %v2791
          %3878 = vmatprep.subr.bf16.mxu0 %v2800
          %3879 = vmatpush1.bf16.msra.mxu0 %v2799
          %3880 = vmatprep.subr.bf16.mxu0 0
          %3881 = vmatpush1.bf16.msra.mxu0 0
          %3882 = vmatprep.subr.bf16.mxu0 0
          %3883 = vmatpush1.bf16.msra.mxu0 0
          %3884 = vmatprep.subr.bf16.mxu0 0
          %3885 = vmatpush1.bf16.msra.mxu0 0
          %3886 = vmatprep.subr.bf16.mxu0 0
          %3887 = vmatpush1.bf16.msra.mxu0 0
          %3888 = vmatprep.subr.bf16.mxu0 0
          %3889 = vmatpush1.bf16.msra.mxu0 0
          %3890 = vmatprep.subr.bf16.mxu0 0
          %3891 = vmatpush1.bf16.msra.mxu0 0
          %3892 = vmatprep.subr.bf16.mxu0 0
          %3893 = vmatpush1.bf16.msra.mxu0 0
          %3894 = vmatprep.subr.bf16.mxu0 0
          %3895 = vmatpush1.bf16.msra.mxu0 0
          %3896 = vmatprep.mubr.bf16.mxu0 0
          %3897 = vmatmul.mubr.bf16.gmra.mrb[0].mxu0 %v1001
          %v3898 = vpop.f32.mrb[0].mxu0
          %v3899 = vadd.f32 %v3858, %v3898
          %v3900 = vpop.f32.mrb[0].mxu0
          %v3901 = vadd.f32 %v3860, %v3900
          %v3902 = vpop.f32.mrb[0].mxu0
          %v3903 = vpop.f32.mrb[0].mxu0
          %3904 = vdwg.mxu0
          %v3905 = vmax.f32 %v3407, 0.0
          %v3906 = vmax.f32 %v3409, 0.0
          %v3907 = vmax.f32 %v3571, 0.0
          %v3908 = vmax.f32 %v3573, 0.0
          %v3909 = vmax.f32 %v3735, 0.0
          %v3910 = vmax.f32 %v3737, 0.0
          %v3911 = vmax.f32 %v3899, 0.0
          %v3912 = vmax.f32 %v3901, 0.0
          %v3913 = vpack.c.bf16 %v3905, %v3905
          %v3914 = vpack.c.bf16 %v3906, %v3906
          %v3915 = vpack.c.bf16 %v3907, %v3907
          %v3916 = vpack.c.bf16 %v3908, %v3908
          %v3917 = vpack.c.bf16 %v3909, %v3909
          %v3918 = vpack.c.bf16 %v3910, %v3910
          %v3919 = vpack.c.bf16 %v3911, %v3911
          %v3920 = vpack.c.bf16 %v3912, %v3912
          %v3929 = vunpack.c.l.b16 %v3913
          %v3930 = vunpack.c.l.b16 %v3914
          %v3931 = vunpack.c.l.b16 %v3915
          %v3932 = vunpack.c.l.b16 %v3916
          %v3933 = vunpack.c.l.b16 %v3917
          %v3934 = vunpack.c.l.b16 %v3918
          %v3935 = vunpack.c.l.b16 %v3919
          %v3936 = vunpack.c.l.b16 %v3920
          %v3937 = vpack.c.b16 %v3930, %v3929
          %v3938 = vpack.c.b16 %v3932, %v3931
          %v3939 = vpack.c.b16 %v3934, %v3933
          %v3940 = vpack.c.b16 %v3936, %v3935
          %s3945 = smul.u32 %s29, 8
          %s3946 = smul.addr %s3945, 4
          %s3947 = scalar_lea.vmem [#allocation2], %s3946
          %3948 = vst [vmem:[%s3947] sm:$0xff] %v3937
          %3949 = vst [vmem:[%s3947 + $0x8] sm:$0xff] %v3938
          %3950 = vst [vmem:[%s3947 + $0x10] sm:$0xff] %v3939
          %3951 = vst [vmem:[%s3947 + $0x18] sm:$0xff] %v3940
        $region76: #{my_neural_network_forward.1} parent=47 // pred_fallthru
          _
        %p3952 = scmp.ge.s32.totalorder %s29, 2
        %p3953 = scmp.lt.s32.totalorder %s29, 4
        %p3954 = pnand %p3952, %p3953
        %p3955 = pneg %p3954
        // Predicated region
        $region77: #{my_neural_network_forward.1} parent=47 // pred_check
          _
        $region78: #{my_neural_network_forward.1} parent=47 // pred_check_branch
          %3957 = sbr.rel (%p3954) target = $region80
        $region79: #{my_neural_network_forward.1} parent=47 // pred_region
          %v3958 = vld [vmem:[#allocation2] sm:$0xff]
          %v3959 = vld [vmem:[#allocation2 + $0x8] sm:$0xff]
          %v3960 = vld [vmem:[#allocation2 + $0x10] sm:$0xff]
          %v3961 = vld [vmem:[#allocation2 + $0x18] sm:$0xff]
          %v3962 = vld [vmem:[%s409] sm:$0xff]
          %v3963 = vld [vmem:[%s409 + $0x8] sm:$0xff]
          %v3964 = vld [vmem:[%s409 + $0x10] sm:$0xff]
          %v3965 = vld [vmem:[%s409 + $0x18] sm:$0xff]
          %v3966 = vld [vmem:[%s409 + $0x20] sm:$0xff]
          %v3967 = vld [vmem:[%s409 + $0x28] sm:$0xff]
          %v3968 = vld [vmem:[%s409 + $0x30] sm:$0xff]
          %v3969 = vld [vmem:[%s409 + $0x38] sm:$0xff]
          %v3970 = vld [vmem:[%s409 + $0x40] sm:$0xff]
          %v3971 = vld [vmem:[%s409 + $0x48] sm:$0xff]
          %v3972 = vld [vmem:[%s409 + $0x50] sm:$0xff]
          %v3973 = vld [vmem:[%s409 + $0x58] sm:$0xff]
          %v3974 = vld [vmem:[%s409 + $0x60] sm:$0xff]
          %v3975 = vld [vmem:[%s409 + $0x68] sm:$0xff]
          %v3976 = vld [vmem:[%s409 + $0x70] sm:$0xff]
          %v3977 = vld [vmem:[%s409 + $0x78] sm:$0xff]
          %v3978 = vld [vmem:[%s409 + $0x80] sm:$0xff]
          %v3979 = vld [vmem:[%s409 + $0x88] sm:$0xff]
          %v3980 = vld [vmem:[%s409 + $0x90] sm:$0xff]
          %v3981 = vld [vmem:[%s409 + $0x98] sm:$0xff]
          %v3982 = vld [vmem:[%s409 + $0xa0] sm:$0xff]
          %v3983 = vld [vmem:[%s409 + $0xa8] sm:$0xff]
          %v3984 = vld [vmem:[%s409 + $0xb0] sm:$0xff]
          %v3985 = vld [vmem:[%s409 + $0xb8] sm:$0xff]
          %v3986 = vld [vmem:[%s409 + $0xc0] sm:$0xff]
          %v3987 = vld [vmem:[%s409 + $0xc8] sm:$0xff]
          %v3988 = vld [vmem:[%s409 + $0xd0] sm:$0xff]
          %v3989 = vld [vmem:[%s409 + $0xd8] sm:$0xff]
          %v3990 = vld [vmem:[%s409 + $0xe0] sm:$0xff]
          %v3991 = vld [vmem:[%s409 + $0xe8] sm:$0xff]
          %v3992 = vld [vmem:[%s409 + $0xf0] sm:$0xff]
          %v3993 = vld [vmem:[%s409 + $0xf8] sm:$0xff]
          %v3994 = vld [vmem:[%s409 + $0x100] sm:$0xff]
          %v3995 = vld [vmem:[%s409 + $0x108] sm:$0xff]
          %v3996 = vld [vmem:[%s409 + $0x110] sm:$0xff]
          %v3997 = vld [vmem:[%s409 + $0x118] sm:$0xff]
          %v3998 = vld [vmem:[%s409 + $0x120] sm:$0xff]
          %v3999 = vld [vmem:[%s409 + $0x128] sm:$0xff]
          %v4000 = vld [vmem:[%s409 + $0x130] sm:$0xff]
          %v4001 = vld [vmem:[%s409 + $0x138] sm:$0xff]
          %v4002 = vld [vmem:[%s409 + $0x140] sm:$0xff]
          %v4003 = vld [vmem:[%s409 + $0x148] sm:$0xff]
          %v4004 = vld [vmem:[%s409 + $0x150] sm:$0xff]
          %v4005 = vld [vmem:[%s409 + $0x158] sm:$0xff]
          %v4006 = vld [vmem:[%s409 + $0x160] sm:$0xff]
          %v4007 = vld [vmem:[%s409 + $0x168] sm:$0xff]
          %v4008 = vld [vmem:[%s409 + $0x170] sm:$0xff]
          %v4009 = vld [vmem:[%s409 + $0x178] sm:$0xff]
          %v4010 = vld [vmem:[%s409 + $0x180] sm:$0xff]
          %v4011 = vld [vmem:[%s409 + $0x188] sm:$0xff]
          %v4012 = vld [vmem:[%s409 + $0x190] sm:$0xff]
          %v4013 = vld [vmem:[%s409 + $0x198] sm:$0xff]
          %v4014 = vld [vmem:[%s409 + $0x1a0] sm:$0xff]
          %v4015 = vld [vmem:[%s409 + $0x1a8] sm:$0xff]
          %v4016 = vld [vmem:[%s409 + $0x1b0] sm:$0xff]
          %v4017 = vld [vmem:[%s409 + $0x1b8] sm:$0xff]
          %v4018 = vld [vmem:[%s409 + $0x1c0] sm:$0xff]
          %v4019 = vld [vmem:[%s409 + $0x1c8] sm:$0xff]
          %v4020 = vld [vmem:[%s409 + $0x1d0] sm:$0xff]
          %v4021 = vld [vmem:[%s409 + $0x1d8] sm:$0xff]
          %v4022 = vld [vmem:[%s409 + $0x1e0] sm:$0xff]
          %v4023 = vld [vmem:[%s409 + $0x1e8] sm:$0xff]
          %v4024 = vld [vmem:[%s409 + $0x1f0] sm:$0xff]
          %v4025 = vld [vmem:[%s409 + $0x1f8] sm:$0xff]
          %v4026 = vld [vmem:[%s409 + $0x200] sm:$0xff]
          %v4027 = vld [vmem:[%s409 + $0x208] sm:$0xff]
          %v4028 = vld [vmem:[%s409 + $0x210] sm:$0xff]
          %v4029 = vld [vmem:[%s409 + $0x218] sm:$0xff]
          %v4030 = vld [vmem:[%s409 + $0x220] sm:$0xff]
          %v4031 = vld [vmem:[%s409 + $0x228] sm:$0xff]
          %v4032 = vld [vmem:[%s409 + $0x230] sm:$0xff]
          %v4033 = vld [vmem:[%s409 + $0x238] sm:$0xff]
          %v4034 = vld [vmem:[%s409 + $0x240] sm:$0xff]
          %v4035 = vld [vmem:[%s409 + $0x248] sm:$0xff]
          %v4036 = vld [vmem:[%s409 + $0x250] sm:$0xff]
          %v4037 = vld [vmem:[%s409 + $0x258] sm:$0xff]
          %v4038 = vld [vmem:[%s409 + $0x260] sm:$0xff]
          %v4039 = vld [vmem:[%s409 + $0x268] sm:$0xff]
          %v4040 = vld [vmem:[%s409 + $0x270] sm:$0xff]
          %v4041 = vld [vmem:[%s409 + $0x278] sm:$0xff]
          %v4042 = vld [vmem:[%s409 + $0x280] sm:$0xff]
          %v4043 = vld [vmem:[%s409 + $0x288] sm:$0xff]
          %v4044 = vld [vmem:[%s409 + $0x290] sm:$0xff]
          %v4045 = vld [vmem:[%s409 + $0x298] sm:$0xff]
          %v4046 = vld [vmem:[%s409 + $0x2a0] sm:$0xff]
          %v4047 = vld [vmem:[%s409 + $0x2a8] sm:$0xff]
          %v4048 = vld [vmem:[%s409 + $0x2b0] sm:$0xff]
          %v4049 = vld [vmem:[%s409 + $0x2b8] sm:$0xff]
          %v4050 = vld [vmem:[%s409 + $0x2c0] sm:$0xff]
          %v4051 = vld [vmem:[%s409 + $0x2c8] sm:$0xff]
          %v4052 = vld [vmem:[%s409 + $0x2d0] sm:$0xff]
          %v4053 = vld [vmem:[%s409 + $0x2d8] sm:$0xff]
          %v4054 = vld [vmem:[%s409 + $0x2e0] sm:$0xff]
          %v4055 = vld [vmem:[%s409 + $0x2e8] sm:$0xff]
          %v4056 = vld [vmem:[%s409 + $0x2f0] sm:$0xff]
          %v4057 = vld [vmem:[%s409 + $0x2f8] sm:$0xff]
          %v4058 = vld [vmem:[%s409 + $0x300] sm:$0xff]
          %v4059 = vld [vmem:[%s409 + $0x308] sm:$0xff]
          %v4060 = vld [vmem:[%s409 + $0x310] sm:$0xff]
          %v4061 = vld [vmem:[%s409 + $0x318] sm:$0xff]
          %v4062 = vld [vmem:[%s409 + $0x320] sm:$0xff]
          %v4063 = vld [vmem:[%s409 + $0x328] sm:$0xff]
          %v4064 = vld [vmem:[%s409 + $0x330] sm:$0xff]
          %v4065 = vld [vmem:[%s409 + $0x338] sm:$0xff]
          %v4066 = vld [vmem:[%s409 + $0x340] sm:$0xff]
          %v4067 = vld [vmem:[%s409 + $0x348] sm:$0xff]
          %v4068 = vld [vmem:[%s409 + $0x350] sm:$0xff]
          %v4069 = vld [vmem:[%s409 + $0x358] sm:$0xff]
          %v4070 = vld [vmem:[%s409 + $0x360] sm:$0xff]
          %v4071 = vld [vmem:[%s409 + $0x368] sm:$0xff]
          %v4072 = vld [vmem:[%s409 + $0x370] sm:$0xff]
          %v4073 = vld [vmem:[%s409 + $0x378] sm:$0xff]
          %v4074 = vld [vmem:[%s409 + $0x380] sm:$0xff]
          %v4075 = vld [vmem:[%s409 + $0x388] sm:$0xff]
          %v4076 = vld [vmem:[%s409 + $0x390] sm:$0xff]
          %v4077 = vld [vmem:[%s409 + $0x398] sm:$0xff]
          %v4078 = vld [vmem:[%s409 + $0x3a0] sm:$0xff]
          %v4079 = vld [vmem:[%s409 + $0x3a8] sm:$0xff]
          %v4080 = vld [vmem:[%s409 + $0x3b0] sm:$0xff]
          %v4081 = vld [vmem:[%s409 + $0x3b8] sm:$0xff]
          %v4082 = vld [vmem:[%s409 + $0x3c0] sm:$0xff]
          %v4083 = vld [vmem:[%s409 + $0x3c8] sm:$0xff]
          %v4084 = vld [vmem:[%s409 + $0x3d0] sm:$0xff]
          %v4085 = vld [vmem:[%s409 + $0x3d8] sm:$0xff]
          %v4086 = vld [vmem:[%s409 + $0x3e0] sm:$0xff]
          %v4087 = vld [vmem:[%s409 + $0x3e8] sm:$0xff]
          %v4088 = vld [vmem:[%s409 + $0x3f0] sm:$0xff]
          %v4089 = vld [vmem:[%s409 + $0x3f8] sm:$0xff]
          %v4090 = vld [vmem:[%s409 + $0x400] sm:$0xff]
          %v4091 = vld [vmem:[%s409 + $0x408] sm:$0xff]
          %v4092 = vld [vmem:[%s409 + $0x410] sm:$0xff]
          %v4093 = vld [vmem:[%s409 + $0x418] sm:$0xff]
          %v4094 = vld [vmem:[%s409 + $0x420] sm:$0xff]
          %v4095 = vld [vmem:[%s409 + $0x428] sm:$0xff]
          %v4096 = vld [vmem:[%s409 + $0x430] sm:$0xff]
          %v4097 = vld [vmem:[%s409 + $0x438] sm:$0xff]
          %v4098 = vld [vmem:[%s409 + $0x440] sm:$0xff]
          %v4099 = vld [vmem:[%s409 + $0x448] sm:$0xff]
          %v4100 = vld [vmem:[%s409 + $0x450] sm:$0xff]
          %v4101 = vld [vmem:[%s409 + $0x458] sm:$0xff]
          %v4102 = vld [vmem:[%s409 + $0x460] sm:$0xff]
          %v4103 = vld [vmem:[%s409 + $0x468] sm:$0xff]
          %v4104 = vld [vmem:[%s409 + $0x470] sm:$0xff]
          %v4105 = vld [vmem:[%s409 + $0x478] sm:$0xff]
          %v4106 = vld [vmem:[%s409 + $0x480] sm:$0xff]
          %v4107 = vld [vmem:[%s409 + $0x488] sm:$0xff]
          %v4108 = vld [vmem:[%s409 + $0x490] sm:$0xff]
          %v4109 = vld [vmem:[%s409 + $0x498] sm:$0xff]
          %v4110 = vld [vmem:[%s409 + $0x4a0] sm:$0xff]
          %v4111 = vld [vmem:[%s409 + $0x4a8] sm:$0xff]
          %v4112 = vld [vmem:[%s409 + $0x4b0] sm:$0xff]
          %v4113 = vld [vmem:[%s409 + $0x4b8] sm:$0xff]
          %v4114 = vld [vmem:[%s409 + $0x4c0] sm:$0xff]
          %v4115 = vld [vmem:[%s409 + $0x4c8] sm:$0xff]
          %v4116 = vld [vmem:[%s409 + $0x4d0] sm:$0xff]
          %v4117 = vld [vmem:[%s409 + $0x4d8] sm:$0xff]
          %v4118 = vld [vmem:[%s409 + $0x4e0] sm:$0xff]
          %v4119 = vld [vmem:[%s409 + $0x4e8] sm:$0xff]
          %v4120 = vld [vmem:[%s409 + $0x4f0] sm:$0xff]
          %v4121 = vld [vmem:[%s409 + $0x4f8] sm:$0xff]
          %v4122 = vld [vmem:[%s409 + $0x500] sm:$0xff]
          %v4123 = vld [vmem:[%s409 + $0x508] sm:$0xff]
          %v4124 = vld [vmem:[%s409 + $0x510] sm:$0xff]
          %v4125 = vld [vmem:[%s409 + $0x518] sm:$0xff]
          %v4126 = vld [vmem:[%s409 + $0x520] sm:$0xff]
          %v4127 = vld [vmem:[%s409 + $0x528] sm:$0xff]
          %v4128 = vld [vmem:[%s409 + $0x530] sm:$0xff]
          %v4129 = vld [vmem:[%s409 + $0x538] sm:$0xff]
          %v4130 = vld [vmem:[%s409 + $0x540] sm:$0xff]
          %v4131 = vld [vmem:[%s409 + $0x548] sm:$0xff]
          %v4132 = vld [vmem:[%s409 + $0x550] sm:$0xff]
          %v4133 = vld [vmem:[%s409 + $0x558] sm:$0xff]
          %v4134 = vld [vmem:[%s409 + $0x560] sm:$0xff]
          %v4135 = vld [vmem:[%s409 + $0x568] sm:$0xff]
          %v4136 = vld [vmem:[%s409 + $0x570] sm:$0xff]
          %v4137 = vld [vmem:[%s409 + $0x578] sm:$0xff]
          %v4138 = vld [vmem:[%s409 + $0x580] sm:$0xff]
          %v4139 = vld [vmem:[%s409 + $0x588] sm:$0xff]
          %v4140 = vld [vmem:[%s409 + $0x590] sm:$0xff]
          %v4141 = vld [vmem:[%s409 + $0x598] sm:$0xff]
          %v4142 = vld [vmem:[%s409 + $0x5a0] sm:$0xff]
          %v4143 = vld [vmem:[%s409 + $0x5a8] sm:$0xff]
          %v4144 = vld [vmem:[%s409 + $0x5b0] sm:$0xff]
          %v4145 = vld [vmem:[%s409 + $0x5b8] sm:$0xff]
          %v4146 = vld [vmem:[%s409 + $0x5c0] sm:$0xff]
          %v4147 = vld [vmem:[%s409 + $0x5c8] sm:$0xff]
          %v4148 = vld [vmem:[%s409 + $0x5d0] sm:$0xff]
          %v4149 = vld [vmem:[%s409 + $0x5d8] sm:$0xff]
          %v4150 = vld [vmem:[%s409 + $0x5e0] sm:$0xff]
          %v4151 = vld [vmem:[%s409 + $0x5e8] sm:$0xff]
          %v4152 = vld [vmem:[%s409 + $0x5f0] sm:$0xff]
          %v4153 = vld [vmem:[%s409 + $0x5f8] sm:$0xff]
          %v4154 = vld [vmem:[%s409 + $0x600] sm:$0xff]
          %v4155 = vld [vmem:[%s409 + $0x608] sm:$0xff]
          %v4156 = vld [vmem:[%s409 + $0x610] sm:$0xff]
          %v4157 = vld [vmem:[%s409 + $0x618] sm:$0xff]
          %v4158 = vld [vmem:[%s409 + $0x620] sm:$0xff]
          %v4159 = vld [vmem:[%s409 + $0x628] sm:$0xff]
          %v4160 = vld [vmem:[%s409 + $0x630] sm:$0xff]
          %v4161 = vld [vmem:[%s409 + $0x638] sm:$0xff]
          %v4162 = vld [vmem:[%s409 + $0x640] sm:$0xff]
          %v4163 = vld [vmem:[%s409 + $0x648] sm:$0xff]
          %v4164 = vld [vmem:[%s409 + $0x650] sm:$0xff]
          %v4165 = vld [vmem:[%s409 + $0x658] sm:$0xff]
          %v4166 = vld [vmem:[%s409 + $0x660] sm:$0xff]
          %v4167 = vld [vmem:[%s409 + $0x668] sm:$0xff]
          %v4168 = vld [vmem:[%s409 + $0x670] sm:$0xff]
          %v4169 = vld [vmem:[%s409 + $0x678] sm:$0xff]
          %v4170 = vld [vmem:[%s409 + $0x680] sm:$0xff]
          %v4171 = vld [vmem:[%s409 + $0x688] sm:$0xff]
          %v4172 = vld [vmem:[%s409 + $0x690] sm:$0xff]
          %v4173 = vld [vmem:[%s409 + $0x698] sm:$0xff]
          %v4174 = vld [vmem:[%s409 + $0x6a0] sm:$0xff]
          %v4175 = vld [vmem:[%s409 + $0x6a8] sm:$0xff]
          %v4176 = vld [vmem:[%s409 + $0x6b0] sm:$0xff]
          %v4177 = vld [vmem:[%s409 + $0x6b8] sm:$0xff]
          %v4178 = vld [vmem:[%s409 + $0x6c0] sm:$0xff]
          %v4179 = vld [vmem:[%s409 + $0x6c8] sm:$0xff]
          %v4180 = vld [vmem:[%s409 + $0x6d0] sm:$0xff]
          %v4181 = vld [vmem:[%s409 + $0x6d8] sm:$0xff]
          %v4182 = vld [vmem:[%s409 + $0x6e0] sm:$0xff]
          %v4183 = vld [vmem:[%s409 + $0x6e8] sm:$0xff]
          %v4184 = vld [vmem:[%s409 + $0x6f0] sm:$0xff]
          %v4185 = vld [vmem:[%s409 + $0x6f8] sm:$0xff]
          %v4186 = vld [vmem:[%s409 + $0x700] sm:$0xff]
          %v4187 = vld [vmem:[%s409 + $0x708] sm:$0xff]
          %v4188 = vld [vmem:[%s409 + $0x710] sm:$0xff]
          %v4189 = vld [vmem:[%s409 + $0x718] sm:$0xff]
          %v4190 = vld [vmem:[%s409 + $0x720] sm:$0xff]
          %v4191 = vld [vmem:[%s409 + $0x728] sm:$0xff]
          %v4192 = vld [vmem:[%s409 + $0x730] sm:$0xff]
          %v4193 = vld [vmem:[%s409 + $0x738] sm:$0xff]
          %v4194 = vld [vmem:[%s409 + $0x740] sm:$0xff]
          %v4195 = vld [vmem:[%s409 + $0x748] sm:$0xff]
          %v4196 = vld [vmem:[%s409 + $0x750] sm:$0xff]
          %v4197 = vld [vmem:[%s409 + $0x758] sm:$0xff]
          %v4198 = vld [vmem:[%s409 + $0x760] sm:$0xff]
          %v4199 = vld [vmem:[%s409 + $0x768] sm:$0xff]
          %v4200 = vld [vmem:[%s409 + $0x770] sm:$0xff]
          %v4201 = vld [vmem:[%s409 + $0x778] sm:$0xff]
          %v4202 = vld [vmem:[%s409 + $0x780] sm:$0xff]
          %v4203 = vld [vmem:[%s409 + $0x788] sm:$0xff]
          %v4204 = vld [vmem:[%s409 + $0x790] sm:$0xff]
          %v4205 = vld [vmem:[%s409 + $0x798] sm:$0xff]
          %v4206 = vld [vmem:[%s409 + $0x7a0] sm:$0xff]
          %v4207 = vld [vmem:[%s409 + $0x7a8] sm:$0xff]
          %v4208 = vld [vmem:[%s409 + $0x7b0] sm:$0xff]
          %v4209 = vld [vmem:[%s409 + $0x7b8] sm:$0xff]
          %v4210 = vld [vmem:[%s409 + $0x7c0] sm:$0xff]
          %v4211 = vld [vmem:[%s409 + $0x7c8] sm:$0xff]
          %v4212 = vld [vmem:[%s409 + $0x7d0] sm:$0xff]
          %v4213 = vld [vmem:[%s409 + $0x7d8] sm:$0xff]
          %v4214 = vld [vmem:[%s409 + $0x7e0] sm:$0xff]
          %v4215 = vld [vmem:[%s409 + $0x7e8] sm:$0xff]
          %v4216 = vld [vmem:[%s409 + $0x7f0] sm:$0xff]
          %v4217 = vld [vmem:[%s409 + $0x7f8] sm:$0xff]
          %v4218 = vld [vmem:[%s409 + $0x800] sm:$0xff]
          %v4219 = vld [vmem:[%s409 + $0x808] sm:$0xff]
          %v4220 = vld [vmem:[%s409 + $0x810] sm:$0xff]
          %v4221 = vld [vmem:[%s409 + $0x818] sm:$0xff]
          %v4222 = vld [vmem:[%s409 + $0x820] sm:$0xff]
          %v4223 = vld [vmem:[%s409 + $0x828] sm:$0xff]
          %v4224 = vld [vmem:[%s409 + $0x830] sm:$0xff]
          %v4225 = vld [vmem:[%s409 + $0x838] sm:$0xff]
          %v4226 = vld [vmem:[%s409 + $0x840] sm:$0xff]
          %v4227 = vld [vmem:[%s409 + $0x848] sm:$0xff]
          %v4228 = vld [vmem:[%s409 + $0x850] sm:$0xff]
          %v4229 = vld [vmem:[%s409 + $0x858] sm:$0xff]
          %v4230 = vld [vmem:[%s409 + $0x860] sm:$0xff]
          %v4231 = vld [vmem:[%s409 + $0x868] sm:$0xff]
          %v4232 = vld [vmem:[%s409 + $0x870] sm:$0xff]
          %v4233 = vld [vmem:[%s409 + $0x878] sm:$0xff]
          %v4234 = vld [vmem:[%s409 + $0x880] sm:$0xff]
          %v4235 = vld [vmem:[%s409 + $0x888] sm:$0xff]
          %v4236 = vld [vmem:[%s409 + $0x890] sm:$0xff]
          %v4237 = vld [vmem:[%s409 + $0x898] sm:$0xff]
          %v4238 = vld [vmem:[%s409 + $0x8a0] sm:$0xff]
          %v4239 = vld [vmem:[%s409 + $0x8a8] sm:$0xff]
          %v4240 = vld [vmem:[%s409 + $0x8b0] sm:$0xff]
          %v4241 = vld [vmem:[%s409 + $0x8b8] sm:$0xff]
          %v4242 = vld [vmem:[%s409 + $0x8c0] sm:$0xff]
          %v4243 = vld [vmem:[%s409 + $0x8c8] sm:$0xff]
          %v4244 = vld [vmem:[%s409 + $0x8d0] sm:$0xff]
          %v4245 = vld [vmem:[%s409 + $0x8d8] sm:$0xff]
          %v4246 = vld [vmem:[%s409 + $0x8e0] sm:$0xff]
          %v4247 = vld [vmem:[%s409 + $0x8e8] sm:$0xff]
          %v4248 = vld [vmem:[%s409 + $0x8f0] sm:$0xff]
          %v4249 = vld [vmem:[%s409 + $0x8f8] sm:$0xff]
          %v4250 = vld [vmem:[%s409 + $0x900] sm:$0xff]
          %v4251 = vld [vmem:[%s409 + $0x908] sm:$0xff]
          %v4252 = vld [vmem:[%s409 + $0x910] sm:$0xff]
          %v4253 = vld [vmem:[%s409 + $0x918] sm:$0xff]
          %v4254 = vld [vmem:[%s409 + $0x920] sm:$0xff]
          %v4255 = vld [vmem:[%s409 + $0x928] sm:$0xff]
          %v4256 = vld [vmem:[%s409 + $0x930] sm:$0xff]
          %v4257 = vld [vmem:[%s409 + $0x938] sm:$0xff]
          %v4258 = vld [vmem:[%s409 + $0x940] sm:$0xff]
          %v4259 = vld [vmem:[%s409 + $0x948] sm:$0xff]
          %v4260 = vld [vmem:[%s409 + $0x950] sm:$0xff]
          %v4261 = vld [vmem:[%s409 + $0x958] sm:$0xff]
          %v4262 = vld [vmem:[%s409 + $0x960] sm:$0xff]
          %v4263 = vld [vmem:[%s409 + $0x968] sm:$0xff]
          %v4264 = vld [vmem:[%s409 + $0x970] sm:$0xff]
          %v4265 = vld [vmem:[%s409 + $0x978] sm:$0xff]
          %v4266 = vld [vmem:[%s409 + $0x980] sm:$0xff]
          %v4267 = vld [vmem:[%s409 + $0x988] sm:$0xff]
          %v4268 = vld [vmem:[%s409 + $0x990] sm:$0xff]
          %v4269 = vld [vmem:[%s409 + $0x998] sm:$0xff]
          %v4270 = vld [vmem:[%s409 + $0x9a0] sm:$0xff]
          %v4271 = vld [vmem:[%s409 + $0x9a8] sm:$0xff]
          %v4272 = vld [vmem:[%s409 + $0x9b0] sm:$0xff]
          %v4273 = vld [vmem:[%s409 + $0x9b8] sm:$0xff]
          %v4274 = vld [vmem:[%s409 + $0x9c0] sm:$0xff]
          %v4275 = vld [vmem:[%s409 + $0x9c8] sm:$0xff]
          %v4276 = vld [vmem:[%s409 + $0x9d0] sm:$0xff]
          %v4277 = vld [vmem:[%s409 + $0x9d8] sm:$0xff]
          %v4278 = vld [vmem:[%s409 + $0x9e0] sm:$0xff]
          %v4279 = vld [vmem:[%s409 + $0x9e8] sm:$0xff]
          %v4280 = vld [vmem:[%s409 + $0x9f0] sm:$0xff]
          %v4281 = vld [vmem:[%s409 + $0x9f8] sm:$0xff]
          %v4282 = vld [vmem:[%s409 + $0xa00] sm:$0xff]
          %v4283 = vld [vmem:[%s409 + $0xa08] sm:$0xff]
          %v4284 = vld [vmem:[%s409 + $0xa10] sm:$0xff]
          %v4285 = vld [vmem:[%s409 + $0xa18] sm:$0xff]
          %v4286 = vld [vmem:[%s409 + $0xa20] sm:$0xff]
          %v4287 = vld [vmem:[%s409 + $0xa28] sm:$0xff]
          %v4288 = vld [vmem:[%s409 + $0xa30] sm:$0xff]
          %v4289 = vld [vmem:[%s409 + $0xa38] sm:$0xff]
          %v4290 = vld [vmem:[%s409 + $0xa40] sm:$0xff]
          %v4291 = vld [vmem:[%s409 + $0xa48] sm:$0xff]
          %v4292 = vld [vmem:[%s409 + $0xa50] sm:$0xff]
          %v4293 = vld [vmem:[%s409 + $0xa58] sm:$0xff]
          %v4294 = vld [vmem:[%s409 + $0xa60] sm:$0xff]
          %v4295 = vld [vmem:[%s409 + $0xa68] sm:$0xff]
          %v4296 = vld [vmem:[%s409 + $0xa70] sm:$0xff]
          %v4297 = vld [vmem:[%s409 + $0xa78] sm:$0xff]
          %v4298 = vld [vmem:[%s409 + $0xa80] sm:$0xff]
          %v4299 = vld [vmem:[%s409 + $0xa88] sm:$0xff]
          %v4300 = vld [vmem:[%s409 + $0xa90] sm:$0xff]
          %v4301 = vld [vmem:[%s409 + $0xa98] sm:$0xff]
          %v4302 = vld [vmem:[%s409 + $0xaa0] sm:$0xff]
          %v4303 = vld [vmem:[%s409 + $0xaa8] sm:$0xff]
          %v4304 = vld [vmem:[%s409 + $0xab0] sm:$0xff]
          %v4305 = vld [vmem:[%s409 + $0xab8] sm:$0xff]
          %v4306 = vld [vmem:[%s409 + $0xac0] sm:$0xff]
          %v4307 = vld [vmem:[%s409 + $0xac8] sm:$0xff]
          %v4308 = vld [vmem:[%s409 + $0xad0] sm:$0xff]
          %v4309 = vld [vmem:[%s409 + $0xad8] sm:$0xff]
          %v4310 = vld [vmem:[%s409 + $0xae0] sm:$0xff]
          %v4311 = vld [vmem:[%s409 + $0xae8] sm:$0xff]
          %v4312 = vld [vmem:[%s409 + $0xaf0] sm:$0xff]
          %v4313 = vld [vmem:[%s409 + $0xaf8] sm:$0xff]
          %v4314 = vld [vmem:[%s409 + $0xb00] sm:$0xff]
          %v4315 = vld [vmem:[%s409 + $0xb08] sm:$0xff]
          %v4316 = vld [vmem:[%s409 + $0xb10] sm:$0xff]
          %v4317 = vld [vmem:[%s409 + $0xb18] sm:$0xff]
          %v4318 = vld [vmem:[%s409 + $0xb20] sm:$0xff]
          %v4319 = vld [vmem:[%s409 + $0xb28] sm:$0xff]
          %v4320 = vld [vmem:[%s409 + $0xb30] sm:$0xff]
          %v4321 = vld [vmem:[%s409 + $0xb38] sm:$0xff]
          %v4322 = vld [vmem:[%s409 + $0xb40] sm:$0xff]
          %v4323 = vld [vmem:[%s409 + $0xb48] sm:$0xff]
          %v4324 = vld [vmem:[%s409 + $0xb50] sm:$0xff]
          %v4325 = vld [vmem:[%s409 + $0xb58] sm:$0xff]
          %v4326 = vld [vmem:[%s409 + $0xb60] sm:$0xff]
          %v4327 = vld [vmem:[%s409 + $0xb68] sm:$0xff]
          %v4328 = vld [vmem:[%s409 + $0xb70] sm:$0xff]
          %v4329 = vld [vmem:[%s409 + $0xb78] sm:$0xff]
          %v4330 = vld [vmem:[%s409 + $0xb80] sm:$0xff]
          %v4331 = vld [vmem:[%s409 + $0xb88] sm:$0xff]
          %v4332 = vld [vmem:[%s409 + $0xb90] sm:$0xff]
          %v4333 = vld [vmem:[%s409 + $0xb98] sm:$0xff]
          %v4334 = vld [vmem:[%s409 + $0xba0] sm:$0xff]
          %v4335 = vld [vmem:[%s409 + $0xba8] sm:$0xff]
          %v4336 = vld [vmem:[%s409 + $0xbb0] sm:$0xff]
          %v4337 = vld [vmem:[%s409 + $0xbb8] sm:$0xff]
          %v4338 = vld [vmem:[%s409 + $0xbc0] sm:$0xff]
          %v4339 = vld [vmem:[%s409 + $0xbc8] sm:$0xff]
          %v4340 = vld [vmem:[%s409 + $0xbd0] sm:$0xff]
          %v4341 = vld [vmem:[%s409 + $0xbd8] sm:$0xff]
          %v4342 = vld [vmem:[%s409 + $0xbe0] sm:$0xff]
          %v4343 = vld [vmem:[%s409 + $0xbe8] sm:$0xff]
          %v4344 = vld [vmem:[%s409 + $0xbf0] sm:$0xff]
          %v4345 = vld [vmem:[%s409 + $0xbf8] sm:$0xff]
          %v4346 = vld [vmem:[%s409 + $0xc00] sm:$0xff]
          %v4347 = vld [vmem:[%s409 + $0xc08] sm:$0xff]
          %v4348 = vld [vmem:[%s409 + $0xc10] sm:$0xff]
          %v4349 = vld [vmem:[%s409 + $0xc18] sm:$0xff]
          %v4350 = vld [vmem:[%s409 + $0xc20] sm:$0xff]
          %v4351 = vld [vmem:[%s409 + $0xc28] sm:$0xff]
          %v4352 = vld [vmem:[%s409 + $0xc30] sm:$0xff]
          %v4353 = vld [vmem:[%s409 + $0xc38] sm:$0xff]
          %v4354 = vld [vmem:[%s409 + $0xc40] sm:$0xff]
          %v4355 = vld [vmem:[%s409 + $0xc48] sm:$0xff]
          %v4356 = vld [vmem:[%s409 + $0xc50] sm:$0xff]
          %v4357 = vld [vmem:[%s409 + $0xc58] sm:$0xff]
          %v4358 = vld [vmem:[%s409 + $0xc60] sm:$0xff]
          %v4359 = vld [vmem:[%s409 + $0xc68] sm:$0xff]
          %v4360 = vld [vmem:[%s409 + $0xc70] sm:$0xff]
          %v4361 = vld [vmem:[%s409 + $0xc78] sm:$0xff]
          %v4362 = vld [vmem:[%s409 + $0xc80] sm:$0xff]
          %v4363 = vld [vmem:[%s409 + $0xc88] sm:$0xff]
          %v4364 = vld [vmem:[%s409 + $0xc90] sm:$0xff]
          %v4365 = vld [vmem:[%s409 + $0xc98] sm:$0xff]
          %v4366 = vld [vmem:[%s409 + $0xca0] sm:$0xff]
          %v4367 = vld [vmem:[%s409 + $0xca8] sm:$0xff]
          %v4368 = vld [vmem:[%s409 + $0xcb0] sm:$0xff]
          %v4369 = vld [vmem:[%s409 + $0xcb8] sm:$0xff]
          %v4370 = vld [vmem:[%s409 + $0xcc0] sm:$0xff]
          %v4371 = vld [vmem:[%s409 + $0xcc8] sm:$0xff]
          %v4372 = vld [vmem:[%s409 + $0xcd0] sm:$0xff]
          %v4373 = vld [vmem:[%s409 + $0xcd8] sm:$0xff]
          %v4374 = vld [vmem:[%s409 + $0xce0] sm:$0xff]
          %v4375 = vld [vmem:[%s409 + $0xce8] sm:$0xff]
          %v4376 = vld [vmem:[%s409 + $0xcf0] sm:$0xff]
          %v4377 = vld [vmem:[%s409 + $0xcf8] sm:$0xff]
          %v4378 = vld [vmem:[%s409 + $0xd00] sm:$0xff]
          %v4379 = vld [vmem:[%s409 + $0xd08] sm:$0xff]
          %v4380 = vld [vmem:[%s409 + $0xd10] sm:$0xff]
          %v4381 = vld [vmem:[%s409 + $0xd18] sm:$0xff]
          %v4382 = vld [vmem:[%s409 + $0xd20] sm:$0xff]
          %v4383 = vld [vmem:[%s409 + $0xd28] sm:$0xff]
          %v4384 = vld [vmem:[%s409 + $0xd30] sm:$0xff]
          %v4385 = vld [vmem:[%s409 + $0xd38] sm:$0xff]
          %v4386 = vld [vmem:[%s409 + $0xd40] sm:$0xff]
          %v4387 = vld [vmem:[%s409 + $0xd48] sm:$0xff]
          %v4388 = vld [vmem:[%s409 + $0xd50] sm:$0xff]
          %v4389 = vld [vmem:[%s409 + $0xd58] sm:$0xff]
          %v4390 = vld [vmem:[%s409 + $0xd60] sm:$0xff]
          %v4391 = vld [vmem:[%s409 + $0xd68] sm:$0xff]
          %v4392 = vld [vmem:[%s409 + $0xd70] sm:$0xff]
          %v4393 = vld [vmem:[%s409 + $0xd78] sm:$0xff]
          %v4394 = vld [vmem:[%s409 + $0xd80] sm:$0xff]
          %v4395 = vld [vmem:[%s409 + $0xd88] sm:$0xff]
          %v4396 = vld [vmem:[%s409 + $0xd90] sm:$0xff]
          %v4397 = vld [vmem:[%s409 + $0xd98] sm:$0xff]
          %v4398 = vld [vmem:[%s409 + $0xda0] sm:$0xff]
          %v4399 = vld [vmem:[%s409 + $0xda8] sm:$0xff]
          %v4400 = vld [vmem:[%s409 + $0xdb0] sm:$0xff]
          %v4401 = vld [vmem:[%s409 + $0xdb8] sm:$0xff]
          %v4402 = vld [vmem:[%s409 + $0xdc0] sm:$0xff]
          %v4403 = vld [vmem:[%s409 + $0xdc8] sm:$0xff]
          %v4404 = vld [vmem:[%s409 + $0xdd0] sm:$0xff]
          %v4405 = vld [vmem:[%s409 + $0xdd8] sm:$0xff]
          %v4406 = vld [vmem:[%s409 + $0xde0] sm:$0xff]
          %v4407 = vld [vmem:[%s409 + $0xde8] sm:$0xff]
          %v4408 = vld [vmem:[%s409 + $0xdf0] sm:$0xff]
          %v4409 = vld [vmem:[%s409 + $0xdf8] sm:$0xff]
          %v4410 = vld [vmem:[%s409 + $0xe00] sm:$0xff]
          %v4411 = vld [vmem:[%s409 + $0xe08] sm:$0xff]
          %v4412 = vld [vmem:[%s409 + $0xe10] sm:$0xff]
          %v4413 = vld [vmem:[%s409 + $0xe18] sm:$0xff]
          %v4414 = vld [vmem:[%s409 + $0xe20] sm:$0xff]
          %v4415 = vld [vmem:[%s409 + $0xe28] sm:$0xff]
          %v4416 = vld [vmem:[%s409 + $0xe30] sm:$0xff]
          %v4417 = vld [vmem:[%s409 + $0xe38] sm:$0xff]
          %v4418 = vld [vmem:[%s409 + $0xe40] sm:$0xff]
          %v4419 = vld [vmem:[%s409 + $0xe48] sm:$0xff]
          %v4420 = vld [vmem:[%s409 + $0xe50] sm:$0xff]
          %v4421 = vld [vmem:[%s409 + $0xe58] sm:$0xff]
          %v4422 = vld [vmem:[%s409 + $0xe60] sm:$0xff]
          %v4423 = vld [vmem:[%s409 + $0xe68] sm:$0xff]
          %v4424 = vld [vmem:[%s409 + $0xe70] sm:$0xff]
          %v4425 = vld [vmem:[%s409 + $0xe78] sm:$0xff]
          %v4426 = vld [vmem:[%s409 + $0xe80] sm:$0xff]
          %v4427 = vld [vmem:[%s409 + $0xe88] sm:$0xff]
          %v4428 = vld [vmem:[%s409 + $0xe90] sm:$0xff]
          %v4429 = vld [vmem:[%s409 + $0xe98] sm:$0xff]
          %v4430 = vld [vmem:[%s409 + $0xea0] sm:$0xff]
          %v4431 = vld [vmem:[%s409 + $0xea8] sm:$0xff]
          %v4432 = vld [vmem:[%s409 + $0xeb0] sm:$0xff]
          %v4433 = vld [vmem:[%s409 + $0xeb8] sm:$0xff]
          %v4434 = vld [vmem:[%s409 + $0xec0] sm:$0xff]
          %v4435 = vld [vmem:[%s409 + $0xec8] sm:$0xff]
          %v4436 = vld [vmem:[%s409 + $0xed0] sm:$0xff]
          %v4437 = vld [vmem:[%s409 + $0xed8] sm:$0xff]
          %v4438 = vld [vmem:[%s409 + $0xee0] sm:$0xff]
          %v4439 = vld [vmem:[%s409 + $0xee8] sm:$0xff]
          %v4440 = vld [vmem:[%s409 + $0xef0] sm:$0xff]
          %v4441 = vld [vmem:[%s409 + $0xef8] sm:$0xff]
          %v4442 = vld [vmem:[%s409 + $0xf00] sm:$0xff]
          %v4443 = vld [vmem:[%s409 + $0xf08] sm:$0xff]
          %v4444 = vld [vmem:[%s409 + $0xf10] sm:$0xff]
          %v4445 = vld [vmem:[%s409 + $0xf18] sm:$0xff]
          %v4446 = vld [vmem:[%s409 + $0xf20] sm:$0xff]
          %v4447 = vld [vmem:[%s409 + $0xf28] sm:$0xff]
          %v4448 = vld [vmem:[%s409 + $0xf30] sm:$0xff]
          %v4449 = vld [vmem:[%s409 + $0xf38] sm:$0xff]
          %v4450 = vld [vmem:[%s409 + $0xf40] sm:$0xff]
          %v4451 = vld [vmem:[%s409 + $0xf48] sm:$0xff]
          %v4452 = vld [vmem:[%s409 + $0xf50] sm:$0xff]
          %v4453 = vld [vmem:[%s409 + $0xf58] sm:$0xff]
          %v4454 = vld [vmem:[%s409 + $0xf60] sm:$0xff]
          %v4455 = vld [vmem:[%s409 + $0xf68] sm:$0xff]
          %v4456 = vld [vmem:[%s409 + $0xf70] sm:$0xff]
          %v4457 = vld [vmem:[%s409 + $0xf78] sm:$0xff]
          %v4458 = vld [vmem:[%s409 + $0xf80] sm:$0xff]
          %v4459 = vld [vmem:[%s409 + $0xf88] sm:$0xff]
          %v4460 = vld [vmem:[%s409 + $0xf90] sm:$0xff]
          %v4461 = vld [vmem:[%s409 + $0xf98] sm:$0xff]
          %v4462 = vld [vmem:[%s409 + $0xfa0] sm:$0xff]
          %v4463 = vld [vmem:[%s409 + $0xfa8] sm:$0xff]
          %v4464 = vld [vmem:[%s409 + $0xfb0] sm:$0xff]
          %v4465 = vld [vmem:[%s409 + $0xfb8] sm:$0xff]
          %v4466 = vld [vmem:[%s409 + $0xfc0] sm:$0xff]
          %v4467 = vld [vmem:[%s409 + $0xfc8] sm:$0xff]
          %v4468 = vld [vmem:[%s409 + $0xfd0] sm:$0xff]
          %v4469 = vld [vmem:[%s409 + $0xfd8] sm:$0xff]
          %v4470 = vld [vmem:[%s409 + $0xfe0] sm:$0xff]
          %v4471 = vld [vmem:[%s409 + $0xfe8] sm:$0xff]
          %v4472 = vld [vmem:[%s409 + $0xff0] sm:$0xff]
          %v4473 = vld [vmem:[%s409 + $0xff8] sm:$0xff]
          %s4474 = scalar_lea.vmem [#allocation2], 32
          %v4475 = vld [vmem:[%s4474] sm:$0xff]
          %v4476 = vld [vmem:[%s4474 + $0x8] sm:$0xff]
          %v4477 = vld [vmem:[%s4474 + $0x10] sm:$0xff]
          %v4478 = vld [vmem:[%s4474 + $0x18] sm:$0xff]
          %v4479 = vld [vmem:[%s409 + $0x1000] sm:$0xff]
          %v4480 = vld [vmem:[%s409 + $0x1008] sm:$0xff]
          %v4481 = vld [vmem:[%s409 + $0x1010] sm:$0xff]
          %v4482 = vld [vmem:[%s409 + $0x1018] sm:$0xff]
          %v4483 = vld [vmem:[%s409 + $0x1020] sm:$0xff]
          %v4484 = vld [vmem:[%s409 + $0x1028] sm:$0xff]
          %v4485 = vld [vmem:[%s409 + $0x1030] sm:$0xff]
          %v4486 = vld [vmem:[%s409 + $0x1038] sm:$0xff]
          %v4487 = vld [vmem:[%s409 + $0x1040] sm:$0xff]
          %v4488 = vld [vmem:[%s409 + $0x1048] sm:$0xff]
          %v4489 = vld [vmem:[%s409 + $0x1050] sm:$0xff]
          %v4490 = vld [vmem:[%s409 + $0x1058] sm:$0xff]
          %v4491 = vld [vmem:[%s409 + $0x1060] sm:$0xff]
          %v4492 = vld [vmem:[%s409 + $0x1068] sm:$0xff]
          %v4493 = vld [vmem:[%s409 + $0x1070] sm:$0xff]
          %v4494 = vld [vmem:[%s409 + $0x1078] sm:$0xff]
          %v4495 = vld [vmem:[%s409 + $0x1080] sm:$0xff]
          %v4496 = vld [vmem:[%s409 + $0x1088] sm:$0xff]
          %v4497 = vld [vmem:[%s409 + $0x1090] sm:$0xff]
          %v4498 = vld [vmem:[%s409 + $0x1098] sm:$0xff]
          %v4499 = vld [vmem:[%s409 + $0x10a0] sm:$0xff]
          %v4500 = vld [vmem:[%s409 + $0x10a8] sm:$0xff]
          %v4501 = vld [vmem:[%s409 + $0x10b0] sm:$0xff]
          %v4502 = vld [vmem:[%s409 + $0x10b8] sm:$0xff]
          %v4503 = vld [vmem:[%s409 + $0x10c0] sm:$0xff]
          %v4504 = vld [vmem:[%s409 + $0x10c8] sm:$0xff]
          %v4505 = vld [vmem:[%s409 + $0x10d0] sm:$0xff]
          %v4506 = vld [vmem:[%s409 + $0x10d8] sm:$0xff]
          %v4507 = vld [vmem:[%s409 + $0x10e0] sm:$0xff]
          %v4508 = vld [vmem:[%s409 + $0x10e8] sm:$0xff]
          %v4509 = vld [vmem:[%s409 + $0x10f0] sm:$0xff]
          %v4510 = vld [vmem:[%s409 + $0x10f8] sm:$0xff]
          %v4511 = vld [vmem:[%s409 + $0x1100] sm:$0xff]
          %v4512 = vld [vmem:[%s409 + $0x1108] sm:$0xff]
          %v4513 = vld [vmem:[%s409 + $0x1110] sm:$0xff]
          %v4514 = vld [vmem:[%s409 + $0x1118] sm:$0xff]
          %v4515 = vld [vmem:[%s409 + $0x1120] sm:$0xff]
          %v4516 = vld [vmem:[%s409 + $0x1128] sm:$0xff]
          %v4517 = vld [vmem:[%s409 + $0x1130] sm:$0xff]
          %v4518 = vld [vmem:[%s409 + $0x1138] sm:$0xff]
          %v4519 = vld [vmem:[%s409 + $0x1140] sm:$0xff]
          %v4520 = vld [vmem:[%s409 + $0x1148] sm:$0xff]
          %v4521 = vld [vmem:[%s409 + $0x1150] sm:$0xff]
          %v4522 = vld [vmem:[%s409 + $0x1158] sm:$0xff]
          %v4523 = vld [vmem:[%s409 + $0x1160] sm:$0xff]
          %v4524 = vld [vmem:[%s409 + $0x1168] sm:$0xff]
          %v4525 = vld [vmem:[%s409 + $0x1170] sm:$0xff]
          %v4526 = vld [vmem:[%s409 + $0x1178] sm:$0xff]
          %v4527 = vld [vmem:[%s409 + $0x1180] sm:$0xff]
          %v4528 = vld [vmem:[%s409 + $0x1188] sm:$0xff]
          %v4529 = vld [vmem:[%s409 + $0x1190] sm:$0xff]
          %v4530 = vld [vmem:[%s409 + $0x1198] sm:$0xff]
          %v4531 = vld [vmem:[%s409 + $0x11a0] sm:$0xff]
          %v4532 = vld [vmem:[%s409 + $0x11a8] sm:$0xff]
          %v4533 = vld [vmem:[%s409 + $0x11b0] sm:$0xff]
          %v4534 = vld [vmem:[%s409 + $0x11b8] sm:$0xff]
          %v4535 = vld [vmem:[%s409 + $0x11c0] sm:$0xff]
          %v4536 = vld [vmem:[%s409 + $0x11c8] sm:$0xff]
          %v4537 = vld [vmem:[%s409 + $0x11d0] sm:$0xff]
          %v4538 = vld [vmem:[%s409 + $0x11d8] sm:$0xff]
          %v4539 = vld [vmem:[%s409 + $0x11e0] sm:$0xff]
          %v4540 = vld [vmem:[%s409 + $0x11e8] sm:$0xff]
          %v4541 = vld [vmem:[%s409 + $0x11f0] sm:$0xff]
          %v4542 = vld [vmem:[%s409 + $0x11f8] sm:$0xff]
          %v4543 = vld [vmem:[%s409 + $0x1200] sm:$0xff]
          %v4544 = vld [vmem:[%s409 + $0x1208] sm:$0xff]
          %v4545 = vld [vmem:[%s409 + $0x1210] sm:$0xff]
          %v4546 = vld [vmem:[%s409 + $0x1218] sm:$0xff]
          %v4547 = vld [vmem:[%s409 + $0x1220] sm:$0xff]
          %v4548 = vld [vmem:[%s409 + $0x1228] sm:$0xff]
          %v4549 = vld [vmem:[%s409 + $0x1230] sm:$0xff]
          %v4550 = vld [vmem:[%s409 + $0x1238] sm:$0xff]
          %v4551 = vld [vmem:[%s409 + $0x1240] sm:$0xff]
          %v4552 = vld [vmem:[%s409 + $0x1248] sm:$0xff]
          %v4553 = vld [vmem:[%s409 + $0x1250] sm:$0xff]
          %v4554 = vld [vmem:[%s409 + $0x1258] sm:$0xff]
          %v4555 = vld [vmem:[%s409 + $0x1260] sm:$0xff]
          %v4556 = vld [vmem:[%s409 + $0x1268] sm:$0xff]
          %v4557 = vld [vmem:[%s409 + $0x1270] sm:$0xff]
          %v4558 = vld [vmem:[%s409 + $0x1278] sm:$0xff]
          %v4559 = vld [vmem:[%s409 + $0x1280] sm:$0xff]
          %v4560 = vld [vmem:[%s409 + $0x1288] sm:$0xff]
          %v4561 = vld [vmem:[%s409 + $0x1290] sm:$0xff]
          %v4562 = vld [vmem:[%s409 + $0x1298] sm:$0xff]
          %v4563 = vld [vmem:[%s409 + $0x12a0] sm:$0xff]
          %v4564 = vld [vmem:[%s409 + $0x12a8] sm:$0xff]
          %v4565 = vld [vmem:[%s409 + $0x12b0] sm:$0xff]
          %v4566 = vld [vmem:[%s409 + $0x12b8] sm:$0xff]
          %v4567 = vld [vmem:[%s409 + $0x12c0] sm:$0xff]
          %v4568 = vld [vmem:[%s409 + $0x12c8] sm:$0xff]
          %v4569 = vld [vmem:[%s409 + $0x12d0] sm:$0xff]
          %v4570 = vld [vmem:[%s409 + $0x12d8] sm:$0xff]
          %v4571 = vld [vmem:[%s409 + $0x12e0] sm:$0xff]
          %v4572 = vld [vmem:[%s409 + $0x12e8] sm:$0xff]
          %v4573 = vld [vmem:[%s409 + $0x12f0] sm:$0xff]
          %v4574 = vld [vmem:[%s409 + $0x12f8] sm:$0xff]
          %v4575 = vld [vmem:[%s409 + $0x1300] sm:$0xff]
          %v4576 = vld [vmem:[%s409 + $0x1308] sm:$0xff]
          %v4577 = vld [vmem:[%s409 + $0x1310] sm:$0xff]
          %v4578 = vld [vmem:[%s409 + $0x1318] sm:$0xff]
          %v4579 = vld [vmem:[%s409 + $0x1320] sm:$0xff]
          %v4580 = vld [vmem:[%s409 + $0x1328] sm:$0xff]
          %v4581 = vld [vmem:[%s409 + $0x1330] sm:$0xff]
          %v4582 = vld [vmem:[%s409 + $0x1338] sm:$0xff]
          %v4583 = vld [vmem:[%s409 + $0x1340] sm:$0xff]
          %v4584 = vld [vmem:[%s409 + $0x1348] sm:$0xff]
          %v4585 = vld [vmem:[%s409 + $0x1350] sm:$0xff]
          %v4586 = vld [vmem:[%s409 + $0x1358] sm:$0xff]
          %v4587 = vld [vmem:[%s409 + $0x1360] sm:$0xff]
          %v4588 = vld [vmem:[%s409 + $0x1368] sm:$0xff]
          %v4589 = vld [vmem:[%s409 + $0x1370] sm:$0xff]
          %v4590 = vld [vmem:[%s409 + $0x1378] sm:$0xff]
          %v4591 = vld [vmem:[%s409 + $0x1380] sm:$0xff]
          %v4592 = vld [vmem:[%s409 + $0x1388] sm:$0xff]
          %v4593 = vld [vmem:[%s409 + $0x1390] sm:$0xff]
          %v4594 = vld [vmem:[%s409 + $0x1398] sm:$0xff]
          %v4595 = vld [vmem:[%s409 + $0x13a0] sm:$0xff]
          %v4596 = vld [vmem:[%s409 + $0x13a8] sm:$0xff]
          %v4597 = vld [vmem:[%s409 + $0x13b0] sm:$0xff]
          %v4598 = vld [vmem:[%s409 + $0x13b8] sm:$0xff]
          %v4599 = vld [vmem:[%s409 + $0x13c0] sm:$0xff]
          %v4600 = vld [vmem:[%s409 + $0x13c8] sm:$0xff]
          %v4601 = vld [vmem:[%s409 + $0x13d0] sm:$0xff]
          %v4602 = vld [vmem:[%s409 + $0x13d8] sm:$0xff]
          %v4603 = vld [vmem:[%s409 + $0x13e0] sm:$0xff]
          %v4604 = vld [vmem:[%s409 + $0x13e8] sm:$0xff]
          %v4605 = vld [vmem:[%s409 + $0x13f0] sm:$0xff]
          %v4606 = vld [vmem:[%s409 + $0x13f8] sm:$0xff]
          %v4607 = vld [vmem:[%s409 + $0x1400] sm:$0xff]
          %v4608 = vld [vmem:[%s409 + $0x1408] sm:$0xff]
          %v4609 = vld [vmem:[%s409 + $0x1410] sm:$0xff]
          %v4610 = vld [vmem:[%s409 + $0x1418] sm:$0xff]
          %v4611 = vld [vmem:[%s409 + $0x1420] sm:$0xff]
          %v4612 = vld [vmem:[%s409 + $0x1428] sm:$0xff]
          %v4613 = vld [vmem:[%s409 + $0x1430] sm:$0xff]
          %v4614 = vld [vmem:[%s409 + $0x1438] sm:$0xff]
          %v4615 = vld [vmem:[%s409 + $0x1440] sm:$0xff]
          %v4616 = vld [vmem:[%s409 + $0x1448] sm:$0xff]
          %v4617 = vld [vmem:[%s409 + $0x1450] sm:$0xff]
          %v4618 = vld [vmem:[%s409 + $0x1458] sm:$0xff]
          %v4619 = vld [vmem:[%s409 + $0x1460] sm:$0xff]
          %v4620 = vld [vmem:[%s409 + $0x1468] sm:$0xff]
          %v4621 = vld [vmem:[%s409 + $0x1470] sm:$0xff]
          %v4622 = vld [vmem:[%s409 + $0x1478] sm:$0xff]
          %v4623 = vld [vmem:[%s409 + $0x1480] sm:$0xff]
          %v4624 = vld [vmem:[%s409 + $0x1488] sm:$0xff]
          %v4625 = vld [vmem:[%s409 + $0x1490] sm:$0xff]
          %v4626 = vld [vmem:[%s409 + $0x1498] sm:$0xff]
          %v4627 = vld [vmem:[%s409 + $0x14a0] sm:$0xff]
          %v4628 = vld [vmem:[%s409 + $0x14a8] sm:$0xff]
          %v4629 = vld [vmem:[%s409 + $0x14b0] sm:$0xff]
          %v4630 = vld [vmem:[%s409 + $0x14b8] sm:$0xff]
          %v4631 = vld [vmem:[%s409 + $0x14c0] sm:$0xff]
          %v4632 = vld [vmem:[%s409 + $0x14c8] sm:$0xff]
          %v4633 = vld [vmem:[%s409 + $0x14d0] sm:$0xff]
          %v4634 = vld [vmem:[%s409 + $0x14d8] sm:$0xff]
          %v4635 = vld [vmem:[%s409 + $0x14e0] sm:$0xff]
          %v4636 = vld [vmem:[%s409 + $0x14e8] sm:$0xff]
          %v4637 = vld [vmem:[%s409 + $0x14f0] sm:$0xff]
          %v4638 = vld [vmem:[%s409 + $0x14f8] sm:$0xff]
          %v4639 = vld [vmem:[%s409 + $0x1500] sm:$0xff]
          %v4640 = vld [vmem:[%s409 + $0x1508] sm:$0xff]
          %v4641 = vld [vmem:[%s409 + $0x1510] sm:$0xff]
          %v4642 = vld [vmem:[%s409 + $0x1518] sm:$0xff]
          %v4643 = vld [vmem:[%s409 + $0x1520] sm:$0xff]
          %v4644 = vld [vmem:[%s409 + $0x1528] sm:$0xff]
          %v4645 = vld [vmem:[%s409 + $0x1530] sm:$0xff]
          %v4646 = vld [vmem:[%s409 + $0x1538] sm:$0xff]
          %v4647 = vld [vmem:[%s409 + $0x1540] sm:$0xff]
          %v4648 = vld [vmem:[%s409 + $0x1548] sm:$0xff]
          %v4649 = vld [vmem:[%s409 + $0x1550] sm:$0xff]
          %v4650 = vld [vmem:[%s409 + $0x1558] sm:$0xff]
          %v4651 = vld [vmem:[%s409 + $0x1560] sm:$0xff]
          %v4652 = vld [vmem:[%s409 + $0x1568] sm:$0xff]
          %v4653 = vld [vmem:[%s409 + $0x1570] sm:$0xff]
          %v4654 = vld [vmem:[%s409 + $0x1578] sm:$0xff]
          %v4655 = vld [vmem:[%s409 + $0x1580] sm:$0xff]
          %v4656 = vld [vmem:[%s409 + $0x1588] sm:$0xff]
          %v4657 = vld [vmem:[%s409 + $0x1590] sm:$0xff]
          %v4658 = vld [vmem:[%s409 + $0x1598] sm:$0xff]
          %v4659 = vld [vmem:[%s409 + $0x15a0] sm:$0xff]
          %v4660 = vld [vmem:[%s409 + $0x15a8] sm:$0xff]
          %v4661 = vld [vmem:[%s409 + $0x15b0] sm:$0xff]
          %v4662 = vld [vmem:[%s409 + $0x15b8] sm:$0xff]
          %v4663 = vld [vmem:[%s409 + $0x15c0] sm:$0xff]
          %v4664 = vld [vmem:[%s409 + $0x15c8] sm:$0xff]
          %v4665 = vld [vmem:[%s409 + $0x15d0] sm:$0xff]
          %v4666 = vld [vmem:[%s409 + $0x15d8] sm:$0xff]
          %v4667 = vld [vmem:[%s409 + $0x15e0] sm:$0xff]
          %v4668 = vld [vmem:[%s409 + $0x15e8] sm:$0xff]
          %v4669 = vld [vmem:[%s409 + $0x15f0] sm:$0xff]
          %v4670 = vld [vmem:[%s409 + $0x15f8] sm:$0xff]
          %v4671 = vld [vmem:[%s409 + $0x1600] sm:$0xff]
          %v4672 = vld [vmem:[%s409 + $0x1608] sm:$0xff]
          %v4673 = vld [vmem:[%s409 + $0x1610] sm:$0xff]
          %v4674 = vld [vmem:[%s409 + $0x1618] sm:$0xff]
          %v4675 = vld [vmem:[%s409 + $0x1620] sm:$0xff]
          %v4676 = vld [vmem:[%s409 + $0x1628] sm:$0xff]
          %v4677 = vld [vmem:[%s409 + $0x1630] sm:$0xff]
          %v4678 = vld [vmem:[%s409 + $0x1638] sm:$0xff]
          %v4679 = vld [vmem:[%s409 + $0x1640] sm:$0xff]
          %v4680 = vld [vmem:[%s409 + $0x1648] sm:$0xff]
          %v4681 = vld [vmem:[%s409 + $0x1650] sm:$0xff]
          %v4682 = vld [vmem:[%s409 + $0x1658] sm:$0xff]
          %v4683 = vld [vmem:[%s409 + $0x1660] sm:$0xff]
          %v4684 = vld [vmem:[%s409 + $0x1668] sm:$0xff]
          %v4685 = vld [vmem:[%s409 + $0x1670] sm:$0xff]
          %v4686 = vld [vmem:[%s409 + $0x1678] sm:$0xff]
          %v4687 = vld [vmem:[%s409 + $0x1680] sm:$0xff]
          %v4688 = vld [vmem:[%s409 + $0x1688] sm:$0xff]
          %v4689 = vld [vmem:[%s409 + $0x1690] sm:$0xff]
          %v4690 = vld [vmem:[%s409 + $0x1698] sm:$0xff]
          %v4691 = vld [vmem:[%s409 + $0x16a0] sm:$0xff]
          %v4692 = vld [vmem:[%s409 + $0x16a8] sm:$0xff]
          %v4693 = vld [vmem:[%s409 + $0x16b0] sm:$0xff]
          %v4694 = vld [vmem:[%s409 + $0x16b8] sm:$0xff]
          %v4695 = vld [vmem:[%s409 + $0x16c0] sm:$0xff]
          %v4696 = vld [vmem:[%s409 + $0x16c8] sm:$0xff]
          %v4697 = vld [vmem:[%s409 + $0x16d0] sm:$0xff]
          %v4698 = vld [vmem:[%s409 + $0x16d8] sm:$0xff]
          %v4699 = vld [vmem:[%s409 + $0x16e0] sm:$0xff]
          %v4700 = vld [vmem:[%s409 + $0x16e8] sm:$0xff]
          %v4701 = vld [vmem:[%s409 + $0x16f0] sm:$0xff]
          %v4702 = vld [vmem:[%s409 + $0x16f8] sm:$0xff]
          %v4703 = vld [vmem:[%s409 + $0x1700] sm:$0xff]
          %v4704 = vld [vmem:[%s409 + $0x1708] sm:$0xff]
          %v4705 = vld [vmem:[%s409 + $0x1710] sm:$0xff]
          %v4706 = vld [vmem:[%s409 + $0x1718] sm:$0xff]
          %v4707 = vld [vmem:[%s409 + $0x1720] sm:$0xff]
          %v4708 = vld [vmem:[%s409 + $0x1728] sm:$0xff]
          %v4709 = vld [vmem:[%s409 + $0x1730] sm:$0xff]
          %v4710 = vld [vmem:[%s409 + $0x1738] sm:$0xff]
          %v4711 = vld [vmem:[%s409 + $0x1740] sm:$0xff]
          %v4712 = vld [vmem:[%s409 + $0x1748] sm:$0xff]
          %v4713 = vld [vmem:[%s409 + $0x1750] sm:$0xff]
          %v4714 = vld [vmem:[%s409 + $0x1758] sm:$0xff]
          %v4715 = vld [vmem:[%s409 + $0x1760] sm:$0xff]
          %v4716 = vld [vmem:[%s409 + $0x1768] sm:$0xff]
          %v4717 = vld [vmem:[%s409 + $0x1770] sm:$0xff]
          %v4718 = vld [vmem:[%s409 + $0x1778] sm:$0xff]
          %v4719 = vld [vmem:[%s409 + $0x1780] sm:$0xff]
          %v4720 = vld [vmem:[%s409 + $0x1788] sm:$0xff]
          %v4721 = vld [vmem:[%s409 + $0x1790] sm:$0xff]
          %v4722 = vld [vmem:[%s409 + $0x1798] sm:$0xff]
          %v4723 = vld [vmem:[%s409 + $0x17a0] sm:$0xff]
          %v4724 = vld [vmem:[%s409 + $0x17a8] sm:$0xff]
          %v4725 = vld [vmem:[%s409 + $0x17b0] sm:$0xff]
          %v4726 = vld [vmem:[%s409 + $0x17b8] sm:$0xff]
          %v4727 = vld [vmem:[%s409 + $0x17c0] sm:$0xff]
          %v4728 = vld [vmem:[%s409 + $0x17c8] sm:$0xff]
          %v4729 = vld [vmem:[%s409 + $0x17d0] sm:$0xff]
          %v4730 = vld [vmem:[%s409 + $0x17d8] sm:$0xff]
          %v4731 = vld [vmem:[%s409 + $0x17e0] sm:$0xff]
          %v4732 = vld [vmem:[%s409 + $0x17e8] sm:$0xff]
          %v4733 = vld [vmem:[%s409 + $0x17f0] sm:$0xff]
          %v4734 = vld [vmem:[%s409 + $0x17f8] sm:$0xff]
          %v4735 = vld [vmem:[%s409 + $0x1800] sm:$0xff]
          %v4736 = vld [vmem:[%s409 + $0x1808] sm:$0xff]
          %v4737 = vld [vmem:[%s409 + $0x1810] sm:$0xff]
          %v4738 = vld [vmem:[%s409 + $0x1818] sm:$0xff]
          %v4739 = vld [vmem:[%s409 + $0x1820] sm:$0xff]
          %v4740 = vld [vmem:[%s409 + $0x1828] sm:$0xff]
          %v4741 = vld [vmem:[%s409 + $0x1830] sm:$0xff]
          %v4742 = vld [vmem:[%s409 + $0x1838] sm:$0xff]
          %v4743 = vld [vmem:[%s409 + $0x1840] sm:$0xff]
          %v4744 = vld [vmem:[%s409 + $0x1848] sm:$0xff]
          %v4745 = vld [vmem:[%s409 + $0x1850] sm:$0xff]
          %v4746 = vld [vmem:[%s409 + $0x1858] sm:$0xff]
          %v4747 = vld [vmem:[%s409 + $0x1860] sm:$0xff]
          %v4748 = vld [vmem:[%s409 + $0x1868] sm:$0xff]
          %v4749 = vld [vmem:[%s409 + $0x1870] sm:$0xff]
          %v4750 = vld [vmem:[%s409 + $0x1878] sm:$0xff]
          %v4751 = vld [vmem:[%s409 + $0x1880] sm:$0xff]
          %v4752 = vld [vmem:[%s409 + $0x1888] sm:$0xff]
          %v4753 = vld [vmem:[%s409 + $0x1890] sm:$0xff]
          %v4754 = vld [vmem:[%s409 + $0x1898] sm:$0xff]
          %v4755 = vld [vmem:[%s409 + $0x18a0] sm:$0xff]
          %v4756 = vld [vmem:[%s409 + $0x18a8] sm:$0xff]
          %v4757 = vld [vmem:[%s409 + $0x18b0] sm:$0xff]
          %v4758 = vld [vmem:[%s409 + $0x18b8] sm:$0xff]
          %v4759 = vld [vmem:[%s409 + $0x18c0] sm:$0xff]
          %v4760 = vld [vmem:[%s409 + $0x18c8] sm:$0xff]
          %v4761 = vld [vmem:[%s409 + $0x18d0] sm:$0xff]
          %v4762 = vld [vmem:[%s409 + $0x18d8] sm:$0xff]
          %v4763 = vld [vmem:[%s409 + $0x18e0] sm:$0xff]
          %v4764 = vld [vmem:[%s409 + $0x18e8] sm:$0xff]
          %v4765 = vld [vmem:[%s409 + $0x18f0] sm:$0xff]
          %v4766 = vld [vmem:[%s409 + $0x18f8] sm:$0xff]
          %v4767 = vld [vmem:[%s409 + $0x1900] sm:$0xff]
          %v4768 = vld [vmem:[%s409 + $0x1908] sm:$0xff]
          %v4769 = vld [vmem:[%s409 + $0x1910] sm:$0xff]
          %v4770 = vld [vmem:[%s409 + $0x1918] sm:$0xff]
          %v4771 = vld [vmem:[%s409 + $0x1920] sm:$0xff]
          %v4772 = vld [vmem:[%s409 + $0x1928] sm:$0xff]
          %v4773 = vld [vmem:[%s409 + $0x1930] sm:$0xff]
          %v4774 = vld [vmem:[%s409 + $0x1938] sm:$0xff]
          %v4775 = vld [vmem:[%s409 + $0x1940] sm:$0xff]
          %v4776 = vld [vmem:[%s409 + $0x1948] sm:$0xff]
          %v4777 = vld [vmem:[%s409 + $0x1950] sm:$0xff]
          %v4778 = vld [vmem:[%s409 + $0x1958] sm:$0xff]
          %v4779 = vld [vmem:[%s409 + $0x1960] sm:$0xff]
          %v4780 = vld [vmem:[%s409 + $0x1968] sm:$0xff]
          %v4781 = vld [vmem:[%s409 + $0x1970] sm:$0xff]
          %v4782 = vld [vmem:[%s409 + $0x1978] sm:$0xff]
          %v4783 = vld [vmem:[%s409 + $0x1980] sm:$0xff]
          %v4784 = vld [vmem:[%s409 + $0x1988] sm:$0xff]
          %v4785 = vld [vmem:[%s409 + $0x1990] sm:$0xff]
          %v4786 = vld [vmem:[%s409 + $0x1998] sm:$0xff]
          %v4787 = vld [vmem:[%s409 + $0x19a0] sm:$0xff]
          %v4788 = vld [vmem:[%s409 + $0x19a8] sm:$0xff]
          %v4789 = vld [vmem:[%s409 + $0x19b0] sm:$0xff]
          %v4790 = vld [vmem:[%s409 + $0x19b8] sm:$0xff]
          %v4791 = vld [vmem:[%s409 + $0x19c0] sm:$0xff]
          %v4792 = vld [vmem:[%s409 + $0x19c8] sm:$0xff]
          %v4793 = vld [vmem:[%s409 + $0x19d0] sm:$0xff]
          %v4794 = vld [vmem:[%s409 + $0x19d8] sm:$0xff]
          %v4795 = vld [vmem:[%s409 + $0x19e0] sm:$0xff]
          %v4796 = vld [vmem:[%s409 + $0x19e8] sm:$0xff]
          %v4797 = vld [vmem:[%s409 + $0x19f0] sm:$0xff]
          %v4798 = vld [vmem:[%s409 + $0x19f8] sm:$0xff]
          %v4799 = vld [vmem:[%s409 + $0x1a00] sm:$0xff]
          %v4800 = vld [vmem:[%s409 + $0x1a08] sm:$0xff]
          %v4801 = vld [vmem:[%s409 + $0x1a10] sm:$0xff]
          %v4802 = vld [vmem:[%s409 + $0x1a18] sm:$0xff]
          %v4803 = vld [vmem:[%s409 + $0x1a20] sm:$0xff]
          %v4804 = vld [vmem:[%s409 + $0x1a28] sm:$0xff]
          %v4805 = vld [vmem:[%s409 + $0x1a30] sm:$0xff]
          %v4806 = vld [vmem:[%s409 + $0x1a38] sm:$0xff]
          %v4807 = vld [vmem:[%s409 + $0x1a40] sm:$0xff]
          %v4808 = vld [vmem:[%s409 + $0x1a48] sm:$0xff]
          %v4809 = vld [vmem:[%s409 + $0x1a50] sm:$0xff]
          %v4810 = vld [vmem:[%s409 + $0x1a58] sm:$0xff]
          %v4811 = vld [vmem:[%s409 + $0x1a60] sm:$0xff]
          %v4812 = vld [vmem:[%s409 + $0x1a68] sm:$0xff]
          %v4813 = vld [vmem:[%s409 + $0x1a70] sm:$0xff]
          %v4814 = vld [vmem:[%s409 + $0x1a78] sm:$0xff]
          %v4815 = vld [vmem:[%s409 + $0x1a80] sm:$0xff]
          %v4816 = vld [vmem:[%s409 + $0x1a88] sm:$0xff]
          %v4817 = vld [vmem:[%s409 + $0x1a90] sm:$0xff]
          %v4818 = vld [vmem:[%s409 + $0x1a98] sm:$0xff]
          %v4819 = vld [vmem:[%s409 + $0x1aa0] sm:$0xff]
          %v4820 = vld [vmem:[%s409 + $0x1aa8] sm:$0xff]
          %v4821 = vld [vmem:[%s409 + $0x1ab0] sm:$0xff]
          %v4822 = vld [vmem:[%s409 + $0x1ab8] sm:$0xff]
          %v4823 = vld [vmem:[%s409 + $0x1ac0] sm:$0xff]
          %v4824 = vld [vmem:[%s409 + $0x1ac8] sm:$0xff]
          %v4825 = vld [vmem:[%s409 + $0x1ad0] sm:$0xff]
          %v4826 = vld [vmem:[%s409 + $0x1ad8] sm:$0xff]
          %v4827 = vld [vmem:[%s409 + $0x1ae0] sm:$0xff]
          %v4828 = vld [vmem:[%s409 + $0x1ae8] sm:$0xff]
          %v4829 = vld [vmem:[%s409 + $0x1af0] sm:$0xff]
          %v4830 = vld [vmem:[%s409 + $0x1af8] sm:$0xff]
          %v4831 = vld [vmem:[%s409 + $0x1b00] sm:$0xff]
          %v4832 = vld [vmem:[%s409 + $0x1b08] sm:$0xff]
          %v4833 = vld [vmem:[%s409 + $0x1b10] sm:$0xff]
          %v4834 = vld [vmem:[%s409 + $0x1b18] sm:$0xff]
          %v4835 = vld [vmem:[%s409 + $0x1b20] sm:$0xff]
          %v4836 = vld [vmem:[%s409 + $0x1b28] sm:$0xff]
          %v4837 = vld [vmem:[%s409 + $0x1b30] sm:$0xff]
          %v4838 = vld [vmem:[%s409 + $0x1b38] sm:$0xff]
          %v4839 = vld [vmem:[%s409 + $0x1b40] sm:$0xff]
          %v4840 = vld [vmem:[%s409 + $0x1b48] sm:$0xff]
          %v4841 = vld [vmem:[%s409 + $0x1b50] sm:$0xff]
          %v4842 = vld [vmem:[%s409 + $0x1b58] sm:$0xff]
          %v4843 = vld [vmem:[%s409 + $0x1b60] sm:$0xff]
          %v4844 = vld [vmem:[%s409 + $0x1b68] sm:$0xff]
          %v4845 = vld [vmem:[%s409 + $0x1b70] sm:$0xff]
          %v4846 = vld [vmem:[%s409 + $0x1b78] sm:$0xff]
          %v4847 = vld [vmem:[%s409 + $0x1b80] sm:$0xff]
          %v4848 = vld [vmem:[%s409 + $0x1b88] sm:$0xff]
          %v4849 = vld [vmem:[%s409 + $0x1b90] sm:$0xff]
          %v4850 = vld [vmem:[%s409 + $0x1b98] sm:$0xff]
          %v4851 = vld [vmem:[%s409 + $0x1ba0] sm:$0xff]
          %v4852 = vld [vmem:[%s409 + $0x1ba8] sm:$0xff]
          %v4853 = vld [vmem:[%s409 + $0x1bb0] sm:$0xff]
          %v4854 = vld [vmem:[%s409 + $0x1bb8] sm:$0xff]
          %v4855 = vld [vmem:[%s409 + $0x1bc0] sm:$0xff]
          %v4856 = vld [vmem:[%s409 + $0x1bc8] sm:$0xff]
          %v4857 = vld [vmem:[%s409 + $0x1bd0] sm:$0xff]
          %v4858 = vld [vmem:[%s409 + $0x1bd8] sm:$0xff]
          %v4859 = vld [vmem:[%s409 + $0x1be0] sm:$0xff]
          %v4860 = vld [vmem:[%s409 + $0x1be8] sm:$0xff]
          %v4861 = vld [vmem:[%s409 + $0x1bf0] sm:$0xff]
          %v4862 = vld [vmem:[%s409 + $0x1bf8] sm:$0xff]
          %v4863 = vld [vmem:[%s409 + $0x1c00] sm:$0xff]
          %v4864 = vld [vmem:[%s409 + $0x1c08] sm:$0xff]
          %v4865 = vld [vmem:[%s409 + $0x1c10] sm:$0xff]
          %v4866 = vld [vmem:[%s409 + $0x1c18] sm:$0xff]
          %v4867 = vld [vmem:[%s409 + $0x1c20] sm:$0xff]
          %v4868 = vld [vmem:[%s409 + $0x1c28] sm:$0xff]
          %v4869 = vld [vmem:[%s409 + $0x1c30] sm:$0xff]
          %v4870 = vld [vmem:[%s409 + $0x1c38] sm:$0xff]
          %v4871 = vld [vmem:[%s409 + $0x1c40] sm:$0xff]
          %v4872 = vld [vmem:[%s409 + $0x1c48] sm:$0xff]
          %v4873 = vld [vmem:[%s409 + $0x1c50] sm:$0xff]
          %v4874 = vld [vmem:[%s409 + $0x1c58] sm:$0xff]
          %v4875 = vld [vmem:[%s409 + $0x1c60] sm:$0xff]
          %v4876 = vld [vmem:[%s409 + $0x1c68] sm:$0xff]
          %v4877 = vld [vmem:[%s409 + $0x1c70] sm:$0xff]
          %v4878 = vld [vmem:[%s409 + $0x1c78] sm:$0xff]
          %v4879 = vld [vmem:[%s409 + $0x1c80] sm:$0xff]
          %v4880 = vld [vmem:[%s409 + $0x1c88] sm:$0xff]
          %v4881 = vld [vmem:[%s409 + $0x1c90] sm:$0xff]
          %v4882 = vld [vmem:[%s409 + $0x1c98] sm:$0xff]
          %v4883 = vld [vmem:[%s409 + $0x1ca0] sm:$0xff]
          %v4884 = vld [vmem:[%s409 + $0x1ca8] sm:$0xff]
          %v4885 = vld [vmem:[%s409 + $0x1cb0] sm:$0xff]
          %v4886 = vld [vmem:[%s409 + $0x1cb8] sm:$0xff]
          %v4887 = vld [vmem:[%s409 + $0x1cc0] sm:$0xff]
          %v4888 = vld [vmem:[%s409 + $0x1cc8] sm:$0xff]
          %v4889 = vld [vmem:[%s409 + $0x1cd0] sm:$0xff]
          %v4890 = vld [vmem:[%s409 + $0x1cd8] sm:$0xff]
          %v4891 = vld [vmem:[%s409 + $0x1ce0] sm:$0xff]
          %v4892 = vld [vmem:[%s409 + $0x1ce8] sm:$0xff]
          %v4893 = vld [vmem:[%s409 + $0x1cf0] sm:$0xff]
          %v4894 = vld [vmem:[%s409 + $0x1cf8] sm:$0xff]
          %v4895 = vld [vmem:[%s409 + $0x1d00] sm:$0xff]
          %v4896 = vld [vmem:[%s409 + $0x1d08] sm:$0xff]
          %v4897 = vld [vmem:[%s409 + $0x1d10] sm:$0xff]
          %v4898 = vld [vmem:[%s409 + $0x1d18] sm:$0xff]
          %v4899 = vld [vmem:[%s409 + $0x1d20] sm:$0xff]
          %v4900 = vld [vmem:[%s409 + $0x1d28] sm:$0xff]
          %v4901 = vld [vmem:[%s409 + $0x1d30] sm:$0xff]
          %v4902 = vld [vmem:[%s409 + $0x1d38] sm:$0xff]
          %v4903 = vld [vmem:[%s409 + $0x1d40] sm:$0xff]
          %v4904 = vld [vmem:[%s409 + $0x1d48] sm:$0xff]
          %v4905 = vld [vmem:[%s409 + $0x1d50] sm:$0xff]
          %v4906 = vld [vmem:[%s409 + $0x1d58] sm:$0xff]
          %v4907 = vld [vmem:[%s409 + $0x1d60] sm:$0xff]
          %v4908 = vld [vmem:[%s409 + $0x1d68] sm:$0xff]
          %v4909 = vld [vmem:[%s409 + $0x1d70] sm:$0xff]
          %v4910 = vld [vmem:[%s409 + $0x1d78] sm:$0xff]
          %v4911 = vld [vmem:[%s409 + $0x1d80] sm:$0xff]
          %v4912 = vld [vmem:[%s409 + $0x1d88] sm:$0xff]
          %v4913 = vld [vmem:[%s409 + $0x1d90] sm:$0xff]
          %v4914 = vld [vmem:[%s409 + $0x1d98] sm:$0xff]
          %v4915 = vld [vmem:[%s409 + $0x1da0] sm:$0xff]
          %v4916 = vld [vmem:[%s409 + $0x1da8] sm:$0xff]
          %v4917 = vld [vmem:[%s409 + $0x1db0] sm:$0xff]
          %v4918 = vld [vmem:[%s409 + $0x1db8] sm:$0xff]
          %v4919 = vld [vmem:[%s409 + $0x1dc0] sm:$0xff]
          %v4920 = vld [vmem:[%s409 + $0x1dc8] sm:$0xff]
          %v4921 = vld [vmem:[%s409 + $0x1dd0] sm:$0xff]
          %v4922 = vld [vmem:[%s409 + $0x1dd8] sm:$0xff]
          %v4923 = vld [vmem:[%s409 + $0x1de0] sm:$0xff]
          %v4924 = vld [vmem:[%s409 + $0x1de8] sm:$0xff]
          %v4925 = vld [vmem:[%s409 + $0x1df0] sm:$0xff]
          %v4926 = vld [vmem:[%s409 + $0x1df8] sm:$0xff]
          %v4927 = vld [vmem:[%s409 + $0x1e00] sm:$0xff]
          %v4928 = vld [vmem:[%s409 + $0x1e08] sm:$0xff]
          %v4929 = vld [vmem:[%s409 + $0x1e10] sm:$0xff]
          %v4930 = vld [vmem:[%s409 + $0x1e18] sm:$0xff]
          %v4931 = vld [vmem:[%s409 + $0x1e20] sm:$0xff]
          %v4932 = vld [vmem:[%s409 + $0x1e28] sm:$0xff]
          %v4933 = vld [vmem:[%s409 + $0x1e30] sm:$0xff]
          %v4934 = vld [vmem:[%s409 + $0x1e38] sm:$0xff]
          %v4935 = vld [vmem:[%s409 + $0x1e40] sm:$0xff]
          %v4936 = vld [vmem:[%s409 + $0x1e48] sm:$0xff]
          %v4937 = vld [vmem:[%s409 + $0x1e50] sm:$0xff]
          %v4938 = vld [vmem:[%s409 + $0x1e58] sm:$0xff]
          %v4939 = vld [vmem:[%s409 + $0x1e60] sm:$0xff]
          %v4940 = vld [vmem:[%s409 + $0x1e68] sm:$0xff]
          %v4941 = vld [vmem:[%s409 + $0x1e70] sm:$0xff]
          %v4942 = vld [vmem:[%s409 + $0x1e78] sm:$0xff]
          %v4943 = vld [vmem:[%s409 + $0x1e80] sm:$0xff]
          %v4944 = vld [vmem:[%s409 + $0x1e88] sm:$0xff]
          %v4945 = vld [vmem:[%s409 + $0x1e90] sm:$0xff]
          %v4946 = vld [vmem:[%s409 + $0x1e98] sm:$0xff]
          %v4947 = vld [vmem:[%s409 + $0x1ea0] sm:$0xff]
          %v4948 = vld [vmem:[%s409 + $0x1ea8] sm:$0xff]
          %v4949 = vld [vmem:[%s409 + $0x1eb0] sm:$0xff]
          %v4950 = vld [vmem:[%s409 + $0x1eb8] sm:$0xff]
          %v4951 = vld [vmem:[%s409 + $0x1ec0] sm:$0xff]
          %v4952 = vld [vmem:[%s409 + $0x1ec8] sm:$0xff]
          %v4953 = vld [vmem:[%s409 + $0x1ed0] sm:$0xff]
          %v4954 = vld [vmem:[%s409 + $0x1ed8] sm:$0xff]
          %v4955 = vld [vmem:[%s409 + $0x1ee0] sm:$0xff]
          %v4956 = vld [vmem:[%s409 + $0x1ee8] sm:$0xff]
          %v4957 = vld [vmem:[%s409 + $0x1ef0] sm:$0xff]
          %v4958 = vld [vmem:[%s409 + $0x1ef8] sm:$0xff]
          %v4959 = vld [vmem:[%s409 + $0x1f00] sm:$0xff]
          %v4960 = vld [vmem:[%s409 + $0x1f08] sm:$0xff]
          %v4961 = vld [vmem:[%s409 + $0x1f10] sm:$0xff]
          %v4962 = vld [vmem:[%s409 + $0x1f18] sm:$0xff]
          %v4963 = vld [vmem:[%s409 + $0x1f20] sm:$0xff]
          %v4964 = vld [vmem:[%s409 + $0x1f28] sm:$0xff]
          %v4965 = vld [vmem:[%s409 + $0x1f30] sm:$0xff]
          %v4966 = vld [vmem:[%s409 + $0x1f38] sm:$0xff]
          %v4967 = vld [vmem:[%s409 + $0x1f40] sm:$0xff]
          %v4968 = vld [vmem:[%s409 + $0x1f48] sm:$0xff]
          %v4969 = vld [vmem:[%s409 + $0x1f50] sm:$0xff]
          %v4970 = vld [vmem:[%s409 + $0x1f58] sm:$0xff]
          %v4971 = vld [vmem:[%s409 + $0x1f60] sm:$0xff]
          %v4972 = vld [vmem:[%s409 + $0x1f68] sm:$0xff]
          %v4973 = vld [vmem:[%s409 + $0x1f70] sm:$0xff]
          %v4974 = vld [vmem:[%s409 + $0x1f78] sm:$0xff]
          %v4975 = vld [vmem:[%s409 + $0x1f80] sm:$0xff]
          %v4976 = vld [vmem:[%s409 + $0x1f88] sm:$0xff]
          %v4977 = vld [vmem:[%s409 + $0x1f90] sm:$0xff]
          %v4978 = vld [vmem:[%s409 + $0x1f98] sm:$0xff]
          %v4979 = vld [vmem:[%s409 + $0x1fa0] sm:$0xff]
          %v4980 = vld [vmem:[%s409 + $0x1fa8] sm:$0xff]
          %v4981 = vld [vmem:[%s409 + $0x1fb0] sm:$0xff]
          %v4982 = vld [vmem:[%s409 + $0x1fb8] sm:$0xff]
          %v4983 = vld [vmem:[%s409 + $0x1fc0] sm:$0xff]
          %v4984 = vld [vmem:[%s409 + $0x1fc8] sm:$0xff]
          %v4985 = vld [vmem:[%s409 + $0x1fd0] sm:$0xff]
          %v4986 = vld [vmem:[%s409 + $0x1fd8] sm:$0xff]
          %v4987 = vld [vmem:[%s409 + $0x1fe0] sm:$0xff]
          %v4988 = vld [vmem:[%s409 + $0x1fe8] sm:$0xff]
          %v4989 = vld [vmem:[%s409 + $0x1ff0] sm:$0xff]
          %v4990 = vld [vmem:[%s409 + $0x1ff8] sm:$0xff]
          %v4995 = vunpack.c.l.b16 %v4475
          %v4996 = vunpack.c.h.b16 %v4475
          %v4997 = vunpack.c.l.b16 %v4476
          %v4998 = vunpack.c.h.b16 %v4476
          %v4999 = vunpack.c.l.b16 %v4477
          %v5000 = vunpack.c.h.b16 %v4477
          %v5001 = vunpack.c.l.b16 %v4478
          %v5002 = vunpack.c.h.b16 %v4478
          %v5003 = vpack.c.b16 %v4995, %v4995
          %v5004 = vpack.c.b16 %v4996, %v4996
          %v5005 = vpack.c.b16 %v4997, %v4997
          %v5006 = vpack.c.b16 %v4998, %v4998
          %v5007 = vpack.c.b16 %v4999, %v4999
          %v5008 = vpack.c.b16 %v5000, %v5000
          %v5009 = vpack.c.b16 %v5001, %v5001
          %v5010 = vpack.c.b16 %v5002, %v5002
          %v5531 = vunpack.c.l.b16 %v4479
          %v5532 = vunpack.c.h.b16 %v4479
          %v5533 = vunpack.c.l.b16 %v4480
          %v5534 = vunpack.c.h.b16 %v4480
          %v5535 = vunpack.c.l.b16 %v4481
          %v5536 = vunpack.c.h.b16 %v4481
          %v5537 = vunpack.c.l.b16 %v4482
          %v5538 = vunpack.c.h.b16 %v4482
          %v5539 = vunpack.c.l.b16 %v4483
          %v5540 = vunpack.c.h.b16 %v4483
          %v5541 = vunpack.c.l.b16 %v4484
          %v5542 = vunpack.c.h.b16 %v4484
          %v5543 = vunpack.c.l.b16 %v4485
          %v5544 = vunpack.c.h.b16 %v4485
          %v5545 = vunpack.c.l.b16 %v4486
          %v5546 = vunpack.c.h.b16 %v4486
          %v5547 = vunpack.c.l.b16 %v4487
          %v5548 = vunpack.c.h.b16 %v4487
          %v5549 = vunpack.c.l.b16 %v4488
          %v5550 = vunpack.c.h.b16 %v4488
          %v5551 = vunpack.c.l.b16 %v4489
          %v5552 = vunpack.c.h.b16 %v4489
          %v5553 = vunpack.c.l.b16 %v4490
          %v5554 = vunpack.c.h.b16 %v4490
          %v5555 = vunpack.c.l.b16 %v4491
          %v5556 = vunpack.c.h.b16 %v4491
          %v5557 = vunpack.c.l.b16 %v4492
          %v5558 = vunpack.c.h.b16 %v4492
          %v5559 = vunpack.c.l.b16 %v4493
          %v5560 = vunpack.c.h.b16 %v4493
          %v5561 = vunpack.c.l.b16 %v4494
          %v5562 = vunpack.c.h.b16 %v4494
          %v5563 = vunpack.c.l.b16 %v4495
          %v5564 = vunpack.c.h.b16 %v4495
          %v5565 = vunpack.c.l.b16 %v4496
          %v5566 = vunpack.c.h.b16 %v4496
          %v5567 = vunpack.c.l.b16 %v4497
          %v5568 = vunpack.c.h.b16 %v4497
          %v5569 = vunpack.c.l.b16 %v4498
          %v5570 = vunpack.c.h.b16 %v4498
          %v5571 = vunpack.c.l.b16 %v4499
          %v5572 = vunpack.c.h.b16 %v4499
          %v5573 = vunpack.c.l.b16 %v4500
          %v5574 = vunpack.c.h.b16 %v4500
          %v5575 = vunpack.c.l.b16 %v4501
          %v5576 = vunpack.c.h.b16 %v4501
          %v5577 = vunpack.c.l.b16 %v4502
          %v5578 = vunpack.c.h.b16 %v4502
          %v5579 = vunpack.c.l.b16 %v4503
          %v5580 = vunpack.c.h.b16 %v4503
          %v5581 = vunpack.c.l.b16 %v4504
          %v5582 = vunpack.c.h.b16 %v4504
          %v5583 = vunpack.c.l.b16 %v4505
          %v5584 = vunpack.c.h.b16 %v4505
          %v5585 = vunpack.c.l.b16 %v4506
          %v5586 = vunpack.c.h.b16 %v4506
          %v5587 = vunpack.c.l.b16 %v4507
          %v5588 = vunpack.c.h.b16 %v4507
          %v5589 = vunpack.c.l.b16 %v4508
          %v5590 = vunpack.c.h.b16 %v4508
          %v5591 = vunpack.c.l.b16 %v4509
          %v5592 = vunpack.c.h.b16 %v4509
          %v5593 = vunpack.c.l.b16 %v4510
          %v5594 = vunpack.c.h.b16 %v4510
          %v5595 = vunpack.c.l.b16 %v4511
          %v5596 = vunpack.c.h.b16 %v4511
          %v5597 = vunpack.c.l.b16 %v4512
          %v5598 = vunpack.c.h.b16 %v4512
          %v5599 = vunpack.c.l.b16 %v4513
          %v5600 = vunpack.c.h.b16 %v4513
          %v5601 = vunpack.c.l.b16 %v4514
          %v5602 = vunpack.c.h.b16 %v4514
          %v5603 = vunpack.c.l.b16 %v4515
          %v5604 = vunpack.c.h.b16 %v4515
          %v5605 = vunpack.c.l.b16 %v4516
          %v5606 = vunpack.c.h.b16 %v4516
          %v5607 = vunpack.c.l.b16 %v4517
          %v5608 = vunpack.c.h.b16 %v4517
          %v5609 = vunpack.c.l.b16 %v4518
          %v5610 = vunpack.c.h.b16 %v4518
          %v5611 = vunpack.c.l.b16 %v4519
          %v5612 = vunpack.c.h.b16 %v4519
          %v5613 = vunpack.c.l.b16 %v4520
          %v5614 = vunpack.c.h.b16 %v4520
          %v5615 = vunpack.c.l.b16 %v4521
          %v5616 = vunpack.c.h.b16 %v4521
          %v5617 = vunpack.c.l.b16 %v4522
          %v5618 = vunpack.c.h.b16 %v4522
          %v5619 = vunpack.c.l.b16 %v4523
          %v5620 = vunpack.c.h.b16 %v4523
          %v5621 = vunpack.c.l.b16 %v4524
          %v5622 = vunpack.c.h.b16 %v4524
          %v5623 = vunpack.c.l.b16 %v4525
          %v5624 = vunpack.c.h.b16 %v4525
          %v5625 = vunpack.c.l.b16 %v4526
          %v5626 = vunpack.c.h.b16 %v4526
          %v5627 = vunpack.c.l.b16 %v4527
          %v5628 = vunpack.c.h.b16 %v4527
          %v5629 = vunpack.c.l.b16 %v4528
          %v5630 = vunpack.c.h.b16 %v4528
          %v5631 = vunpack.c.l.b16 %v4529
          %v5632 = vunpack.c.h.b16 %v4529
          %v5633 = vunpack.c.l.b16 %v4530
          %v5634 = vunpack.c.h.b16 %v4530
          %v5635 = vunpack.c.l.b16 %v4531
          %v5636 = vunpack.c.h.b16 %v4531
          %v5637 = vunpack.c.l.b16 %v4532
          %v5638 = vunpack.c.h.b16 %v4532
          %v5639 = vunpack.c.l.b16 %v4533
          %v5640 = vunpack.c.h.b16 %v4533
          %v5641 = vunpack.c.l.b16 %v4534
          %v5642 = vunpack.c.h.b16 %v4534
          %v5643 = vunpack.c.l.b16 %v4535
          %v5644 = vunpack.c.h.b16 %v4535
          %v5645 = vunpack.c.l.b16 %v4536
          %v5646 = vunpack.c.h.b16 %v4536
          %v5647 = vunpack.c.l.b16 %v4537
          %v5648 = vunpack.c.h.b16 %v4537
          %v5649 = vunpack.c.l.b16 %v4538
          %v5650 = vunpack.c.h.b16 %v4538
          %v5651 = vunpack.c.l.b16 %v4539
          %v5652 = vunpack.c.h.b16 %v4539
          %v5653 = vunpack.c.l.b16 %v4540
          %v5654 = vunpack.c.h.b16 %v4540
          %v5655 = vunpack.c.l.b16 %v4541
          %v5656 = vunpack.c.h.b16 %v4541
          %v5657 = vunpack.c.l.b16 %v4542
          %v5658 = vunpack.c.h.b16 %v4542
          %v5659 = vunpack.c.l.b16 %v4543
          %v5660 = vunpack.c.h.b16 %v4543
          %v5661 = vunpack.c.l.b16 %v4544
          %v5662 = vunpack.c.h.b16 %v4544
          %v5663 = vunpack.c.l.b16 %v4545
          %v5664 = vunpack.c.h.b16 %v4545
          %v5665 = vunpack.c.l.b16 %v4546
          %v5666 = vunpack.c.h.b16 %v4546
          %v5667 = vunpack.c.l.b16 %v4547
          %v5668 = vunpack.c.h.b16 %v4547
          %v5669 = vunpack.c.l.b16 %v4548
          %v5670 = vunpack.c.h.b16 %v4548
          %v5671 = vunpack.c.l.b16 %v4549
          %v5672 = vunpack.c.h.b16 %v4549
          %v5673 = vunpack.c.l.b16 %v4550
          %v5674 = vunpack.c.h.b16 %v4550
          %v5675 = vunpack.c.l.b16 %v4551
          %v5676 = vunpack.c.h.b16 %v4551
          %v5677 = vunpack.c.l.b16 %v4552
          %v5678 = vunpack.c.h.b16 %v4552
          %v5679 = vunpack.c.l.b16 %v4553
          %v5680 = vunpack.c.h.b16 %v4553
          %v5681 = vunpack.c.l.b16 %v4554
          %v5682 = vunpack.c.h.b16 %v4554
          %v5683 = vunpack.c.l.b16 %v4555
          %v5684 = vunpack.c.h.b16 %v4555
          %v5685 = vunpack.c.l.b16 %v4556
          %v5686 = vunpack.c.h.b16 %v4556
          %v5687 = vunpack.c.l.b16 %v4557
          %v5688 = vunpack.c.h.b16 %v4557
          %v5689 = vunpack.c.l.b16 %v4558
          %v5690 = vunpack.c.h.b16 %v4558
          %v5691 = vunpack.c.l.b16 %v4559
          %v5692 = vunpack.c.h.b16 %v4559
          %v5693 = vunpack.c.l.b16 %v4560
          %v5694 = vunpack.c.h.b16 %v4560
          %v5695 = vunpack.c.l.b16 %v4561
          %v5696 = vunpack.c.h.b16 %v4561
          %v5697 = vunpack.c.l.b16 %v4562
          %v5698 = vunpack.c.h.b16 %v4562
          %v5699 = vunpack.c.l.b16 %v4563
          %v5700 = vunpack.c.h.b16 %v4563
          %v5701 = vunpack.c.l.b16 %v4564
          %v5702 = vunpack.c.h.b16 %v4564
          %v5703 = vunpack.c.l.b16 %v4565
          %v5704 = vunpack.c.h.b16 %v4565
          %v5705 = vunpack.c.l.b16 %v4566
          %v5706 = vunpack.c.h.b16 %v4566
          %v5707 = vunpack.c.l.b16 %v4567
          %v5708 = vunpack.c.h.b16 %v4567
          %v5709 = vunpack.c.l.b16 %v4568
          %v5710 = vunpack.c.h.b16 %v4568
          %v5711 = vunpack.c.l.b16 %v4569
          %v5712 = vunpack.c.h.b16 %v4569
          %v5713 = vunpack.c.l.b16 %v4570
          %v5714 = vunpack.c.h.b16 %v4570
          %v5715 = vunpack.c.l.b16 %v4571
          %v5716 = vunpack.c.h.b16 %v4571
          %v5717 = vunpack.c.l.b16 %v4572
          %v5718 = vunpack.c.h.b16 %v4572
          %v5719 = vunpack.c.l.b16 %v4573
          %v5720 = vunpack.c.h.b16 %v4573
          %v5721 = vunpack.c.l.b16 %v4574
          %v5722 = vunpack.c.h.b16 %v4574
          %v5723 = vunpack.c.l.b16 %v4575
          %v5724 = vunpack.c.h.b16 %v4575
          %v5725 = vunpack.c.l.b16 %v4576
          %v5726 = vunpack.c.h.b16 %v4576
          %v5727 = vunpack.c.l.b16 %v4577
          %v5728 = vunpack.c.h.b16 %v4577
          %v5729 = vunpack.c.l.b16 %v4578
          %v5730 = vunpack.c.h.b16 %v4578
          %v5731 = vunpack.c.l.b16 %v4579
          %v5732 = vunpack.c.h.b16 %v4579
          %v5733 = vunpack.c.l.b16 %v4580
          %v5734 = vunpack.c.h.b16 %v4580
          %v5735 = vunpack.c.l.b16 %v4581
          %v5736 = vunpack.c.h.b16 %v4581
          %v5737 = vunpack.c.l.b16 %v4582
          %v5738 = vunpack.c.h.b16 %v4582
          %v5739 = vunpack.c.l.b16 %v4583
          %v5740 = vunpack.c.h.b16 %v4583
          %v5741 = vunpack.c.l.b16 %v4584
          %v5742 = vunpack.c.h.b16 %v4584
          %v5743 = vunpack.c.l.b16 %v4585
          %v5744 = vunpack.c.h.b16 %v4585
          %v5745 = vunpack.c.l.b16 %v4586
          %v5746 = vunpack.c.h.b16 %v4586
          %v5747 = vunpack.c.l.b16 %v4587
          %v5748 = vunpack.c.h.b16 %v4587
          %v5749 = vunpack.c.l.b16 %v4588
          %v5750 = vunpack.c.h.b16 %v4588
          %v5751 = vunpack.c.l.b16 %v4589
          %v5752 = vunpack.c.h.b16 %v4589
          %v5753 = vunpack.c.l.b16 %v4590
          %v5754 = vunpack.c.h.b16 %v4590
          %v5755 = vunpack.c.l.b16 %v4591
          %v5756 = vunpack.c.h.b16 %v4591
          %v5757 = vunpack.c.l.b16 %v4592
          %v5758 = vunpack.c.h.b16 %v4592
          %v5759 = vunpack.c.l.b16 %v4593
          %v5760 = vunpack.c.h.b16 %v4593
          %v5761 = vunpack.c.l.b16 %v4594
          %v5762 = vunpack.c.h.b16 %v4594
          %v5763 = vunpack.c.l.b16 %v4595
          %v5764 = vunpack.c.h.b16 %v4595
          %v5765 = vunpack.c.l.b16 %v4596
          %v5766 = vunpack.c.h.b16 %v4596
          %v5767 = vunpack.c.l.b16 %v4597
          %v5768 = vunpack.c.h.b16 %v4597
          %v5769 = vunpack.c.l.b16 %v4598
          %v5770 = vunpack.c.h.b16 %v4598
          %v5771 = vunpack.c.l.b16 %v4599
          %v5772 = vunpack.c.h.b16 %v4599
          %v5773 = vunpack.c.l.b16 %v4600
          %v5774 = vunpack.c.h.b16 %v4600
          %v5775 = vunpack.c.l.b16 %v4601
          %v5776 = vunpack.c.h.b16 %v4601
          %v5777 = vunpack.c.l.b16 %v4602
          %v5778 = vunpack.c.h.b16 %v4602
          %v5779 = vunpack.c.l.b16 %v4603
          %v5780 = vunpack.c.h.b16 %v4603
          %v5781 = vunpack.c.l.b16 %v4604
          %v5782 = vunpack.c.h.b16 %v4604
          %v5783 = vunpack.c.l.b16 %v4605
          %v5784 = vunpack.c.h.b16 %v4605
          %v5785 = vunpack.c.l.b16 %v4606
          %v5786 = vunpack.c.h.b16 %v4606
          %v5787 = vunpack.c.l.b16 %v4607
          %v5788 = vunpack.c.h.b16 %v4607
          %v5789 = vunpack.c.l.b16 %v4608
          %v5790 = vunpack.c.h.b16 %v4608
          %v5791 = vunpack.c.l.b16 %v4609
          %v5792 = vunpack.c.h.b16 %v4609
          %v5793 = vunpack.c.l.b16 %v4610
          %v5794 = vunpack.c.h.b16 %v4610
          %v5795 = vunpack.c.l.b16 %v4611
          %v5796 = vunpack.c.h.b16 %v4611
          %v5797 = vunpack.c.l.b16 %v4612
          %v5798 = vunpack.c.h.b16 %v4612
          %v5799 = vunpack.c.l.b16 %v4613
          %v5800 = vunpack.c.h.b16 %v4613
          %v5801 = vunpack.c.l.b16 %v4614
          %v5802 = vunpack.c.h.b16 %v4614
          %v5803 = vunpack.c.l.b16 %v4615
          %v5804 = vunpack.c.h.b16 %v4615
          %v5805 = vunpack.c.l.b16 %v4616
          %v5806 = vunpack.c.h.b16 %v4616
          %v5807 = vunpack.c.l.b16 %v4617
          %v5808 = vunpack.c.h.b16 %v4617
          %v5809 = vunpack.c.l.b16 %v4618
          %v5810 = vunpack.c.h.b16 %v4618
          %v5811 = vunpack.c.l.b16 %v4619
          %v5812 = vunpack.c.h.b16 %v4619
          %v5813 = vunpack.c.l.b16 %v4620
          %v5814 = vunpack.c.h.b16 %v4620
          %v5815 = vunpack.c.l.b16 %v4621
          %v5816 = vunpack.c.h.b16 %v4621
          %v5817 = vunpack.c.l.b16 %v4622
          %v5818 = vunpack.c.h.b16 %v4622
          %v5819 = vunpack.c.l.b16 %v4623
          %v5820 = vunpack.c.h.b16 %v4623
          %v5821 = vunpack.c.l.b16 %v4624
          %v5822 = vunpack.c.h.b16 %v4624
          %v5823 = vunpack.c.l.b16 %v4625
          %v5824 = vunpack.c.h.b16 %v4625
          %v5825 = vunpack.c.l.b16 %v4626
          %v5826 = vunpack.c.h.b16 %v4626
          %v5827 = vunpack.c.l.b16 %v4627
          %v5828 = vunpack.c.h.b16 %v4627
          %v5829 = vunpack.c.l.b16 %v4628
          %v5830 = vunpack.c.h.b16 %v4628
          %v5831 = vunpack.c.l.b16 %v4629
          %v5832 = vunpack.c.h.b16 %v4629
          %v5833 = vunpack.c.l.b16 %v4630
          %v5834 = vunpack.c.h.b16 %v4630
          %v5835 = vunpack.c.l.b16 %v4631
          %v5836 = vunpack.c.h.b16 %v4631
          %v5837 = vunpack.c.l.b16 %v4632
          %v5838 = vunpack.c.h.b16 %v4632
          %v5839 = vunpack.c.l.b16 %v4633
          %v5840 = vunpack.c.h.b16 %v4633
          %v5841 = vunpack.c.l.b16 %v4634
          %v5842 = vunpack.c.h.b16 %v4634
          %v5843 = vunpack.c.l.b16 %v4635
          %v5844 = vunpack.c.h.b16 %v4635
          %v5845 = vunpack.c.l.b16 %v4636
          %v5846 = vunpack.c.h.b16 %v4636
          %v5847 = vunpack.c.l.b16 %v4637
          %v5848 = vunpack.c.h.b16 %v4637
          %v5849 = vunpack.c.l.b16 %v4638
          %v5850 = vunpack.c.h.b16 %v4638
          %v5851 = vunpack.c.l.b16 %v4639
          %v5852 = vunpack.c.h.b16 %v4639
          %v5853 = vunpack.c.l.b16 %v4640
          %v5854 = vunpack.c.h.b16 %v4640
          %v5855 = vunpack.c.l.b16 %v4641
          %v5856 = vunpack.c.h.b16 %v4641
          %v5857 = vunpack.c.l.b16 %v4642
          %v5858 = vunpack.c.h.b16 %v4642
          %v5859 = vunpack.c.l.b16 %v4643
          %v5860 = vunpack.c.h.b16 %v4643
          %v5861 = vunpack.c.l.b16 %v4644
          %v5862 = vunpack.c.h.b16 %v4644
          %v5863 = vunpack.c.l.b16 %v4645
          %v5864 = vunpack.c.h.b16 %v4645
          %v5865 = vunpack.c.l.b16 %v4646
          %v5866 = vunpack.c.h.b16 %v4646
          %v5867 = vunpack.c.l.b16 %v4647
          %v5868 = vunpack.c.h.b16 %v4647
          %v5869 = vunpack.c.l.b16 %v4648
          %v5870 = vunpack.c.h.b16 %v4648
          %v5871 = vunpack.c.l.b16 %v4649
          %v5872 = vunpack.c.h.b16 %v4649
          %v5873 = vunpack.c.l.b16 %v4650
          %v5874 = vunpack.c.h.b16 %v4650
          %v5875 = vunpack.c.l.b16 %v4651
          %v5876 = vunpack.c.h.b16 %v4651
          %v5877 = vunpack.c.l.b16 %v4652
          %v5878 = vunpack.c.h.b16 %v4652
          %v5879 = vunpack.c.l.b16 %v4653
          %v5880 = vunpack.c.h.b16 %v4653
          %v5881 = vunpack.c.l.b16 %v4654
          %v5882 = vunpack.c.h.b16 %v4654
          %v5883 = vunpack.c.l.b16 %v4655
          %v5884 = vunpack.c.h.b16 %v4655
          %v5885 = vunpack.c.l.b16 %v4656
          %v5886 = vunpack.c.h.b16 %v4656
          %v5887 = vunpack.c.l.b16 %v4657
          %v5888 = vunpack.c.h.b16 %v4657
          %v5889 = vunpack.c.l.b16 %v4658
          %v5890 = vunpack.c.h.b16 %v4658
          %v5891 = vunpack.c.l.b16 %v4659
          %v5892 = vunpack.c.h.b16 %v4659
          %v5893 = vunpack.c.l.b16 %v4660
          %v5894 = vunpack.c.h.b16 %v4660
          %v5895 = vunpack.c.l.b16 %v4661
          %v5896 = vunpack.c.h.b16 %v4661
          %v5897 = vunpack.c.l.b16 %v4662
          %v5898 = vunpack.c.h.b16 %v4662
          %v5899 = vunpack.c.l.b16 %v4663
          %v5900 = vunpack.c.h.b16 %v4663
          %v5901 = vunpack.c.l.b16 %v4664
          %v5902 = vunpack.c.h.b16 %v4664
          %v5903 = vunpack.c.l.b16 %v4665
          %v5904 = vunpack.c.h.b16 %v4665
          %v5905 = vunpack.c.l.b16 %v4666
          %v5906 = vunpack.c.h.b16 %v4666
          %v5907 = vunpack.c.l.b16 %v4667
          %v5908 = vunpack.c.h.b16 %v4667
          %v5909 = vunpack.c.l.b16 %v4668
          %v5910 = vunpack.c.h.b16 %v4668
          %v5911 = vunpack.c.l.b16 %v4669
          %v5912 = vunpack.c.h.b16 %v4669
          %v5913 = vunpack.c.l.b16 %v4670
          %v5914 = vunpack.c.h.b16 %v4670
          %v5915 = vunpack.c.l.b16 %v4671
          %v5916 = vunpack.c.h.b16 %v4671
          %v5917 = vunpack.c.l.b16 %v4672
          %v5918 = vunpack.c.h.b16 %v4672
          %v5919 = vunpack.c.l.b16 %v4673
          %v5920 = vunpack.c.h.b16 %v4673
          %v5921 = vunpack.c.l.b16 %v4674
          %v5922 = vunpack.c.h.b16 %v4674
          %v5923 = vunpack.c.l.b16 %v4675
          %v5924 = vunpack.c.h.b16 %v4675
          %v5925 = vunpack.c.l.b16 %v4676
          %v5926 = vunpack.c.h.b16 %v4676
          %v5927 = vunpack.c.l.b16 %v4677
          %v5928 = vunpack.c.h.b16 %v4677
          %v5929 = vunpack.c.l.b16 %v4678
          %v5930 = vunpack.c.h.b16 %v4678
          %v5931 = vunpack.c.l.b16 %v4679
          %v5932 = vunpack.c.h.b16 %v4679
          %v5933 = vunpack.c.l.b16 %v4680
          %v5934 = vunpack.c.h.b16 %v4680
          %v5935 = vunpack.c.l.b16 %v4681
          %v5936 = vunpack.c.h.b16 %v4681
          %v5937 = vunpack.c.l.b16 %v4682
          %v5938 = vunpack.c.h.b16 %v4682
          %v5939 = vunpack.c.l.b16 %v4683
          %v5940 = vunpack.c.h.b16 %v4683
          %v5941 = vunpack.c.l.b16 %v4684
          %v5942 = vunpack.c.h.b16 %v4684
          %v5943 = vunpack.c.l.b16 %v4685
          %v5944 = vunpack.c.h.b16 %v4685
          %v5945 = vunpack.c.l.b16 %v4686
          %v5946 = vunpack.c.h.b16 %v4686
          %v5947 = vunpack.c.l.b16 %v4687
          %v5948 = vunpack.c.h.b16 %v4687
          %v5949 = vunpack.c.l.b16 %v4688
          %v5950 = vunpack.c.h.b16 %v4688
          %v5951 = vunpack.c.l.b16 %v4689
          %v5952 = vunpack.c.h.b16 %v4689
          %v5953 = vunpack.c.l.b16 %v4690
          %v5954 = vunpack.c.h.b16 %v4690
          %v5955 = vunpack.c.l.b16 %v4691
          %v5956 = vunpack.c.h.b16 %v4691
          %v5957 = vunpack.c.l.b16 %v4692
          %v5958 = vunpack.c.h.b16 %v4692
          %v5959 = vunpack.c.l.b16 %v4693
          %v5960 = vunpack.c.h.b16 %v4693
          %v5961 = vunpack.c.l.b16 %v4694
          %v5962 = vunpack.c.h.b16 %v4694
          %v5963 = vunpack.c.l.b16 %v4695
          %v5964 = vunpack.c.h.b16 %v4695
          %v5965 = vunpack.c.l.b16 %v4696
          %v5966 = vunpack.c.h.b16 %v4696
          %v5967 = vunpack.c.l.b16 %v4697
          %v5968 = vunpack.c.h.b16 %v4697
          %v5969 = vunpack.c.l.b16 %v4698
          %v5970 = vunpack.c.h.b16 %v4698
          %v5971 = vunpack.c.l.b16 %v4699
          %v5972 = vunpack.c.h.b16 %v4699
          %v5973 = vunpack.c.l.b16 %v4700
          %v5974 = vunpack.c.h.b16 %v4700
          %v5975 = vunpack.c.l.b16 %v4701
          %v5976 = vunpack.c.h.b16 %v4701
          %v5977 = vunpack.c.l.b16 %v4702
          %v5978 = vunpack.c.h.b16 %v4702
          %v5979 = vunpack.c.l.b16 %v4703
          %v5980 = vunpack.c.h.b16 %v4703
          %v5981 = vunpack.c.l.b16 %v4704
          %v5982 = vunpack.c.h.b16 %v4704
          %v5983 = vunpack.c.l.b16 %v4705
          %v5984 = vunpack.c.h.b16 %v4705
          %v5985 = vunpack.c.l.b16 %v4706
          %v5986 = vunpack.c.h.b16 %v4706
          %v5987 = vunpack.c.l.b16 %v4707
          %v5988 = vunpack.c.h.b16 %v4707
          %v5989 = vunpack.c.l.b16 %v4708
          %v5990 = vunpack.c.h.b16 %v4708
          %v5991 = vunpack.c.l.b16 %v4709
          %v5992 = vunpack.c.h.b16 %v4709
          %v5993 = vunpack.c.l.b16 %v4710
          %v5994 = vunpack.c.h.b16 %v4710
          %v5995 = vunpack.c.l.b16 %v4711
          %v5996 = vunpack.c.h.b16 %v4711
          %v5997 = vunpack.c.l.b16 %v4712
          %v5998 = vunpack.c.h.b16 %v4712
          %v5999 = vunpack.c.l.b16 %v4713
          %v6000 = vunpack.c.h.b16 %v4713
          %v6001 = vunpack.c.l.b16 %v4714
          %v6002 = vunpack.c.h.b16 %v4714
          %v6003 = vunpack.c.l.b16 %v4715
          %v6004 = vunpack.c.h.b16 %v4715
          %v6005 = vunpack.c.l.b16 %v4716
          %v6006 = vunpack.c.h.b16 %v4716
          %v6007 = vunpack.c.l.b16 %v4717
          %v6008 = vunpack.c.h.b16 %v4717
          %v6009 = vunpack.c.l.b16 %v4718
          %v6010 = vunpack.c.h.b16 %v4718
          %v6011 = vunpack.c.l.b16 %v4719
          %v6012 = vunpack.c.h.b16 %v4719
          %v6013 = vunpack.c.l.b16 %v4720
          %v6014 = vunpack.c.h.b16 %v4720
          %v6015 = vunpack.c.l.b16 %v4721
          %v6016 = vunpack.c.h.b16 %v4721
          %v6017 = vunpack.c.l.b16 %v4722
          %v6018 = vunpack.c.h.b16 %v4722
          %v6019 = vunpack.c.l.b16 %v4723
          %v6020 = vunpack.c.h.b16 %v4723
          %v6021 = vunpack.c.l.b16 %v4724
          %v6022 = vunpack.c.h.b16 %v4724
          %v6023 = vunpack.c.l.b16 %v4725
          %v6024 = vunpack.c.h.b16 %v4725
          %v6025 = vunpack.c.l.b16 %v4726
          %v6026 = vunpack.c.h.b16 %v4726
          %v6027 = vunpack.c.l.b16 %v4727
          %v6028 = vunpack.c.h.b16 %v4727
          %v6029 = vunpack.c.l.b16 %v4728
          %v6030 = vunpack.c.h.b16 %v4728
          %v6031 = vunpack.c.l.b16 %v4729
          %v6032 = vunpack.c.h.b16 %v4729
          %v6033 = vunpack.c.l.b16 %v4730
          %v6034 = vunpack.c.h.b16 %v4730
          %v6035 = vunpack.c.l.b16 %v4731
          %v6036 = vunpack.c.h.b16 %v4731
          %v6037 = vunpack.c.l.b16 %v4732
          %v6038 = vunpack.c.h.b16 %v4732
          %v6039 = vunpack.c.l.b16 %v4733
          %v6040 = vunpack.c.h.b16 %v4733
          %v6041 = vunpack.c.l.b16 %v4734
          %v6042 = vunpack.c.h.b16 %v4734
          %v6043 = vunpack.c.l.b16 %v4735
          %v6044 = vunpack.c.h.b16 %v4735
          %v6045 = vunpack.c.l.b16 %v4736
          %v6046 = vunpack.c.h.b16 %v4736
          %v6047 = vunpack.c.l.b16 %v4737
          %v6048 = vunpack.c.h.b16 %v4737
          %v6049 = vunpack.c.l.b16 %v4738
          %v6050 = vunpack.c.h.b16 %v4738
          %v6051 = vunpack.c.l.b16 %v4739
          %v6052 = vunpack.c.h.b16 %v4739
          %v6053 = vunpack.c.l.b16 %v4740
          %v6054 = vunpack.c.h.b16 %v4740
          %v6055 = vunpack.c.l.b16 %v4741
          %v6056 = vunpack.c.h.b16 %v4741
          %v6057 = vunpack.c.l.b16 %v4742
          %v6058 = vunpack.c.h.b16 %v4742
          %v6059 = vunpack.c.l.b16 %v4743
          %v6060 = vunpack.c.h.b16 %v4743
          %v6061 = vunpack.c.l.b16 %v4744
          %v6062 = vunpack.c.h.b16 %v4744
          %v6063 = vunpack.c.l.b16 %v4745
          %v6064 = vunpack.c.h.b16 %v4745
          %v6065 = vunpack.c.l.b16 %v4746
          %v6066 = vunpack.c.h.b16 %v4746
          %v6067 = vunpack.c.l.b16 %v4747
          %v6068 = vunpack.c.h.b16 %v4747
          %v6069 = vunpack.c.l.b16 %v4748
          %v6070 = vunpack.c.h.b16 %v4748
          %v6071 = vunpack.c.l.b16 %v4749
          %v6072 = vunpack.c.h.b16 %v4749
          %v6073 = vunpack.c.l.b16 %v4750
          %v6074 = vunpack.c.h.b16 %v4750
          %v6075 = vunpack.c.l.b16 %v4751
          %v6076 = vunpack.c.h.b16 %v4751
          %v6077 = vunpack.c.l.b16 %v4752
          %v6078 = vunpack.c.h.b16 %v4752
          %v6079 = vunpack.c.l.b16 %v4753
          %v6080 = vunpack.c.h.b16 %v4753
          %v6081 = vunpack.c.l.b16 %v4754
          %v6082 = vunpack.c.h.b16 %v4754
          %v6083 = vunpack.c.l.b16 %v4755
          %v6084 = vunpack.c.h.b16 %v4755
          %v6085 = vunpack.c.l.b16 %v4756
          %v6086 = vunpack.c.h.b16 %v4756
          %v6087 = vunpack.c.l.b16 %v4757
          %v6088 = vunpack.c.h.b16 %v4757
          %v6089 = vunpack.c.l.b16 %v4758
          %v6090 = vunpack.c.h.b16 %v4758
          %v6091 = vunpack.c.l.b16 %v4759
          %v6092 = vunpack.c.h.b16 %v4759
          %v6093 = vunpack.c.l.b16 %v4760
          %v6094 = vunpack.c.h.b16 %v4760
          %v6095 = vunpack.c.l.b16 %v4761
          %v6096 = vunpack.c.h.b16 %v4761
          %v6097 = vunpack.c.l.b16 %v4762
          %v6098 = vunpack.c.h.b16 %v4762
          %v6099 = vunpack.c.l.b16 %v4763
          %v6100 = vunpack.c.h.b16 %v4763
          %v6101 = vunpack.c.l.b16 %v4764
          %v6102 = vunpack.c.h.b16 %v4764
          %v6103 = vunpack.c.l.b16 %v4765
          %v6104 = vunpack.c.h.b16 %v4765
          %v6105 = vunpack.c.l.b16 %v4766
          %v6106 = vunpack.c.h.b16 %v4766
          %v6107 = vunpack.c.l.b16 %v4767
          %v6108 = vunpack.c.h.b16 %v4767
          %v6109 = vunpack.c.l.b16 %v4768
          %v6110 = vunpack.c.h.b16 %v4768
          %v6111 = vunpack.c.l.b16 %v4769
          %v6112 = vunpack.c.h.b16 %v4769
          %v6113 = vunpack.c.l.b16 %v4770
          %v6114 = vunpack.c.h.b16 %v4770
          %v6115 = vunpack.c.l.b16 %v4771
          %v6116 = vunpack.c.h.b16 %v4771
          %v6117 = vunpack.c.l.b16 %v4772
          %v6118 = vunpack.c.h.b16 %v4772
          %v6119 = vunpack.c.l.b16 %v4773
          %v6120 = vunpack.c.h.b16 %v4773
          %v6121 = vunpack.c.l.b16 %v4774
          %v6122 = vunpack.c.h.b16 %v4774
          %v6123 = vunpack.c.l.b16 %v4775
          %v6124 = vunpack.c.h.b16 %v4775
          %v6125 = vunpack.c.l.b16 %v4776
          %v6126 = vunpack.c.h.b16 %v4776
          %v6127 = vunpack.c.l.b16 %v4777
          %v6128 = vunpack.c.h.b16 %v4777
          %v6129 = vunpack.c.l.b16 %v4778
          %v6130 = vunpack.c.h.b16 %v4778
          %v6131 = vunpack.c.l.b16 %v4779
          %v6132 = vunpack.c.h.b16 %v4779
          %v6133 = vunpack.c.l.b16 %v4780
          %v6134 = vunpack.c.h.b16 %v4780
          %v6135 = vunpack.c.l.b16 %v4781
          %v6136 = vunpack.c.h.b16 %v4781
          %v6137 = vunpack.c.l.b16 %v4782
          %v6138 = vunpack.c.h.b16 %v4782
          %v6139 = vunpack.c.l.b16 %v4783
          %v6140 = vunpack.c.h.b16 %v4783
          %v6141 = vunpack.c.l.b16 %v4784
          %v6142 = vunpack.c.h.b16 %v4784
          %v6143 = vunpack.c.l.b16 %v4785
          %v6144 = vunpack.c.h.b16 %v4785
          %v6145 = vunpack.c.l.b16 %v4786
          %v6146 = vunpack.c.h.b16 %v4786
          %v6147 = vunpack.c.l.b16 %v4787
          %v6148 = vunpack.c.h.b16 %v4787
          %v6149 = vunpack.c.l.b16 %v4788
          %v6150 = vunpack.c.h.b16 %v4788
          %v6151 = vunpack.c.l.b16 %v4789
          %v6152 = vunpack.c.h.b16 %v4789
          %v6153 = vunpack.c.l.b16 %v4790
          %v6154 = vunpack.c.h.b16 %v4790
          %v6155 = vunpack.c.l.b16 %v4791
          %v6156 = vunpack.c.h.b16 %v4791
          %v6157 = vunpack.c.l.b16 %v4792
          %v6158 = vunpack.c.h.b16 %v4792
          %v6159 = vunpack.c.l.b16 %v4793
          %v6160 = vunpack.c.h.b16 %v4793
          %v6161 = vunpack.c.l.b16 %v4794
          %v6162 = vunpack.c.h.b16 %v4794
          %v6163 = vunpack.c.l.b16 %v4795
          %v6164 = vunpack.c.h.b16 %v4795
          %v6165 = vunpack.c.l.b16 %v4796
          %v6166 = vunpack.c.h.b16 %v4796
          %v6167 = vunpack.c.l.b16 %v4797
          %v6168 = vunpack.c.h.b16 %v4797
          %v6169 = vunpack.c.l.b16 %v4798
          %v6170 = vunpack.c.h.b16 %v4798
          %v6171 = vunpack.c.l.b16 %v4799
          %v6172 = vunpack.c.h.b16 %v4799
          %v6173 = vunpack.c.l.b16 %v4800
          %v6174 = vunpack.c.h.b16 %v4800
          %v6175 = vunpack.c.l.b16 %v4801
          %v6176 = vunpack.c.h.b16 %v4801
          %v6177 = vunpack.c.l.b16 %v4802
          %v6178 = vunpack.c.h.b16 %v4802
          %v6179 = vunpack.c.l.b16 %v4803
          %v6180 = vunpack.c.h.b16 %v4803
          %v6181 = vunpack.c.l.b16 %v4804
          %v6182 = vunpack.c.h.b16 %v4804
          %v6183 = vunpack.c.l.b16 %v4805
          %v6184 = vunpack.c.h.b16 %v4805
          %v6185 = vunpack.c.l.b16 %v4806
          %v6186 = vunpack.c.h.b16 %v4806
          %v6187 = vunpack.c.l.b16 %v4807
          %v6188 = vunpack.c.h.b16 %v4807
          %v6189 = vunpack.c.l.b16 %v4808
          %v6190 = vunpack.c.h.b16 %v4808
          %v6191 = vunpack.c.l.b16 %v4809
          %v6192 = vunpack.c.h.b16 %v4809
          %v6193 = vunpack.c.l.b16 %v4810
          %v6194 = vunpack.c.h.b16 %v4810
          %v6195 = vunpack.c.l.b16 %v4811
          %v6196 = vunpack.c.h.b16 %v4811
          %v6197 = vunpack.c.l.b16 %v4812
          %v6198 = vunpack.c.h.b16 %v4812
          %v6199 = vunpack.c.l.b16 %v4813
          %v6200 = vunpack.c.h.b16 %v4813
          %v6201 = vunpack.c.l.b16 %v4814
          %v6202 = vunpack.c.h.b16 %v4814
          %v6203 = vunpack.c.l.b16 %v4815
          %v6204 = vunpack.c.h.b16 %v4815
          %v6205 = vunpack.c.l.b16 %v4816
          %v6206 = vunpack.c.h.b16 %v4816
          %v6207 = vunpack.c.l.b16 %v4817
          %v6208 = vunpack.c.h.b16 %v4817
          %v6209 = vunpack.c.l.b16 %v4818
          %v6210 = vunpack.c.h.b16 %v4818
          %v6211 = vunpack.c.l.b16 %v4819
          %v6212 = vunpack.c.h.b16 %v4819
          %v6213 = vunpack.c.l.b16 %v4820
          %v6214 = vunpack.c.h.b16 %v4820
          %v6215 = vunpack.c.l.b16 %v4821
          %v6216 = vunpack.c.h.b16 %v4821
          %v6217 = vunpack.c.l.b16 %v4822
          %v6218 = vunpack.c.h.b16 %v4822
          %v6219 = vunpack.c.l.b16 %v4823
          %v6220 = vunpack.c.h.b16 %v4823
          %v6221 = vunpack.c.l.b16 %v4824
          %v6222 = vunpack.c.h.b16 %v4824
          %v6223 = vunpack.c.l.b16 %v4825
          %v6224 = vunpack.c.h.b16 %v4825
          %v6225 = vunpack.c.l.b16 %v4826
          %v6226 = vunpack.c.h.b16 %v4826
          %v6227 = vunpack.c.l.b16 %v4827
          %v6228 = vunpack.c.h.b16 %v4827
          %v6229 = vunpack.c.l.b16 %v4828
          %v6230 = vunpack.c.h.b16 %v4828
          %v6231 = vunpack.c.l.b16 %v4829
          %v6232 = vunpack.c.h.b16 %v4829
          %v6233 = vunpack.c.l.b16 %v4830
          %v6234 = vunpack.c.h.b16 %v4830
          %v6235 = vunpack.c.l.b16 %v4831
          %v6236 = vunpack.c.h.b16 %v4831
          %v6237 = vunpack.c.l.b16 %v4832
          %v6238 = vunpack.c.h.b16 %v4832
          %v6239 = vunpack.c.l.b16 %v4833
          %v6240 = vunpack.c.h.b16 %v4833
          %v6241 = vunpack.c.l.b16 %v4834
          %v6242 = vunpack.c.h.b16 %v4834
          %v6243 = vunpack.c.l.b16 %v4835
          %v6244 = vunpack.c.h.b16 %v4835
          %v6245 = vunpack.c.l.b16 %v4836
          %v6246 = vunpack.c.h.b16 %v4836
          %v6247 = vunpack.c.l.b16 %v4837
          %v6248 = vunpack.c.h.b16 %v4837
          %v6249 = vunpack.c.l.b16 %v4838
          %v6250 = vunpack.c.h.b16 %v4838
          %v6251 = vunpack.c.l.b16 %v4839
          %v6252 = vunpack.c.h.b16 %v4839
          %v6253 = vunpack.c.l.b16 %v4840
          %v6254 = vunpack.c.h.b16 %v4840
          %v6255 = vunpack.c.l.b16 %v4841
          %v6256 = vunpack.c.h.b16 %v4841
          %v6257 = vunpack.c.l.b16 %v4842
          %v6258 = vunpack.c.h.b16 %v4842
          %v6259 = vunpack.c.l.b16 %v4843
          %v6260 = vunpack.c.h.b16 %v4843
          %v6261 = vunpack.c.l.b16 %v4844
          %v6262 = vunpack.c.h.b16 %v4844
          %v6263 = vunpack.c.l.b16 %v4845
          %v6264 = vunpack.c.h.b16 %v4845
          %v6265 = vunpack.c.l.b16 %v4846
          %v6266 = vunpack.c.h.b16 %v4846
          %v6267 = vunpack.c.l.b16 %v4847
          %v6268 = vunpack.c.h.b16 %v4847
          %v6269 = vunpack.c.l.b16 %v4848
          %v6270 = vunpack.c.h.b16 %v4848
          %v6271 = vunpack.c.l.b16 %v4849
          %v6272 = vunpack.c.h.b16 %v4849
          %v6273 = vunpack.c.l.b16 %v4850
          %v6274 = vunpack.c.h.b16 %v4850
          %v6275 = vunpack.c.l.b16 %v4851
          %v6276 = vunpack.c.h.b16 %v4851
          %v6277 = vunpack.c.l.b16 %v4852
          %v6278 = vunpack.c.h.b16 %v4852
          %v6279 = vunpack.c.l.b16 %v4853
          %v6280 = vunpack.c.h.b16 %v4853
          %v6281 = vunpack.c.l.b16 %v4854
          %v6282 = vunpack.c.h.b16 %v4854
          %v6283 = vunpack.c.l.b16 %v4855
          %v6284 = vunpack.c.h.b16 %v4855
          %v6285 = vunpack.c.l.b16 %v4856
          %v6286 = vunpack.c.h.b16 %v4856
          %v6287 = vunpack.c.l.b16 %v4857
          %v6288 = vunpack.c.h.b16 %v4857
          %v6289 = vunpack.c.l.b16 %v4858
          %v6290 = vunpack.c.h.b16 %v4858
          %v6291 = vunpack.c.l.b16 %v4859
          %v6292 = vunpack.c.h.b16 %v4859
          %v6293 = vunpack.c.l.b16 %v4860
          %v6294 = vunpack.c.h.b16 %v4860
          %v6295 = vunpack.c.l.b16 %v4861
          %v6296 = vunpack.c.h.b16 %v4861
          %v6297 = vunpack.c.l.b16 %v4862
          %v6298 = vunpack.c.h.b16 %v4862
          %v6299 = vunpack.c.l.b16 %v4863
          %v6300 = vunpack.c.h.b16 %v4863
          %v6301 = vunpack.c.l.b16 %v4864
          %v6302 = vunpack.c.h.b16 %v4864
          %v6303 = vunpack.c.l.b16 %v4865
          %v6304 = vunpack.c.h.b16 %v4865
          %v6305 = vunpack.c.l.b16 %v4866
          %v6306 = vunpack.c.h.b16 %v4866
          %v6307 = vunpack.c.l.b16 %v4867
          %v6308 = vunpack.c.h.b16 %v4867
          %v6309 = vunpack.c.l.b16 %v4868
          %v6310 = vunpack.c.h.b16 %v4868
          %v6311 = vunpack.c.l.b16 %v4869
          %v6312 = vunpack.c.h.b16 %v4869
          %v6313 = vunpack.c.l.b16 %v4870
          %v6314 = vunpack.c.h.b16 %v4870
          %v6315 = vunpack.c.l.b16 %v4871
          %v6316 = vunpack.c.h.b16 %v4871
          %v6317 = vunpack.c.l.b16 %v4872
          %v6318 = vunpack.c.h.b16 %v4872
          %v6319 = vunpack.c.l.b16 %v4873
          %v6320 = vunpack.c.h.b16 %v4873
          %v6321 = vunpack.c.l.b16 %v4874
          %v6322 = vunpack.c.h.b16 %v4874
          %v6323 = vunpack.c.l.b16 %v4875
          %v6324 = vunpack.c.h.b16 %v4875
          %v6325 = vunpack.c.l.b16 %v4876
          %v6326 = vunpack.c.h.b16 %v4876
          %v6327 = vunpack.c.l.b16 %v4877
          %v6328 = vunpack.c.h.b16 %v4877
          %v6329 = vunpack.c.l.b16 %v4878
          %v6330 = vunpack.c.h.b16 %v4878
          %v6331 = vunpack.c.l.b16 %v4879
          %v6332 = vunpack.c.h.b16 %v4879
          %v6333 = vunpack.c.l.b16 %v4880
          %v6334 = vunpack.c.h.b16 %v4880
          %v6335 = vunpack.c.l.b16 %v4881
          %v6336 = vunpack.c.h.b16 %v4881
          %v6337 = vunpack.c.l.b16 %v4882
          %v6338 = vunpack.c.h.b16 %v4882
          %v6339 = vunpack.c.l.b16 %v4883
          %v6340 = vunpack.c.h.b16 %v4883
          %v6341 = vunpack.c.l.b16 %v4884
          %v6342 = vunpack.c.h.b16 %v4884
          %v6343 = vunpack.c.l.b16 %v4885
          %v6344 = vunpack.c.h.b16 %v4885
          %v6345 = vunpack.c.l.b16 %v4886
          %v6346 = vunpack.c.h.b16 %v4886
          %v6347 = vunpack.c.l.b16 %v4887
          %v6348 = vunpack.c.h.b16 %v4887
          %v6349 = vunpack.c.l.b16 %v4888
          %v6350 = vunpack.c.h.b16 %v4888
          %v6351 = vunpack.c.l.b16 %v4889
          %v6352 = vunpack.c.h.b16 %v4889
          %v6353 = vunpack.c.l.b16 %v4890
          %v6354 = vunpack.c.h.b16 %v4890
          %v6355 = vunpack.c.l.b16 %v4891
          %v6356 = vunpack.c.h.b16 %v4891
          %v6357 = vunpack.c.l.b16 %v4892
          %v6358 = vunpack.c.h.b16 %v4892
          %v6359 = vunpack.c.l.b16 %v4893
          %v6360 = vunpack.c.h.b16 %v4893
          %v6361 = vunpack.c.l.b16 %v4894
          %v6362 = vunpack.c.h.b16 %v4894
          %v6363 = vunpack.c.l.b16 %v4895
          %v6364 = vunpack.c.h.b16 %v4895
          %v6365 = vunpack.c.l.b16 %v4896
          %v6366 = vunpack.c.h.b16 %v4896
          %v6367 = vunpack.c.l.b16 %v4897
          %v6368 = vunpack.c.h.b16 %v4897
          %v6369 = vunpack.c.l.b16 %v4898
          %v6370 = vunpack.c.h.b16 %v4898
          %v6371 = vunpack.c.l.b16 %v4899
          %v6372 = vunpack.c.h.b16 %v4899
          %v6373 = vunpack.c.l.b16 %v4900
          %v6374 = vunpack.c.h.b16 %v4900
          %v6375 = vunpack.c.l.b16 %v4901
          %v6376 = vunpack.c.h.b16 %v4901
          %v6377 = vunpack.c.l.b16 %v4902
          %v6378 = vunpack.c.h.b16 %v4902
          %v6379 = vunpack.c.l.b16 %v4903
          %v6380 = vunpack.c.h.b16 %v4903
          %v6381 = vunpack.c.l.b16 %v4904
          %v6382 = vunpack.c.h.b16 %v4904
          %v6383 = vunpack.c.l.b16 %v4905
          %v6384 = vunpack.c.h.b16 %v4905
          %v6385 = vunpack.c.l.b16 %v4906
          %v6386 = vunpack.c.h.b16 %v4906
          %v6387 = vunpack.c.l.b16 %v4907
          %v6388 = vunpack.c.h.b16 %v4907
          %v6389 = vunpack.c.l.b16 %v4908
          %v6390 = vunpack.c.h.b16 %v4908
          %v6391 = vunpack.c.l.b16 %v4909
          %v6392 = vunpack.c.h.b16 %v4909
          %v6393 = vunpack.c.l.b16 %v4910
          %v6394 = vunpack.c.h.b16 %v4910
          %v6395 = vunpack.c.l.b16 %v4911
          %v6396 = vunpack.c.h.b16 %v4911
          %v6397 = vunpack.c.l.b16 %v4912
          %v6398 = vunpack.c.h.b16 %v4912
          %v6399 = vunpack.c.l.b16 %v4913
          %v6400 = vunpack.c.h.b16 %v4913
          %v6401 = vunpack.c.l.b16 %v4914
          %v6402 = vunpack.c.h.b16 %v4914
          %v6403 = vunpack.c.l.b16 %v4915
          %v6404 = vunpack.c.h.b16 %v4915
          %v6405 = vunpack.c.l.b16 %v4916
          %v6406 = vunpack.c.h.b16 %v4916
          %v6407 = vunpack.c.l.b16 %v4917
          %v6408 = vunpack.c.h.b16 %v4917
          %v6409 = vunpack.c.l.b16 %v4918
          %v6410 = vunpack.c.h.b16 %v4918
          %v6411 = vunpack.c.l.b16 %v4919
          %v6412 = vunpack.c.h.b16 %v4919
          %v6413 = vunpack.c.l.b16 %v4920
          %v6414 = vunpack.c.h.b16 %v4920
          %v6415 = vunpack.c.l.b16 %v4921
          %v6416 = vunpack.c.h.b16 %v4921
          %v6417 = vunpack.c.l.b16 %v4922
          %v6418 = vunpack.c.h.b16 %v4922
          %v6419 = vunpack.c.l.b16 %v4923
          %v6420 = vunpack.c.h.b16 %v4923
          %v6421 = vunpack.c.l.b16 %v4924
          %v6422 = vunpack.c.h.b16 %v4924
          %v6423 = vunpack.c.l.b16 %v4925
          %v6424 = vunpack.c.h.b16 %v4925
          %v6425 = vunpack.c.l.b16 %v4926
          %v6426 = vunpack.c.h.b16 %v4926
          %v6427 = vunpack.c.l.b16 %v4927
          %v6428 = vunpack.c.h.b16 %v4927
          %v6429 = vunpack.c.l.b16 %v4928
          %v6430 = vunpack.c.h.b16 %v4928
          %v6431 = vunpack.c.l.b16 %v4929
          %v6432 = vunpack.c.h.b16 %v4929
          %v6433 = vunpack.c.l.b16 %v4930
          %v6434 = vunpack.c.h.b16 %v4930
          %v6435 = vunpack.c.l.b16 %v4931
          %v6436 = vunpack.c.h.b16 %v4931
          %v6437 = vunpack.c.l.b16 %v4932
          %v6438 = vunpack.c.h.b16 %v4932
          %v6439 = vunpack.c.l.b16 %v4933
          %v6440 = vunpack.c.h.b16 %v4933
          %v6441 = vunpack.c.l.b16 %v4934
          %v6442 = vunpack.c.h.b16 %v4934
          %v6443 = vunpack.c.l.b16 %v4935
          %v6444 = vunpack.c.h.b16 %v4935
          %v6445 = vunpack.c.l.b16 %v4936
          %v6446 = vunpack.c.h.b16 %v4936
          %v6447 = vunpack.c.l.b16 %v4937
          %v6448 = vunpack.c.h.b16 %v4937
          %v6449 = vunpack.c.l.b16 %v4938
          %v6450 = vunpack.c.h.b16 %v4938
          %v6451 = vunpack.c.l.b16 %v4939
          %v6452 = vunpack.c.h.b16 %v4939
          %v6453 = vunpack.c.l.b16 %v4940
          %v6454 = vunpack.c.h.b16 %v4940
          %v6455 = vunpack.c.l.b16 %v4941
          %v6456 = vunpack.c.h.b16 %v4941
          %v6457 = vunpack.c.l.b16 %v4942
          %v6458 = vunpack.c.h.b16 %v4942
          %v6459 = vunpack.c.l.b16 %v4943
          %v6460 = vunpack.c.h.b16 %v4943
          %v6461 = vunpack.c.l.b16 %v4944
          %v6462 = vunpack.c.h.b16 %v4944
          %v6463 = vunpack.c.l.b16 %v4945
          %v6464 = vunpack.c.h.b16 %v4945
          %v6465 = vunpack.c.l.b16 %v4946
          %v6466 = vunpack.c.h.b16 %v4946
          %v6467 = vunpack.c.l.b16 %v4947
          %v6468 = vunpack.c.h.b16 %v4947
          %v6469 = vunpack.c.l.b16 %v4948
          %v6470 = vunpack.c.h.b16 %v4948
          %v6471 = vunpack.c.l.b16 %v4949
          %v6472 = vunpack.c.h.b16 %v4949
          %v6473 = vunpack.c.l.b16 %v4950
          %v6474 = vunpack.c.h.b16 %v4950
          %v6475 = vunpack.c.l.b16 %v4951
          %v6476 = vunpack.c.h.b16 %v4951
          %v6477 = vunpack.c.l.b16 %v4952
          %v6478 = vunpack.c.h.b16 %v4952
          %v6479 = vunpack.c.l.b16 %v4953
          %v6480 = vunpack.c.h.b16 %v4953
          %v6481 = vunpack.c.l.b16 %v4954
          %v6482 = vunpack.c.h.b16 %v4954
          %v6483 = vunpack.c.l.b16 %v4955
          %v6484 = vunpack.c.h.b16 %v4955
          %v6485 = vunpack.c.l.b16 %v4956
          %v6486 = vunpack.c.h.b16 %v4956
          %v6487 = vunpack.c.l.b16 %v4957
          %v6488 = vunpack.c.h.b16 %v4957
          %v6489 = vunpack.c.l.b16 %v4958
          %v6490 = vunpack.c.h.b16 %v4958
          %v6491 = vunpack.c.l.b16 %v4959
          %v6492 = vunpack.c.h.b16 %v4959
          %v6493 = vunpack.c.l.b16 %v4960
          %v6494 = vunpack.c.h.b16 %v4960
          %v6495 = vunpack.c.l.b16 %v4961
          %v6496 = vunpack.c.h.b16 %v4961
          %v6497 = vunpack.c.l.b16 %v4962
          %v6498 = vunpack.c.h.b16 %v4962
          %v6499 = vunpack.c.l.b16 %v4963
          %v6500 = vunpack.c.h.b16 %v4963
          %v6501 = vunpack.c.l.b16 %v4964
          %v6502 = vunpack.c.h.b16 %v4964
          %v6503 = vunpack.c.l.b16 %v4965
          %v6504 = vunpack.c.h.b16 %v4965
          %v6505 = vunpack.c.l.b16 %v4966
          %v6506 = vunpack.c.h.b16 %v4966
          %v6507 = vunpack.c.l.b16 %v4967
          %v6508 = vunpack.c.h.b16 %v4967
          %v6509 = vunpack.c.l.b16 %v4968
          %v6510 = vunpack.c.h.b16 %v4968
          %v6511 = vunpack.c.l.b16 %v4969
          %v6512 = vunpack.c.h.b16 %v4969
          %v6513 = vunpack.c.l.b16 %v4970
          %v6514 = vunpack.c.h.b16 %v4970
          %v6515 = vunpack.c.l.b16 %v4971
          %v6516 = vunpack.c.h.b16 %v4971
          %v6517 = vunpack.c.l.b16 %v4972
          %v6518 = vunpack.c.h.b16 %v4972
          %v6519 = vunpack.c.l.b16 %v4973
          %v6520 = vunpack.c.h.b16 %v4973
          %v6521 = vunpack.c.l.b16 %v4974
          %v6522 = vunpack.c.h.b16 %v4974
          %v6523 = vunpack.c.l.b16 %v4975
          %v6524 = vunpack.c.h.b16 %v4975
          %v6525 = vunpack.c.l.b16 %v4976
          %v6526 = vunpack.c.h.b16 %v4976
          %v6527 = vunpack.c.l.b16 %v4977
          %v6528 = vunpack.c.h.b16 %v4977
          %v6529 = vunpack.c.l.b16 %v4978
          %v6530 = vunpack.c.h.b16 %v4978
          %v6531 = vunpack.c.l.b16 %v4979
          %v6532 = vunpack.c.h.b16 %v4979
          %v6533 = vunpack.c.l.b16 %v4980
          %v6534 = vunpack.c.h.b16 %v4980
          %v6535 = vunpack.c.l.b16 %v4981
          %v6536 = vunpack.c.h.b16 %v4981
          %v6537 = vunpack.c.l.b16 %v4982
          %v6538 = vunpack.c.h.b16 %v4982
          %v6539 = vunpack.c.l.b16 %v4983
          %v6540 = vunpack.c.h.b16 %v4983
          %v6541 = vunpack.c.l.b16 %v4984
          %v6542 = vunpack.c.h.b16 %v4984
          %v6543 = vunpack.c.l.b16 %v4985
          %v6544 = vunpack.c.h.b16 %v4985
          %v6545 = vunpack.c.l.b16 %v4986
          %v6546 = vunpack.c.h.b16 %v4986
          %v6547 = vunpack.c.l.b16 %v4987
          %v6548 = vunpack.c.h.b16 %v4987
          %v6549 = vunpack.c.l.b16 %v4988
          %v6550 = vunpack.c.h.b16 %v4988
          %v6551 = vunpack.c.l.b16 %v4989
          %v6552 = vunpack.c.h.b16 %v4989
          %v6553 = vunpack.c.l.b16 %v4990
          %v6554 = vunpack.c.h.b16 %v4990
          %v6555 = vpack.c.b16 %v5539, %v5531
          %v6556 = vpack.c.b16 %v5540, %v5532
          %v6557 = vpack.c.b16 %v5541, %v5533
          %v6558 = vpack.c.b16 %v5542, %v5534
          %v6559 = vpack.c.b16 %v5543, %v5535
          %v6560 = vpack.c.b16 %v5544, %v5536
          %v6561 = vpack.c.b16 %v5545, %v5537
          %v6562 = vpack.c.b16 %v5546, %v5538
          %v6563 = vpack.c.b16 %v5555, %v5547
          %v6564 = vpack.c.b16 %v5556, %v5548
          %v6565 = vpack.c.b16 %v5557, %v5549
          %v6566 = vpack.c.b16 %v5558, %v5550
          %v6567 = vpack.c.b16 %v5559, %v5551
          %v6568 = vpack.c.b16 %v5560, %v5552
          %v6569 = vpack.c.b16 %v5561, %v5553
          %v6570 = vpack.c.b16 %v5562, %v5554
          %v6571 = vpack.c.b16 %v5571, %v5563
          %v6572 = vpack.c.b16 %v5572, %v5564
          %v6573 = vpack.c.b16 %v5573, %v5565
          %v6574 = vpack.c.b16 %v5574, %v5566
          %v6575 = vpack.c.b16 %v5575, %v5567
          %v6576 = vpack.c.b16 %v5576, %v5568
          %v6577 = vpack.c.b16 %v5577, %v5569
          %v6578 = vpack.c.b16 %v5578, %v5570
          %v6579 = vpack.c.b16 %v5587, %v5579
          %v6580 = vpack.c.b16 %v5588, %v5580
          %v6581 = vpack.c.b16 %v5589, %v5581
          %v6582 = vpack.c.b16 %v5590, %v5582
          %v6583 = vpack.c.b16 %v5591, %v5583
          %v6584 = vpack.c.b16 %v5592, %v5584
          %v6585 = vpack.c.b16 %v5593, %v5585
          %v6586 = vpack.c.b16 %v5594, %v5586
          %v6587 = vpack.c.b16 %v5603, %v5595
          %v6588 = vpack.c.b16 %v5604, %v5596
          %v6589 = vpack.c.b16 %v5605, %v5597
          %v6590 = vpack.c.b16 %v5606, %v5598
          %v6591 = vpack.c.b16 %v5607, %v5599
          %v6592 = vpack.c.b16 %v5608, %v5600
          %v6593 = vpack.c.b16 %v5609, %v5601
          %v6594 = vpack.c.b16 %v5610, %v5602
          %v6595 = vpack.c.b16 %v5619, %v5611
          %v6596 = vpack.c.b16 %v5620, %v5612
          %v6597 = vpack.c.b16 %v5621, %v5613
          %v6598 = vpack.c.b16 %v5622, %v5614
          %v6599 = vpack.c.b16 %v5623, %v5615
          %v6600 = vpack.c.b16 %v5624, %v5616
          %v6601 = vpack.c.b16 %v5625, %v5617
          %v6602 = vpack.c.b16 %v5626, %v5618
          %v6603 = vpack.c.b16 %v5635, %v5627
          %v6604 = vpack.c.b16 %v5636, %v5628
          %v6605 = vpack.c.b16 %v5637, %v5629
          %v6606 = vpack.c.b16 %v5638, %v5630
          %v6607 = vpack.c.b16 %v5639, %v5631
          %v6608 = vpack.c.b16 %v5640, %v5632
          %v6609 = vpack.c.b16 %v5641, %v5633
          %v6610 = vpack.c.b16 %v5642, %v5634
          %v6611 = vpack.c.b16 %v5651, %v5643
          %v6612 = vpack.c.b16 %v5652, %v5644
          %v6613 = vpack.c.b16 %v5653, %v5645
          %v6614 = vpack.c.b16 %v5654, %v5646
          %v6615 = vpack.c.b16 %v5655, %v5647
          %v6616 = vpack.c.b16 %v5656, %v5648
          %v6617 = vpack.c.b16 %v5657, %v5649
          %v6618 = vpack.c.b16 %v5658, %v5650
          %v6619 = vpack.c.b16 %v5667, %v5659
          %v6620 = vpack.c.b16 %v5668, %v5660
          %v6621 = vpack.c.b16 %v5669, %v5661
          %v6622 = vpack.c.b16 %v5670, %v5662
          %v6623 = vpack.c.b16 %v5671, %v5663
          %v6624 = vpack.c.b16 %v5672, %v5664
          %v6625 = vpack.c.b16 %v5673, %v5665
          %v6626 = vpack.c.b16 %v5674, %v5666
          %v6627 = vpack.c.b16 %v5683, %v5675
          %v6628 = vpack.c.b16 %v5684, %v5676
          %v6629 = vpack.c.b16 %v5685, %v5677
          %v6630 = vpack.c.b16 %v5686, %v5678
          %v6631 = vpack.c.b16 %v5687, %v5679
          %v6632 = vpack.c.b16 %v5688, %v5680
          %v6633 = vpack.c.b16 %v5689, %v5681
          %v6634 = vpack.c.b16 %v5690, %v5682
          %v6635 = vpack.c.b16 %v5699, %v5691
          %v6636 = vpack.c.b16 %v5700, %v5692
          %v6637 = vpack.c.b16 %v5701, %v5693
          %v6638 = vpack.c.b16 %v5702, %v5694
          %v6639 = vpack.c.b16 %v5703, %v5695
          %v6640 = vpack.c.b16 %v5704, %v5696
          %v6641 = vpack.c.b16 %v5705, %v5697
          %v6642 = vpack.c.b16 %v5706, %v5698
          %v6643 = vpack.c.b16 %v5715, %v5707
          %v6644 = vpack.c.b16 %v5716, %v5708
          %v6645 = vpack.c.b16 %v5717, %v5709
          %v6646 = vpack.c.b16 %v5718, %v5710
          %v6647 = vpack.c.b16 %v5719, %v5711
          %v6648 = vpack.c.b16 %v5720, %v5712
          %v6649 = vpack.c.b16 %v5721, %v5713
          %v6650 = vpack.c.b16 %v5722, %v5714
          %v6651 = vpack.c.b16 %v5731, %v5723
          %v6652 = vpack.c.b16 %v5732, %v5724
          %v6653 = vpack.c.b16 %v5733, %v5725
          %v6654 = vpack.c.b16 %v5734, %v5726
          %v6655 = vpack.c.b16 %v5735, %v5727
          %v6656 = vpack.c.b16 %v5736, %v5728
          %v6657 = vpack.c.b16 %v5737, %v5729
          %v6658 = vpack.c.b16 %v5738, %v5730
          %v6659 = vpack.c.b16 %v5747, %v5739
          %v6660 = vpack.c.b16 %v5748, %v5740
          %v6661 = vpack.c.b16 %v5749, %v5741
          %v6662 = vpack.c.b16 %v5750, %v5742
          %v6663 = vpack.c.b16 %v5751, %v5743
          %v6664 = vpack.c.b16 %v5752, %v5744
          %v6665 = vpack.c.b16 %v5753, %v5745
          %v6666 = vpack.c.b16 %v5754, %v5746
          %v6667 = vpack.c.b16 %v5763, %v5755
          %v6668 = vpack.c.b16 %v5764, %v5756
          %v6669 = vpack.c.b16 %v5765, %v5757
          %v6670 = vpack.c.b16 %v5766, %v5758
          %v6671 = vpack.c.b16 %v5767, %v5759
          %v6672 = vpack.c.b16 %v5768, %v5760
          %v6673 = vpack.c.b16 %v5769, %v5761
          %v6674 = vpack.c.b16 %v5770, %v5762
          %v6675 = vpack.c.b16 %v5779, %v5771
          %v6676 = vpack.c.b16 %v5780, %v5772
          %v6677 = vpack.c.b16 %v5781, %v5773
          %v6678 = vpack.c.b16 %v5782, %v5774
          %v6679 = vpack.c.b16 %v5783, %v5775
          %v6680 = vpack.c.b16 %v5784, %v5776
          %v6681 = vpack.c.b16 %v5785, %v5777
          %v6682 = vpack.c.b16 %v5786, %v5778
          %v6683 = vpack.c.b16 %v5795, %v5787
          %v6684 = vpack.c.b16 %v5796, %v5788
          %v6685 = vpack.c.b16 %v5797, %v5789
          %v6686 = vpack.c.b16 %v5798, %v5790
          %v6687 = vpack.c.b16 %v5799, %v5791
          %v6688 = vpack.c.b16 %v5800, %v5792
          %v6689 = vpack.c.b16 %v5801, %v5793
          %v6690 = vpack.c.b16 %v5802, %v5794
          %v6691 = vpack.c.b16 %v5811, %v5803
          %v6692 = vpack.c.b16 %v5812, %v5804
          %v6693 = vpack.c.b16 %v5813, %v5805
          %v6694 = vpack.c.b16 %v5814, %v5806
          %v6695 = vpack.c.b16 %v5815, %v5807
          %v6696 = vpack.c.b16 %v5816, %v5808
          %v6697 = vpack.c.b16 %v5817, %v5809
          %v6698 = vpack.c.b16 %v5818, %v5810
          %v6699 = vpack.c.b16 %v5827, %v5819
          %v6700 = vpack.c.b16 %v5828, %v5820
          %v6701 = vpack.c.b16 %v5829, %v5821
          %v6702 = vpack.c.b16 %v5830, %v5822
          %v6703 = vpack.c.b16 %v5831, %v5823
          %v6704 = vpack.c.b16 %v5832, %v5824
          %v6705 = vpack.c.b16 %v5833, %v5825
          %v6706 = vpack.c.b16 %v5834, %v5826
          %v6707 = vpack.c.b16 %v5843, %v5835
          %v6708 = vpack.c.b16 %v5844, %v5836
          %v6709 = vpack.c.b16 %v5845, %v5837
          %v6710 = vpack.c.b16 %v5846, %v5838
          %v6711 = vpack.c.b16 %v5847, %v5839
          %v6712 = vpack.c.b16 %v5848, %v5840
          %v6713 = vpack.c.b16 %v5849, %v5841
          %v6714 = vpack.c.b16 %v5850, %v5842
          %v6715 = vpack.c.b16 %v5859, %v5851
          %v6716 = vpack.c.b16 %v5860, %v5852
          %v6717 = vpack.c.b16 %v5861, %v5853
          %v6718 = vpack.c.b16 %v5862, %v5854
          %v6719 = vpack.c.b16 %v5863, %v5855
          %v6720 = vpack.c.b16 %v5864, %v5856
          %v6721 = vpack.c.b16 %v5865, %v5857
          %v6722 = vpack.c.b16 %v5866, %v5858
          %v6723 = vpack.c.b16 %v5875, %v5867
          %v6724 = vpack.c.b16 %v5876, %v5868
          %v6725 = vpack.c.b16 %v5877, %v5869
          %v6726 = vpack.c.b16 %v5878, %v5870
          %v6727 = vpack.c.b16 %v5879, %v5871
          %v6728 = vpack.c.b16 %v5880, %v5872
          %v6729 = vpack.c.b16 %v5881, %v5873
          %v6730 = vpack.c.b16 %v5882, %v5874
          %v6731 = vpack.c.b16 %v5891, %v5883
          %v6732 = vpack.c.b16 %v5892, %v5884
          %v6733 = vpack.c.b16 %v5893, %v5885
          %v6734 = vpack.c.b16 %v5894, %v5886
          %v6735 = vpack.c.b16 %v5895, %v5887
          %v6736 = vpack.c.b16 %v5896, %v5888
          %v6737 = vpack.c.b16 %v5897, %v5889
          %v6738 = vpack.c.b16 %v5898, %v5890
          %v6739 = vpack.c.b16 %v5907, %v5899
          %v6740 = vpack.c.b16 %v5908, %v5900
          %v6741 = vpack.c.b16 %v5909, %v5901
          %v6742 = vpack.c.b16 %v5910, %v5902
          %v6743 = vpack.c.b16 %v5911, %v5903
          %v6744 = vpack.c.b16 %v5912, %v5904
          %v6745 = vpack.c.b16 %v5913, %v5905
          %v6746 = vpack.c.b16 %v5914, %v5906
          %v6747 = vpack.c.b16 %v5923, %v5915
          %v6748 = vpack.c.b16 %v5924, %v5916
          %v6749 = vpack.c.b16 %v5925, %v5917
          %v6750 = vpack.c.b16 %v5926, %v5918
          %v6751 = vpack.c.b16 %v5927, %v5919
          %v6752 = vpack.c.b16 %v5928, %v5920
          %v6753 = vpack.c.b16 %v5929, %v5921
          %v6754 = vpack.c.b16 %v5930, %v5922
          %v6755 = vpack.c.b16 %v5939, %v5931
          %v6756 = vpack.c.b16 %v5940, %v5932
          %v6757 = vpack.c.b16 %v5941, %v5933
          %v6758 = vpack.c.b16 %v5942, %v5934
          %v6759 = vpack.c.b16 %v5943, %v5935
          %v6760 = vpack.c.b16 %v5944, %v5936
          %v6761 = vpack.c.b16 %v5945, %v5937
          %v6762 = vpack.c.b16 %v5946, %v5938
          %v6763 = vpack.c.b16 %v5955, %v5947
          %v6764 = vpack.c.b16 %v5956, %v5948
          %v6765 = vpack.c.b16 %v5957, %v5949
          %v6766 = vpack.c.b16 %v5958, %v5950
          %v6767 = vpack.c.b16 %v5959, %v5951
          %v6768 = vpack.c.b16 %v5960, %v5952
          %v6769 = vpack.c.b16 %v5961, %v5953
          %v6770 = vpack.c.b16 %v5962, %v5954
          %v6771 = vpack.c.b16 %v5971, %v5963
          %v6772 = vpack.c.b16 %v5972, %v5964
          %v6773 = vpack.c.b16 %v5973, %v5965
          %v6774 = vpack.c.b16 %v5974, %v5966
          %v6775 = vpack.c.b16 %v5975, %v5967
          %v6776 = vpack.c.b16 %v5976, %v5968
          %v6777 = vpack.c.b16 %v5977, %v5969
          %v6778 = vpack.c.b16 %v5978, %v5970
          %v6779 = vpack.c.b16 %v5987, %v5979
          %v6780 = vpack.c.b16 %v5988, %v5980
          %v6781 = vpack.c.b16 %v5989, %v5981
          %v6782 = vpack.c.b16 %v5990, %v5982
          %v6783 = vpack.c.b16 %v5991, %v5983
          %v6784 = vpack.c.b16 %v5992, %v5984
          %v6785 = vpack.c.b16 %v5993, %v5985
          %v6786 = vpack.c.b16 %v5994, %v5986
          %v6787 = vpack.c.b16 %v6003, %v5995
          %v6788 = vpack.c.b16 %v6004, %v5996
          %v6789 = vpack.c.b16 %v6005, %v5997
          %v6790 = vpack.c.b16 %v6006, %v5998
          %v6791 = vpack.c.b16 %v6007, %v5999
          %v6792 = vpack.c.b16 %v6008, %v6000
          %v6793 = vpack.c.b16 %v6009, %v6001
          %v6794 = vpack.c.b16 %v6010, %v6002
          %v6795 = vpack.c.b16 %v6019, %v6011
          %v6796 = vpack.c.b16 %v6020, %v6012
          %v6797 = vpack.c.b16 %v6021, %v6013
          %v6798 = vpack.c.b16 %v6022, %v6014
          %v6799 = vpack.c.b16 %v6023, %v6015
          %v6800 = vpack.c.b16 %v6024, %v6016
          %v6801 = vpack.c.b16 %v6025, %v6017
          %v6802 = vpack.c.b16 %v6026, %v6018
          %v6803 = vpack.c.b16 %v6035, %v6027
          %v6804 = vpack.c.b16 %v6036, %v6028
          %v6805 = vpack.c.b16 %v6037, %v6029
          %v6806 = vpack.c.b16 %v6038, %v6030
          %v6807 = vpack.c.b16 %v6039, %v6031
          %v6808 = vpack.c.b16 %v6040, %v6032
          %v6809 = vpack.c.b16 %v6041, %v6033
          %v6810 = vpack.c.b16 %v6042, %v6034
          %v6811 = vpack.c.b16 %v6051, %v6043
          %v6812 = vpack.c.b16 %v6052, %v6044
          %v6813 = vpack.c.b16 %v6053, %v6045
          %v6814 = vpack.c.b16 %v6054, %v6046
          %v6815 = vpack.c.b16 %v6055, %v6047
          %v6816 = vpack.c.b16 %v6056, %v6048
          %v6817 = vpack.c.b16 %v6057, %v6049
          %v6818 = vpack.c.b16 %v6058, %v6050
          %v6819 = vpack.c.b16 %v6067, %v6059
          %v6820 = vpack.c.b16 %v6068, %v6060
          %v6821 = vpack.c.b16 %v6069, %v6061
          %v6822 = vpack.c.b16 %v6070, %v6062
          %v6823 = vpack.c.b16 %v6071, %v6063
          %v6824 = vpack.c.b16 %v6072, %v6064
          %v6825 = vpack.c.b16 %v6073, %v6065
          %v6826 = vpack.c.b16 %v6074, %v6066
          %v6827 = vpack.c.b16 %v6083, %v6075
          %v6828 = vpack.c.b16 %v6084, %v6076
          %v6829 = vpack.c.b16 %v6085, %v6077
          %v6830 = vpack.c.b16 %v6086, %v6078
          %v6831 = vpack.c.b16 %v6087, %v6079
          %v6832 = vpack.c.b16 %v6088, %v6080
          %v6833 = vpack.c.b16 %v6089, %v6081
          %v6834 = vpack.c.b16 %v6090, %v6082
          %v6835 = vpack.c.b16 %v6099, %v6091
          %v6836 = vpack.c.b16 %v6100, %v6092
          %v6837 = vpack.c.b16 %v6101, %v6093
          %v6838 = vpack.c.b16 %v6102, %v6094
          %v6839 = vpack.c.b16 %v6103, %v6095
          %v6840 = vpack.c.b16 %v6104, %v6096
          %v6841 = vpack.c.b16 %v6105, %v6097
          %v6842 = vpack.c.b16 %v6106, %v6098
          %v6843 = vpack.c.b16 %v6115, %v6107
          %v6844 = vpack.c.b16 %v6116, %v6108
          %v6845 = vpack.c.b16 %v6117, %v6109
          %v6846 = vpack.c.b16 %v6118, %v6110
          %v6847 = vpack.c.b16 %v6119, %v6111
          %v6848 = vpack.c.b16 %v6120, %v6112
          %v6849 = vpack.c.b16 %v6121, %v6113
          %v6850 = vpack.c.b16 %v6122, %v6114
          %v6851 = vpack.c.b16 %v6131, %v6123
          %v6852 = vpack.c.b16 %v6132, %v6124
          %v6853 = vpack.c.b16 %v6133, %v6125
          %v6854 = vpack.c.b16 %v6134, %v6126
          %v6855 = vpack.c.b16 %v6135, %v6127
          %v6856 = vpack.c.b16 %v6136, %v6128
          %v6857 = vpack.c.b16 %v6137, %v6129
          %v6858 = vpack.c.b16 %v6138, %v6130
          %v6859 = vpack.c.b16 %v6147, %v6139
          %v6860 = vpack.c.b16 %v6148, %v6140
          %v6861 = vpack.c.b16 %v6149, %v6141
          %v6862 = vpack.c.b16 %v6150, %v6142
          %v6863 = vpack.c.b16 %v6151, %v6143
          %v6864 = vpack.c.b16 %v6152, %v6144
          %v6865 = vpack.c.b16 %v6153, %v6145
          %v6866 = vpack.c.b16 %v6154, %v6146
          %v6867 = vpack.c.b16 %v6163, %v6155
          %v6868 = vpack.c.b16 %v6164, %v6156
          %v6869 = vpack.c.b16 %v6165, %v6157
          %v6870 = vpack.c.b16 %v6166, %v6158
          %v6871 = vpack.c.b16 %v6167, %v6159
          %v6872 = vpack.c.b16 %v6168, %v6160
          %v6873 = vpack.c.b16 %v6169, %v6161
          %v6874 = vpack.c.b16 %v6170, %v6162
          %v6875 = vpack.c.b16 %v6179, %v6171
          %v6876 = vpack.c.b16 %v6180, %v6172
          %v6877 = vpack.c.b16 %v6181, %v6173
          %v6878 = vpack.c.b16 %v6182, %v6174
          %v6879 = vpack.c.b16 %v6183, %v6175
          %v6880 = vpack.c.b16 %v6184, %v6176
          %v6881 = vpack.c.b16 %v6185, %v6177
          %v6882 = vpack.c.b16 %v6186, %v6178
          %v6883 = vpack.c.b16 %v6195, %v6187
          %v6884 = vpack.c.b16 %v6196, %v6188
          %v6885 = vpack.c.b16 %v6197, %v6189
          %v6886 = vpack.c.b16 %v6198, %v6190
          %v6887 = vpack.c.b16 %v6199, %v6191
          %v6888 = vpack.c.b16 %v6200, %v6192
          %v6889 = vpack.c.b16 %v6201, %v6193
          %v6890 = vpack.c.b16 %v6202, %v6194
          %v6891 = vpack.c.b16 %v6211, %v6203
          %v6892 = vpack.c.b16 %v6212, %v6204
          %v6893 = vpack.c.b16 %v6213, %v6205
          %v6894 = vpack.c.b16 %v6214, %v6206
          %v6895 = vpack.c.b16 %v6215, %v6207
          %v6896 = vpack.c.b16 %v6216, %v6208
          %v6897 = vpack.c.b16 %v6217, %v6209
          %v6898 = vpack.c.b16 %v6218, %v6210
          %v6899 = vpack.c.b16 %v6227, %v6219
          %v6900 = vpack.c.b16 %v6228, %v6220
          %v6901 = vpack.c.b16 %v6229, %v6221
          %v6902 = vpack.c.b16 %v6230, %v6222
          %v6903 = vpack.c.b16 %v6231, %v6223
          %v6904 = vpack.c.b16 %v6232, %v6224
          %v6905 = vpack.c.b16 %v6233, %v6225
          %v6906 = vpack.c.b16 %v6234, %v6226
          %v6907 = vpack.c.b16 %v6243, %v6235
          %v6908 = vpack.c.b16 %v6244, %v6236
          %v6909 = vpack.c.b16 %v6245, %v6237
          %v6910 = vpack.c.b16 %v6246, %v6238
          %v6911 = vpack.c.b16 %v6247, %v6239
          %v6912 = vpack.c.b16 %v6248, %v6240
          %v6913 = vpack.c.b16 %v6249, %v6241
          %v6914 = vpack.c.b16 %v6250, %v6242
          %v6915 = vpack.c.b16 %v6259, %v6251
          %v6916 = vpack.c.b16 %v6260, %v6252
          %v6917 = vpack.c.b16 %v6261, %v6253
          %v6918 = vpack.c.b16 %v6262, %v6254
          %v6919 = vpack.c.b16 %v6263, %v6255
          %v6920 = vpack.c.b16 %v6264, %v6256
          %v6921 = vpack.c.b16 %v6265, %v6257
          %v6922 = vpack.c.b16 %v6266, %v6258
          %v6923 = vpack.c.b16 %v6275, %v6267
          %v6924 = vpack.c.b16 %v6276, %v6268
          %v6925 = vpack.c.b16 %v6277, %v6269
          %v6926 = vpack.c.b16 %v6278, %v6270
          %v6927 = vpack.c.b16 %v6279, %v6271
          %v6928 = vpack.c.b16 %v6280, %v6272
          %v6929 = vpack.c.b16 %v6281, %v6273
          %v6930 = vpack.c.b16 %v6282, %v6274
          %v6931 = vpack.c.b16 %v6291, %v6283
          %v6932 = vpack.c.b16 %v6292, %v6284
          %v6933 = vpack.c.b16 %v6293, %v6285
          %v6934 = vpack.c.b16 %v6294, %v6286
          %v6935 = vpack.c.b16 %v6295, %v6287
          %v6936 = vpack.c.b16 %v6296, %v6288
          %v6937 = vpack.c.b16 %v6297, %v6289
          %v6938 = vpack.c.b16 %v6298, %v6290
          %v6939 = vpack.c.b16 %v6307, %v6299
          %v6940 = vpack.c.b16 %v6308, %v6300
          %v6941 = vpack.c.b16 %v6309, %v6301
          %v6942 = vpack.c.b16 %v6310, %v6302
          %v6943 = vpack.c.b16 %v6311, %v6303
          %v6944 = vpack.c.b16 %v6312, %v6304
          %v6945 = vpack.c.b16 %v6313, %v6305
          %v6946 = vpack.c.b16 %v6314, %v6306
          %v6947 = vpack.c.b16 %v6323, %v6315
          %v6948 = vpack.c.b16 %v6324, %v6316
          %v6949 = vpack.c.b16 %v6325, %v6317
          %v6950 = vpack.c.b16 %v6326, %v6318
          %v6951 = vpack.c.b16 %v6327, %v6319
          %v6952 = vpack.c.b16 %v6328, %v6320
          %v6953 = vpack.c.b16 %v6329, %v6321
          %v6954 = vpack.c.b16 %v6330, %v6322
          %v6955 = vpack.c.b16 %v6339, %v6331
          %v6956 = vpack.c.b16 %v6340, %v6332
          %v6957 = vpack.c.b16 %v6341, %v6333
          %v6958 = vpack.c.b16 %v6342, %v6334
          %v6959 = vpack.c.b16 %v6343, %v6335
          %v6960 = vpack.c.b16 %v6344, %v6336
          %v6961 = vpack.c.b16 %v6345, %v6337
          %v6962 = vpack.c.b16 %v6346, %v6338
          %v6963 = vpack.c.b16 %v6355, %v6347
          %v6964 = vpack.c.b16 %v6356, %v6348
          %v6965 = vpack.c.b16 %v6357, %v6349
          %v6966 = vpack.c.b16 %v6358, %v6350
          %v6967 = vpack.c.b16 %v6359, %v6351
          %v6968 = vpack.c.b16 %v6360, %v6352
          %v6969 = vpack.c.b16 %v6361, %v6353
          %v6970 = vpack.c.b16 %v6362, %v6354
          %v6971 = vpack.c.b16 %v6371, %v6363
          %v6972 = vpack.c.b16 %v6372, %v6364
          %v6973 = vpack.c.b16 %v6373, %v6365
          %v6974 = vpack.c.b16 %v6374, %v6366
          %v6975 = vpack.c.b16 %v6375, %v6367
          %v6976 = vpack.c.b16 %v6376, %v6368
          %v6977 = vpack.c.b16 %v6377, %v6369
          %v6978 = vpack.c.b16 %v6378, %v6370
          %v6979 = vpack.c.b16 %v6387, %v6379
          %v6980 = vpack.c.b16 %v6388, %v6380
          %v6981 = vpack.c.b16 %v6389, %v6381
          %v6982 = vpack.c.b16 %v6390, %v6382
          %v6983 = vpack.c.b16 %v6391, %v6383
          %v6984 = vpack.c.b16 %v6392, %v6384
          %v6985 = vpack.c.b16 %v6393, %v6385
          %v6986 = vpack.c.b16 %v6394, %v6386
          %v6987 = vpack.c.b16 %v6403, %v6395
          %v6988 = vpack.c.b16 %v6404, %v6396
          %v6989 = vpack.c.b16 %v6405, %v6397
          %v6990 = vpack.c.b16 %v6406, %v6398
          %v6991 = vpack.c.b16 %v6407, %v6399
          %v6992 = vpack.c.b16 %v6408, %v6400
          %v6993 = vpack.c.b16 %v6409, %v6401
          %v6994 = vpack.c.b16 %v6410, %v6402
          %v6995 = vpack.c.b16 %v6419, %v6411
          %v6996 = vpack.c.b16 %v6420, %v6412
          %v6997 = vpack.c.b16 %v6421, %v6413
          %v6998 = vpack.c.b16 %v6422, %v6414
          %v6999 = vpack.c.b16 %v6423, %v6415
          %v7000 = vpack.c.b16 %v6424, %v6416
          %v7001 = vpack.c.b16 %v6425, %v6417
          %v7002 = vpack.c.b16 %v6426, %v6418
          %v7003 = vpack.c.b16 %v6435, %v6427
          %v7004 = vpack.c.b16 %v6436, %v6428
          %v7005 = vpack.c.b16 %v6437, %v6429
          %v7006 = vpack.c.b16 %v6438, %v6430
          %v7007 = vpack.c.b16 %v6439, %v6431
          %v7008 = vpack.c.b16 %v6440, %v6432
          %v7009 = vpack.c.b16 %v6441, %v6433
          %v7010 = vpack.c.b16 %v6442, %v6434
          %v7011 = vpack.c.b16 %v6451, %v6443
          %v7012 = vpack.c.b16 %v6452, %v6444
          %v7013 = vpack.c.b16 %v6453, %v6445
          %v7014 = vpack.c.b16 %v6454, %v6446
          %v7015 = vpack.c.b16 %v6455, %v6447
          %v7016 = vpack.c.b16 %v6456, %v6448
          %v7017 = vpack.c.b16 %v6457, %v6449
          %v7018 = vpack.c.b16 %v6458, %v6450
          %v7019 = vpack.c.b16 %v6467, %v6459
          %v7020 = vpack.c.b16 %v6468, %v6460
          %v7021 = vpack.c.b16 %v6469, %v6461
          %v7022 = vpack.c.b16 %v6470, %v6462
          %v7023 = vpack.c.b16 %v6471, %v6463
          %v7024 = vpack.c.b16 %v6472, %v6464
          %v7025 = vpack.c.b16 %v6473, %v6465
          %v7026 = vpack.c.b16 %v6474, %v6466
          %v7027 = vpack.c.b16 %v6483, %v6475
          %v7028 = vpack.c.b16 %v6484, %v6476
          %v7029 = vpack.c.b16 %v6485, %v6477
          %v7030 = vpack.c.b16 %v6486, %v6478
          %v7031 = vpack.c.b16 %v6487, %v6479
          %v7032 = vpack.c.b16 %v6488, %v6480
          %v7033 = vpack.c.b16 %v6489, %v6481
          %v7034 = vpack.c.b16 %v6490, %v6482
          %v7035 = vpack.c.b16 %v6499, %v6491
          %v7036 = vpack.c.b16 %v6500, %v6492
          %v7037 = vpack.c.b16 %v6501, %v6493
          %v7038 = vpack.c.b16 %v6502, %v6494
          %v7039 = vpack.c.b16 %v6503, %v6495
          %v7040 = vpack.c.b16 %v6504, %v6496
          %v7041 = vpack.c.b16 %v6505, %v6497
          %v7042 = vpack.c.b16 %v6506, %v6498
          %v7043 = vpack.c.b16 %v6515, %v6507
          %v7044 = vpack.c.b16 %v6516, %v6508
          %v7045 = vpack.c.b16 %v6517, %v6509
          %v7046 = vpack.c.b16 %v6518, %v6510
          %v7047 = vpack.c.b16 %v6519, %v6511
          %v7048 = vpack.c.b16 %v6520, %v6512
          %v7049 = vpack.c.b16 %v6521, %v6513
          %v7050 = vpack.c.b16 %v6522, %v6514
          %v7051 = vpack.c.b16 %v6531, %v6523
          %v7052 = vpack.c.b16 %v6532, %v6524
          %v7053 = vpack.c.b16 %v6533, %v6525
          %v7054 = vpack.c.b16 %v6534, %v6526
          %v7055 = vpack.c.b16 %v6535, %v6527
          %v7056 = vpack.c.b16 %v6536, %v6528
          %v7057 = vpack.c.b16 %v6537, %v6529
          %v7058 = vpack.c.b16 %v6538, %v6530
          %v7059 = vpack.c.b16 %v6547, %v6539
          %v7060 = vpack.c.b16 %v6548, %v6540
          %v7061 = vpack.c.b16 %v6549, %v6541
          %v7062 = vpack.c.b16 %v6550, %v6542
          %v7063 = vpack.c.b16 %v6551, %v6543
          %v7064 = vpack.c.b16 %v6552, %v6544
          %v7065 = vpack.c.b16 %v6553, %v6545
          %v7066 = vpack.c.b16 %v6554, %v6546
          %7579 = vmatprep.subr.bf16.mxu0 %v6556
          %7580 = vmatpush1.bf16.msra.mxu0 %v6555
          %7581 = vmatprep.subr.bf16.mxu0 %v6564
          %7582 = vmatpush1.bf16.msra.mxu0 %v6563
          %7583 = vmatprep.subr.bf16.mxu0 %v6572
          %7584 = vmatpush1.bf16.msra.mxu0 %v6571
          %7585 = vmatprep.subr.bf16.mxu0 %v6580
          %7586 = vmatpush1.bf16.msra.mxu0 %v6579
          %7587 = vmatprep.subr.bf16.mxu0 %v6588
          %7588 = vmatpush1.bf16.msra.mxu0 %v6587
          %7589 = vmatprep.subr.bf16.mxu0 %v6596
          %7590 = vmatpush1.bf16.msra.mxu0 %v6595
          %7591 = vmatprep.subr.bf16.mxu0 %v6604
          %7592 = vmatpush1.bf16.msra.mxu0 %v6603
          %7593 = vmatprep.subr.bf16.mxu0 %v6612
          %7594 = vmatpush1.bf16.msra.mxu0 %v6611
          %7595 = vmatprep.subr.bf16.mxu0 %v6620
          %7596 = vmatpush1.bf16.msra.mxu0 %v6619
          %7597 = vmatprep.subr.bf16.mxu0 %v6628
          %7598 = vmatpush1.bf16.msra.mxu0 %v6627
          %7599 = vmatprep.subr.bf16.mxu0 %v6636
          %7600 = vmatpush1.bf16.msra.mxu0 %v6635
          %7601 = vmatprep.subr.bf16.mxu0 %v6644
          %7602 = vmatpush1.bf16.msra.mxu0 %v6643
          %7603 = vmatprep.subr.bf16.mxu0 %v6652
          %7604 = vmatpush1.bf16.msra.mxu0 %v6651
          %7605 = vmatprep.subr.bf16.mxu0 %v6660
          %7606 = vmatpush1.bf16.msra.mxu0 %v6659
          %7607 = vmatprep.subr.bf16.mxu0 %v6668
          %7608 = vmatpush1.bf16.msra.mxu0 %v6667
          %7609 = vmatprep.subr.bf16.mxu0 %v6676
          %7610 = vmatpush1.bf16.msra.mxu0 %v6675
          %7611 = vmatprep.mubr.bf16.mxu0 %v5004
          %7612 = vmatmul.mubr.bf16.gmra.mrb[0].mxu0 %v5003
          %v7613 = vpop.f32.mrb[0].mxu0
          %v7614 = vadd.f32 0.0, %v7613
          %v7615 = vpop.f32.mrb[0].mxu0
          %v7616 = vadd.f32 0.0, %v7615
          %v7617 = vpop.f32.mrb[0].mxu0
          %v7618 = vpop.f32.mrb[0].mxu0
          %7619 = vdwg.mxu0
          %7620 = vmatprep.subr.bf16.mxu0 %v6684
          %7621 = vmatpush1.bf16.msra.mxu0 %v6683
          %7622 = vmatprep.subr.bf16.mxu0 %v6692
          %7623 = vmatpush1.bf16.msra.mxu0 %v6691
          %7624 = vmatprep.subr.bf16.mxu0 %v6700
          %7625 = vmatpush1.bf16.msra.mxu0 %v6699
          %7626 = vmatprep.subr.bf16.mxu0 %v6708
          %7627 = vmatpush1.bf16.msra.mxu0 %v6707
          %7628 = vmatprep.subr.bf16.mxu0 %v6716
          %7629 = vmatpush1.bf16.msra.mxu0 %v6715
          %7630 = vmatprep.subr.bf16.mxu0 %v6724
          %7631 = vmatpush1.bf16.msra.mxu0 %v6723
          %7632 = vmatprep.subr.bf16.mxu0 %v6732
          %7633 = vmatpush1.bf16.msra.mxu0 %v6731
          %7634 = vmatprep.subr.bf16.mxu0 %v6740
          %7635 = vmatpush1.bf16.msra.mxu0 %v6739
          %7636 = vmatprep.subr.bf16.mxu0 %v6748
          %7637 = vmatpush1.bf16.msra.mxu0 %v6747
          %7638 = vmatprep.subr.bf16.mxu0 %v6756
          %7639 = vmatpush1.bf16.msra.mxu0 %v6755
          %7640 = vmatprep.subr.bf16.mxu0 %v6764
          %7641 = vmatpush1.bf16.msra.mxu0 %v6763
          %7642 = vmatprep.subr.bf16.mxu0 %v6772
          %7643 = vmatpush1.bf16.msra.mxu0 %v6771
          %7644 = vmatprep.subr.bf16.mxu0 %v6780
          %7645 = vmatpush1.bf16.msra.mxu0 %v6779
          %7646 = vmatprep.subr.bf16.mxu0 %v6788
          %7647 = vmatpush1.bf16.msra.mxu0 %v6787
          %7648 = vmatprep.subr.bf16.mxu0 %v6796
          %7649 = vmatpush1.bf16.msra.mxu0 %v6795
          %7650 = vmatprep.subr.bf16.mxu0 %v6804
          %7651 = vmatpush1.bf16.msra.mxu0 %v6803
          %7652 = vmatprep.mubr.bf16.mxu0 %v5006
          %7653 = vmatmul.mubr.bf16.gmra.mrb[0].mxu0 %v5005
          %v7654 = vpop.f32.mrb[0].mxu0
          %v7655 = vadd.f32 %v7614, %v7654
          %v7656 = vpop.f32.mrb[0].mxu0
          %v7657 = vadd.f32 %v7616, %v7656
          %v7658 = vpop.f32.mrb[0].mxu0
          %v7659 = vpop.f32.mrb[0].mxu0
          %7660 = vdwg.mxu0
          %7661 = vmatprep.subr.bf16.mxu0 %v6812
          %7662 = vmatpush1.bf16.msra.mxu0 %v6811
          %7663 = vmatprep.subr.bf16.mxu0 %v6820
          %7664 = vmatpush1.bf16.msra.mxu0 %v6819
          %7665 = vmatprep.subr.bf16.mxu0 %v6828
          %7666 = vmatpush1.bf16.msra.mxu0 %v6827
          %7667 = vmatprep.subr.bf16.mxu0 %v6836
          %7668 = vmatpush1.bf16.msra.mxu0 %v6835
          %7669 = vmatprep.subr.bf16.mxu0 %v6844
          %7670 = vmatpush1.bf16.msra.mxu0 %v6843
          %7671 = vmatprep.subr.bf16.mxu0 %v6852
          %7672 = vmatpush1.bf16.msra.mxu0 %v6851
          %7673 = vmatprep.subr.bf16.mxu0 %v6860
          %7674 = vmatpush1.bf16.msra.mxu0 %v6859
          %7675 = vmatprep.subr.bf16.mxu0 %v6868
          %7676 = vmatpush1.bf16.msra.mxu0 %v6867
          %7677 = vmatprep.subr.bf16.mxu0 %v6876
          %7678 = vmatpush1.bf16.msra.mxu0 %v6875
          %7679 = vmatprep.subr.bf16.mxu0 %v6884
          %7680 = vmatpush1.bf16.msra.mxu0 %v6883
          %7681 = vmatprep.subr.bf16.mxu0 %v6892
          %7682 = vmatpush1.bf16.msra.mxu0 %v6891
          %7683 = vmatprep.subr.bf16.mxu0 %v6900
          %7684 = vmatpush1.bf16.msra.mxu0 %v6899
          %7685 = vmatprep.subr.bf16.mxu0 %v6908
          %7686 = vmatpush1.bf16.msra.mxu0 %v6907
          %7687 = vmatprep.subr.bf16.mxu0 %v6916
          %7688 = vmatpush1.bf16.msra.mxu0 %v6915
          %7689 = vmatprep.subr.bf16.mxu0 %v6924
          %7690 = vmatpush1.bf16.msra.mxu0 %v6923
          %7691 = vmatprep.subr.bf16.mxu0 %v6932
          %7692 = vmatpush1.bf16.msra.mxu0 %v6931
          %7693 = vmatprep.mubr.bf16.mxu0 %v5008
          %7694 = vmatmul.mubr.bf16.gmra.mrb[0].mxu0 %v5007
          %v7695 = vpop.f32.mrb[0].mxu0
          %v7696 = vadd.f32 %v7655, %v7695
          %v7697 = vpop.f32.mrb[0].mxu0
          %v7698 = vadd.f32 %v7657, %v7697
          %v7699 = vpop.f32.mrb[0].mxu0
          %v7700 = vpop.f32.mrb[0].mxu0
          %7701 = vdwg.mxu0
          %7702 = vmatprep.subr.bf16.mxu0 %v6940
          %7703 = vmatpush1.bf16.msra.mxu0 %v6939
          %7704 = vmatprep.subr.bf16.mxu0 %v6948
          %7705 = vmatpush1.bf16.msra.mxu0 %v6947
          %7706 = vmatprep.subr.bf16.mxu0 %v6956
          %7707 = vmatpush1.bf16.msra.mxu0 %v6955
          %7708 = vmatprep.subr.bf16.mxu0 %v6964
          %7709 = vmatpush1.bf16.msra.mxu0 %v6963
          %7710 = vmatprep.subr.bf16.mxu0 %v6972
          %7711 = vmatpush1.bf16.msra.mxu0 %v6971
          %7712 = vmatprep.subr.bf16.mxu0 %v6980
          %7713 = vmatpush1.bf16.msra.mxu0 %v6979
          %7714 = vmatprep.subr.bf16.mxu0 %v6988
          %7715 = vmatpush1.bf16.msra.mxu0 %v6987
          %7716 = vmatprep.subr.bf16.mxu0 %v6996
          %7717 = vmatpush1.bf16.msra.mxu0 %v6995
          %7718 = vmatprep.subr.bf16.mxu0 %v7004
          %7719 = vmatpush1.bf16.msra.mxu0 %v7003
          %7720 = vmatprep.subr.bf16.mxu0 %v7012
          %7721 = vmatpush1.bf16.msra.mxu0 %v7011
          %7722 = vmatprep.subr.bf16.mxu0 %v7020
          %7723 = vmatpush1.bf16.msra.mxu0 %v7019
          %7724 = vmatprep.subr.bf16.mxu0 %v7028
          %7725 = vmatpush1.bf16.msra.mxu0 %v7027
          %7726 = vmatprep.subr.bf16.mxu0 %v7036
          %7727 = vmatpush1.bf16.msra.mxu0 %v7035
          %7728 = vmatprep.subr.bf16.mxu0 %v7044
          %7729 = vmatpush1.bf16.msra.mxu0 %v7043
          %7730 = vmatprep.subr.bf16.mxu0 %v7052
          %7731 = vmatpush1.bf16.msra.mxu0 %v7051
          %7732 = vmatprep.subr.bf16.mxu0 %v7060
          %7733 = vmatpush1.bf16.msra.mxu0 %v7059
          %7734 = vmatprep.mubr.bf16.mxu0 %v5010
          %7735 = vmatmul.mubr.bf16.gmra.mrb[0].mxu0 %v5009
          %v7736 = vpop.f32.mrb[0].mxu0
          %v7737 = vadd.f32 %v7696, %v7736
          %v7738 = vpop.f32.mrb[0].mxu0
          %v7739 = vadd.f32 %v7698, %v7738
          %v7740 = vpop.f32.mrb[0].mxu0
          %v7741 = vpop.f32.mrb[0].mxu0
          %7742 = vdwg.mxu0
          %7743 = vmatprep.subr.bf16.mxu0 %v6558
          %7744 = vmatpush1.bf16.msra.mxu0 %v6557
          %7745 = vmatprep.subr.bf16.mxu0 %v6566
          %7746 = vmatpush1.bf16.msra.mxu0 %v6565
          %7747 = vmatprep.subr.bf16.mxu0 %v6574
          %7748 = vmatpush1.bf16.msra.mxu0 %v6573
          %7749 = vmatprep.subr.bf16.mxu0 %v6582
          %7750 = vmatpush1.bf16.msra.mxu0 %v6581
          %7751 = vmatprep.subr.bf16.mxu0 %v6590
          %7752 = vmatpush1.bf16.msra.mxu0 %v6589
          %7753 = vmatprep.subr.bf16.mxu0 %v6598
          %7754 = vmatpush1.bf16.msra.mxu0 %v6597
          %7755 = vmatprep.subr.bf16.mxu0 %v6606
          %7756 = vmatpush1.bf16.msra.mxu0 %v6605
          %7757 = vmatprep.subr.bf16.mxu0 %v6614
          %7758 = vmatpush1.bf16.msra.mxu0 %v6613
          %7759 = vmatprep.subr.bf16.mxu0 %v6622
          %7760 = vmatpush1.bf16.msra.mxu0 %v6621
          %7761 = vmatprep.subr.bf16.mxu0 %v6630
          %7762 = vmatpush1.bf16.msra.mxu0 %v6629
          %7763 = vmatprep.subr.bf16.mxu0 %v6638
          %7764 = vmatpush1.bf16.msra.mxu0 %v6637
          %7765 = vmatprep.subr.bf16.mxu0 %v6646
          %7766 = vmatpush1.bf16.msra.mxu0 %v6645
          %7767 = vmatprep.subr.bf16.mxu0 %v6654
          %7768 = vmatpush1.bf16.msra.mxu0 %v6653
          %7769 = vmatprep.subr.bf16.mxu0 %v6662
          %7770 = vmatpush1.bf16.msra.mxu0 %v6661
          %7771 = vmatprep.subr.bf16.mxu0 %v6670
          %7772 = vmatpush1.bf16.msra.mxu0 %v6669
          %7773 = vmatprep.subr.bf16.mxu0 %v6678
          %7774 = vmatpush1.bf16.msra.mxu0 %v6677
          %7775 = vmatprep.mubr.bf16.mxu0 %v5004
          %7776 = vmatmul.mubr.bf16.gmra.mrb[0].mxu0 %v5003
          %v7777 = vpop.f32.mrb[0].mxu0
          %v7778 = vadd.f32 0.0, %v7777
          %v7779 = vpop.f32.mrb[0].mxu0
          %v7780 = vadd.f32 0.0, %v7779
          %v7781 = vpop.f32.mrb[0].mxu0
          %v7782 = vpop.f32.mrb[0].mxu0
          %7783 = vdwg.mxu0
          %7784 = vmatprep.subr.bf16.mxu0 %v6686
          %7785 = vmatpush1.bf16.msra.mxu0 %v6685
          %7786 = vmatprep.subr.bf16.mxu0 %v6694
          %7787 = vmatpush1.bf16.msra.mxu0 %v6693
          %7788 = vmatprep.subr.bf16.mxu0 %v6702
          %7789 = vmatpush1.bf16.msra.mxu0 %v6701
          %7790 = vmatprep.subr.bf16.mxu0 %v6710
          %7791 = vmatpush1.bf16.msra.mxu0 %v6709
          %7792 = vmatprep.subr.bf16.mxu0 %v6718
          %7793 = vmatpush1.bf16.msra.mxu0 %v6717
          %7794 = vmatprep.subr.bf16.mxu0 %v6726
          %7795 = vmatpush1.bf16.msra.mxu0 %v6725
          %7796 = vmatprep.subr.bf16.mxu0 %v6734
          %7797 = vmatpush1.bf16.msra.mxu0 %v6733
          %7798 = vmatprep.subr.bf16.mxu0 %v6742
          %7799 = vmatpush1.bf16.msra.mxu0 %v6741
          %7800 = vmatprep.subr.bf16.mxu0 %v6750
          %7801 = vmatpush1.bf16.msra.mxu0 %v6749
          %7802 = vmatprep.subr.bf16.mxu0 %v6758
          %7803 = vmatpush1.bf16.msra.mxu0 %v6757
          %7804 = vmatprep.subr.bf16.mxu0 %v6766
          %7805 = vmatpush1.bf16.msra.mxu0 %v6765
          %7806 = vmatprep.subr.bf16.mxu0 %v6774
          %7807 = vmatpush1.bf16.msra.mxu0 %v6773
          %7808 = vmatprep.subr.bf16.mxu0 %v6782
          %7809 = vmatpush1.bf16.msra.mxu0 %v6781
          %7810 = vmatprep.subr.bf16.mxu0 %v6790
          %7811 = vmatpush1.bf16.msra.mxu0 %v6789
          %7812 = vmatprep.subr.bf16.mxu0 %v6798
          %7813 = vmatpush1.bf16.msra.mxu0 %v6797
          %7814 = vmatprep.subr.bf16.mxu0 %v6806
          %7815 = vmatpush1.bf16.msra.mxu0 %v6805
          %7816 = vmatprep.mubr.bf16.mxu0 %v5006
          %7817 = vmatmul.mubr.bf16.gmra.mrb[0].mxu0 %v5005
          %v7818 = vpop.f32.mrb[0].mxu0
          %v7819 = vadd.f32 %v7778, %v7818
          %v7820 = vpop.f32.mrb[0].mxu0
          %v7821 = vadd.f32 %v7780, %v7820
          %v7822 = vpop.f32.mrb[0].mxu0
          %v7823 = vpop.f32.mrb[0].mxu0
          %7824 = vdwg.mxu0
          %7825 = vmatprep.subr.bf16.mxu0 %v6814
          %7826 = vmatpush1.bf16.msra.mxu0 %v6813
          %7827 = vmatprep.subr.bf16.mxu0 %v6822
          %7828 = vmatpush1.bf16.msra.mxu0 %v6821
          %7829 = vmatprep.subr.bf16.mxu0 %v6830
          %7830 = vmatpush1.bf16.msra.mxu0 %v6829
          %7831 = vmatprep.subr.bf16.mxu0 %v6838
          %7832 = vmatpush1.bf16.msra.mxu0 %v6837
          %7833 = vmatprep.subr.bf16.mxu0 %v6846
          %7834 = vmatpush1.bf16.msra.mxu0 %v6845
          %7835 = vmatprep.subr.bf16.mxu0 %v6854
          %7836 = vmatpush1.bf16.msra.mxu0 %v6853
          %7837 = vmatprep.subr.bf16.mxu0 %v6862
          %7838 = vmatpush1.bf16.msra.mxu0 %v6861
          %7839 = vmatprep.subr.bf16.mxu0 %v6870
          %7840 = vmatpush1.bf16.msra.mxu0 %v6869
          %7841 = vmatprep.subr.bf16.mxu0 %v6878
          %7842 = vmatpush1.bf16.msra.mxu0 %v6877
          %7843 = vmatprep.subr.bf16.mxu0 %v6886
          %7844 = vmatpush1.bf16.msra.mxu0 %v6885
          %7845 = vmatprep.subr.bf16.mxu0 %v6894
          %7846 = vmatpush1.bf16.msra.mxu0 %v6893
          %7847 = vmatprep.subr.bf16.mxu0 %v6902
          %7848 = vmatpush1.bf16.msra.mxu0 %v6901
          %7849 = vmatprep.subr.bf16.mxu0 %v6910
          %7850 = vmatpush1.bf16.msra.mxu0 %v6909
          %7851 = vmatprep.subr.bf16.mxu0 %v6918
          %7852 = vmatpush1.bf16.msra.mxu0 %v6917
          %7853 = vmatprep.subr.bf16.mxu0 %v6926
          %7854 = vmatpush1.bf16.msra.mxu0 %v6925
          %7855 = vmatprep.subr.bf16.mxu0 %v6934
          %7856 = vmatpush1.bf16.msra.mxu0 %v6933
          %7857 = vmatprep.mubr.bf16.mxu0 %v5008
          %7858 = vmatmul.mubr.bf16.gmra.mrb[0].mxu0 %v5007
          %v7859 = vpop.f32.mrb[0].mxu0
          %v7860 = vadd.f32 %v7819, %v7859
          %v7861 = vpop.f32.mrb[0].mxu0
          %v7862 = vadd.f32 %v7821, %v7861
          %v7863 = vpop.f32.mrb[0].mxu0
          %v7864 = vpop.f32.mrb[0].mxu0
          %7865 = vdwg.mxu0
          %7866 = vmatprep.subr.bf16.mxu0 %v6942
          %7867 = vmatpush1.bf16.msra.mxu0 %v6941
          %7868 = vmatprep.subr.bf16.mxu0 %v6950
          %7869 = vmatpush1.bf16.msra.mxu0 %v6949
          %7870 = vmatprep.subr.bf16.mxu0 %v6958
          %7871 = vmatpush1.bf16.msra.mxu0 %v6957
          %7872 = vmatprep.subr.bf16.mxu0 %v6966
          %7873 = vmatpush1.bf16.msra.mxu0 %v6965
          %7874 = vmatprep.subr.bf16.mxu0 %v6974
          %7875 = vmatpush1.bf16.msra.mxu0 %v6973
          %7876 = vmatprep.subr.bf16.mxu0 %v6982
          %7877 = vmatpush1.bf16.msra.mxu0 %v6981
          %7878 = vmatprep.subr.bf16.mxu0 %v6990
          %7879 = vmatpush1.bf16.msra.mxu0 %v6989
          %7880 = vmatprep.subr.bf16.mxu0 %v6998
          %7881 = vmatpush1.bf16.msra.mxu0 %v6997
          %7882 = vmatprep.subr.bf16.mxu0 %v7006
          %7883 = vmatpush1.bf16.msra.mxu0 %v7005
          %7884 = vmatprep.subr.bf16.mxu0 %v7014
          %7885 = vmatpush1.bf16.msra.mxu0 %v7013
          %7886 = vmatprep.subr.bf16.mxu0 %v7022
          %7887 = vmatpush1.bf16.msra.mxu0 %v7021
          %7888 = vmatprep.subr.bf16.mxu0 %v7030
          %7889 = vmatpush1.bf16.msra.mxu0 %v7029
          %7890 = vmatprep.subr.bf16.mxu0 %v7038
          %7891 = vmatpush1.bf16.msra.mxu0 %v7037
          %7892 = vmatprep.subr.bf16.mxu0 %v7046
          %7893 = vmatpush1.bf16.msra.mxu0 %v7045
          %7894 = vmatprep.subr.bf16.mxu0 %v7054
          %7895 = vmatpush1.bf16.msra.mxu0 %v7053
          %7896 = vmatprep.subr.bf16.mxu0 %v7062
          %7897 = vmatpush1.bf16.msra.mxu0 %v7061
          %7898 = vmatprep.mubr.bf16.mxu0 %v5010
          %7899 = vmatmul.mubr.bf16.gmra.mrb[0].mxu0 %v5009
          %v7900 = vpop.f32.mrb[0].mxu0
          %v7901 = vadd.f32 %v7860, %v7900
          %v7902 = vpop.f32.mrb[0].mxu0
          %v7903 = vadd.f32 %v7862, %v7902
          %v7904 = vpop.f32.mrb[0].mxu0
          %v7905 = vpop.f32.mrb[0].mxu0
          %7906 = vdwg.mxu0
          %7907 = vmatprep.subr.bf16.mxu0 %v6560
          %7908 = vmatpush1.bf16.msra.mxu0 %v6559
          %7909 = vmatprep.subr.bf16.mxu0 %v6568
          %7910 = vmatpush1.bf16.msra.mxu0 %v6567
          %7911 = vmatprep.subr.bf16.mxu0 %v6576
          %7912 = vmatpush1.bf16.msra.mxu0 %v6575
          %7913 = vmatprep.subr.bf16.mxu0 %v6584
          %7914 = vmatpush1.bf16.msra.mxu0 %v6583
          %7915 = vmatprep.subr.bf16.mxu0 %v6592
          %7916 = vmatpush1.bf16.msra.mxu0 %v6591
          %7917 = vmatprep.subr.bf16.mxu0 %v6600
          %7918 = vmatpush1.bf16.msra.mxu0 %v6599
          %7919 = vmatprep.subr.bf16.mxu0 %v6608
          %7920 = vmatpush1.bf16.msra.mxu0 %v6607
          %7921 = vmatprep.subr.bf16.mxu0 %v6616
          %7922 = vmatpush1.bf16.msra.mxu0 %v6615
          %7923 = vmatprep.subr.bf16.mxu0 %v6624
          %7924 = vmatpush1.bf16.msra.mxu0 %v6623
          %7925 = vmatprep.subr.bf16.mxu0 %v6632
          %7926 = vmatpush1.bf16.msra.mxu0 %v6631
          %7927 = vmatprep.subr.bf16.mxu0 %v6640
          %7928 = vmatpush1.bf16.msra.mxu0 %v6639
          %7929 = vmatprep.subr.bf16.mxu0 %v6648
          %7930 = vmatpush1.bf16.msra.mxu0 %v6647
          %7931 = vmatprep.subr.bf16.mxu0 %v6656
          %7932 = vmatpush1.bf16.msra.mxu0 %v6655
          %7933 = vmatprep.subr.bf16.mxu0 %v6664
          %7934 = vmatpush1.bf16.msra.mxu0 %v6663
          %7935 = vmatprep.subr.bf16.mxu0 %v6672
          %7936 = vmatpush1.bf16.msra.mxu0 %v6671
          %7937 = vmatprep.subr.bf16.mxu0 %v6680
          %7938 = vmatpush1.bf16.msra.mxu0 %v6679
          %7939 = vmatprep.mubr.bf16.mxu0 %v5004
          %7940 = vmatmul.mubr.bf16.gmra.mrb[0].mxu0 %v5003
          %v7941 = vpop.f32.mrb[0].mxu0
          %v7942 = vadd.f32 0.0, %v7941
          %v7943 = vpop.f32.mrb[0].mxu0
          %v7944 = vadd.f32 0.0, %v7943
          %v7945 = vpop.f32.mrb[0].mxu0
          %v7946 = vpop.f32.mrb[0].mxu0
          %7947 = vdwg.mxu0
          %7948 = vmatprep.subr.bf16.mxu0 %v6688
          %7949 = vmatpush1.bf16.msra.mxu0 %v6687
          %7950 = vmatprep.subr.bf16.mxu0 %v6696
          %7951 = vmatpush1.bf16.msra.mxu0 %v6695
          %7952 = vmatprep.subr.bf16.mxu0 %v6704
          %7953 = vmatpush1.bf16.msra.mxu0 %v6703
          %7954 = vmatprep.subr.bf16.mxu0 %v6712
          %7955 = vmatpush1.bf16.msra.mxu0 %v6711
          %7956 = vmatprep.subr.bf16.mxu0 %v6720
          %7957 = vmatpush1.bf16.msra.mxu0 %v6719
          %7958 = vmatprep.subr.bf16.mxu0 %v6728
          %7959 = vmatpush1.bf16.msra.mxu0 %v6727
          %7960 = vmatprep.subr.bf16.mxu0 %v6736
          %7961 = vmatpush1.bf16.msra.mxu0 %v6735
          %7962 = vmatprep.subr.bf16.mxu0 %v6744
          %7963 = vmatpush1.bf16.msra.mxu0 %v6743
          %7964 = vmatprep.subr.bf16.mxu0 %v6752
          %7965 = vmatpush1.bf16.msra.mxu0 %v6751
          %7966 = vmatprep.subr.bf16.mxu0 %v6760
          %7967 = vmatpush1.bf16.msra.mxu0 %v6759
          %7968 = vmatprep.subr.bf16.mxu0 %v6768
          %7969 = vmatpush1.bf16.msra.mxu0 %v6767
          %7970 = vmatprep.subr.bf16.mxu0 %v6776
          %7971 = vmatpush1.bf16.msra.mxu0 %v6775
          %7972 = vmatprep.subr.bf16.mxu0 %v6784
          %7973 = vmatpush1.bf16.msra.mxu0 %v6783
          %7974 = vmatprep.subr.bf16.mxu0 %v6792
          %7975 = vmatpush1.bf16.msra.mxu0 %v6791
          %7976 = vmatprep.subr.bf16.mxu0 %v6800
          %7977 = vmatpush1.bf16.msra.mxu0 %v6799
          %7978 = vmatprep.subr.bf16.mxu0 %v6808
          %7979 = vmatpush1.bf16.msra.mxu0 %v6807
          %7980 = vmatprep.mubr.bf16.mxu0 %v5006
          %7981 = vmatmul.mubr.bf16.gmra.mrb[0].mxu0 %v5005
          %v7982 = vpop.f32.mrb[0].mxu0
          %v7983 = vadd.f32 %v7942, %v7982
          %v7984 = vpop.f32.mrb[0].mxu0
          %v7985 = vadd.f32 %v7944, %v7984
          %v7986 = vpop.f32.mrb[0].mxu0
          %v7987 = vpop.f32.mrb[0].mxu0
          %7988 = vdwg.mxu0
          %7989 = vmatprep.subr.bf16.mxu0 %v6816
          %7990 = vmatpush1.bf16.msra.mxu0 %v6815
          %7991 = vmatprep.subr.bf16.mxu0 %v6824
          %7992 = vmatpush1.bf16.msra.mxu0 %v6823
          %7993 = vmatprep.subr.bf16.mxu0 %v6832
          %7994 = vmatpush1.bf16.msra.mxu0 %v6831
          %7995 = vmatprep.subr.bf16.mxu0 %v6840
          %7996 = vmatpush1.bf16.msra.mxu0 %v6839
          %7997 = vmatprep.subr.bf16.mxu0 %v6848
          %7998 = vmatpush1.bf16.msra.mxu0 %v6847
          %7999 = vmatprep.subr.bf16.mxu0 %v6856
          %8000 = vmatpush1.bf16.msra.mxu0 %v6855
          %8001 = vmatprep.subr.bf16.mxu0 %v6864
          %8002 = vmatpush1.bf16.msra.mxu0 %v6863
          %8003 = vmatprep.subr.bf16.mxu0 %v6872
          %8004 = vmatpush1.bf16.msra.mxu0 %v6871
          %8005 = vmatprep.subr.bf16.mxu0 %v6880
          %8006 = vmatpush1.bf16.msra.mxu0 %v6879
          %8007 = vmatprep.subr.bf16.mxu0 %v6888
          %8008 = vmatpush1.bf16.msra.mxu0 %v6887
          %8009 = vmatprep.subr.bf16.mxu0 %v6896
          %8010 = vmatpush1.bf16.msra.mxu0 %v6895
          %8011 = vmatprep.subr.bf16.mxu0 %v6904
          %8012 = vmatpush1.bf16.msra.mxu0 %v6903
          %8013 = vmatprep.subr.bf16.mxu0 %v6912
          %8014 = vmatpush1.bf16.msra.mxu0 %v6911
          %8015 = vmatprep.subr.bf16.mxu0 %v6920
          %8016 = vmatpush1.bf16.msra.mxu0 %v6919
          %8017 = vmatprep.subr.bf16.mxu0 %v6928
          %8018 = vmatpush1.bf16.msra.mxu0 %v6927
          %8019 = vmatprep.subr.bf16.mxu0 %v6936
          %8020 = vmatpush1.bf16.msra.mxu0 %v6935
          %8021 = vmatprep.mubr.bf16.mxu0 %v5008
          %8022 = vmatmul.mubr.bf16.gmra.mrb[0].mxu0 %v5007
          %v8023 = vpop.f32.mrb[0].mxu0
          %v8024 = vadd.f32 %v7983, %v8023
          %v8025 = vpop.f32.mrb[0].mxu0
          %v8026 = vadd.f32 %v7985, %v8025
          %v8027 = vpop.f32.mrb[0].mxu0
          %v8028 = vpop.f32.mrb[0].mxu0
          %8029 = vdwg.mxu0
          %8030 = vmatprep.subr.bf16.mxu0 %v6944
          %8031 = vmatpush1.bf16.msra.mxu0 %v6943
          %8032 = vmatprep.subr.bf16.mxu0 %v6952
          %8033 = vmatpush1.bf16.msra.mxu0 %v6951
          %8034 = vmatprep.subr.bf16.mxu0 %v6960
          %8035 = vmatpush1.bf16.msra.mxu0 %v6959
          %8036 = vmatprep.subr.bf16.mxu0 %v6968
          %8037 = vmatpush1.bf16.msra.mxu0 %v6967
          %8038 = vmatprep.subr.bf16.mxu0 %v6976
          %8039 = vmatpush1.bf16.msra.mxu0 %v6975
          %8040 = vmatprep.subr.bf16.mxu0 %v6984
          %8041 = vmatpush1.bf16.msra.mxu0 %v6983
          %8042 = vmatprep.subr.bf16.mxu0 %v6992
          %8043 = vmatpush1.bf16.msra.mxu0 %v6991
          %8044 = vmatprep.subr.bf16.mxu0 %v7000
          %8045 = vmatpush1.bf16.msra.mxu0 %v6999
          %8046 = vmatprep.subr.bf16.mxu0 %v7008
          %8047 = vmatpush1.bf16.msra.mxu0 %v7007
          %8048 = vmatprep.subr.bf16.mxu0 %v7016
          %8049 = vmatpush1.bf16.msra.mxu0 %v7015
          %8050 = vmatprep.subr.bf16.mxu0 %v7024
          %8051 = vmatpush1.bf16.msra.mxu0 %v7023
          %8052 = vmatprep.subr.bf16.mxu0 %v7032
          %8053 = vmatpush1.bf16.msra.mxu0 %v7031
          %8054 = vmatprep.subr.bf16.mxu0 %v7040
          %8055 = vmatpush1.bf16.msra.mxu0 %v7039
          %8056 = vmatprep.subr.bf16.mxu0 %v7048
          %8057 = vmatpush1.bf16.msra.mxu0 %v7047
          %8058 = vmatprep.subr.bf16.mxu0 %v7056
          %8059 = vmatpush1.bf16.msra.mxu0 %v7055
          %8060 = vmatprep.subr.bf16.mxu0 %v7064
          %8061 = vmatpush1.bf16.msra.mxu0 %v7063
          %8062 = vmatprep.mubr.bf16.mxu0 %v5010
          %8063 = vmatmul.mubr.bf16.gmra.mrb[0].mxu0 %v5009
          %v8064 = vpop.f32.mrb[0].mxu0
          %v8065 = vadd.f32 %v8024, %v8064
          %v8066 = vpop.f32.mrb[0].mxu0
          %v8067 = vadd.f32 %v8026, %v8066
          %v8068 = vpop.f32.mrb[0].mxu0
          %v8069 = vpop.f32.mrb[0].mxu0
          %8070 = vdwg.mxu0
          %8071 = vmatprep.subr.bf16.mxu0 %v6562
          %8072 = vmatpush1.bf16.msra.mxu0 %v6561
          %8073 = vmatprep.subr.bf16.mxu0 %v6570
          %8074 = vmatpush1.bf16.msra.mxu0 %v6569
          %8075 = vmatprep.subr.bf16.mxu0 %v6578
          %8076 = vmatpush1.bf16.msra.mxu0 %v6577
          %8077 = vmatprep.subr.bf16.mxu0 %v6586
          %8078 = vmatpush1.bf16.msra.mxu0 %v6585
          %8079 = vmatprep.subr.bf16.mxu0 %v6594
          %8080 = vmatpush1.bf16.msra.mxu0 %v6593
          %8081 = vmatprep.subr.bf16.mxu0 %v6602
          %8082 = vmatpush1.bf16.msra.mxu0 %v6601
          %8083 = vmatprep.subr.bf16.mxu0 %v6610
          %8084 = vmatpush1.bf16.msra.mxu0 %v6609
          %8085 = vmatprep.subr.bf16.mxu0 %v6618
          %8086 = vmatpush1.bf16.msra.mxu0 %v6617
          %8087 = vmatprep.subr.bf16.mxu0 %v6626
          %8088 = vmatpush1.bf16.msra.mxu0 %v6625
          %8089 = vmatprep.subr.bf16.mxu0 %v6634
          %8090 = vmatpush1.bf16.msra.mxu0 %v6633
          %8091 = vmatprep.subr.bf16.mxu0 %v6642
          %8092 = vmatpush1.bf16.msra.mxu0 %v6641
          %8093 = vmatprep.subr.bf16.mxu0 %v6650
          %8094 = vmatpush1.bf16.msra.mxu0 %v6649
          %8095 = vmatprep.subr.bf16.mxu0 %v6658
          %8096 = vmatpush1.bf16.msra.mxu0 %v6657
          %8097 = vmatprep.subr.bf16.mxu0 %v6666
          %8098 = vmatpush1.bf16.msra.mxu0 %v6665
          %8099 = vmatprep.subr.bf16.mxu0 %v6674
          %8100 = vmatpush1.bf16.msra.mxu0 %v6673
          %8101 = vmatprep.subr.bf16.mxu0 %v6682
          %8102 = vmatpush1.bf16.msra.mxu0 %v6681
          %8103 = vmatprep.mubr.bf16.mxu0 %v5004
          %8104 = vmatmul.mubr.bf16.gmra.mrb[0].mxu0 %v5003
          %v8105 = vpop.f32.mrb[0].mxu0
          %v8106 = vadd.f32 0.0, %v8105
          %v8107 = vpop.f32.mrb[0].mxu0
          %v8108 = vadd.f32 0.0, %v8107
          %v8109 = vpop.f32.mrb[0].mxu0
          %v8110 = vpop.f32.mrb[0].mxu0
          %8111 = vdwg.mxu0
          %8112 = vmatprep.subr.bf16.mxu0 %v6690
          %8113 = vmatpush1.bf16.msra.mxu0 %v6689
          %8114 = vmatprep.subr.bf16.mxu0 %v6698
          %8115 = vmatpush1.bf16.msra.mxu0 %v6697
          %8116 = vmatprep.subr.bf16.mxu0 %v6706
          %8117 = vmatpush1.bf16.msra.mxu0 %v6705
          %8118 = vmatprep.subr.bf16.mxu0 %v6714
          %8119 = vmatpush1.bf16.msra.mxu0 %v6713
          %8120 = vmatprep.subr.bf16.mxu0 %v6722
          %8121 = vmatpush1.bf16.msra.mxu0 %v6721
          %8122 = vmatprep.subr.bf16.mxu0 %v6730
          %8123 = vmatpush1.bf16.msra.mxu0 %v6729
          %8124 = vmatprep.subr.bf16.mxu0 %v6738
          %8125 = vmatpush1.bf16.msra.mxu0 %v6737
          %8126 = vmatprep.subr.bf16.mxu0 %v6746
          %8127 = vmatpush1.bf16.msra.mxu0 %v6745
          %8128 = vmatprep.subr.bf16.mxu0 %v6754
          %8129 = vmatpush1.bf16.msra.mxu0 %v6753
          %8130 = vmatprep.subr.bf16.mxu0 %v6762
          %8131 = vmatpush1.bf16.msra.mxu0 %v6761
          %8132 = vmatprep.subr.bf16.mxu0 %v6770
          %8133 = vmatpush1.bf16.msra.mxu0 %v6769
          %8134 = vmatprep.subr.bf16.mxu0 %v6778
          %8135 = vmatpush1.bf16.msra.mxu0 %v6777
          %8136 = vmatprep.subr.bf16.mxu0 %v6786
          %8137 = vmatpush1.bf16.msra.mxu0 %v6785
          %8138 = vmatprep.subr.bf16.mxu0 %v6794
          %8139 = vmatpush1.bf16.msra.mxu0 %v6793
          %8140 = vmatprep.subr.bf16.mxu0 %v6802
          %8141 = vmatpush1.bf16.msra.mxu0 %v6801
          %8142 = vmatprep.subr.bf16.mxu0 %v6810
          %8143 = vmatpush1.bf16.msra.mxu0 %v6809
          %8144 = vmatprep.mubr.bf16.mxu0 %v5006
          %8145 = vmatmul.mubr.bf16.gmra.mrb[0].mxu0 %v5005
          %v8146 = vpop.f32.mrb[0].mxu0
          %v8147 = vadd.f32 %v8106, %v8146
          %v8148 = vpop.f32.mrb[0].mxu0
          %v8149 = vadd.f32 %v8108, %v8148
          %v8150 = vpop.f32.mrb[0].mxu0
          %v8151 = vpop.f32.mrb[0].mxu0
          %8152 = vdwg.mxu0
          %8153 = vmatprep.subr.bf16.mxu0 %v6818
          %8154 = vmatpush1.bf16.msra.mxu0 %v6817
          %8155 = vmatprep.subr.bf16.mxu0 %v6826
          %8156 = vmatpush1.bf16.msra.mxu0 %v6825
          %8157 = vmatprep.subr.bf16.mxu0 %v6834
          %8158 = vmatpush1.bf16.msra.mxu0 %v6833
          %8159 = vmatprep.subr.bf16.mxu0 %v6842
          %8160 = vmatpush1.bf16.msra.mxu0 %v6841
          %8161 = vmatprep.subr.bf16.mxu0 %v6850
          %8162 = vmatpush1.bf16.msra.mxu0 %v6849
          %8163 = vmatprep.subr.bf16.mxu0 %v6858
          %8164 = vmatpush1.bf16.msra.mxu0 %v6857
          %8165 = vmatprep.subr.bf16.mxu0 %v6866
          %8166 = vmatpush1.bf16.msra.mxu0 %v6865
          %8167 = vmatprep.subr.bf16.mxu0 %v6874
          %8168 = vmatpush1.bf16.msra.mxu0 %v6873
          %8169 = vmatprep.subr.bf16.mxu0 %v6882
          %8170 = vmatpush1.bf16.msra.mxu0 %v6881
          %8171 = vmatprep.subr.bf16.mxu0 %v6890
          %8172 = vmatpush1.bf16.msra.mxu0 %v6889
          %8173 = vmatprep.subr.bf16.mxu0 %v6898
          %8174 = vmatpush1.bf16.msra.mxu0 %v6897
          %8175 = vmatprep.subr.bf16.mxu0 %v6906
          %8176 = vmatpush1.bf16.msra.mxu0 %v6905
          %8177 = vmatprep.subr.bf16.mxu0 %v6914
          %8178 = vmatpush1.bf16.msra.mxu0 %v6913
          %8179 = vmatprep.subr.bf16.mxu0 %v6922
          %8180 = vmatpush1.bf16.msra.mxu0 %v6921
          %8181 = vmatprep.subr.bf16.mxu0 %v6930
          %8182 = vmatpush1.bf16.msra.mxu0 %v6929
          %8183 = vmatprep.subr.bf16.mxu0 %v6938
          %8184 = vmatpush1.bf16.msra.mxu0 %v6937
          %8185 = vmatprep.mubr.bf16.mxu0 %v5008
          %8186 = vmatmul.mubr.bf16.gmra.mrb[0].mxu0 %v5007
          %v8187 = vpop.f32.mrb[0].mxu0
          %v8188 = vadd.f32 %v8147, %v8187
          %v8189 = vpop.f32.mrb[0].mxu0
          %v8190 = vadd.f32 %v8149, %v8189
          %v8191 = vpop.f32.mrb[0].mxu0
          %v8192 = vpop.f32.mrb[0].mxu0
          %8193 = vdwg.mxu0
          %8194 = vmatprep.subr.bf16.mxu0 %v6946
          %8195 = vmatpush1.bf16.msra.mxu0 %v6945
          %8196 = vmatprep.subr.bf16.mxu0 %v6954
          %8197 = vmatpush1.bf16.msra.mxu0 %v6953
          %8198 = vmatprep.subr.bf16.mxu0 %v6962
          %8199 = vmatpush1.bf16.msra.mxu0 %v6961
          %8200 = vmatprep.subr.bf16.mxu0 %v6970
          %8201 = vmatpush1.bf16.msra.mxu0 %v6969
          %8202 = vmatprep.subr.bf16.mxu0 %v6978
          %8203 = vmatpush1.bf16.msra.mxu0 %v6977
          %8204 = vmatprep.subr.bf16.mxu0 %v6986
          %8205 = vmatpush1.bf16.msra.mxu0 %v6985
          %8206 = vmatprep.subr.bf16.mxu0 %v6994
          %8207 = vmatpush1.bf16.msra.mxu0 %v6993
          %8208 = vmatprep.subr.bf16.mxu0 %v7002
          %8209 = vmatpush1.bf16.msra.mxu0 %v7001
          %8210 = vmatprep.subr.bf16.mxu0 %v7010
          %8211 = vmatpush1.bf16.msra.mxu0 %v7009
          %8212 = vmatprep.subr.bf16.mxu0 %v7018
          %8213 = vmatpush1.bf16.msra.mxu0 %v7017
          %8214 = vmatprep.subr.bf16.mxu0 %v7026
          %8215 = vmatpush1.bf16.msra.mxu0 %v7025
          %8216 = vmatprep.subr.bf16.mxu0 %v7034
          %8217 = vmatpush1.bf16.msra.mxu0 %v7033
          %8218 = vmatprep.subr.bf16.mxu0 %v7042
          %8219 = vmatpush1.bf16.msra.mxu0 %v7041
          %8220 = vmatprep.subr.bf16.mxu0 %v7050
          %8221 = vmatpush1.bf16.msra.mxu0 %v7049
          %8222 = vmatprep.subr.bf16.mxu0 %v7058
          %8223 = vmatpush1.bf16.msra.mxu0 %v7057
          %8224 = vmatprep.subr.bf16.mxu0 %v7066
          %8225 = vmatpush1.bf16.msra.mxu0 %v7065
          %8226 = vmatprep.mubr.bf16.mxu0 %v5010
          %8227 = vmatmul.mubr.bf16.gmra.mrb[0].mxu0 %v5009
          %v8228 = vpop.f32.mrb[0].mxu0
          %v8229 = vadd.f32 %v8188, %v8228
          %v8230 = vpop.f32.mrb[0].mxu0
          %v8231 = vadd.f32 %v8190, %v8230
          %v8232 = vpop.f32.mrb[0].mxu0
          %v8233 = vpop.f32.mrb[0].mxu0
          %8234 = vdwg.mxu0
          %v8239 = vunpack.c.l.b16 %v3958
          %v8240 = vunpack.c.h.b16 %v3958
          %v8241 = vunpack.c.l.b16 %v3959
          %v8242 = vunpack.c.h.b16 %v3959
          %v8243 = vunpack.c.l.b16 %v3960
          %v8244 = vunpack.c.h.b16 %v3960
          %v8245 = vunpack.c.l.b16 %v3961
          %v8246 = vunpack.c.h.b16 %v3961
          %v8247 = vpack.c.b16 %v8239, %v8239
          %v8248 = vpack.c.b16 %v8240, %v8240
          %v8249 = vpack.c.b16 %v8241, %v8241
          %v8250 = vpack.c.b16 %v8242, %v8242
          %v8251 = vpack.c.b16 %v8243, %v8243
          %v8252 = vpack.c.b16 %v8244, %v8244
          %v8253 = vpack.c.b16 %v8245, %v8245
          %v8254 = vpack.c.b16 %v8246, %v8246
          %v8775 = vunpack.c.l.b16 %v3962
          %v8776 = vunpack.c.h.b16 %v3962
          %v8777 = vunpack.c.l.b16 %v3963
          %v8778 = vunpack.c.h.b16 %v3963
          %v8779 = vunpack.c.l.b16 %v3964
          %v8780 = vunpack.c.h.b16 %v3964
          %v8781 = vunpack.c.l.b16 %v3965
          %v8782 = vunpack.c.h.b16 %v3965
          %v8783 = vunpack.c.l.b16 %v3966
          %v8784 = vunpack.c.h.b16 %v3966
          %v8785 = vunpack.c.l.b16 %v3967
          %v8786 = vunpack.c.h.b16 %v3967
          %v8787 = vunpack.c.l.b16 %v3968
          %v8788 = vunpack.c.h.b16 %v3968
          %v8789 = vunpack.c.l.b16 %v3969
          %v8790 = vunpack.c.h.b16 %v3969
          %v8791 = vunpack.c.l.b16 %v3970
          %v8792 = vunpack.c.h.b16 %v3970
          %v8793 = vunpack.c.l.b16 %v3971
          %v8794 = vunpack.c.h.b16 %v3971
          %v8795 = vunpack.c.l.b16 %v3972
          %v8796 = vunpack.c.h.b16 %v3972
          %v8797 = vunpack.c.l.b16 %v3973
          %v8798 = vunpack.c.h.b16 %v3973
          %v8799 = vunpack.c.l.b16 %v3974
          %v8800 = vunpack.c.h.b16 %v3974
          %v8801 = vunpack.c.l.b16 %v3975
          %v8802 = vunpack.c.h.b16 %v3975
          %v8803 = vunpack.c.l.b16 %v3976
          %v8804 = vunpack.c.h.b16 %v3976
          %v8805 = vunpack.c.l.b16 %v3977
          %v8806 = vunpack.c.h.b16 %v3977
          %v8807 = vunpack.c.l.b16 %v3978
          %v8808 = vunpack.c.h.b16 %v3978
          %v8809 = vunpack.c.l.b16 %v3979
          %v8810 = vunpack.c.h.b16 %v3979
          %v8811 = vunpack.c.l.b16 %v3980
          %v8812 = vunpack.c.h.b16 %v3980
          %v8813 = vunpack.c.l.b16 %v3981
          %v8814 = vunpack.c.h.b16 %v3981
          %v8815 = vunpack.c.l.b16 %v3982
          %v8816 = vunpack.c.h.b16 %v3982
          %v8817 = vunpack.c.l.b16 %v3983
          %v8818 = vunpack.c.h.b16 %v3983
          %v8819 = vunpack.c.l.b16 %v3984
          %v8820 = vunpack.c.h.b16 %v3984
          %v8821 = vunpack.c.l.b16 %v3985
          %v8822 = vunpack.c.h.b16 %v3985
          %v8823 = vunpack.c.l.b16 %v3986
          %v8824 = vunpack.c.h.b16 %v3986
          %v8825 = vunpack.c.l.b16 %v3987
          %v8826 = vunpack.c.h.b16 %v3987
          %v8827 = vunpack.c.l.b16 %v3988
          %v8828 = vunpack.c.h.b16 %v3988
          %v8829 = vunpack.c.l.b16 %v3989
          %v8830 = vunpack.c.h.b16 %v3989
          %v8831 = vunpack.c.l.b16 %v3990
          %v8832 = vunpack.c.h.b16 %v3990
          %v8833 = vunpack.c.l.b16 %v3991
          %v8834 = vunpack.c.h.b16 %v3991
          %v8835 = vunpack.c.l.b16 %v3992
          %v8836 = vunpack.c.h.b16 %v3992
          %v8837 = vunpack.c.l.b16 %v3993
          %v8838 = vunpack.c.h.b16 %v3993
          %v8839 = vunpack.c.l.b16 %v3994
          %v8840 = vunpack.c.h.b16 %v3994
          %v8841 = vunpack.c.l.b16 %v3995
          %v8842 = vunpack.c.h.b16 %v3995
          %v8843 = vunpack.c.l.b16 %v3996
          %v8844 = vunpack.c.h.b16 %v3996
          %v8845 = vunpack.c.l.b16 %v3997
          %v8846 = vunpack.c.h.b16 %v3997
          %v8847 = vunpack.c.l.b16 %v3998
          %v8848 = vunpack.c.h.b16 %v3998
          %v8849 = vunpack.c.l.b16 %v3999
          %v8850 = vunpack.c.h.b16 %v3999
          %v8851 = vunpack.c.l.b16 %v4000
          %v8852 = vunpack.c.h.b16 %v4000
          %v8853 = vunpack.c.l.b16 %v4001
          %v8854 = vunpack.c.h.b16 %v4001
          %v8855 = vunpack.c.l.b16 %v4002
          %v8856 = vunpack.c.h.b16 %v4002
          %v8857 = vunpack.c.l.b16 %v4003
          %v8858 = vunpack.c.h.b16 %v4003
          %v8859 = vunpack.c.l.b16 %v4004
          %v8860 = vunpack.c.h.b16 %v4004
          %v8861 = vunpack.c.l.b16 %v4005
          %v8862 = vunpack.c.h.b16 %v4005
          %v8863 = vunpack.c.l.b16 %v4006
          %v8864 = vunpack.c.h.b16 %v4006
          %v8865 = vunpack.c.l.b16 %v4007
          %v8866 = vunpack.c.h.b16 %v4007
          %v8867 = vunpack.c.l.b16 %v4008
          %v8868 = vunpack.c.h.b16 %v4008
          %v8869 = vunpack.c.l.b16 %v4009
          %v8870 = vunpack.c.h.b16 %v4009
          %v8871 = vunpack.c.l.b16 %v4010
          %v8872 = vunpack.c.h.b16 %v4010
          %v8873 = vunpack.c.l.b16 %v4011
          %v8874 = vunpack.c.h.b16 %v4011
          %v8875 = vunpack.c.l.b16 %v4012
          %v8876 = vunpack.c.h.b16 %v4012
          %v8877 = vunpack.c.l.b16 %v4013
          %v8878 = vunpack.c.h.b16 %v4013
          %v8879 = vunpack.c.l.b16 %v4014
          %v8880 = vunpack.c.h.b16 %v4014
          %v8881 = vunpack.c.l.b16 %v4015
          %v8882 = vunpack.c.h.b16 %v4015
          %v8883 = vunpack.c.l.b16 %v4016
          %v8884 = vunpack.c.h.b16 %v4016
          %v8885 = vunpack.c.l.b16 %v4017
          %v8886 = vunpack.c.h.b16 %v4017
          %v8887 = vunpack.c.l.b16 %v4018
          %v8888 = vunpack.c.h.b16 %v4018
          %v8889 = vunpack.c.l.b16 %v4019
          %v8890 = vunpack.c.h.b16 %v4019
          %v8891 = vunpack.c.l.b16 %v4020
          %v8892 = vunpack.c.h.b16 %v4020
          %v8893 = vunpack.c.l.b16 %v4021
          %v8894 = vunpack.c.h.b16 %v4021
          %v8895 = vunpack.c.l.b16 %v4022
          %v8896 = vunpack.c.h.b16 %v4022
          %v8897 = vunpack.c.l.b16 %v4023
          %v8898 = vunpack.c.h.b16 %v4023
          %v8899 = vunpack.c.l.b16 %v4024
          %v8900 = vunpack.c.h.b16 %v4024
          %v8901 = vunpack.c.l.b16 %v4025
          %v8902 = vunpack.c.h.b16 %v4025
          %v8903 = vunpack.c.l.b16 %v4026
          %v8904 = vunpack.c.h.b16 %v4026
          %v8905 = vunpack.c.l.b16 %v4027
          %v8906 = vunpack.c.h.b16 %v4027
          %v8907 = vunpack.c.l.b16 %v4028
          %v8908 = vunpack.c.h.b16 %v4028
          %v8909 = vunpack.c.l.b16 %v4029
          %v8910 = vunpack.c.h.b16 %v4029
          %v8911 = vunpack.c.l.b16 %v4030
          %v8912 = vunpack.c.h.b16 %v4030
          %v8913 = vunpack.c.l.b16 %v4031
          %v8914 = vunpack.c.h.b16 %v4031
          %v8915 = vunpack.c.l.b16 %v4032
          %v8916 = vunpack.c.h.b16 %v4032
          %v8917 = vunpack.c.l.b16 %v4033
          %v8918 = vunpack.c.h.b16 %v4033
          %v8919 = vunpack.c.l.b16 %v4034
          %v8920 = vunpack.c.h.b16 %v4034
          %v8921 = vunpack.c.l.b16 %v4035
          %v8922 = vunpack.c.h.b16 %v4035
          %v8923 = vunpack.c.l.b16 %v4036
          %v8924 = vunpack.c.h.b16 %v4036
          %v8925 = vunpack.c.l.b16 %v4037
          %v8926 = vunpack.c.h.b16 %v4037
          %v8927 = vunpack.c.l.b16 %v4038
          %v8928 = vunpack.c.h.b16 %v4038
          %v8929 = vunpack.c.l.b16 %v4039
          %v8930 = vunpack.c.h.b16 %v4039
          %v8931 = vunpack.c.l.b16 %v4040
          %v8932 = vunpack.c.h.b16 %v4040
          %v8933 = vunpack.c.l.b16 %v4041
          %v8934 = vunpack.c.h.b16 %v4041
          %v8935 = vunpack.c.l.b16 %v4042
          %v8936 = vunpack.c.h.b16 %v4042
          %v8937 = vunpack.c.l.b16 %v4043
          %v8938 = vunpack.c.h.b16 %v4043
          %v8939 = vunpack.c.l.b16 %v4044
          %v8940 = vunpack.c.h.b16 %v4044
          %v8941 = vunpack.c.l.b16 %v4045
          %v8942 = vunpack.c.h.b16 %v4045
          %v8943 = vunpack.c.l.b16 %v4046
          %v8944 = vunpack.c.h.b16 %v4046
          %v8945 = vunpack.c.l.b16 %v4047
          %v8946 = vunpack.c.h.b16 %v4047
          %v8947 = vunpack.c.l.b16 %v4048
          %v8948 = vunpack.c.h.b16 %v4048
          %v8949 = vunpack.c.l.b16 %v4049
          %v8950 = vunpack.c.h.b16 %v4049
          %v8951 = vunpack.c.l.b16 %v4050
          %v8952 = vunpack.c.h.b16 %v4050
          %v8953 = vunpack.c.l.b16 %v4051
          %v8954 = vunpack.c.h.b16 %v4051
          %v8955 = vunpack.c.l.b16 %v4052
          %v8956 = vunpack.c.h.b16 %v4052
          %v8957 = vunpack.c.l.b16 %v4053
          %v8958 = vunpack.c.h.b16 %v4053
          %v8959 = vunpack.c.l.b16 %v4054
          %v8960 = vunpack.c.h.b16 %v4054
          %v8961 = vunpack.c.l.b16 %v4055
          %v8962 = vunpack.c.h.b16 %v4055
          %v8963 = vunpack.c.l.b16 %v4056
          %v8964 = vunpack.c.h.b16 %v4056
          %v8965 = vunpack.c.l.b16 %v4057
          %v8966 = vunpack.c.h.b16 %v4057
          %v8967 = vunpack.c.l.b16 %v4058
          %v8968 = vunpack.c.h.b16 %v4058
          %v8969 = vunpack.c.l.b16 %v4059
          %v8970 = vunpack.c.h.b16 %v4059
          %v8971 = vunpack.c.l.b16 %v4060
          %v8972 = vunpack.c.h.b16 %v4060
          %v8973 = vunpack.c.l.b16 %v4061
          %v8974 = vunpack.c.h.b16 %v4061
          %v8975 = vunpack.c.l.b16 %v4062
          %v8976 = vunpack.c.h.b16 %v4062
          %v8977 = vunpack.c.l.b16 %v4063
          %v8978 = vunpack.c.h.b16 %v4063
          %v8979 = vunpack.c.l.b16 %v4064
          %v8980 = vunpack.c.h.b16 %v4064
          %v8981 = vunpack.c.l.b16 %v4065
          %v8982 = vunpack.c.h.b16 %v4065
          %v8983 = vunpack.c.l.b16 %v4066
          %v8984 = vunpack.c.h.b16 %v4066
          %v8985 = vunpack.c.l.b16 %v4067
          %v8986 = vunpack.c.h.b16 %v4067
          %v8987 = vunpack.c.l.b16 %v4068
          %v8988 = vunpack.c.h.b16 %v4068
          %v8989 = vunpack.c.l.b16 %v4069
          %v8990 = vunpack.c.h.b16 %v4069
          %v8991 = vunpack.c.l.b16 %v4070
          %v8992 = vunpack.c.h.b16 %v4070
          %v8993 = vunpack.c.l.b16 %v4071
          %v8994 = vunpack.c.h.b16 %v4071
          %v8995 = vunpack.c.l.b16 %v4072
          %v8996 = vunpack.c.h.b16 %v4072
          %v8997 = vunpack.c.l.b16 %v4073
          %v8998 = vunpack.c.h.b16 %v4073
          %v8999 = vunpack.c.l.b16 %v4074
          %v9000 = vunpack.c.h.b16 %v4074
          %v9001 = vunpack.c.l.b16 %v4075
          %v9002 = vunpack.c.h.b16 %v4075
          %v9003 = vunpack.c.l.b16 %v4076
          %v9004 = vunpack.c.h.b16 %v4076
          %v9005 = vunpack.c.l.b16 %v4077
          %v9006 = vunpack.c.h.b16 %v4077
          %v9007 = vunpack.c.l.b16 %v4078
          %v9008 = vunpack.c.h.b16 %v4078
          %v9009 = vunpack.c.l.b16 %v4079
          %v9010 = vunpack.c.h.b16 %v4079
          %v9011 = vunpack.c.l.b16 %v4080
          %v9012 = vunpack.c.h.b16 %v4080
          %v9013 = vunpack.c.l.b16 %v4081
          %v9014 = vunpack.c.h.b16 %v4081
          %v9015 = vunpack.c.l.b16 %v4082
          %v9016 = vunpack.c.h.b16 %v4082
          %v9017 = vunpack.c.l.b16 %v4083
          %v9018 = vunpack.c.h.b16 %v4083
          %v9019 = vunpack.c.l.b16 %v4084
          %v9020 = vunpack.c.h.b16 %v4084
          %v9021 = vunpack.c.l.b16 %v4085
          %v9022 = vunpack.c.h.b16 %v4085
          %v9023 = vunpack.c.l.b16 %v4086
          %v9024 = vunpack.c.h.b16 %v4086
          %v9025 = vunpack.c.l.b16 %v4087
          %v9026 = vunpack.c.h.b16 %v4087
          %v9027 = vunpack.c.l.b16 %v4088
          %v9028 = vunpack.c.h.b16 %v4088
          %v9029 = vunpack.c.l.b16 %v4089
          %v9030 = vunpack.c.h.b16 %v4089
          %v9031 = vunpack.c.l.b16 %v4090
          %v9032 = vunpack.c.h.b16 %v4090
          %v9033 = vunpack.c.l.b16 %v4091
          %v9034 = vunpack.c.h.b16 %v4091
          %v9035 = vunpack.c.l.b16 %v4092
          %v9036 = vunpack.c.h.b16 %v4092
          %v9037 = vunpack.c.l.b16 %v4093
          %v9038 = vunpack.c.h.b16 %v4093
          %v9039 = vunpack.c.l.b16 %v4094
          %v9040 = vunpack.c.h.b16 %v4094
          %v9041 = vunpack.c.l.b16 %v4095
          %v9042 = vunpack.c.h.b16 %v4095
          %v9043 = vunpack.c.l.b16 %v4096
          %v9044 = vunpack.c.h.b16 %v4096
          %v9045 = vunpack.c.l.b16 %v4097
          %v9046 = vunpack.c.h.b16 %v4097
          %v9047 = vunpack.c.l.b16 %v4098
          %v9048 = vunpack.c.h.b16 %v4098
          %v9049 = vunpack.c.l.b16 %v4099
          %v9050 = vunpack.c.h.b16 %v4099
          %v9051 = vunpack.c.l.b16 %v4100
          %v9052 = vunpack.c.h.b16 %v4100
          %v9053 = vunpack.c.l.b16 %v4101
          %v9054 = vunpack.c.h.b16 %v4101
          %v9055 = vunpack.c.l.b16 %v4102
          %v9056 = vunpack.c.h.b16 %v4102
          %v9057 = vunpack.c.l.b16 %v4103
          %v9058 = vunpack.c.h.b16 %v4103
          %v9059 = vunpack.c.l.b16 %v4104
          %v9060 = vunpack.c.h.b16 %v4104
          %v9061 = vunpack.c.l.b16 %v4105
          %v9062 = vunpack.c.h.b16 %v4105
          %v9063 = vunpack.c.l.b16 %v4106
          %v9064 = vunpack.c.h.b16 %v4106
          %v9065 = vunpack.c.l.b16 %v4107
          %v9066 = vunpack.c.h.b16 %v4107
          %v9067 = vunpack.c.l.b16 %v4108
          %v9068 = vunpack.c.h.b16 %v4108
          %v9069 = vunpack.c.l.b16 %v4109
          %v9070 = vunpack.c.h.b16 %v4109
          %v9071 = vunpack.c.l.b16 %v4110
          %v9072 = vunpack.c.h.b16 %v4110
          %v9073 = vunpack.c.l.b16 %v4111
          %v9074 = vunpack.c.h.b16 %v4111
          %v9075 = vunpack.c.l.b16 %v4112
          %v9076 = vunpack.c.h.b16 %v4112
          %v9077 = vunpack.c.l.b16 %v4113
          %v9078 = vunpack.c.h.b16 %v4113
          %v9079 = vunpack.c.l.b16 %v4114
          %v9080 = vunpack.c.h.b16 %v4114
          %v9081 = vunpack.c.l.b16 %v4115
          %v9082 = vunpack.c.h.b16 %v4115
          %v9083 = vunpack.c.l.b16 %v4116
          %v9084 = vunpack.c.h.b16 %v4116
          %v9085 = vunpack.c.l.b16 %v4117
          %v9086 = vunpack.c.h.b16 %v4117
          %v9087 = vunpack.c.l.b16 %v4118
          %v9088 = vunpack.c.h.b16 %v4118
          %v9089 = vunpack.c.l.b16 %v4119
          %v9090 = vunpack.c.h.b16 %v4119
          %v9091 = vunpack.c.l.b16 %v4120
          %v9092 = vunpack.c.h.b16 %v4120
          %v9093 = vunpack.c.l.b16 %v4121
          %v9094 = vunpack.c.h.b16 %v4121
          %v9095 = vunpack.c.l.b16 %v4122
          %v9096 = vunpack.c.h.b16 %v4122
          %v9097 = vunpack.c.l.b16 %v4123
          %v9098 = vunpack.c.h.b16 %v4123
          %v9099 = vunpack.c.l.b16 %v4124
          %v9100 = vunpack.c.h.b16 %v4124
          %v9101 = vunpack.c.l.b16 %v4125
          %v9102 = vunpack.c.h.b16 %v4125
          %v9103 = vunpack.c.l.b16 %v4126
          %v9104 = vunpack.c.h.b16 %v4126
          %v9105 = vunpack.c.l.b16 %v4127
          %v9106 = vunpack.c.h.b16 %v4127
          %v9107 = vunpack.c.l.b16 %v4128
          %v9108 = vunpack.c.h.b16 %v4128
          %v9109 = vunpack.c.l.b16 %v4129
          %v9110 = vunpack.c.h.b16 %v4129
          %v9111 = vunpack.c.l.b16 %v4130
          %v9112 = vunpack.c.h.b16 %v4130
          %v9113 = vunpack.c.l.b16 %v4131
          %v9114 = vunpack.c.h.b16 %v4131
          %v9115 = vunpack.c.l.b16 %v4132
          %v9116 = vunpack.c.h.b16 %v4132
          %v9117 = vunpack.c.l.b16 %v4133
          %v9118 = vunpack.c.h.b16 %v4133
          %v9119 = vunpack.c.l.b16 %v4134
          %v9120 = vunpack.c.h.b16 %v4134
          %v9121 = vunpack.c.l.b16 %v4135
          %v9122 = vunpack.c.h.b16 %v4135
          %v9123 = vunpack.c.l.b16 %v4136
          %v9124 = vunpack.c.h.b16 %v4136
          %v9125 = vunpack.c.l.b16 %v4137
          %v9126 = vunpack.c.h.b16 %v4137
          %v9127 = vunpack.c.l.b16 %v4138
          %v9128 = vunpack.c.h.b16 %v4138
          %v9129 = vunpack.c.l.b16 %v4139
          %v9130 = vunpack.c.h.b16 %v4139
          %v9131 = vunpack.c.l.b16 %v4140
          %v9132 = vunpack.c.h.b16 %v4140
          %v9133 = vunpack.c.l.b16 %v4141
          %v9134 = vunpack.c.h.b16 %v4141
          %v9135 = vunpack.c.l.b16 %v4142
          %v9136 = vunpack.c.h.b16 %v4142
          %v9137 = vunpack.c.l.b16 %v4143
          %v9138 = vunpack.c.h.b16 %v4143
          %v9139 = vunpack.c.l.b16 %v4144
          %v9140 = vunpack.c.h.b16 %v4144
          %v9141 = vunpack.c.l.b16 %v4145
          %v9142 = vunpack.c.h.b16 %v4145
          %v9143 = vunpack.c.l.b16 %v4146
          %v9144 = vunpack.c.h.b16 %v4146
          %v9145 = vunpack.c.l.b16 %v4147
          %v9146 = vunpack.c.h.b16 %v4147
          %v9147 = vunpack.c.l.b16 %v4148
          %v9148 = vunpack.c.h.b16 %v4148
          %v9149 = vunpack.c.l.b16 %v4149
          %v9150 = vunpack.c.h.b16 %v4149
          %v9151 = vunpack.c.l.b16 %v4150
          %v9152 = vunpack.c.h.b16 %v4150
          %v9153 = vunpack.c.l.b16 %v4151
          %v9154 = vunpack.c.h.b16 %v4151
          %v9155 = vunpack.c.l.b16 %v4152
          %v9156 = vunpack.c.h.b16 %v4152
          %v9157 = vunpack.c.l.b16 %v4153
          %v9158 = vunpack.c.h.b16 %v4153
          %v9159 = vunpack.c.l.b16 %v4154
          %v9160 = vunpack.c.h.b16 %v4154
          %v9161 = vunpack.c.l.b16 %v4155
          %v9162 = vunpack.c.h.b16 %v4155
          %v9163 = vunpack.c.l.b16 %v4156
          %v9164 = vunpack.c.h.b16 %v4156
          %v9165 = vunpack.c.l.b16 %v4157
          %v9166 = vunpack.c.h.b16 %v4157
          %v9167 = vunpack.c.l.b16 %v4158
          %v9168 = vunpack.c.h.b16 %v4158
          %v9169 = vunpack.c.l.b16 %v4159
          %v9170 = vunpack.c.h.b16 %v4159
          %v9171 = vunpack.c.l.b16 %v4160
          %v9172 = vunpack.c.h.b16 %v4160
          %v9173 = vunpack.c.l.b16 %v4161
          %v9174 = vunpack.c.h.b16 %v4161
          %v9175 = vunpack.c.l.b16 %v4162
          %v9176 = vunpack.c.h.b16 %v4162
          %v9177 = vunpack.c.l.b16 %v4163
          %v9178 = vunpack.c.h.b16 %v4163
          %v9179 = vunpack.c.l.b16 %v4164
          %v9180 = vunpack.c.h.b16 %v4164
          %v9181 = vunpack.c.l.b16 %v4165
          %v9182 = vunpack.c.h.b16 %v4165
          %v9183 = vunpack.c.l.b16 %v4166
          %v9184 = vunpack.c.h.b16 %v4166
          %v9185 = vunpack.c.l.b16 %v4167
          %v9186 = vunpack.c.h.b16 %v4167
          %v9187 = vunpack.c.l.b16 %v4168
          %v9188 = vunpack.c.h.b16 %v4168
          %v9189 = vunpack.c.l.b16 %v4169
          %v9190 = vunpack.c.h.b16 %v4169
          %v9191 = vunpack.c.l.b16 %v4170
          %v9192 = vunpack.c.h.b16 %v4170
          %v9193 = vunpack.c.l.b16 %v4171
          %v9194 = vunpack.c.h.b16 %v4171
          %v9195 = vunpack.c.l.b16 %v4172
          %v9196 = vunpack.c.h.b16 %v4172
          %v9197 = vunpack.c.l.b16 %v4173
          %v9198 = vunpack.c.h.b16 %v4173
          %v9199 = vunpack.c.l.b16 %v4174
          %v9200 = vunpack.c.h.b16 %v4174
          %v9201 = vunpack.c.l.b16 %v4175
          %v9202 = vunpack.c.h.b16 %v4175
          %v9203 = vunpack.c.l.b16 %v4176
          %v9204 = vunpack.c.h.b16 %v4176
          %v9205 = vunpack.c.l.b16 %v4177
          %v9206 = vunpack.c.h.b16 %v4177
          %v9207 = vunpack.c.l.b16 %v4178
          %v9208 = vunpack.c.h.b16 %v4178
          %v9209 = vunpack.c.l.b16 %v4179
          %v9210 = vunpack.c.h.b16 %v4179
          %v9211 = vunpack.c.l.b16 %v4180
          %v9212 = vunpack.c.h.b16 %v4180
          %v9213 = vunpack.c.l.b16 %v4181
          %v9214 = vunpack.c.h.b16 %v4181
          %v9215 = vunpack.c.l.b16 %v4182
          %v9216 = vunpack.c.h.b16 %v4182
          %v9217 = vunpack.c.l.b16 %v4183
          %v9218 = vunpack.c.h.b16 %v4183
          %v9219 = vunpack.c.l.b16 %v4184
          %v9220 = vunpack.c.h.b16 %v4184
          %v9221 = vunpack.c.l.b16 %v4185
          %v9222 = vunpack.c.h.b16 %v4185
          %v9223 = vunpack.c.l.b16 %v4186
          %v9224 = vunpack.c.h.b16 %v4186
          %v9225 = vunpack.c.l.b16 %v4187
          %v9226 = vunpack.c.h.b16 %v4187
          %v9227 = vunpack.c.l.b16 %v4188
          %v9228 = vunpack.c.h.b16 %v4188
          %v9229 = vunpack.c.l.b16 %v4189
          %v9230 = vunpack.c.h.b16 %v4189
          %v9231 = vunpack.c.l.b16 %v4190
          %v9232 = vunpack.c.h.b16 %v4190
          %v9233 = vunpack.c.l.b16 %v4191
          %v9234 = vunpack.c.h.b16 %v4191
          %v9235 = vunpack.c.l.b16 %v4192
          %v9236 = vunpack.c.h.b16 %v4192
          %v9237 = vunpack.c.l.b16 %v4193
          %v9238 = vunpack.c.h.b16 %v4193
          %v9239 = vunpack.c.l.b16 %v4194
          %v9240 = vunpack.c.h.b16 %v4194
          %v9241 = vunpack.c.l.b16 %v4195
          %v9242 = vunpack.c.h.b16 %v4195
          %v9243 = vunpack.c.l.b16 %v4196
          %v9244 = vunpack.c.h.b16 %v4196
          %v9245 = vunpack.c.l.b16 %v4197
          %v9246 = vunpack.c.h.b16 %v4197
          %v9247 = vunpack.c.l.b16 %v4198
          %v9248 = vunpack.c.h.b16 %v4198
          %v9249 = vunpack.c.l.b16 %v4199
          %v9250 = vunpack.c.h.b16 %v4199
          %v9251 = vunpack.c.l.b16 %v4200
          %v9252 = vunpack.c.h.b16 %v4200
          %v9253 = vunpack.c.l.b16 %v4201
          %v9254 = vunpack.c.h.b16 %v4201
          %v9255 = vunpack.c.l.b16 %v4202
          %v9256 = vunpack.c.h.b16 %v4202
          %v9257 = vunpack.c.l.b16 %v4203
          %v9258 = vunpack.c.h.b16 %v4203
          %v9259 = vunpack.c.l.b16 %v4204
          %v9260 = vunpack.c.h.b16 %v4204
          %v9261 = vunpack.c.l.b16 %v4205
          %v9262 = vunpack.c.h.b16 %v4205
          %v9263 = vunpack.c.l.b16 %v4206
          %v9264 = vunpack.c.h.b16 %v4206
          %v9265 = vunpack.c.l.b16 %v4207
          %v9266 = vunpack.c.h.b16 %v4207
          %v9267 = vunpack.c.l.b16 %v4208
          %v9268 = vunpack.c.h.b16 %v4208
          %v9269 = vunpack.c.l.b16 %v4209
          %v9270 = vunpack.c.h.b16 %v4209
          %v9271 = vunpack.c.l.b16 %v4210
          %v9272 = vunpack.c.h.b16 %v4210
          %v9273 = vunpack.c.l.b16 %v4211
          %v9274 = vunpack.c.h.b16 %v4211
          %v9275 = vunpack.c.l.b16 %v4212
          %v9276 = vunpack.c.h.b16 %v4212
          %v9277 = vunpack.c.l.b16 %v4213
          %v9278 = vunpack.c.h.b16 %v4213
          %v9279 = vunpack.c.l.b16 %v4214
          %v9280 = vunpack.c.h.b16 %v4214
          %v9281 = vunpack.c.l.b16 %v4215
          %v9282 = vunpack.c.h.b16 %v4215
          %v9283 = vunpack.c.l.b16 %v4216
          %v9284 = vunpack.c.h.b16 %v4216
          %v9285 = vunpack.c.l.b16 %v4217
          %v9286 = vunpack.c.h.b16 %v4217
          %v9287 = vunpack.c.l.b16 %v4218
          %v9288 = vunpack.c.h.b16 %v4218
          %v9289 = vunpack.c.l.b16 %v4219
          %v9290 = vunpack.c.h.b16 %v4219
          %v9291 = vunpack.c.l.b16 %v4220
          %v9292 = vunpack.c.h.b16 %v4220
          %v9293 = vunpack.c.l.b16 %v4221
          %v9294 = vunpack.c.h.b16 %v4221
          %v9295 = vunpack.c.l.b16 %v4222
          %v9296 = vunpack.c.h.b16 %v4222
          %v9297 = vunpack.c.l.b16 %v4223
          %v9298 = vunpack.c.h.b16 %v4223
          %v9299 = vunpack.c.l.b16 %v4224
          %v9300 = vunpack.c.h.b16 %v4224
          %v9301 = vunpack.c.l.b16 %v4225
          %v9302 = vunpack.c.h.b16 %v4225
          %v9303 = vunpack.c.l.b16 %v4226
          %v9304 = vunpack.c.h.b16 %v4226
          %v9305 = vunpack.c.l.b16 %v4227
          %v9306 = vunpack.c.h.b16 %v4227
          %v9307 = vunpack.c.l.b16 %v4228
          %v9308 = vunpack.c.h.b16 %v4228
          %v9309 = vunpack.c.l.b16 %v4229
          %v9310 = vunpack.c.h.b16 %v4229
          %v9311 = vunpack.c.l.b16 %v4230
          %v9312 = vunpack.c.h.b16 %v4230
          %v9313 = vunpack.c.l.b16 %v4231
          %v9314 = vunpack.c.h.b16 %v4231
          %v9315 = vunpack.c.l.b16 %v4232
          %v9316 = vunpack.c.h.b16 %v4232
          %v9317 = vunpack.c.l.b16 %v4233
          %v9318 = vunpack.c.h.b16 %v4233
          %v9319 = vunpack.c.l.b16 %v4234
          %v9320 = vunpack.c.h.b16 %v4234
          %v9321 = vunpack.c.l.b16 %v4235
          %v9322 = vunpack.c.h.b16 %v4235
          %v9323 = vunpack.c.l.b16 %v4236
          %v9324 = vunpack.c.h.b16 %v4236
          %v9325 = vunpack.c.l.b16 %v4237
          %v9326 = vunpack.c.h.b16 %v4237
          %v9327 = vunpack.c.l.b16 %v4238
          %v9328 = vunpack.c.h.b16 %v4238
          %v9329 = vunpack.c.l.b16 %v4239
          %v9330 = vunpack.c.h.b16 %v4239
          %v9331 = vunpack.c.l.b16 %v4240
          %v9332 = vunpack.c.h.b16 %v4240
          %v9333 = vunpack.c.l.b16 %v4241
          %v9334 = vunpack.c.h.b16 %v4241
          %v9335 = vunpack.c.l.b16 %v4242
          %v9336 = vunpack.c.h.b16 %v4242
          %v9337 = vunpack.c.l.b16 %v4243
          %v9338 = vunpack.c.h.b16 %v4243
          %v9339 = vunpack.c.l.b16 %v4244
          %v9340 = vunpack.c.h.b16 %v4244
          %v9341 = vunpack.c.l.b16 %v4245
          %v9342 = vunpack.c.h.b16 %v4245
          %v9343 = vunpack.c.l.b16 %v4246
          %v9344 = vunpack.c.h.b16 %v4246
          %v9345 = vunpack.c.l.b16 %v4247
          %v9346 = vunpack.c.h.b16 %v4247
          %v9347 = vunpack.c.l.b16 %v4248
          %v9348 = vunpack.c.h.b16 %v4248
          %v9349 = vunpack.c.l.b16 %v4249
          %v9350 = vunpack.c.h.b16 %v4249
          %v9351 = vunpack.c.l.b16 %v4250
          %v9352 = vunpack.c.h.b16 %v4250
          %v9353 = vunpack.c.l.b16 %v4251
          %v9354 = vunpack.c.h.b16 %v4251
          %v9355 = vunpack.c.l.b16 %v4252
          %v9356 = vunpack.c.h.b16 %v4252
          %v9357 = vunpack.c.l.b16 %v4253
          %v9358 = vunpack.c.h.b16 %v4253
          %v9359 = vunpack.c.l.b16 %v4254
          %v9360 = vunpack.c.h.b16 %v4254
          %v9361 = vunpack.c.l.b16 %v4255
          %v9362 = vunpack.c.h.b16 %v4255
          %v9363 = vunpack.c.l.b16 %v4256
          %v9364 = vunpack.c.h.b16 %v4256
          %v9365 = vunpack.c.l.b16 %v4257
          %v9366 = vunpack.c.h.b16 %v4257
          %v9367 = vunpack.c.l.b16 %v4258
          %v9368 = vunpack.c.h.b16 %v4258
          %v9369 = vunpack.c.l.b16 %v4259
          %v9370 = vunpack.c.h.b16 %v4259
          %v9371 = vunpack.c.l.b16 %v4260
          %v9372 = vunpack.c.h.b16 %v4260
          %v9373 = vunpack.c.l.b16 %v4261
          %v9374 = vunpack.c.h.b16 %v4261
          %v9375 = vunpack.c.l.b16 %v4262
          %v9376 = vunpack.c.h.b16 %v4262
          %v9377 = vunpack.c.l.b16 %v4263
          %v9378 = vunpack.c.h.b16 %v4263
          %v9379 = vunpack.c.l.b16 %v4264
          %v9380 = vunpack.c.h.b16 %v4264
          %v9381 = vunpack.c.l.b16 %v4265
          %v9382 = vunpack.c.h.b16 %v4265
          %v9383 = vunpack.c.l.b16 %v4266
          %v9384 = vunpack.c.h.b16 %v4266
          %v9385 = vunpack.c.l.b16 %v4267
          %v9386 = vunpack.c.h.b16 %v4267
          %v9387 = vunpack.c.l.b16 %v4268
          %v9388 = vunpack.c.h.b16 %v4268
          %v9389 = vunpack.c.l.b16 %v4269
          %v9390 = vunpack.c.h.b16 %v4269
          %v9391 = vunpack.c.l.b16 %v4270
          %v9392 = vunpack.c.h.b16 %v4270
          %v9393 = vunpack.c.l.b16 %v4271
          %v9394 = vunpack.c.h.b16 %v4271
          %v9395 = vunpack.c.l.b16 %v4272
          %v9396 = vunpack.c.h.b16 %v4272
          %v9397 = vunpack.c.l.b16 %v4273
          %v9398 = vunpack.c.h.b16 %v4273
          %v9399 = vunpack.c.l.b16 %v4274
          %v9400 = vunpack.c.h.b16 %v4274
          %v9401 = vunpack.c.l.b16 %v4275
          %v9402 = vunpack.c.h.b16 %v4275
          %v9403 = vunpack.c.l.b16 %v4276
          %v9404 = vunpack.c.h.b16 %v4276
          %v9405 = vunpack.c.l.b16 %v4277
          %v9406 = vunpack.c.h.b16 %v4277
          %v9407 = vunpack.c.l.b16 %v4278
          %v9408 = vunpack.c.h.b16 %v4278
          %v9409 = vunpack.c.l.b16 %v4279
          %v9410 = vunpack.c.h.b16 %v4279
          %v9411 = vunpack.c.l.b16 %v4280
          %v9412 = vunpack.c.h.b16 %v4280
          %v9413 = vunpack.c.l.b16 %v4281
          %v9414 = vunpack.c.h.b16 %v4281
          %v9415 = vunpack.c.l.b16 %v4282
          %v9416 = vunpack.c.h.b16 %v4282
          %v9417 = vunpack.c.l.b16 %v4283
          %v9418 = vunpack.c.h.b16 %v4283
          %v9419 = vunpack.c.l.b16 %v4284
          %v9420 = vunpack.c.h.b16 %v4284
          %v9421 = vunpack.c.l.b16 %v4285
          %v9422 = vunpack.c.h.b16 %v4285
          %v9423 = vunpack.c.l.b16 %v4286
          %v9424 = vunpack.c.h.b16 %v4286
          %v9425 = vunpack.c.l.b16 %v4287
          %v9426 = vunpack.c.h.b16 %v4287
          %v9427 = vunpack.c.l.b16 %v4288
          %v9428 = vunpack.c.h.b16 %v4288
          %v9429 = vunpack.c.l.b16 %v4289
          %v9430 = vunpack.c.h.b16 %v4289
          %v9431 = vunpack.c.l.b16 %v4290
          %v9432 = vunpack.c.h.b16 %v4290
          %v9433 = vunpack.c.l.b16 %v4291
          %v9434 = vunpack.c.h.b16 %v4291
          %v9435 = vunpack.c.l.b16 %v4292
          %v9436 = vunpack.c.h.b16 %v4292
          %v9437 = vunpack.c.l.b16 %v4293
          %v9438 = vunpack.c.h.b16 %v4293
          %v9439 = vunpack.c.l.b16 %v4294
          %v9440 = vunpack.c.h.b16 %v4294
          %v9441 = vunpack.c.l.b16 %v4295
          %v9442 = vunpack.c.h.b16 %v4295
          %v9443 = vunpack.c.l.b16 %v4296
          %v9444 = vunpack.c.h.b16 %v4296
          %v9445 = vunpack.c.l.b16 %v4297
          %v9446 = vunpack.c.h.b16 %v4297
          %v9447 = vunpack.c.l.b16 %v4298
          %v9448 = vunpack.c.h.b16 %v4298
          %v9449 = vunpack.c.l.b16 %v4299
          %v9450 = vunpack.c.h.b16 %v4299
          %v9451 = vunpack.c.l.b16 %v4300
          %v9452 = vunpack.c.h.b16 %v4300
          %v9453 = vunpack.c.l.b16 %v4301
          %v9454 = vunpack.c.h.b16 %v4301
          %v9455 = vunpack.c.l.b16 %v4302
          %v9456 = vunpack.c.h.b16 %v4302
          %v9457 = vunpack.c.l.b16 %v4303
          %v9458 = vunpack.c.h.b16 %v4303
          %v9459 = vunpack.c.l.b16 %v4304
          %v9460 = vunpack.c.h.b16 %v4304
          %v9461 = vunpack.c.l.b16 %v4305
          %v9462 = vunpack.c.h.b16 %v4305
          %v9463 = vunpack.c.l.b16 %v4306
          %v9464 = vunpack.c.h.b16 %v4306
          %v9465 = vunpack.c.l.b16 %v4307
          %v9466 = vunpack.c.h.b16 %v4307
          %v9467 = vunpack.c.l.b16 %v4308
          %v9468 = vunpack.c.h.b16 %v4308
          %v9469 = vunpack.c.l.b16 %v4309
          %v9470 = vunpack.c.h.b16 %v4309
          %v9471 = vunpack.c.l.b16 %v4310
          %v9472 = vunpack.c.h.b16 %v4310
          %v9473 = vunpack.c.l.b16 %v4311
          %v9474 = vunpack.c.h.b16 %v4311
          %v9475 = vunpack.c.l.b16 %v4312
          %v9476 = vunpack.c.h.b16 %v4312
          %v9477 = vunpack.c.l.b16 %v4313
          %v9478 = vunpack.c.h.b16 %v4313
          %v9479 = vunpack.c.l.b16 %v4314
          %v9480 = vunpack.c.h.b16 %v4314
          %v9481 = vunpack.c.l.b16 %v4315
          %v9482 = vunpack.c.h.b16 %v4315
          %v9483 = vunpack.c.l.b16 %v4316
          %v9484 = vunpack.c.h.b16 %v4316
          %v9485 = vunpack.c.l.b16 %v4317
          %v9486 = vunpack.c.h.b16 %v4317
          %v9487 = vunpack.c.l.b16 %v4318
          %v9488 = vunpack.c.h.b16 %v4318
          %v9489 = vunpack.c.l.b16 %v4319
          %v9490 = vunpack.c.h.b16 %v4319
          %v9491 = vunpack.c.l.b16 %v4320
          %v9492 = vunpack.c.h.b16 %v4320
          %v9493 = vunpack.c.l.b16 %v4321
          %v9494 = vunpack.c.h.b16 %v4321
          %v9495 = vunpack.c.l.b16 %v4322
          %v9496 = vunpack.c.h.b16 %v4322
          %v9497 = vunpack.c.l.b16 %v4323
          %v9498 = vunpack.c.h.b16 %v4323
          %v9499 = vunpack.c.l.b16 %v4324
          %v9500 = vunpack.c.h.b16 %v4324
          %v9501 = vunpack.c.l.b16 %v4325
          %v9502 = vunpack.c.h.b16 %v4325
          %v9503 = vunpack.c.l.b16 %v4326
          %v9504 = vunpack.c.h.b16 %v4326
          %v9505 = vunpack.c.l.b16 %v4327
          %v9506 = vunpack.c.h.b16 %v4327
          %v9507 = vunpack.c.l.b16 %v4328
          %v9508 = vunpack.c.h.b16 %v4328
          %v9509 = vunpack.c.l.b16 %v4329
          %v9510 = vunpack.c.h.b16 %v4329
          %v9511 = vunpack.c.l.b16 %v4330
          %v9512 = vunpack.c.h.b16 %v4330
          %v9513 = vunpack.c.l.b16 %v4331
          %v9514 = vunpack.c.h.b16 %v4331
          %v9515 = vunpack.c.l.b16 %v4332
          %v9516 = vunpack.c.h.b16 %v4332
          %v9517 = vunpack.c.l.b16 %v4333
          %v9518 = vunpack.c.h.b16 %v4333
          %v9519 = vunpack.c.l.b16 %v4334
          %v9520 = vunpack.c.h.b16 %v4334
          %v9521 = vunpack.c.l.b16 %v4335
          %v9522 = vunpack.c.h.b16 %v4335
          %v9523 = vunpack.c.l.b16 %v4336
          %v9524 = vunpack.c.h.b16 %v4336
          %v9525 = vunpack.c.l.b16 %v4337
          %v9526 = vunpack.c.h.b16 %v4337
          %v9527 = vunpack.c.l.b16 %v4338
          %v9528 = vunpack.c.h.b16 %v4338
          %v9529 = vunpack.c.l.b16 %v4339
          %v9530 = vunpack.c.h.b16 %v4339
          %v9531 = vunpack.c.l.b16 %v4340
          %v9532 = vunpack.c.h.b16 %v4340
          %v9533 = vunpack.c.l.b16 %v4341
          %v9534 = vunpack.c.h.b16 %v4341
          %v9535 = vunpack.c.l.b16 %v4342
          %v9536 = vunpack.c.h.b16 %v4342
          %v9537 = vunpack.c.l.b16 %v4343
          %v9538 = vunpack.c.h.b16 %v4343
          %v9539 = vunpack.c.l.b16 %v4344
          %v9540 = vunpack.c.h.b16 %v4344
          %v9541 = vunpack.c.l.b16 %v4345
          %v9542 = vunpack.c.h.b16 %v4345
          %v9543 = vunpack.c.l.b16 %v4346
          %v9544 = vunpack.c.h.b16 %v4346
          %v9545 = vunpack.c.l.b16 %v4347
          %v9546 = vunpack.c.h.b16 %v4347
          %v9547 = vunpack.c.l.b16 %v4348
          %v9548 = vunpack.c.h.b16 %v4348
          %v9549 = vunpack.c.l.b16 %v4349
          %v9550 = vunpack.c.h.b16 %v4349
          %v9551 = vunpack.c.l.b16 %v4350
          %v9552 = vunpack.c.h.b16 %v4350
          %v9553 = vunpack.c.l.b16 %v4351
          %v9554 = vunpack.c.h.b16 %v4351
          %v9555 = vunpack.c.l.b16 %v4352
          %v9556 = vunpack.c.h.b16 %v4352
          %v9557 = vunpack.c.l.b16 %v4353
          %v9558 = vunpack.c.h.b16 %v4353
          %v9559 = vunpack.c.l.b16 %v4354
          %v9560 = vunpack.c.h.b16 %v4354
          %v9561 = vunpack.c.l.b16 %v4355
          %v9562 = vunpack.c.h.b16 %v4355
          %v9563 = vunpack.c.l.b16 %v4356
          %v9564 = vunpack.c.h.b16 %v4356
          %v9565 = vunpack.c.l.b16 %v4357
          %v9566 = vunpack.c.h.b16 %v4357
          %v9567 = vunpack.c.l.b16 %v4358
          %v9568 = vunpack.c.h.b16 %v4358
          %v9569 = vunpack.c.l.b16 %v4359
          %v9570 = vunpack.c.h.b16 %v4359
          %v9571 = vunpack.c.l.b16 %v4360
          %v9572 = vunpack.c.h.b16 %v4360
          %v9573 = vunpack.c.l.b16 %v4361
          %v9574 = vunpack.c.h.b16 %v4361
          %v9575 = vunpack.c.l.b16 %v4362
          %v9576 = vunpack.c.h.b16 %v4362
          %v9577 = vunpack.c.l.b16 %v4363
          %v9578 = vunpack.c.h.b16 %v4363
          %v9579 = vunpack.c.l.b16 %v4364
          %v9580 = vunpack.c.h.b16 %v4364
          %v9581 = vunpack.c.l.b16 %v4365
          %v9582 = vunpack.c.h.b16 %v4365
          %v9583 = vunpack.c.l.b16 %v4366
          %v9584 = vunpack.c.h.b16 %v4366
          %v9585 = vunpack.c.l.b16 %v4367
          %v9586 = vunpack.c.h.b16 %v4367
          %v9587 = vunpack.c.l.b16 %v4368
          %v9588 = vunpack.c.h.b16 %v4368
          %v9589 = vunpack.c.l.b16 %v4369
          %v9590 = vunpack.c.h.b16 %v4369
          %v9591 = vunpack.c.l.b16 %v4370
          %v9592 = vunpack.c.h.b16 %v4370
          %v9593 = vunpack.c.l.b16 %v4371
          %v9594 = vunpack.c.h.b16 %v4371
          %v9595 = vunpack.c.l.b16 %v4372
          %v9596 = vunpack.c.h.b16 %v4372
          %v9597 = vunpack.c.l.b16 %v4373
          %v9598 = vunpack.c.h.b16 %v4373
          %v9599 = vunpack.c.l.b16 %v4374
          %v9600 = vunpack.c.h.b16 %v4374
          %v9601 = vunpack.c.l.b16 %v4375
          %v9602 = vunpack.c.h.b16 %v4375
          %v9603 = vunpack.c.l.b16 %v4376
          %v9604 = vunpack.c.h.b16 %v4376
          %v9605 = vunpack.c.l.b16 %v4377
          %v9606 = vunpack.c.h.b16 %v4377
          %v9607 = vunpack.c.l.b16 %v4378
          %v9608 = vunpack.c.h.b16 %v4378
          %v9609 = vunpack.c.l.b16 %v4379
          %v9610 = vunpack.c.h.b16 %v4379
          %v9611 = vunpack.c.l.b16 %v4380
          %v9612 = vunpack.c.h.b16 %v4380
          %v9613 = vunpack.c.l.b16 %v4381
          %v9614 = vunpack.c.h.b16 %v4381
          %v9615 = vunpack.c.l.b16 %v4382
          %v9616 = vunpack.c.h.b16 %v4382
          %v9617 = vunpack.c.l.b16 %v4383
          %v9618 = vunpack.c.h.b16 %v4383
          %v9619 = vunpack.c.l.b16 %v4384
          %v9620 = vunpack.c.h.b16 %v4384
          %v9621 = vunpack.c.l.b16 %v4385
          %v9622 = vunpack.c.h.b16 %v4385
          %v9623 = vunpack.c.l.b16 %v4386
          %v9624 = vunpack.c.h.b16 %v4386
          %v9625 = vunpack.c.l.b16 %v4387
          %v9626 = vunpack.c.h.b16 %v4387
          %v9627 = vunpack.c.l.b16 %v4388
          %v9628 = vunpack.c.h.b16 %v4388
          %v9629 = vunpack.c.l.b16 %v4389
          %v9630 = vunpack.c.h.b16 %v4389
          %v9631 = vunpack.c.l.b16 %v4390
          %v9632 = vunpack.c.h.b16 %v4390
          %v9633 = vunpack.c.l.b16 %v4391
          %v9634 = vunpack.c.h.b16 %v4391
          %v9635 = vunpack.c.l.b16 %v4392
          %v9636 = vunpack.c.h.b16 %v4392
          %v9637 = vunpack.c.l.b16 %v4393
          %v9638 = vunpack.c.h.b16 %v4393
          %v9639 = vunpack.c.l.b16 %v4394
          %v9640 = vunpack.c.h.b16 %v4394
          %v9641 = vunpack.c.l.b16 %v4395
          %v9642 = vunpack.c.h.b16 %v4395
          %v9643 = vunpack.c.l.b16 %v4396
          %v9644 = vunpack.c.h.b16 %v4396
          %v9645 = vunpack.c.l.b16 %v4397
          %v9646 = vunpack.c.h.b16 %v4397
          %v9647 = vunpack.c.l.b16 %v4398
          %v9648 = vunpack.c.h.b16 %v4398
          %v9649 = vunpack.c.l.b16 %v4399
          %v9650 = vunpack.c.h.b16 %v4399
          %v9651 = vunpack.c.l.b16 %v4400
          %v9652 = vunpack.c.h.b16 %v4400
          %v9653 = vunpack.c.l.b16 %v4401
          %v9654 = vunpack.c.h.b16 %v4401
          %v9655 = vunpack.c.l.b16 %v4402
          %v9656 = vunpack.c.h.b16 %v4402
          %v9657 = vunpack.c.l.b16 %v4403
          %v9658 = vunpack.c.h.b16 %v4403
          %v9659 = vunpack.c.l.b16 %v4404
          %v9660 = vunpack.c.h.b16 %v4404
          %v9661 = vunpack.c.l.b16 %v4405
          %v9662 = vunpack.c.h.b16 %v4405
          %v9663 = vunpack.c.l.b16 %v4406
          %v9664 = vunpack.c.h.b16 %v4406
          %v9665 = vunpack.c.l.b16 %v4407
          %v9666 = vunpack.c.h.b16 %v4407
          %v9667 = vunpack.c.l.b16 %v4408
          %v9668 = vunpack.c.h.b16 %v4408
          %v9669 = vunpack.c.l.b16 %v4409
          %v9670 = vunpack.c.h.b16 %v4409
          %v9671 = vunpack.c.l.b16 %v4410
          %v9672 = vunpack.c.h.b16 %v4410
          %v9673 = vunpack.c.l.b16 %v4411
          %v9674 = vunpack.c.h.b16 %v4411
          %v9675 = vunpack.c.l.b16 %v4412
          %v9676 = vunpack.c.h.b16 %v4412
          %v9677 = vunpack.c.l.b16 %v4413
          %v9678 = vunpack.c.h.b16 %v4413
          %v9679 = vunpack.c.l.b16 %v4414
          %v9680 = vunpack.c.h.b16 %v4414
          %v9681 = vunpack.c.l.b16 %v4415
          %v9682 = vunpack.c.h.b16 %v4415
          %v9683 = vunpack.c.l.b16 %v4416
          %v9684 = vunpack.c.h.b16 %v4416
          %v9685 = vunpack.c.l.b16 %v4417
          %v9686 = vunpack.c.h.b16 %v4417
          %v9687 = vunpack.c.l.b16 %v4418
          %v9688 = vunpack.c.h.b16 %v4418
          %v9689 = vunpack.c.l.b16 %v4419
          %v9690 = vunpack.c.h.b16 %v4419
          %v9691 = vunpack.c.l.b16 %v4420
          %v9692 = vunpack.c.h.b16 %v4420
          %v9693 = vunpack.c.l.b16 %v4421
          %v9694 = vunpack.c.h.b16 %v4421
          %v9695 = vunpack.c.l.b16 %v4422
          %v9696 = vunpack.c.h.b16 %v4422
          %v9697 = vunpack.c.l.b16 %v4423
          %v9698 = vunpack.c.h.b16 %v4423
          %v9699 = vunpack.c.l.b16 %v4424
          %v9700 = vunpack.c.h.b16 %v4424
          %v9701 = vunpack.c.l.b16 %v4425
          %v9702 = vunpack.c.h.b16 %v4425
          %v9703 = vunpack.c.l.b16 %v4426
          %v9704 = vunpack.c.h.b16 %v4426
          %v9705 = vunpack.c.l.b16 %v4427
          %v9706 = vunpack.c.h.b16 %v4427
          %v9707 = vunpack.c.l.b16 %v4428
          %v9708 = vunpack.c.h.b16 %v4428
          %v9709 = vunpack.c.l.b16 %v4429
          %v9710 = vunpack.c.h.b16 %v4429
          %v9711 = vunpack.c.l.b16 %v4430
          %v9712 = vunpack.c.h.b16 %v4430
          %v9713 = vunpack.c.l.b16 %v4431
          %v9714 = vunpack.c.h.b16 %v4431
          %v9715 = vunpack.c.l.b16 %v4432
          %v9716 = vunpack.c.h.b16 %v4432
          %v9717 = vunpack.c.l.b16 %v4433
          %v9718 = vunpack.c.h.b16 %v4433
          %v9719 = vunpack.c.l.b16 %v4434
          %v9720 = vunpack.c.h.b16 %v4434
          %v9721 = vunpack.c.l.b16 %v4435
          %v9722 = vunpack.c.h.b16 %v4435
          %v9723 = vunpack.c.l.b16 %v4436
          %v9724 = vunpack.c.h.b16 %v4436
          %v9725 = vunpack.c.l.b16 %v4437
          %v9726 = vunpack.c.h.b16 %v4437
          %v9727 = vunpack.c.l.b16 %v4438
          %v9728 = vunpack.c.h.b16 %v4438
          %v9729 = vunpack.c.l.b16 %v4439
          %v9730 = vunpack.c.h.b16 %v4439
          %v9731 = vunpack.c.l.b16 %v4440
          %v9732 = vunpack.c.h.b16 %v4440
          %v9733 = vunpack.c.l.b16 %v4441
          %v9734 = vunpack.c.h.b16 %v4441
          %v9735 = vunpack.c.l.b16 %v4442
          %v9736 = vunpack.c.h.b16 %v4442
          %v9737 = vunpack.c.l.b16 %v4443
          %v9738 = vunpack.c.h.b16 %v4443
          %v9739 = vunpack.c.l.b16 %v4444
          %v9740 = vunpack.c.h.b16 %v4444
          %v9741 = vunpack.c.l.b16 %v4445
          %v9742 = vunpack.c.h.b16 %v4445
          %v9743 = vunpack.c.l.b16 %v4446
          %v9744 = vunpack.c.h.b16 %v4446
          %v9745 = vunpack.c.l.b16 %v4447
          %v9746 = vunpack.c.h.b16 %v4447
          %v9747 = vunpack.c.l.b16 %v4448
          %v9748 = vunpack.c.h.b16 %v4448
          %v9749 = vunpack.c.l.b16 %v4449
          %v9750 = vunpack.c.h.b16 %v4449
          %v9751 = vunpack.c.l.b16 %v4450
          %v9752 = vunpack.c.h.b16 %v4450
          %v9753 = vunpack.c.l.b16 %v4451
          %v9754 = vunpack.c.h.b16 %v4451
          %v9755 = vunpack.c.l.b16 %v4452
          %v9756 = vunpack.c.h.b16 %v4452
          %v9757 = vunpack.c.l.b16 %v4453
          %v9758 = vunpack.c.h.b16 %v4453
          %v9759 = vunpack.c.l.b16 %v4454
          %v9760 = vunpack.c.h.b16 %v4454
          %v9761 = vunpack.c.l.b16 %v4455
          %v9762 = vunpack.c.h.b16 %v4455
          %v9763 = vunpack.c.l.b16 %v4456
          %v9764 = vunpack.c.h.b16 %v4456
          %v9765 = vunpack.c.l.b16 %v4457
          %v9766 = vunpack.c.h.b16 %v4457
          %v9767 = vunpack.c.l.b16 %v4458
          %v9768 = vunpack.c.h.b16 %v4458
          %v9769 = vunpack.c.l.b16 %v4459
          %v9770 = vunpack.c.h.b16 %v4459
          %v9771 = vunpack.c.l.b16 %v4460
          %v9772 = vunpack.c.h.b16 %v4460
          %v9773 = vunpack.c.l.b16 %v4461
          %v9774 = vunpack.c.h.b16 %v4461
          %v9775 = vunpack.c.l.b16 %v4462
          %v9776 = vunpack.c.h.b16 %v4462
          %v9777 = vunpack.c.l.b16 %v4463
          %v9778 = vunpack.c.h.b16 %v4463
          %v9779 = vunpack.c.l.b16 %v4464
          %v9780 = vunpack.c.h.b16 %v4464
          %v9781 = vunpack.c.l.b16 %v4465
          %v9782 = vunpack.c.h.b16 %v4465
          %v9783 = vunpack.c.l.b16 %v4466
          %v9784 = vunpack.c.h.b16 %v4466
          %v9785 = vunpack.c.l.b16 %v4467
          %v9786 = vunpack.c.h.b16 %v4467
          %v9787 = vunpack.c.l.b16 %v4468
          %v9788 = vunpack.c.h.b16 %v4468
          %v9789 = vunpack.c.l.b16 %v4469
          %v9790 = vunpack.c.h.b16 %v4469
          %v9791 = vunpack.c.l.b16 %v4470
          %v9792 = vunpack.c.h.b16 %v4470
          %v9793 = vunpack.c.l.b16 %v4471
          %v9794 = vunpack.c.h.b16 %v4471
          %v9795 = vunpack.c.l.b16 %v4472
          %v9796 = vunpack.c.h.b16 %v4472
          %v9797 = vunpack.c.l.b16 %v4473
          %v9798 = vunpack.c.h.b16 %v4473
          %v9799 = vpack.c.b16 %v8783, %v8775
          %v9800 = vpack.c.b16 %v8784, %v8776
          %v9801 = vpack.c.b16 %v8785, %v8777
          %v9802 = vpack.c.b16 %v8786, %v8778
          %v9803 = vpack.c.b16 %v8787, %v8779
          %v9804 = vpack.c.b16 %v8788, %v8780
          %v9805 = vpack.c.b16 %v8789, %v8781
          %v9806 = vpack.c.b16 %v8790, %v8782
          %v9807 = vpack.c.b16 %v8799, %v8791
          %v9808 = vpack.c.b16 %v8800, %v8792
          %v9809 = vpack.c.b16 %v8801, %v8793
          %v9810 = vpack.c.b16 %v8802, %v8794
          %v9811 = vpack.c.b16 %v8803, %v8795
          %v9812 = vpack.c.b16 %v8804, %v8796
          %v9813 = vpack.c.b16 %v8805, %v8797
          %v9814 = vpack.c.b16 %v8806, %v8798
          %v9815 = vpack.c.b16 %v8815, %v8807
          %v9816 = vpack.c.b16 %v8816, %v8808
          %v9817 = vpack.c.b16 %v8817, %v8809
          %v9818 = vpack.c.b16 %v8818, %v8810
          %v9819 = vpack.c.b16 %v8819, %v8811
          %v9820 = vpack.c.b16 %v8820, %v8812
          %v9821 = vpack.c.b16 %v8821, %v8813
          %v9822 = vpack.c.b16 %v8822, %v8814
          %v9823 = vpack.c.b16 %v8831, %v8823
          %v9824 = vpack.c.b16 %v8832, %v8824
          %v9825 = vpack.c.b16 %v8833, %v8825
          %v9826 = vpack.c.b16 %v8834, %v8826
          %v9827 = vpack.c.b16 %v8835, %v8827
          %v9828 = vpack.c.b16 %v8836, %v8828
          %v9829 = vpack.c.b16 %v8837, %v8829
          %v9830 = vpack.c.b16 %v8838, %v8830
          %v9831 = vpack.c.b16 %v8847, %v8839
          %v9832 = vpack.c.b16 %v8848, %v8840
          %v9833 = vpack.c.b16 %v8849, %v8841
          %v9834 = vpack.c.b16 %v8850, %v8842
          %v9835 = vpack.c.b16 %v8851, %v8843
          %v9836 = vpack.c.b16 %v8852, %v8844
          %v9837 = vpack.c.b16 %v8853, %v8845
          %v9838 = vpack.c.b16 %v8854, %v8846
          %v9839 = vpack.c.b16 %v8863, %v8855
          %v9840 = vpack.c.b16 %v8864, %v8856
          %v9841 = vpack.c.b16 %v8865, %v8857
          %v9842 = vpack.c.b16 %v8866, %v8858
          %v9843 = vpack.c.b16 %v8867, %v8859
          %v9844 = vpack.c.b16 %v8868, %v8860
          %v9845 = vpack.c.b16 %v8869, %v8861
          %v9846 = vpack.c.b16 %v8870, %v8862
          %v9847 = vpack.c.b16 %v8879, %v8871
          %v9848 = vpack.c.b16 %v8880, %v8872
          %v9849 = vpack.c.b16 %v8881, %v8873
          %v9850 = vpack.c.b16 %v8882, %v8874
          %v9851 = vpack.c.b16 %v8883, %v8875
          %v9852 = vpack.c.b16 %v8884, %v8876
          %v9853 = vpack.c.b16 %v8885, %v8877
          %v9854 = vpack.c.b16 %v8886, %v8878
          %v9855 = vpack.c.b16 %v8895, %v8887
          %v9856 = vpack.c.b16 %v8896, %v8888
          %v9857 = vpack.c.b16 %v8897, %v8889
          %v9858 = vpack.c.b16 %v8898, %v8890
          %v9859 = vpack.c.b16 %v8899, %v8891
          %v9860 = vpack.c.b16 %v8900, %v8892
          %v9861 = vpack.c.b16 %v8901, %v8893
          %v9862 = vpack.c.b16 %v8902, %v8894
          %v9863 = vpack.c.b16 %v8911, %v8903
          %v9864 = vpack.c.b16 %v8912, %v8904
          %v9865 = vpack.c.b16 %v8913, %v8905
          %v9866 = vpack.c.b16 %v8914, %v8906
          %v9867 = vpack.c.b16 %v8915, %v8907
          %v9868 = vpack.c.b16 %v8916, %v8908
          %v9869 = vpack.c.b16 %v8917, %v8909
          %v9870 = vpack.c.b16 %v8918, %v8910
          %v9871 = vpack.c.b16 %v8927, %v8919
          %v9872 = vpack.c.b16 %v8928, %v8920
          %v9873 = vpack.c.b16 %v8929, %v8921
          %v9874 = vpack.c.b16 %v8930, %v8922
          %v9875 = vpack.c.b16 %v8931, %v8923
          %v9876 = vpack.c.b16 %v8932, %v8924
          %v9877 = vpack.c.b16 %v8933, %v8925
          %v9878 = vpack.c.b16 %v8934, %v8926
          %v9879 = vpack.c.b16 %v8943, %v8935
          %v9880 = vpack.c.b16 %v8944, %v8936
          %v9881 = vpack.c.b16 %v8945, %v8937
          %v9882 = vpack.c.b16 %v8946, %v8938
          %v9883 = vpack.c.b16 %v8947, %v8939
          %v9884 = vpack.c.b16 %v8948, %v8940
          %v9885 = vpack.c.b16 %v8949, %v8941
          %v9886 = vpack.c.b16 %v8950, %v8942
          %v9887 = vpack.c.b16 %v8959, %v8951
          %v9888 = vpack.c.b16 %v8960, %v8952
          %v9889 = vpack.c.b16 %v8961, %v8953
          %v9890 = vpack.c.b16 %v8962, %v8954
          %v9891 = vpack.c.b16 %v8963, %v8955
          %v9892 = vpack.c.b16 %v8964, %v8956
          %v9893 = vpack.c.b16 %v8965, %v8957
          %v9894 = vpack.c.b16 %v8966, %v8958
          %v9895 = vpack.c.b16 %v8975, %v8967
          %v9896 = vpack.c.b16 %v8976, %v8968
          %v9897 = vpack.c.b16 %v8977, %v8969
          %v9898 = vpack.c.b16 %v8978, %v8970
          %v9899 = vpack.c.b16 %v8979, %v8971
          %v9900 = vpack.c.b16 %v8980, %v8972
          %v9901 = vpack.c.b16 %v8981, %v8973
          %v9902 = vpack.c.b16 %v8982, %v8974
          %v9903 = vpack.c.b16 %v8991, %v8983
          %v9904 = vpack.c.b16 %v8992, %v8984
          %v9905 = vpack.c.b16 %v8993, %v8985
          %v9906 = vpack.c.b16 %v8994, %v8986
          %v9907 = vpack.c.b16 %v8995, %v8987
          %v9908 = vpack.c.b16 %v8996, %v8988
          %v9909 = vpack.c.b16 %v8997, %v8989
          %v9910 = vpack.c.b16 %v8998, %v8990
          %v9911 = vpack.c.b16 %v9007, %v8999
          %v9912 = vpack.c.b16 %v9008, %v9000
          %v9913 = vpack.c.b16 %v9009, %v9001
          %v9914 = vpack.c.b16 %v9010, %v9002
          %v9915 = vpack.c.b16 %v9011, %v9003
          %v9916 = vpack.c.b16 %v9012, %v9004
          %v9917 = vpack.c.b16 %v9013, %v9005
          %v9918 = vpack.c.b16 %v9014, %v9006
          %v9919 = vpack.c.b16 %v9023, %v9015
          %v9920 = vpack.c.b16 %v9024, %v9016
          %v9921 = vpack.c.b16 %v9025, %v9017
          %v9922 = vpack.c.b16 %v9026, %v9018
          %v9923 = vpack.c.b16 %v9027, %v9019
          %v9924 = vpack.c.b16 %v9028, %v9020
          %v9925 = vpack.c.b16 %v9029, %v9021
          %v9926 = vpack.c.b16 %v9030, %v9022
          %v9927 = vpack.c.b16 %v9039, %v9031
          %v9928 = vpack.c.b16 %v9040, %v9032
          %v9929 = vpack.c.b16 %v9041, %v9033
          %v9930 = vpack.c.b16 %v9042, %v9034
          %v9931 = vpack.c.b16 %v9043, %v9035
          %v9932 = vpack.c.b16 %v9044, %v9036
          %v9933 = vpack.c.b16 %v9045, %v9037
          %v9934 = vpack.c.b16 %v9046, %v9038
          %v9935 = vpack.c.b16 %v9055, %v9047
          %v9936 = vpack.c.b16 %v9056, %v9048
          %v9937 = vpack.c.b16 %v9057, %v9049
          %v9938 = vpack.c.b16 %v9058, %v9050
          %v9939 = vpack.c.b16 %v9059, %v9051
          %v9940 = vpack.c.b16 %v9060, %v9052
          %v9941 = vpack.c.b16 %v9061, %v9053
          %v9942 = vpack.c.b16 %v9062, %v9054
          %v9943 = vpack.c.b16 %v9071, %v9063
          %v9944 = vpack.c.b16 %v9072, %v9064
          %v9945 = vpack.c.b16 %v9073, %v9065
          %v9946 = vpack.c.b16 %v9074, %v9066
          %v9947 = vpack.c.b16 %v9075, %v9067
          %v9948 = vpack.c.b16 %v9076, %v9068
          %v9949 = vpack.c.b16 %v9077, %v9069
          %v9950 = vpack.c.b16 %v9078, %v9070
          %v9951 = vpack.c.b16 %v9087, %v9079
          %v9952 = vpack.c.b16 %v9088, %v9080
          %v9953 = vpack.c.b16 %v9089, %v9081
          %v9954 = vpack.c.b16 %v9090, %v9082
          %v9955 = vpack.c.b16 %v9091, %v9083
          %v9956 = vpack.c.b16 %v9092, %v9084
          %v9957 = vpack.c.b16 %v9093, %v9085
          %v9958 = vpack.c.b16 %v9094, %v9086
          %v9959 = vpack.c.b16 %v9103, %v9095
          %v9960 = vpack.c.b16 %v9104, %v9096
          %v9961 = vpack.c.b16 %v9105, %v9097
          %v9962 = vpack.c.b16 %v9106, %v9098
          %v9963 = vpack.c.b16 %v9107, %v9099
          %v9964 = vpack.c.b16 %v9108, %v9100
          %v9965 = vpack.c.b16 %v9109, %v9101
          %v9966 = vpack.c.b16 %v9110, %v9102
          %v9967 = vpack.c.b16 %v9119, %v9111
          %v9968 = vpack.c.b16 %v9120, %v9112
          %v9969 = vpack.c.b16 %v9121, %v9113
          %v9970 = vpack.c.b16 %v9122, %v9114
          %v9971 = vpack.c.b16 %v9123, %v9115
          %v9972 = vpack.c.b16 %v9124, %v9116
          %v9973 = vpack.c.b16 %v9125, %v9117
          %v9974 = vpack.c.b16 %v9126, %v9118
          %v9975 = vpack.c.b16 %v9135, %v9127
          %v9976 = vpack.c.b16 %v9136, %v9128
          %v9977 = vpack.c.b16 %v9137, %v9129
          %v9978 = vpack.c.b16 %v9138, %v9130
          %v9979 = vpack.c.b16 %v9139, %v9131
          %v9980 = vpack.c.b16 %v9140, %v9132
          %v9981 = vpack.c.b16 %v9141, %v9133
          %v9982 = vpack.c.b16 %v9142, %v9134
          %v9983 = vpack.c.b16 %v9151, %v9143
          %v9984 = vpack.c.b16 %v9152, %v9144
          %v9985 = vpack.c.b16 %v9153, %v9145
          %v9986 = vpack.c.b16 %v9154, %v9146
          %v9987 = vpack.c.b16 %v9155, %v9147
          %v9988 = vpack.c.b16 %v9156, %v9148
          %v9989 = vpack.c.b16 %v9157, %v9149
          %v9990 = vpack.c.b16 %v9158, %v9150
          %v9991 = vpack.c.b16 %v9167, %v9159
          %v9992 = vpack.c.b16 %v9168, %v9160
          %v9993 = vpack.c.b16 %v9169, %v9161
          %v9994 = vpack.c.b16 %v9170, %v9162
          %v9995 = vpack.c.b16 %v9171, %v9163
          %v9996 = vpack.c.b16 %v9172, %v9164
          %v9997 = vpack.c.b16 %v9173, %v9165
          %v9998 = vpack.c.b16 %v9174, %v9166
          %v9999 = vpack.c.b16 %v9183, %v9175
          %v10000 = vpack.c.b16 %v9184, %v9176
          %v10001 = vpack.c.b16 %v9185, %v9177
          %v10002 = vpack.c.b16 %v9186, %v9178
          %v10003 = vpack.c.b16 %v9187, %v9179
          %v10004 = vpack.c.b16 %v9188, %v9180
          %v10005 = vpack.c.b16 %v9189, %v9181
          %v10006 = vpack.c.b16 %v9190, %v9182
          %v10007 = vpack.c.b16 %v9199, %v9191
          %v10008 = vpack.c.b16 %v9200, %v9192
          %v10009 = vpack.c.b16 %v9201, %v9193
          %v10010 = vpack.c.b16 %v9202, %v9194
          %v10011 = vpack.c.b16 %v9203, %v9195
          %v10012 = vpack.c.b16 %v9204, %v9196
          %v10013 = vpack.c.b16 %v9205, %v9197
          %v10014 = vpack.c.b16 %v9206, %v9198
          %v10015 = vpack.c.b16 %v9215, %v9207
          %v10016 = vpack.c.b16 %v9216, %v9208
          %v10017 = vpack.c.b16 %v9217, %v9209
          %v10018 = vpack.c.b16 %v9218, %v9210
          %v10019 = vpack.c.b16 %v9219, %v9211
          %v10020 = vpack.c.b16 %v9220, %v9212
          %v10021 = vpack.c.b16 %v9221, %v9213
          %v10022 = vpack.c.b16 %v9222, %v9214
          %v10023 = vpack.c.b16 %v9231, %v9223
          %v10024 = vpack.c.b16 %v9232, %v9224
          %v10025 = vpack.c.b16 %v9233, %v9225
          %v10026 = vpack.c.b16 %v9234, %v9226
          %v10027 = vpack.c.b16 %v9235, %v9227
          %v10028 = vpack.c.b16 %v9236, %v9228
          %v10029 = vpack.c.b16 %v9237, %v9229
          %v10030 = vpack.c.b16 %v9238, %v9230
          %v10031 = vpack.c.b16 %v9247, %v9239
          %v10032 = vpack.c.b16 %v9248, %v9240
          %v10033 = vpack.c.b16 %v9249, %v9241
          %v10034 = vpack.c.b16 %v9250, %v9242
          %v10035 = vpack.c.b16 %v9251, %v9243
          %v10036 = vpack.c.b16 %v9252, %v9244
          %v10037 = vpack.c.b16 %v9253, %v9245
          %v10038 = vpack.c.b16 %v9254, %v9246
          %v10039 = vpack.c.b16 %v9263, %v9255
          %v10040 = vpack.c.b16 %v9264, %v9256
          %v10041 = vpack.c.b16 %v9265, %v9257
          %v10042 = vpack.c.b16 %v9266, %v9258
          %v10043 = vpack.c.b16 %v9267, %v9259
          %v10044 = vpack.c.b16 %v9268, %v9260
          %v10045 = vpack.c.b16 %v9269, %v9261
          %v10046 = vpack.c.b16 %v9270, %v9262
          %v10047 = vpack.c.b16 %v9279, %v9271
          %v10048 = vpack.c.b16 %v9280, %v9272
          %v10049 = vpack.c.b16 %v9281, %v9273
          %v10050 = vpack.c.b16 %v9282, %v9274
          %v10051 = vpack.c.b16 %v9283, %v9275
          %v10052 = vpack.c.b16 %v9284, %v9276
          %v10053 = vpack.c.b16 %v9285, %v9277
          %v10054 = vpack.c.b16 %v9286, %v9278
          %v10055 = vpack.c.b16 %v9295, %v9287
          %v10056 = vpack.c.b16 %v9296, %v9288
          %v10057 = vpack.c.b16 %v9297, %v9289
          %v10058 = vpack.c.b16 %v9298, %v9290
          %v10059 = vpack.c.b16 %v9299, %v9291
          %v10060 = vpack.c.b16 %v9300, %v9292
          %v10061 = vpack.c.b16 %v9301, %v9293
          %v10062 = vpack.c.b16 %v9302, %v9294
          %v10063 = vpack.c.b16 %v9311, %v9303
          %v10064 = vpack.c.b16 %v9312, %v9304
          %v10065 = vpack.c.b16 %v9313, %v9305
          %v10066 = vpack.c.b16 %v9314, %v9306
          %v10067 = vpack.c.b16 %v9315, %v9307
          %v10068 = vpack.c.b16 %v9316, %v9308
          %v10069 = vpack.c.b16 %v9317, %v9309
          %v10070 = vpack.c.b16 %v9318, %v9310
          %v10071 = vpack.c.b16 %v9327, %v9319
          %v10072 = vpack.c.b16 %v9328, %v9320
          %v10073 = vpack.c.b16 %v9329, %v9321
          %v10074 = vpack.c.b16 %v9330, %v9322
          %v10075 = vpack.c.b16 %v9331, %v9323
          %v10076 = vpack.c.b16 %v9332, %v9324
          %v10077 = vpack.c.b16 %v9333, %v9325
          %v10078 = vpack.c.b16 %v9334, %v9326
          %v10079 = vpack.c.b16 %v9343, %v9335
          %v10080 = vpack.c.b16 %v9344, %v9336
          %v10081 = vpack.c.b16 %v9345, %v9337
          %v10082 = vpack.c.b16 %v9346, %v9338
          %v10083 = vpack.c.b16 %v9347, %v9339
          %v10084 = vpack.c.b16 %v9348, %v9340
          %v10085 = vpack.c.b16 %v9349, %v9341
          %v10086 = vpack.c.b16 %v9350, %v9342
          %v10087 = vpack.c.b16 %v9359, %v9351
          %v10088 = vpack.c.b16 %v9360, %v9352
          %v10089 = vpack.c.b16 %v9361, %v9353
          %v10090 = vpack.c.b16 %v9362, %v9354
          %v10091 = vpack.c.b16 %v9363, %v9355
          %v10092 = vpack.c.b16 %v9364, %v9356
          %v10093 = vpack.c.b16 %v9365, %v9357
          %v10094 = vpack.c.b16 %v9366, %v9358
          %v10095 = vpack.c.b16 %v9375, %v9367
          %v10096 = vpack.c.b16 %v9376, %v9368
          %v10097 = vpack.c.b16 %v9377, %v9369
          %v10098 = vpack.c.b16 %v9378, %v9370
          %v10099 = vpack.c.b16 %v9379, %v9371
          %v10100 = vpack.c.b16 %v9380, %v9372
          %v10101 = vpack.c.b16 %v9381, %v9373
          %v10102 = vpack.c.b16 %v9382, %v9374
          %v10103 = vpack.c.b16 %v9391, %v9383
          %v10104 = vpack.c.b16 %v9392, %v9384
          %v10105 = vpack.c.b16 %v9393, %v9385
          %v10106 = vpack.c.b16 %v9394, %v9386
          %v10107 = vpack.c.b16 %v9395, %v9387
          %v10108 = vpack.c.b16 %v9396, %v9388
          %v10109 = vpack.c.b16 %v9397, %v9389
          %v10110 = vpack.c.b16 %v9398, %v9390
          %v10111 = vpack.c.b16 %v9407, %v9399
          %v10112 = vpack.c.b16 %v9408, %v9400
          %v10113 = vpack.c.b16 %v9409, %v9401
          %v10114 = vpack.c.b16 %v9410, %v9402
          %v10115 = vpack.c.b16 %v9411, %v9403
          %v10116 = vpack.c.b16 %v9412, %v9404
          %v10117 = vpack.c.b16 %v9413, %v9405
          %v10118 = vpack.c.b16 %v9414, %v9406
          %v10119 = vpack.c.b16 %v9423, %v9415
          %v10120 = vpack.c.b16 %v9424, %v9416
          %v10121 = vpack.c.b16 %v9425, %v9417
          %v10122 = vpack.c.b16 %v9426, %v9418
          %v10123 = vpack.c.b16 %v9427, %v9419
          %v10124 = vpack.c.b16 %v9428, %v9420
          %v10125 = vpack.c.b16 %v9429, %v9421
          %v10126 = vpack.c.b16 %v9430, %v9422
          %v10127 = vpack.c.b16 %v9439, %v9431
          %v10128 = vpack.c.b16 %v9440, %v9432
          %v10129 = vpack.c.b16 %v9441, %v9433
          %v10130 = vpack.c.b16 %v9442, %v9434
          %v10131 = vpack.c.b16 %v9443, %v9435
          %v10132 = vpack.c.b16 %v9444, %v9436
          %v10133 = vpack.c.b16 %v9445, %v9437
          %v10134 = vpack.c.b16 %v9446, %v9438
          %v10135 = vpack.c.b16 %v9455, %v9447
          %v10136 = vpack.c.b16 %v9456, %v9448
          %v10137 = vpack.c.b16 %v9457, %v9449
          %v10138 = vpack.c.b16 %v9458, %v9450
          %v10139 = vpack.c.b16 %v9459, %v9451
          %v10140 = vpack.c.b16 %v9460, %v9452
          %v10141 = vpack.c.b16 %v9461, %v9453
          %v10142 = vpack.c.b16 %v9462, %v9454
          %v10143 = vpack.c.b16 %v9471, %v9463
          %v10144 = vpack.c.b16 %v9472, %v9464
          %v10145 = vpack.c.b16 %v9473, %v9465
          %v10146 = vpack.c.b16 %v9474, %v9466
          %v10147 = vpack.c.b16 %v9475, %v9467
          %v10148 = vpack.c.b16 %v9476, %v9468
          %v10149 = vpack.c.b16 %v9477, %v9469
          %v10150 = vpack.c.b16 %v9478, %v9470
          %v10151 = vpack.c.b16 %v9487, %v9479
          %v10152 = vpack.c.b16 %v9488, %v9480
          %v10153 = vpack.c.b16 %v9489, %v9481
          %v10154 = vpack.c.b16 %v9490, %v9482
          %v10155 = vpack.c.b16 %v9491, %v9483
          %v10156 = vpack.c.b16 %v9492, %v9484
          %v10157 = vpack.c.b16 %v9493, %v9485
          %v10158 = vpack.c.b16 %v9494, %v9486
          %v10159 = vpack.c.b16 %v9503, %v9495
          %v10160 = vpack.c.b16 %v9504, %v9496
          %v10161 = vpack.c.b16 %v9505, %v9497
          %v10162 = vpack.c.b16 %v9506, %v9498
          %v10163 = vpack.c.b16 %v9507, %v9499
          %v10164 = vpack.c.b16 %v9508, %v9500
          %v10165 = vpack.c.b16 %v9509, %v9501
          %v10166 = vpack.c.b16 %v9510, %v9502
          %v10167 = vpack.c.b16 %v9519, %v9511
          %v10168 = vpack.c.b16 %v9520, %v9512
          %v10169 = vpack.c.b16 %v9521, %v9513
          %v10170 = vpack.c.b16 %v9522, %v9514
          %v10171 = vpack.c.b16 %v9523, %v9515
          %v10172 = vpack.c.b16 %v9524, %v9516
          %v10173 = vpack.c.b16 %v9525, %v9517
          %v10174 = vpack.c.b16 %v9526, %v9518
          %v10175 = vpack.c.b16 %v9535, %v9527
          %v10176 = vpack.c.b16 %v9536, %v9528
          %v10177 = vpack.c.b16 %v9537, %v9529
          %v10178 = vpack.c.b16 %v9538, %v9530
          %v10179 = vpack.c.b16 %v9539, %v9531
          %v10180 = vpack.c.b16 %v9540, %v9532
          %v10181 = vpack.c.b16 %v9541, %v9533
          %v10182 = vpack.c.b16 %v9542, %v9534
          %v10183 = vpack.c.b16 %v9551, %v9543
          %v10184 = vpack.c.b16 %v9552, %v9544
          %v10185 = vpack.c.b16 %v9553, %v9545
          %v10186 = vpack.c.b16 %v9554, %v9546
          %v10187 = vpack.c.b16 %v9555, %v9547
          %v10188 = vpack.c.b16 %v9556, %v9548
          %v10189 = vpack.c.b16 %v9557, %v9549
          %v10190 = vpack.c.b16 %v9558, %v9550
          %v10191 = vpack.c.b16 %v9567, %v9559
          %v10192 = vpack.c.b16 %v9568, %v9560
          %v10193 = vpack.c.b16 %v9569, %v9561
          %v10194 = vpack.c.b16 %v9570, %v9562
          %v10195 = vpack.c.b16 %v9571, %v9563
          %v10196 = vpack.c.b16 %v9572, %v9564
          %v10197 = vpack.c.b16 %v9573, %v9565
          %v10198 = vpack.c.b16 %v9574, %v9566
          %v10199 = vpack.c.b16 %v9583, %v9575
          %v10200 = vpack.c.b16 %v9584, %v9576
          %v10201 = vpack.c.b16 %v9585, %v9577
          %v10202 = vpack.c.b16 %v9586, %v9578
          %v10203 = vpack.c.b16 %v9587, %v9579
          %v10204 = vpack.c.b16 %v9588, %v9580
          %v10205 = vpack.c.b16 %v9589, %v9581
          %v10206 = vpack.c.b16 %v9590, %v9582
          %v10207 = vpack.c.b16 %v9599, %v9591
          %v10208 = vpack.c.b16 %v9600, %v9592
          %v10209 = vpack.c.b16 %v9601, %v9593
          %v10210 = vpack.c.b16 %v9602, %v9594
          %v10211 = vpack.c.b16 %v9603, %v9595
          %v10212 = vpack.c.b16 %v9604, %v9596
          %v10213 = vpack.c.b16 %v9605, %v9597
          %v10214 = vpack.c.b16 %v9606, %v9598
          %v10215 = vpack.c.b16 %v9615, %v9607
          %v10216 = vpack.c.b16 %v9616, %v9608
          %v10217 = vpack.c.b16 %v9617, %v9609
          %v10218 = vpack.c.b16 %v9618, %v9610
          %v10219 = vpack.c.b16 %v9619, %v9611
          %v10220 = vpack.c.b16 %v9620, %v9612
          %v10221 = vpack.c.b16 %v9621, %v9613
          %v10222 = vpack.c.b16 %v9622, %v9614
          %v10223 = vpack.c.b16 %v9631, %v9623
          %v10224 = vpack.c.b16 %v9632, %v9624
          %v10225 = vpack.c.b16 %v9633, %v9625
          %v10226 = vpack.c.b16 %v9634, %v9626
          %v10227 = vpack.c.b16 %v9635, %v9627
          %v10228 = vpack.c.b16 %v9636, %v9628
          %v10229 = vpack.c.b16 %v9637, %v9629
          %v10230 = vpack.c.b16 %v9638, %v9630
          %v10231 = vpack.c.b16 %v9647, %v9639
          %v10232 = vpack.c.b16 %v9648, %v9640
          %v10233 = vpack.c.b16 %v9649, %v9641
          %v10234 = vpack.c.b16 %v9650, %v9642
          %v10235 = vpack.c.b16 %v9651, %v9643
          %v10236 = vpack.c.b16 %v9652, %v9644
          %v10237 = vpack.c.b16 %v9653, %v9645
          %v10238 = vpack.c.b16 %v9654, %v9646
          %v10239 = vpack.c.b16 %v9663, %v9655
          %v10240 = vpack.c.b16 %v9664, %v9656
          %v10241 = vpack.c.b16 %v9665, %v9657
          %v10242 = vpack.c.b16 %v9666, %v9658
          %v10243 = vpack.c.b16 %v9667, %v9659
          %v10244 = vpack.c.b16 %v9668, %v9660
          %v10245 = vpack.c.b16 %v9669, %v9661
          %v10246 = vpack.c.b16 %v9670, %v9662
          %v10247 = vpack.c.b16 %v9679, %v9671
          %v10248 = vpack.c.b16 %v9680, %v9672
          %v10249 = vpack.c.b16 %v9681, %v9673
          %v10250 = vpack.c.b16 %v9682, %v9674
          %v10251 = vpack.c.b16 %v9683, %v9675
          %v10252 = vpack.c.b16 %v9684, %v9676
          %v10253 = vpack.c.b16 %v9685, %v9677
          %v10254 = vpack.c.b16 %v9686, %v9678
          %v10255 = vpack.c.b16 %v9695, %v9687
          %v10256 = vpack.c.b16 %v9696, %v9688
          %v10257 = vpack.c.b16 %v9697, %v9689
          %v10258 = vpack.c.b16 %v9698, %v9690
          %v10259 = vpack.c.b16 %v9699, %v9691
          %v10260 = vpack.c.b16 %v9700, %v9692
          %v10261 = vpack.c.b16 %v9701, %v9693
          %v10262 = vpack.c.b16 %v9702, %v9694
          %v10263 = vpack.c.b16 %v9711, %v9703
          %v10264 = vpack.c.b16 %v9712, %v9704
          %v10265 = vpack.c.b16 %v9713, %v9705
          %v10266 = vpack.c.b16 %v9714, %v9706
          %v10267 = vpack.c.b16 %v9715, %v9707
          %v10268 = vpack.c.b16 %v9716, %v9708
          %v10269 = vpack.c.b16 %v9717, %v9709
          %v10270 = vpack.c.b16 %v9718, %v9710
          %v10271 = vpack.c.b16 %v9727, %v9719
          %v10272 = vpack.c.b16 %v9728, %v9720
          %v10273 = vpack.c.b16 %v9729, %v9721
          %v10274 = vpack.c.b16 %v9730, %v9722
          %v10275 = vpack.c.b16 %v9731, %v9723
          %v10276 = vpack.c.b16 %v9732, %v9724
          %v10277 = vpack.c.b16 %v9733, %v9725
          %v10278 = vpack.c.b16 %v9734, %v9726
          %v10279 = vpack.c.b16 %v9743, %v9735
          %v10280 = vpack.c.b16 %v9744, %v9736
          %v10281 = vpack.c.b16 %v9745, %v9737
          %v10282 = vpack.c.b16 %v9746, %v9738
          %v10283 = vpack.c.b16 %v9747, %v9739
          %v10284 = vpack.c.b16 %v9748, %v9740
          %v10285 = vpack.c.b16 %v9749, %v9741
          %v10286 = vpack.c.b16 %v9750, %v9742
          %v10287 = vpack.c.b16 %v9759, %v9751
          %v10288 = vpack.c.b16 %v9760, %v9752
          %v10289 = vpack.c.b16 %v9761, %v9753
          %v10290 = vpack.c.b16 %v9762, %v9754
          %v10291 = vpack.c.b16 %v9763, %v9755
          %v10292 = vpack.c.b16 %v9764, %v9756
          %v10293 = vpack.c.b16 %v9765, %v9757
          %v10294 = vpack.c.b16 %v9766, %v9758
          %v10295 = vpack.c.b16 %v9775, %v9767
          %v10296 = vpack.c.b16 %v9776, %v9768
          %v10297 = vpack.c.b16 %v9777, %v9769
          %v10298 = vpack.c.b16 %v9778, %v9770
          %v10299 = vpack.c.b16 %v9779, %v9771
          %v10300 = vpack.c.b16 %v9780, %v9772
          %v10301 = vpack.c.b16 %v9781, %v9773
          %v10302 = vpack.c.b16 %v9782, %v9774
          %v10303 = vpack.c.b16 %v9791, %v9783
          %v10304 = vpack.c.b16 %v9792, %v9784
          %v10305 = vpack.c.b16 %v9793, %v9785
          %v10306 = vpack.c.b16 %v9794, %v9786
          %v10307 = vpack.c.b16 %v9795, %v9787
          %v10308 = vpack.c.b16 %v9796, %v9788
          %v10309 = vpack.c.b16 %v9797, %v9789
          %v10310 = vpack.c.b16 %v9798, %v9790
          %10823 = vmatprep.subr.bf16.mxu0 %v9800
          %10824 = vmatpush1.bf16.msra.mxu0 %v9799
          %10825 = vmatprep.subr.bf16.mxu0 %v9808
          %10826 = vmatpush1.bf16.msra.mxu0 %v9807
          %10827 = vmatprep.subr.bf16.mxu0 %v9816
          %10828 = vmatpush1.bf16.msra.mxu0 %v9815
          %10829 = vmatprep.subr.bf16.mxu0 %v9824
          %10830 = vmatpush1.bf16.msra.mxu0 %v9823
          %10831 = vmatprep.subr.bf16.mxu0 %v9832
          %10832 = vmatpush1.bf16.msra.mxu0 %v9831
          %10833 = vmatprep.subr.bf16.mxu0 %v9840
          %10834 = vmatpush1.bf16.msra.mxu0 %v9839
          %10835 = vmatprep.subr.bf16.mxu0 %v9848
          %10836 = vmatpush1.bf16.msra.mxu0 %v9847
          %10837 = vmatprep.subr.bf16.mxu0 %v9856
          %10838 = vmatpush1.bf16.msra.mxu0 %v9855
          %10839 = vmatprep.subr.bf16.mxu0 %v9864
          %10840 = vmatpush1.bf16.msra.mxu0 %v9863
          %10841 = vmatprep.subr.bf16.mxu0 %v9872
          %10842 = vmatpush1.bf16.msra.mxu0 %v9871
          %10843 = vmatprep.subr.bf16.mxu0 %v9880
          %10844 = vmatpush1.bf16.msra.mxu0 %v9879
          %10845 = vmatprep.subr.bf16.mxu0 %v9888
          %10846 = vmatpush1.bf16.msra.mxu0 %v9887
          %10847 = vmatprep.subr.bf16.mxu0 %v9896
          %10848 = vmatpush1.bf16.msra.mxu0 %v9895
          %10849 = vmatprep.subr.bf16.mxu0 %v9904
          %10850 = vmatpush1.bf16.msra.mxu0 %v9903
          %10851 = vmatprep.subr.bf16.mxu0 %v9912
          %10852 = vmatpush1.bf16.msra.mxu0 %v9911
          %10853 = vmatprep.subr.bf16.mxu0 %v9920
          %10854 = vmatpush1.bf16.msra.mxu0 %v9919
          %10855 = vmatprep.mubr.bf16.mxu0 %v8248
          %10856 = vmatmul.mubr.bf16.gmra.mrb[0].mxu0 %v8247
          %v10857 = vpop.f32.mrb[0].mxu0
          %v10858 = vadd.f32 %v7737, %v10857
          %v10859 = vpop.f32.mrb[0].mxu0
          %v10860 = vadd.f32 %v7739, %v10859
          %v10861 = vpop.f32.mrb[0].mxu0
          %v10862 = vpop.f32.mrb[0].mxu0
          %10863 = vdwg.mxu0
          %10864 = vmatprep.subr.bf16.mxu0 %v9928
          %10865 = vmatpush1.bf16.msra.mxu0 %v9927
          %10866 = vmatprep.subr.bf16.mxu0 %v9936
          %10867 = vmatpush1.bf16.msra.mxu0 %v9935
          %10868 = vmatprep.subr.bf16.mxu0 %v9944
          %10869 = vmatpush1.bf16.msra.mxu0 %v9943
          %10870 = vmatprep.subr.bf16.mxu0 %v9952
          %10871 = vmatpush1.bf16.msra.mxu0 %v9951
          %10872 = vmatprep.subr.bf16.mxu0 %v9960
          %10873 = vmatpush1.bf16.msra.mxu0 %v9959
          %10874 = vmatprep.subr.bf16.mxu0 %v9968
          %10875 = vmatpush1.bf16.msra.mxu0 %v9967
          %10876 = vmatprep.subr.bf16.mxu0 %v9976
          %10877 = vmatpush1.bf16.msra.mxu0 %v9975
          %10878 = vmatprep.subr.bf16.mxu0 %v9984
          %10879 = vmatpush1.bf16.msra.mxu0 %v9983
          %10880 = vmatprep.subr.bf16.mxu0 %v9992
          %10881 = vmatpush1.bf16.msra.mxu0 %v9991
          %10882 = vmatprep.subr.bf16.mxu0 %v10000
          %10883 = vmatpush1.bf16.msra.mxu0 %v9999
          %10884 = vmatprep.subr.bf16.mxu0 %v10008
          %10885 = vmatpush1.bf16.msra.mxu0 %v10007
          %10886 = vmatprep.subr.bf16.mxu0 %v10016
          %10887 = vmatpush1.bf16.msra.mxu0 %v10015
          %10888 = vmatprep.subr.bf16.mxu0 %v10024
          %10889 = vmatpush1.bf16.msra.mxu0 %v10023
          %10890 = vmatprep.subr.bf16.mxu0 %v10032
          %10891 = vmatpush1.bf16.msra.mxu0 %v10031
          %10892 = vmatprep.subr.bf16.mxu0 %v10040
          %10893 = vmatpush1.bf16.msra.mxu0 %v10039
          %10894 = vmatprep.subr.bf16.mxu0 %v10048
          %10895 = vmatpush1.bf16.msra.mxu0 %v10047
          %10896 = vmatprep.mubr.bf16.mxu0 %v8250
          %10897 = vmatmul.mubr.bf16.gmra.mrb[0].mxu0 %v8249
          %v10898 = vpop.f32.mrb[0].mxu0
          %v10899 = vadd.f32 %v10858, %v10898
          %v10900 = vpop.f32.mrb[0].mxu0
          %v10901 = vadd.f32 %v10860, %v10900
          %v10902 = vpop.f32.mrb[0].mxu0
          %v10903 = vpop.f32.mrb[0].mxu0
          %10904 = vdwg.mxu0
          %10905 = vmatprep.subr.bf16.mxu0 %v10056
          %10906 = vmatpush1.bf16.msra.mxu0 %v10055
          %10907 = vmatprep.subr.bf16.mxu0 %v10064
          %10908 = vmatpush1.bf16.msra.mxu0 %v10063
          %10909 = vmatprep.subr.bf16.mxu0 %v10072
          %10910 = vmatpush1.bf16.msra.mxu0 %v10071
          %10911 = vmatprep.subr.bf16.mxu0 %v10080
          %10912 = vmatpush1.bf16.msra.mxu0 %v10079
          %10913 = vmatprep.subr.bf16.mxu0 %v10088
          %10914 = vmatpush1.bf16.msra.mxu0 %v10087
          %10915 = vmatprep.subr.bf16.mxu0 %v10096
          %10916 = vmatpush1.bf16.msra.mxu0 %v10095
          %10917 = vmatprep.subr.bf16.mxu0 %v10104
          %10918 = vmatpush1.bf16.msra.mxu0 %v10103
          %10919 = vmatprep.subr.bf16.mxu0 %v10112
          %10920 = vmatpush1.bf16.msra.mxu0 %v10111
          %10921 = vmatprep.subr.bf16.mxu0 %v10120
          %10922 = vmatpush1.bf16.msra.mxu0 %v10119
          %10923 = vmatprep.subr.bf16.mxu0 %v10128
          %10924 = vmatpush1.bf16.msra.mxu0 %v10127
          %10925 = vmatprep.subr.bf16.mxu0 %v10136
          %10926 = vmatpush1.bf16.msra.mxu0 %v10135
          %10927 = vmatprep.subr.bf16.mxu0 %v10144
          %10928 = vmatpush1.bf16.msra.mxu0 %v10143
          %10929 = vmatprep.subr.bf16.mxu0 %v10152
          %10930 = vmatpush1.bf16.msra.mxu0 %v10151
          %10931 = vmatprep.subr.bf16.mxu0 %v10160
          %10932 = vmatpush1.bf16.msra.mxu0 %v10159
          %10933 = vmatprep.subr.bf16.mxu0 %v10168
          %10934 = vmatpush1.bf16.msra.mxu0 %v10167
          %10935 = vmatprep.subr.bf16.mxu0 %v10176
          %10936 = vmatpush1.bf16.msra.mxu0 %v10175
          %10937 = vmatprep.mubr.bf16.mxu0 %v8252
          %10938 = vmatmul.mubr.bf16.gmra.mrb[0].mxu0 %v8251
          %v10939 = vpop.f32.mrb[0].mxu0
          %v10940 = vadd.f32 %v10899, %v10939
          %v10941 = vpop.f32.mrb[0].mxu0
          %v10942 = vadd.f32 %v10901, %v10941
          %v10943 = vpop.f32.mrb[0].mxu0
          %v10944 = vpop.f32.mrb[0].mxu0
          %10945 = vdwg.mxu0
          %10946 = vmatprep.subr.bf16.mxu0 %v10184
          %10947 = vmatpush1.bf16.msra.mxu0 %v10183
          %10948 = vmatprep.subr.bf16.mxu0 %v10192
          %10949 = vmatpush1.bf16.msra.mxu0 %v10191
          %10950 = vmatprep.subr.bf16.mxu0 %v10200
          %10951 = vmatpush1.bf16.msra.mxu0 %v10199
          %10952 = vmatprep.subr.bf16.mxu0 %v10208
          %10953 = vmatpush1.bf16.msra.mxu0 %v10207
          %10954 = vmatprep.subr.bf16.mxu0 %v10216
          %10955 = vmatpush1.bf16.msra.mxu0 %v10215
          %10956 = vmatprep.subr.bf16.mxu0 %v10224
          %10957 = vmatpush1.bf16.msra.mxu0 %v10223
          %10958 = vmatprep.subr.bf16.mxu0 %v10232
          %10959 = vmatpush1.bf16.msra.mxu0 %v10231
          %10960 = vmatprep.subr.bf16.mxu0 %v10240
          %10961 = vmatpush1.bf16.msra.mxu0 %v10239
          %10962 = vmatprep.subr.bf16.mxu0 %v10248
          %10963 = vmatpush1.bf16.msra.mxu0 %v10247
          %10964 = vmatprep.subr.bf16.mxu0 %v10256
          %10965 = vmatpush1.bf16.msra.mxu0 %v10255
          %10966 = vmatprep.subr.bf16.mxu0 %v10264
          %10967 = vmatpush1.bf16.msra.mxu0 %v10263
          %10968 = vmatprep.subr.bf16.mxu0 %v10272
          %10969 = vmatpush1.bf16.msra.mxu0 %v10271
          %10970 = vmatprep.subr.bf16.mxu0 %v10280
          %10971 = vmatpush1.bf16.msra.mxu0 %v10279
          %10972 = vmatprep.subr.bf16.mxu0 %v10288
          %10973 = vmatpush1.bf16.msra.mxu0 %v10287
          %10974 = vmatprep.subr.bf16.mxu0 %v10296
          %10975 = vmatpush1.bf16.msra.mxu0 %v10295
          %10976 = vmatprep.subr.bf16.mxu0 %v10304
          %10977 = vmatpush1.bf16.msra.mxu0 %v10303
          %10978 = vmatprep.mubr.bf16.mxu0 %v8254
          %10979 = vmatmul.mubr.bf16.gmra.mrb[0].mxu0 %v8253
          %v10980 = vpop.f32.mrb[0].mxu0
          %v10981 = vadd.f32 %v10940, %v10980
          %v10982 = vpop.f32.mrb[0].mxu0
          %v10983 = vadd.f32 %v10942, %v10982
          %v10984 = vpop.f32.mrb[0].mxu0
          %v10985 = vpop.f32.mrb[0].mxu0
          %10986 = vdwg.mxu0
          %10987 = vmatprep.subr.bf16.mxu0 %v9802
          %10988 = vmatpush1.bf16.msra.mxu0 %v9801
          %10989 = vmatprep.subr.bf16.mxu0 %v9810
          %10990 = vmatpush1.bf16.msra.mxu0 %v9809
          %10991 = vmatprep.subr.bf16.mxu0 %v9818
          %10992 = vmatpush1.bf16.msra.mxu0 %v9817
          %10993 = vmatprep.subr.bf16.mxu0 %v9826
          %10994 = vmatpush1.bf16.msra.mxu0 %v9825
          %10995 = vmatprep.subr.bf16.mxu0 %v9834
          %10996 = vmatpush1.bf16.msra.mxu0 %v9833
          %10997 = vmatprep.subr.bf16.mxu0 %v9842
          %10998 = vmatpush1.bf16.msra.mxu0 %v9841
          %10999 = vmatprep.subr.bf16.mxu0 %v9850
          %11000 = vmatpush1.bf16.msra.mxu0 %v9849
          %11001 = vmatprep.subr.bf16.mxu0 %v9858
          %11002 = vmatpush1.bf16.msra.mxu0 %v9857
          %11003 = vmatprep.subr.bf16.mxu0 %v9866
          %11004 = vmatpush1.bf16.msra.mxu0 %v9865
          %11005 = vmatprep.subr.bf16.mxu0 %v9874
          %11006 = vmatpush1.bf16.msra.mxu0 %v9873
          %11007 = vmatprep.subr.bf16.mxu0 %v9882
          %11008 = vmatpush1.bf16.msra.mxu0 %v9881
          %11009 = vmatprep.subr.bf16.mxu0 %v9890
          %11010 = vmatpush1.bf16.msra.mxu0 %v9889
          %11011 = vmatprep.subr.bf16.mxu0 %v9898
          %11012 = vmatpush1.bf16.msra.mxu0 %v9897
          %11013 = vmatprep.subr.bf16.mxu0 %v9906
          %11014 = vmatpush1.bf16.msra.mxu0 %v9905
          %11015 = vmatprep.subr.bf16.mxu0 %v9914
          %11016 = vmatpush1.bf16.msra.mxu0 %v9913
          %11017 = vmatprep.subr.bf16.mxu0 %v9922
          %11018 = vmatpush1.bf16.msra.mxu0 %v9921
          %11019 = vmatprep.mubr.bf16.mxu0 %v8248
          %11020 = vmatmul.mubr.bf16.gmra.mrb[0].mxu0 %v8247
          %v11021 = vpop.f32.mrb[0].mxu0
          %v11022 = vadd.f32 %v7901, %v11021
          %v11023 = vpop.f32.mrb[0].mxu0
          %v11024 = vadd.f32 %v7903, %v11023
          %v11025 = vpop.f32.mrb[0].mxu0
          %v11026 = vpop.f32.mrb[0].mxu0
          %11027 = vdwg.mxu0
          %11028 = vmatprep.subr.bf16.mxu0 %v9930
          %11029 = vmatpush1.bf16.msra.mxu0 %v9929
          %11030 = vmatprep.subr.bf16.mxu0 %v9938
          %11031 = vmatpush1.bf16.msra.mxu0 %v9937
          %11032 = vmatprep.subr.bf16.mxu0 %v9946
          %11033 = vmatpush1.bf16.msra.mxu0 %v9945
          %11034 = vmatprep.subr.bf16.mxu0 %v9954
          %11035 = vmatpush1.bf16.msra.mxu0 %v9953
          %11036 = vmatprep.subr.bf16.mxu0 %v9962
          %11037 = vmatpush1.bf16.msra.mxu0 %v9961
          %11038 = vmatprep.subr.bf16.mxu0 %v9970
          %11039 = vmatpush1.bf16.msra.mxu0 %v9969
          %11040 = vmatprep.subr.bf16.mxu0 %v9978
          %11041 = vmatpush1.bf16.msra.mxu0 %v9977
          %11042 = vmatprep.subr.bf16.mxu0 %v9986
          %11043 = vmatpush1.bf16.msra.mxu0 %v9985
          %11044 = vmatprep.subr.bf16.mxu0 %v9994
          %11045 = vmatpush1.bf16.msra.mxu0 %v9993
          %11046 = vmatprep.subr.bf16.mxu0 %v10002
          %11047 = vmatpush1.bf16.msra.mxu0 %v10001
          %11048 = vmatprep.subr.bf16.mxu0 %v10010
          %11049 = vmatpush1.bf16.msra.mxu0 %v10009
          %11050 = vmatprep.subr.bf16.mxu0 %v10018
          %11051 = vmatpush1.bf16.msra.mxu0 %v10017
          %11052 = vmatprep.subr.bf16.mxu0 %v10026
          %11053 = vmatpush1.bf16.msra.mxu0 %v10025
          %11054 = vmatprep.subr.bf16.mxu0 %v10034
          %11055 = vmatpush1.bf16.msra.mxu0 %v10033
          %11056 = vmatprep.subr.bf16.mxu0 %v10042
          %11057 = vmatpush1.bf16.msra.mxu0 %v10041
          %11058 = vmatprep.subr.bf16.mxu0 %v10050
          %11059 = vmatpush1.bf16.msra.mxu0 %v10049
          %11060 = vmatprep.mubr.bf16.mxu0 %v8250
          %11061 = vmatmul.mubr.bf16.gmra.mrb[0].mxu0 %v8249
          %v11062 = vpop.f32.mrb[0].mxu0
          %v11063 = vadd.f32 %v11022, %v11062
          %v11064 = vpop.f32.mrb[0].mxu0
          %v11065 = vadd.f32 %v11024, %v11064
          %v11066 = vpop.f32.mrb[0].mxu0
          %v11067 = vpop.f32.mrb[0].mxu0
          %11068 = vdwg.mxu0
          %11069 = vmatprep.subr.bf16.mxu0 %v10058
          %11070 = vmatpush1.bf16.msra.mxu0 %v10057
          %11071 = vmatprep.subr.bf16.mxu0 %v10066
          %11072 = vmatpush1.bf16.msra.mxu0 %v10065
          %11073 = vmatprep.subr.bf16.mxu0 %v10074
          %11074 = vmatpush1.bf16.msra.mxu0 %v10073
          %11075 = vmatprep.subr.bf16.mxu0 %v10082
          %11076 = vmatpush1.bf16.msra.mxu0 %v10081
          %11077 = vmatprep.subr.bf16.mxu0 %v10090
          %11078 = vmatpush1.bf16.msra.mxu0 %v10089
          %11079 = vmatprep.subr.bf16.mxu0 %v10098
          %11080 = vmatpush1.bf16.msra.mxu0 %v10097
          %11081 = vmatprep.subr.bf16.mxu0 %v10106
          %11082 = vmatpush1.bf16.msra.mxu0 %v10105
          %11083 = vmatprep.subr.bf16.mxu0 %v10114
          %11084 = vmatpush1.bf16.msra.mxu0 %v10113
          %11085 = vmatprep.subr.bf16.mxu0 %v10122
          %11086 = vmatpush1.bf16.msra.mxu0 %v10121
          %11087 = vmatprep.subr.bf16.mxu0 %v10130
          %11088 = vmatpush1.bf16.msra.mxu0 %v10129
          %11089 = vmatprep.subr.bf16.mxu0 %v10138
          %11090 = vmatpush1.bf16.msra.mxu0 %v10137
          %11091 = vmatprep.subr.bf16.mxu0 %v10146
          %11092 = vmatpush1.bf16.msra.mxu0 %v10145
          %11093 = vmatprep.subr.bf16.mxu0 %v10154
          %11094 = vmatpush1.bf16.msra.mxu0 %v10153
          %11095 = vmatprep.subr.bf16.mxu0 %v10162
          %11096 = vmatpush1.bf16.msra.mxu0 %v10161
          %11097 = vmatprep.subr.bf16.mxu0 %v10170
          %11098 = vmatpush1.bf16.msra.mxu0 %v10169
          %11099 = vmatprep.subr.bf16.mxu0 %v10178
          %11100 = vmatpush1.bf16.msra.mxu0 %v10177
          %11101 = vmatprep.mubr.bf16.mxu0 %v8252
          %11102 = vmatmul.mubr.bf16.gmra.mrb[0].mxu0 %v8251
          %v11103 = vpop.f32.mrb[0].mxu0
          %v11104 = vadd.f32 %v11063, %v11103
          %v11105 = vpop.f32.mrb[0].mxu0
          %v11106 = vadd.f32 %v11065, %v11105
          %v11107 = vpop.f32.mrb[0].mxu0
          %v11108 = vpop.f32.mrb[0].mxu0
          %11109 = vdwg.mxu0
          %11110 = vmatprep.subr.bf16.mxu0 %v10186
          %11111 = vmatpush1.bf16.msra.mxu0 %v10185
          %11112 = vmatprep.subr.bf16.mxu0 %v10194
          %11113 = vmatpush1.bf16.msra.mxu0 %v10193
          %11114 = vmatprep.subr.bf16.mxu0 %v10202
          %11115 = vmatpush1.bf16.msra.mxu0 %v10201
          %11116 = vmatprep.subr.bf16.mxu0 %v10210
          %11117 = vmatpush1.bf16.msra.mxu0 %v10209
          %11118 = vmatprep.subr.bf16.mxu0 %v10218
          %11119 = vmatpush1.bf16.msra.mxu0 %v10217
          %11120 = vmatprep.subr.bf16.mxu0 %v10226
          %11121 = vmatpush1.bf16.msra.mxu0 %v10225
          %11122 = vmatprep.subr.bf16.mxu0 %v10234
          %11123 = vmatpush1.bf16.msra.mxu0 %v10233
          %11124 = vmatprep.subr.bf16.mxu0 %v10242
          %11125 = vmatpush1.bf16.msra.mxu0 %v10241
          %11126 = vmatprep.subr.bf16.mxu0 %v10250
          %11127 = vmatpush1.bf16.msra.mxu0 %v10249
          %11128 = vmatprep.subr.bf16.mxu0 %v10258
          %11129 = vmatpush1.bf16.msra.mxu0 %v10257
          %11130 = vmatprep.subr.bf16.mxu0 %v10266
          %11131 = vmatpush1.bf16.msra.mxu0 %v10265
          %11132 = vmatprep.subr.bf16.mxu0 %v10274
          %11133 = vmatpush1.bf16.msra.mxu0 %v10273
          %11134 = vmatprep.subr.bf16.mxu0 %v10282
          %11135 = vmatpush1.bf16.msra.mxu0 %v10281
          %11136 = vmatprep.subr.bf16.mxu0 %v10290
          %11137 = vmatpush1.bf16.msra.mxu0 %v10289
          %11138 = vmatprep.subr.bf16.mxu0 %v10298
          %11139 = vmatpush1.bf16.msra.mxu0 %v10297
          %11140 = vmatprep.subr.bf16.mxu0 %v10306
          %11141 = vmatpush1.bf16.msra.mxu0 %v10305
          %11142 = vmatprep.mubr.bf16.mxu0 %v8254
          %11143 = vmatmul.mubr.bf16.gmra.mrb[0].mxu0 %v8253
          %v11144 = vpop.f32.mrb[0].mxu0
          %v11145 = vadd.f32 %v11104, %v11144
          %v11146 = vpop.f32.mrb[0].mxu0
          %v11147 = vadd.f32 %v11106, %v11146
          %v11148 = vpop.f32.mrb[0].mxu0
          %v11149 = vpop.f32.mrb[0].mxu0
          %11150 = vdwg.mxu0
          %11151 = vmatprep.subr.bf16.mxu0 %v9804
          %11152 = vmatpush1.bf16.msra.mxu0 %v9803
          %11153 = vmatprep.subr.bf16.mxu0 %v9812
          %11154 = vmatpush1.bf16.msra.mxu0 %v9811
          %11155 = vmatprep.subr.bf16.mxu0 %v9820
          %11156 = vmatpush1.bf16.msra.mxu0 %v9819
          %11157 = vmatprep.subr.bf16.mxu0 %v9828
          %11158 = vmatpush1.bf16.msra.mxu0 %v9827
          %11159 = vmatprep.subr.bf16.mxu0 %v9836
          %11160 = vmatpush1.bf16.msra.mxu0 %v9835
          %11161 = vmatprep.subr.bf16.mxu0 %v9844
          %11162 = vmatpush1.bf16.msra.mxu0 %v9843
          %11163 = vmatprep.subr.bf16.mxu0 %v9852
          %11164 = vmatpush1.bf16.msra.mxu0 %v9851
          %11165 = vmatprep.subr.bf16.mxu0 %v9860
          %11166 = vmatpush1.bf16.msra.mxu0 %v9859
          %11167 = vmatprep.subr.bf16.mxu0 %v9868
          %11168 = vmatpush1.bf16.msra.mxu0 %v9867
          %11169 = vmatprep.subr.bf16.mxu0 %v9876
          %11170 = vmatpush1.bf16.msra.mxu0 %v9875
          %11171 = vmatprep.subr.bf16.mxu0 %v9884
          %11172 = vmatpush1.bf16.msra.mxu0 %v9883
          %11173 = vmatprep.subr.bf16.mxu0 %v9892
          %11174 = vmatpush1.bf16.msra.mxu0 %v9891
          %11175 = vmatprep.subr.bf16.mxu0 %v9900
          %11176 = vmatpush1.bf16.msra.mxu0 %v9899
          %11177 = vmatprep.subr.bf16.mxu0 %v9908
          %11178 = vmatpush1.bf16.msra.mxu0 %v9907
          %11179 = vmatprep.subr.bf16.mxu0 %v9916
          %11180 = vmatpush1.bf16.msra.mxu0 %v9915
          %11181 = vmatprep.subr.bf16.mxu0 %v9924
          %11182 = vmatpush1.bf16.msra.mxu0 %v9923
          %11183 = vmatprep.mubr.bf16.mxu0 %v8248
          %11184 = vmatmul.mubr.bf16.gmra.mrb[0].mxu0 %v8247
          %v11185 = vpop.f32.mrb[0].mxu0
          %v11186 = vadd.f32 %v8065, %v11185
          %v11187 = vpop.f32.mrb[0].mxu0
          %v11188 = vadd.f32 %v8067, %v11187
          %v11189 = vpop.f32.mrb[0].mxu0
          %v11190 = vpop.f32.mrb[0].mxu0
          %11191 = vdwg.mxu0
          %11192 = vmatprep.subr.bf16.mxu0 %v9932
          %11193 = vmatpush1.bf16.msra.mxu0 %v9931
          %11194 = vmatprep.subr.bf16.mxu0 %v9940
          %11195 = vmatpush1.bf16.msra.mxu0 %v9939
          %11196 = vmatprep.subr.bf16.mxu0 %v9948
          %11197 = vmatpush1.bf16.msra.mxu0 %v9947
          %11198 = vmatprep.subr.bf16.mxu0 %v9956
          %11199 = vmatpush1.bf16.msra.mxu0 %v9955
          %11200 = vmatprep.subr.bf16.mxu0 %v9964
          %11201 = vmatpush1.bf16.msra.mxu0 %v9963
          %11202 = vmatprep.subr.bf16.mxu0 %v9972
          %11203 = vmatpush1.bf16.msra.mxu0 %v9971
          %11204 = vmatprep.subr.bf16.mxu0 %v9980
          %11205 = vmatpush1.bf16.msra.mxu0 %v9979
          %11206 = vmatprep.subr.bf16.mxu0 %v9988
          %11207 = vmatpush1.bf16.msra.mxu0 %v9987
          %11208 = vmatprep.subr.bf16.mxu0 %v9996
          %11209 = vmatpush1.bf16.msra.mxu0 %v9995
          %11210 = vmatprep.subr.bf16.mxu0 %v10004
          %11211 = vmatpush1.bf16.msra.mxu0 %v10003
          %11212 = vmatprep.subr.bf16.mxu0 %v10012
          %11213 = vmatpush1.bf16.msra.mxu0 %v10011
          %11214 = vmatprep.subr.bf16.mxu0 %v10020
          %11215 = vmatpush1.bf16.msra.mxu0 %v10019
          %11216 = vmatprep.subr.bf16.mxu0 %v10028
          %11217 = vmatpush1.bf16.msra.mxu0 %v10027
          %11218 = vmatprep.subr.bf16.mxu0 %v10036
          %11219 = vmatpush1.bf16.msra.mxu0 %v10035
          %11220 = vmatprep.subr.bf16.mxu0 %v10044
          %11221 = vmatpush1.bf16.msra.mxu0 %v10043
          %11222 = vmatprep.subr.bf16.mxu0 %v10052
          %11223 = vmatpush1.bf16.msra.mxu0 %v10051
          %11224 = vmatprep.mubr.bf16.mxu0 %v8250
          %11225 = vmatmul.mubr.bf16.gmra.mrb[0].mxu0 %v8249
          %v11226 = vpop.f32.mrb[0].mxu0
          %v11227 = vadd.f32 %v11186, %v11226
          %v11228 = vpop.f32.mrb[0].mxu0
          %v11229 = vadd.f32 %v11188, %v11228
          %v11230 = vpop.f32.mrb[0].mxu0
          %v11231 = vpop.f32.mrb[0].mxu0
          %11232 = vdwg.mxu0
          %11233 = vmatprep.subr.bf16.mxu0 %v10060
          %11234 = vmatpush1.bf16.msra.mxu0 %v10059
          %11235 = vmatprep.subr.bf16.mxu0 %v10068
          %11236 = vmatpush1.bf16.msra.mxu0 %v10067
          %11237 = vmatprep.subr.bf16.mxu0 %v10076
          %11238 = vmatpush1.bf16.msra.mxu0 %v10075
          %11239 = vmatprep.subr.bf16.mxu0 %v10084
          %11240 = vmatpush1.bf16.msra.mxu0 %v10083
          %11241 = vmatprep.subr.bf16.mxu0 %v10092
          %11242 = vmatpush1.bf16.msra.mxu0 %v10091
          %11243 = vmatprep.subr.bf16.mxu0 %v10100
          %11244 = vmatpush1.bf16.msra.mxu0 %v10099
          %11245 = vmatprep.subr.bf16.mxu0 %v10108
          %11246 = vmatpush1.bf16.msra.mxu0 %v10107
          %11247 = vmatprep.subr.bf16.mxu0 %v10116
          %11248 = vmatpush1.bf16.msra.mxu0 %v10115
          %11249 = vmatprep.subr.bf16.mxu0 %v10124
          %11250 = vmatpush1.bf16.msra.mxu0 %v10123
          %11251 = vmatprep.subr.bf16.mxu0 %v10132
          %11252 = vmatpush1.bf16.msra.mxu0 %v10131
          %11253 = vmatprep.subr.bf16.mxu0 %v10140
          %11254 = vmatpush1.bf16.msra.mxu0 %v10139
          %11255 = vmatprep.subr.bf16.mxu0 %v10148
          %11256 = vmatpush1.bf16.msra.mxu0 %v10147
          %11257 = vmatprep.subr.bf16.mxu0 %v10156
          %11258 = vmatpush1.bf16.msra.mxu0 %v10155
          %11259 = vmatprep.subr.bf16.mxu0 %v10164
          %11260 = vmatpush1.bf16.msra.mxu0 %v10163
          %11261 = vmatprep.subr.bf16.mxu0 %v10172
          %11262 = vmatpush1.bf16.msra.mxu0 %v10171
          %11263 = vmatprep.subr.bf16.mxu0 %v10180
          %11264 = vmatpush1.bf16.msra.mxu0 %v10179
          %11265 = vmatprep.mubr.bf16.mxu0 %v8252
          %11266 = vmatmul.mubr.bf16.gmra.mrb[0].mxu0 %v8251
          %v11267 = vpop.f32.mrb[0].mxu0
          %v11268 = vadd.f32 %v11227, %v11267
          %v11269 = vpop.f32.mrb[0].mxu0
          %v11270 = vadd.f32 %v11229, %v11269
          %v11271 = vpop.f32.mrb[0].mxu0
          %v11272 = vpop.f32.mrb[0].mxu0
          %11273 = vdwg.mxu0
          %11274 = vmatprep.subr.bf16.mxu0 %v10188
          %11275 = vmatpush1.bf16.msra.mxu0 %v10187
          %11276 = vmatprep.subr.bf16.mxu0 %v10196
          %11277 = vmatpush1.bf16.msra.mxu0 %v10195
          %11278 = vmatprep.subr.bf16.mxu0 %v10204
          %11279 = vmatpush1.bf16.msra.mxu0 %v10203
          %11280 = vmatprep.subr.bf16.mxu0 %v10212
          %11281 = vmatpush1.bf16.msra.mxu0 %v10211
          %11282 = vmatprep.subr.bf16.mxu0 %v10220
          %11283 = vmatpush1.bf16.msra.mxu0 %v10219
          %11284 = vmatprep.subr.bf16.mxu0 %v10228
          %11285 = vmatpush1.bf16.msra.mxu0 %v10227
          %11286 = vmatprep.subr.bf16.mxu0 %v10236
          %11287 = vmatpush1.bf16.msra.mxu0 %v10235
          %11288 = vmatprep.subr.bf16.mxu0 %v10244
          %11289 = vmatpush1.bf16.msra.mxu0 %v10243
          %11290 = vmatprep.subr.bf16.mxu0 %v10252
          %11291 = vmatpush1.bf16.msra.mxu0 %v10251
          %11292 = vmatprep.subr.bf16.mxu0 %v10260
          %11293 = vmatpush1.bf16.msra.mxu0 %v10259
          %11294 = vmatprep.subr.bf16.mxu0 %v10268
          %11295 = vmatpush1.bf16.msra.mxu0 %v10267
          %11296 = vmatprep.subr.bf16.mxu0 %v10276
          %11297 = vmatpush1.bf16.msra.mxu0 %v10275
          %11298 = vmatprep.subr.bf16.mxu0 %v10284
          %11299 = vmatpush1.bf16.msra.mxu0 %v10283
          %11300 = vmatprep.subr.bf16.mxu0 %v10292
          %11301 = vmatpush1.bf16.msra.mxu0 %v10291
          %11302 = vmatprep.subr.bf16.mxu0 %v10300
          %11303 = vmatpush1.bf16.msra.mxu0 %v10299
          %11304 = vmatprep.subr.bf16.mxu0 %v10308
          %11305 = vmatpush1.bf16.msra.mxu0 %v10307
          %11306 = vmatprep.mubr.bf16.mxu0 %v8254
          %11307 = vmatmul.mubr.bf16.gmra.mrb[0].mxu0 %v8253
          %v11308 = vpop.f32.mrb[0].mxu0
          %v11309 = vadd.f32 %v11268, %v11308
          %v11310 = vpop.f32.mrb[0].mxu0
          %v11311 = vadd.f32 %v11270, %v11310
          %v11312 = vpop.f32.mrb[0].mxu0
          %v11313 = vpop.f32.mrb[0].mxu0
          %11314 = vdwg.mxu0
          %11315 = vmatprep.subr.bf16.mxu0 %v9806
          %11316 = vmatpush1.bf16.msra.mxu0 %v9805
          %11317 = vmatprep.subr.bf16.mxu0 %v9814
          %11318 = vmatpush1.bf16.msra.mxu0 %v9813
          %11319 = vmatprep.subr.bf16.mxu0 %v9822
          %11320 = vmatpush1.bf16.msra.mxu0 %v9821
          %11321 = vmatprep.subr.bf16.mxu0 %v9830
          %11322 = vmatpush1.bf16.msra.mxu0 %v9829
          %11323 = vmatprep.subr.bf16.mxu0 %v9838
          %11324 = vmatpush1.bf16.msra.mxu0 %v9837
          %11325 = vmatprep.subr.bf16.mxu0 %v9846
          %11326 = vmatpush1.bf16.msra.mxu0 %v9845
          %11327 = vmatprep.subr.bf16.mxu0 %v9854
          %11328 = vmatpush1.bf16.msra.mxu0 %v9853
          %11329 = vmatprep.subr.bf16.mxu0 %v9862
          %11330 = vmatpush1.bf16.msra.mxu0 %v9861
          %11331 = vmatprep.subr.bf16.mxu0 %v9870
          %11332 = vmatpush1.bf16.msra.mxu0 %v9869
          %11333 = vmatprep.subr.bf16.mxu0 %v9878
          %11334 = vmatpush1.bf16.msra.mxu0 %v9877
          %11335 = vmatprep.subr.bf16.mxu0 %v9886
          %11336 = vmatpush1.bf16.msra.mxu0 %v9885
          %11337 = vmatprep.subr.bf16.mxu0 %v9894
          %11338 = vmatpush1.bf16.msra.mxu0 %v9893
          %11339 = vmatprep.subr.bf16.mxu0 %v9902
          %11340 = vmatpush1.bf16.msra.mxu0 %v9901
          %11341 = vmatprep.subr.bf16.mxu0 %v9910
          %11342 = vmatpush1.bf16.msra.mxu0 %v9909
          %11343 = vmatprep.subr.bf16.mxu0 %v9918
          %11344 = vmatpush1.bf16.msra.mxu0 %v9917
          %11345 = vmatprep.subr.bf16.mxu0 %v9926
          %11346 = vmatpush1.bf16.msra.mxu0 %v9925
          %11347 = vmatprep.mubr.bf16.mxu0 %v8248
          %11348 = vmatmul.mubr.bf16.gmra.mrb[0].mxu0 %v8247
          %v11349 = vpop.f32.mrb[0].mxu0
          %v11350 = vadd.f32 %v8229, %v11349
          %v11351 = vpop.f32.mrb[0].mxu0
          %v11352 = vadd.f32 %v8231, %v11351
          %v11353 = vpop.f32.mrb[0].mxu0
          %v11354 = vpop.f32.mrb[0].mxu0
          %11355 = vdwg.mxu0
          %11356 = vmatprep.subr.bf16.mxu0 %v9934
          %11357 = vmatpush1.bf16.msra.mxu0 %v9933
          %11358 = vmatprep.subr.bf16.mxu0 %v9942
          %11359 = vmatpush1.bf16.msra.mxu0 %v9941
          %11360 = vmatprep.subr.bf16.mxu0 %v9950
          %11361 = vmatpush1.bf16.msra.mxu0 %v9949
          %11362 = vmatprep.subr.bf16.mxu0 %v9958
          %11363 = vmatpush1.bf16.msra.mxu0 %v9957
          %11364 = vmatprep.subr.bf16.mxu0 %v9966
          %11365 = vmatpush1.bf16.msra.mxu0 %v9965
          %11366 = vmatprep.subr.bf16.mxu0 %v9974
          %11367 = vmatpush1.bf16.msra.mxu0 %v9973
          %11368 = vmatprep.subr.bf16.mxu0 %v9982
          %11369 = vmatpush1.bf16.msra.mxu0 %v9981
          %11370 = vmatprep.subr.bf16.mxu0 %v9990
          %11371 = vmatpush1.bf16.msra.mxu0 %v9989
          %11372 = vmatprep.subr.bf16.mxu0 %v9998
          %11373 = vmatpush1.bf16.msra.mxu0 %v9997
          %11374 = vmatprep.subr.bf16.mxu0 %v10006
          %11375 = vmatpush1.bf16.msra.mxu0 %v10005
          %11376 = vmatprep.subr.bf16.mxu0 %v10014
          %11377 = vmatpush1.bf16.msra.mxu0 %v10013
          %11378 = vmatprep.subr.bf16.mxu0 %v10022
          %11379 = vmatpush1.bf16.msra.mxu0 %v10021
          %11380 = vmatprep.subr.bf16.mxu0 %v10030
          %11381 = vmatpush1.bf16.msra.mxu0 %v10029
          %11382 = vmatprep.subr.bf16.mxu0 %v10038
          %11383 = vmatpush1.bf16.msra.mxu0 %v10037
          %11384 = vmatprep.subr.bf16.mxu0 %v10046
          %11385 = vmatpush1.bf16.msra.mxu0 %v10045
          %11386 = vmatprep.subr.bf16.mxu0 %v10054
          %11387 = vmatpush1.bf16.msra.mxu0 %v10053
          %11388 = vmatprep.mubr.bf16.mxu0 %v8250
          %11389 = vmatmul.mubr.bf16.gmra.mrb[0].mxu0 %v8249
          %v11390 = vpop.f32.mrb[0].mxu0
          %v11391 = vadd.f32 %v11350, %v11390
          %v11392 = vpop.f32.mrb[0].mxu0
          %v11393 = vadd.f32 %v11352, %v11392
          %v11394 = vpop.f32.mrb[0].mxu0
          %v11395 = vpop.f32.mrb[0].mxu0
          %11396 = vdwg.mxu0
          %11397 = vmatprep.subr.bf16.mxu0 %v10062
          %11398 = vmatpush1.bf16.msra.mxu0 %v10061
          %11399 = vmatprep.subr.bf16.mxu0 %v10070
          %11400 = vmatpush1.bf16.msra.mxu0 %v10069
          %11401 = vmatprep.subr.bf16.mxu0 %v10078
          %11402 = vmatpush1.bf16.msra.mxu0 %v10077
          %11403 = vmatprep.subr.bf16.mxu0 %v10086
          %11404 = vmatpush1.bf16.msra.mxu0 %v10085
          %11405 = vmatprep.subr.bf16.mxu0 %v10094
          %11406 = vmatpush1.bf16.msra.mxu0 %v10093
          %11407 = vmatprep.subr.bf16.mxu0 %v10102
          %11408 = vmatpush1.bf16.msra.mxu0 %v10101
          %11409 = vmatprep.subr.bf16.mxu0 %v10110
          %11410 = vmatpush1.bf16.msra.mxu0 %v10109
          %11411 = vmatprep.subr.bf16.mxu0 %v10118
          %11412 = vmatpush1.bf16.msra.mxu0 %v10117
          %11413 = vmatprep.subr.bf16.mxu0 %v10126
          %11414 = vmatpush1.bf16.msra.mxu0 %v10125
          %11415 = vmatprep.subr.bf16.mxu0 %v10134
          %11416 = vmatpush1.bf16.msra.mxu0 %v10133
          %11417 = vmatprep.subr.bf16.mxu0 %v10142
          %11418 = vmatpush1.bf16.msra.mxu0 %v10141
          %11419 = vmatprep.subr.bf16.mxu0 %v10150
          %11420 = vmatpush1.bf16.msra.mxu0 %v10149
          %11421 = vmatprep.subr.bf16.mxu0 %v10158
          %11422 = vmatpush1.bf16.msra.mxu0 %v10157
          %11423 = vmatprep.subr.bf16.mxu0 %v10166
          %11424 = vmatpush1.bf16.msra.mxu0 %v10165
          %11425 = vmatprep.subr.bf16.mxu0 %v10174
          %11426 = vmatpush1.bf16.msra.mxu0 %v10173
          %11427 = vmatprep.subr.bf16.mxu0 %v10182
          %11428 = vmatpush1.bf16.msra.mxu0 %v10181
          %11429 = vmatprep.mubr.bf16.mxu0 %v8252
          %11430 = vmatmul.mubr.bf16.gmra.mrb[0].mxu0 %v8251
          %v11431 = vpop.f32.mrb[0].mxu0
          %v11432 = vadd.f32 %v11391, %v11431
          %v11433 = vpop.f32.mrb[0].mxu0
          %v11434 = vadd.f32 %v11393, %v11433
          %v11435 = vpop.f32.mrb[0].mxu0
          %v11436 = vpop.f32.mrb[0].mxu0
          %11437 = vdwg.mxu0
          %11438 = vmatprep.subr.bf16.mxu0 %v10190
          %11439 = vmatpush1.bf16.msra.mxu0 %v10189
          %11440 = vmatprep.subr.bf16.mxu0 %v10198
          %11441 = vmatpush1.bf16.msra.mxu0 %v10197
          %11442 = vmatprep.subr.bf16.mxu0 %v10206
          %11443 = vmatpush1.bf16.msra.mxu0 %v10205
          %11444 = vmatprep.subr.bf16.mxu0 %v10214
          %11445 = vmatpush1.bf16.msra.mxu0 %v10213
          %11446 = vmatprep.subr.bf16.mxu0 %v10222
          %11447 = vmatpush1.bf16.msra.mxu0 %v10221
          %11448 = vmatprep.subr.bf16.mxu0 %v10230
          %11449 = vmatpush1.bf16.msra.mxu0 %v10229
          %11450 = vmatprep.subr.bf16.mxu0 %v10238
          %11451 = vmatpush1.bf16.msra.mxu0 %v10237
          %11452 = vmatprep.subr.bf16.mxu0 %v10246
          %11453 = vmatpush1.bf16.msra.mxu0 %v10245
          %11454 = vmatprep.subr.bf16.mxu0 %v10254
          %11455 = vmatpush1.bf16.msra.mxu0 %v10253
          %11456 = vmatprep.subr.bf16.mxu0 %v10262
          %11457 = vmatpush1.bf16.msra.mxu0 %v10261
          %11458 = vmatprep.subr.bf16.mxu0 %v10270
          %11459 = vmatpush1.bf16.msra.mxu0 %v10269
          %11460 = vmatprep.subr.bf16.mxu0 %v10278
          %11461 = vmatpush1.bf16.msra.mxu0 %v10277
          %11462 = vmatprep.subr.bf16.mxu0 %v10286
          %11463 = vmatpush1.bf16.msra.mxu0 %v10285
          %11464 = vmatprep.subr.bf16.mxu0 %v10294
          %11465 = vmatpush1.bf16.msra.mxu0 %v10293
          %11466 = vmatprep.subr.bf16.mxu0 %v10302
          %11467 = vmatpush1.bf16.msra.mxu0 %v10301
          %11468 = vmatprep.subr.bf16.mxu0 %v10310
          %11469 = vmatpush1.bf16.msra.mxu0 %v10309
          %11470 = vmatprep.mubr.bf16.mxu0 %v8254
          %11471 = vmatmul.mubr.bf16.gmra.mrb[0].mxu0 %v8253
          %v11472 = vpop.f32.mrb[0].mxu0
          %v11473 = vadd.f32 %v11432, %v11472
          %v11474 = vpop.f32.mrb[0].mxu0
          %v11475 = vadd.f32 %v11434, %v11474
          %v11476 = vpop.f32.mrb[0].mxu0
          %v11477 = vpop.f32.mrb[0].mxu0
          %11478 = vdwg.mxu0
          %v11479 = vld [vmem:[%s418] sm:$0xff]
          %v11481 = vlaneseq
          %v11482 = vshrl.u32 %v11481, 7
          %v11483 = vsub.s32 0, %v11482
          %v11484 = vrot.slane %v11479, %v11483
          %v11485 = vlaneseq
          %v11486 = vshrl.u32 %v11485, 7
          %v11487 = vsub.s32 1, %v11486
          %v11488 = vrot.slane %v11479, %v11487
          %v11489 = vlaneseq
          %v11490 = vshrl.u32 %v11489, 7
          %v11491 = vsub.s32 2, %v11490
          %v11492 = vrot.slane %v11479, %v11491
          %v11493 = vlaneseq
          %v11494 = vshrl.u32 %v11493, 7
          %v11495 = vsub.s32 3, %v11494
          %v11496 = vrot.slane %v11479, %v11495
          %v11497 = vlaneseq
          %v11498 = vshrl.u32 %v11497, 7
          %v11499 = vsub.s32 4, %v11498
          %v11500 = vrot.slane %v11479, %v11499
          %v11501 = vlaneseq
          %v11502 = vshrl.u32 %v11501, 7
          %v11503 = vsub.s32 5, %v11502
          %v11504 = vrot.slane %v11479, %v11503
          %v11505 = vlaneseq
          %v11506 = vshrl.u32 %v11505, 7
          %v11507 = vsub.s32 6, %v11506
          %v11508 = vrot.slane %v11479, %v11507
          %v11509 = vlaneseq
          %v11510 = vshrl.u32 %v11509, 7
          %v11511 = vsub.s32 7, %v11510
          %v11512 = vrot.slane %v11479, %v11511
          %v11521 = vadd.f32 %v10981, %v11484
          %v11522 = vadd.f32 %v10983, %v11488
          %v11523 = vadd.f32 %v11145, %v11492
          %v11524 = vadd.f32 %v11147, %v11496
          %v11525 = vadd.f32 %v11309, %v11500
          %v11526 = vadd.f32 %v11311, %v11504
          %v11527 = vadd.f32 %v11473, %v11508
          %v11528 = vadd.f32 %v11475, %v11512
          %v11529 = vmax.f32 %v11521, 0.0
          %v11530 = vmax.f32 %v11522, 0.0
          %v11531 = vmax.f32 %v11523, 0.0
          %v11532 = vmax.f32 %v11524, 0.0
          %v11533 = vmax.f32 %v11525, 0.0
          %v11534 = vmax.f32 %v11526, 0.0
          %v11535 = vmax.f32 %v11527, 0.0
          %v11536 = vmax.f32 %v11528, 0.0
          %v11537 = vpack.c.bf16 %v11529, %v11529
          %v11538 = vpack.c.bf16 %v11530, %v11530
          %v11539 = vpack.c.bf16 %v11531, %v11531
          %v11540 = vpack.c.bf16 %v11532, %v11532
          %v11541 = vpack.c.bf16 %v11533, %v11533
          %v11542 = vpack.c.bf16 %v11534, %v11534
          %v11543 = vpack.c.bf16 %v11535, %v11535
          %v11544 = vpack.c.bf16 %v11536, %v11536
          %s11545 = ssub.s32 %s29, 2
          %v11554 = vunpack.c.l.b16 %v11537
          %v11555 = vunpack.c.l.b16 %v11538
          %v11556 = vunpack.c.l.b16 %v11539
          %v11557 = vunpack.c.l.b16 %v11540
          %v11558 = vunpack.c.l.b16 %v11541
          %v11559 = vunpack.c.l.b16 %v11542
          %v11560 = vunpack.c.l.b16 %v11543
          %v11561 = vunpack.c.l.b16 %v11544
          %v11562 = vpack.c.b16 %v11555, %v11554
          %v11563 = vpack.c.b16 %v11557, %v11556
          %v11564 = vpack.c.b16 %v11559, %v11558
          %v11565 = vpack.c.b16 %v11561, %v11560
          %s11570 = smul.u32 %s11545, 8
          %s11571 = smul.addr %s11570, 4
          %s11572 = scalar_lea.vmem [#allocation3], %s11571
          %11573 = vst [vmem:[%s11572] sm:$0xff] %v11562
          %11574 = vst [vmem:[%s11572 + $0x8] sm:$0xff] %v11563
          %11575 = vst [vmem:[%s11572 + $0x10] sm:$0xff] %v11564
          %11576 = vst [vmem:[%s11572 + $0x18] sm:$0xff] %v11565
        $region80: #{my_neural_network_forward.1} parent=47 // pred_fallthru
          _
        %p11577 = scmp.eq.s32.totalorder %s29, 4
        // Predicated region
        $region81: #{my_neural_network_forward.1} parent=47 // pred_check
          %p11578 = pneg %p11577
        $region82: #{my_neural_network_forward.1} parent=47 // pred_check_branch
          %11580 = sbr.rel (%p11578) target = $region84
        $region83: #{my_neural_network_forward.1} parent=47 // pred_region
          %v11581 = vld [vmem:[#allocation3] sm:$0xff]
          %v11582 = vld [vmem:[#allocation3 + $0x8] sm:$0xff]
          %v11583 = vld [vmem:[#allocation3 + $0x10] sm:$0xff]
          %v11584 = vld [vmem:[#allocation3 + $0x18] sm:$0xff]
          %v11585 = vld [vmem:[#allocation12] sm:$0xf]
          %v11586 = vld [vmem:[#allocation12 + $0x4] sm:$0xf]
          %v11587 = vld [vmem:[#allocation12 + $0x8] sm:$0xf]
          %v11588 = vld [vmem:[#allocation12 + $0xc] sm:$0xf]
          %v11589 = vld [vmem:[#allocation12 + $0x10] sm:$0xf]
          %v11590 = vld [vmem:[#allocation12 + $0x14] sm:$0xf]
          %v11591 = vld [vmem:[#allocation12 + $0x18] sm:$0xf]
          %v11592 = vld [vmem:[#allocation12 + $0x1c] sm:$0xf]
          %v11593 = vld [vmem:[#allocation12 + $0x20] sm:$0xf]
          %v11594 = vld [vmem:[#allocation12 + $0x24] sm:$0xf]
          %v11595 = vld [vmem:[#allocation12 + $0x28] sm:$0xf]
          %v11596 = vld [vmem:[#allocation12 + $0x2c] sm:$0xf]
          %v11597 = vld [vmem:[#allocation12 + $0x30] sm:$0xf]
          %v11598 = vld [vmem:[#allocation12 + $0x34] sm:$0xf]
          %v11599 = vld [vmem:[#allocation12 + $0x38] sm:$0xf]
          %v11600 = vld [vmem:[#allocation12 + $0x3c] sm:$0xf]
          %v11601 = vld [vmem:[#allocation12 + $0x40] sm:$0xf]
          %v11602 = vld [vmem:[#allocation12 + $0x44] sm:$0xf]
          %v11603 = vld [vmem:[#allocation12 + $0x48] sm:$0xf]
          %v11604 = vld [vmem:[#allocation12 + $0x4c] sm:$0xf]
          %v11605 = vld [vmem:[#allocation12 + $0x50] sm:$0xf]
          %v11606 = vld [vmem:[#allocation12 + $0x54] sm:$0xf]
          %v11607 = vld [vmem:[#allocation12 + $0x58] sm:$0xf]
          %v11608 = vld [vmem:[#allocation12 + $0x5c] sm:$0xf]
          %v11609 = vld [vmem:[#allocation12 + $0x60] sm:$0xf]
          %v11610 = vld [vmem:[#allocation12 + $0x64] sm:$0xf]
          %v11611 = vld [vmem:[#allocation12 + $0x68] sm:$0xf]
          %v11612 = vld [vmem:[#allocation12 + $0x6c] sm:$0xf]
          %v11613 = vld [vmem:[#allocation12 + $0x70] sm:$0xf]
          %v11614 = vld [vmem:[#allocation12 + $0x74] sm:$0xf]
          %v11615 = vld [vmem:[#allocation12 + $0x78] sm:$0xf]
          %v11616 = vld [vmem:[#allocation12 + $0x7c] sm:$0xf]
          %v11617 = vld [vmem:[#allocation12 + $0x80] sm:$0xf]
          %v11618 = vld [vmem:[#allocation12 + $0x84] sm:$0xf]
          %v11619 = vld [vmem:[#allocation12 + $0x88] sm:$0xf]
          %v11620 = vld [vmem:[#allocation12 + $0x8c] sm:$0xf]
          %v11621 = vld [vmem:[#allocation12 + $0x90] sm:$0xf]
          %v11622 = vld [vmem:[#allocation12 + $0x94] sm:$0xf]
          %v11623 = vld [vmem:[#allocation12 + $0x98] sm:$0xf]
          %v11624 = vld [vmem:[#allocation12 + $0x9c] sm:$0xf]
          %v11625 = vld [vmem:[#allocation12 + $0xa0] sm:$0xf]
          %v11626 = vld [vmem:[#allocation12 + $0xa4] sm:$0xf]
          %v11627 = vld [vmem:[#allocation12 + $0xa8] sm:$0xf]
          %v11628 = vld [vmem:[#allocation12 + $0xac] sm:$0xf]
          %v11629 = vld [vmem:[#allocation12 + $0xb0] sm:$0xf]
          %v11630 = vld [vmem:[#allocation12 + $0xb4] sm:$0xf]
          %v11631 = vld [vmem:[#allocation12 + $0xb8] sm:$0xf]
          %v11632 = vld [vmem:[#allocation12 + $0xbc] sm:$0xf]
          %v11633 = vld [vmem:[#allocation12 + $0xc0] sm:$0xf]
          %v11634 = vld [vmem:[#allocation12 + $0xc4] sm:$0xf]
          %v11635 = vld [vmem:[#allocation12 + $0xc8] sm:$0xf]
          %v11636 = vld [vmem:[#allocation12 + $0xcc] sm:$0xf]
          %v11637 = vld [vmem:[#allocation12 + $0xd0] sm:$0xf]
          %v11638 = vld [vmem:[#allocation12 + $0xd4] sm:$0xf]
          %v11639 = vld [vmem:[#allocation12 + $0xd8] sm:$0xf]
          %v11640 = vld [vmem:[#allocation12 + $0xdc] sm:$0xf]
          %v11641 = vld [vmem:[#allocation12 + $0xe0] sm:$0xf]
          %v11642 = vld [vmem:[#allocation12 + $0xe4] sm:$0xf]
          %v11643 = vld [vmem:[#allocation12 + $0xe8] sm:$0xf]
          %v11644 = vld [vmem:[#allocation12 + $0xec] sm:$0xf]
          %v11645 = vld [vmem:[#allocation12 + $0xf0] sm:$0xf]
          %v11646 = vld [vmem:[#allocation12 + $0xf4] sm:$0xf]
          %v11647 = vld [vmem:[#allocation12 + $0xf8] sm:$0xf]
          %v11648 = vld [vmem:[#allocation12 + $0xfc] sm:$0xf]
          %v11649 = vld [vmem:[#allocation12 + $0x100] sm:$0xf]
          %v11650 = vld [vmem:[#allocation12 + $0x104] sm:$0xf]
          %v11651 = vld [vmem:[#allocation12 + $0x108] sm:$0xf]
          %v11652 = vld [vmem:[#allocation12 + $0x10c] sm:$0xf]
          %v11653 = vld [vmem:[#allocation12 + $0x110] sm:$0xf]
          %v11654 = vld [vmem:[#allocation12 + $0x114] sm:$0xf]
          %v11655 = vld [vmem:[#allocation12 + $0x118] sm:$0xf]
          %v11656 = vld [vmem:[#allocation12 + $0x11c] sm:$0xf]
          %v11657 = vld [vmem:[#allocation12 + $0x120] sm:$0xf]
          %v11658 = vld [vmem:[#allocation12 + $0x124] sm:$0xf]
          %v11659 = vld [vmem:[#allocation12 + $0x128] sm:$0xf]
          %v11660 = vld [vmem:[#allocation12 + $0x12c] sm:$0xf]
          %v11661 = vld [vmem:[#allocation12 + $0x130] sm:$0xf]
          %v11662 = vld [vmem:[#allocation12 + $0x134] sm:$0xf]
          %v11663 = vld [vmem:[#allocation12 + $0x138] sm:$0xf]
          %v11664 = vld [vmem:[#allocation12 + $0x13c] sm:$0xf]
          %v11665 = vld [vmem:[#allocation12 + $0x140] sm:$0xf]
          %v11666 = vld [vmem:[#allocation12 + $0x144] sm:$0xf]
          %v11667 = vld [vmem:[#allocation12 + $0x148] sm:$0xf]
          %v11668 = vld [vmem:[#allocation12 + $0x14c] sm:$0xf]
          %v11669 = vld [vmem:[#allocation12 + $0x150] sm:$0xf]
          %v11670 = vld [vmem:[#allocation12 + $0x154] sm:$0xf]
          %v11671 = vld [vmem:[#allocation12 + $0x158] sm:$0xf]
          %v11672 = vld [vmem:[#allocation12 + $0x15c] sm:$0xf]
          %v11673 = vld [vmem:[#allocation12 + $0x160] sm:$0xf]
          %v11674 = vld [vmem:[#allocation12 + $0x164] sm:$0xf]
          %v11675 = vld [vmem:[#allocation12 + $0x168] sm:$0xf]
          %v11676 = vld [vmem:[#allocation12 + $0x16c] sm:$0xf]
          %v11677 = vld [vmem:[#allocation12 + $0x170] sm:$0xf]
          %v11678 = vld [vmem:[#allocation12 + $0x174] sm:$0xf]
          %v11679 = vld [vmem:[#allocation12 + $0x178] sm:$0xf]
          %v11680 = vld [vmem:[#allocation12 + $0x17c] sm:$0xf]
          %v11681 = vld [vmem:[#allocation12 + $0x180] sm:$0xf]
          %v11682 = vld [vmem:[#allocation12 + $0x184] sm:$0xf]
          %v11683 = vld [vmem:[#allocation12 + $0x188] sm:$0xf]
          %v11684 = vld [vmem:[#allocation12 + $0x18c] sm:$0xf]
          %v11685 = vld [vmem:[#allocation12 + $0x190] sm:$0xf]
          %v11686 = vld [vmem:[#allocation12 + $0x194] sm:$0xf]
          %v11687 = vld [vmem:[#allocation12 + $0x198] sm:$0xf]
          %v11688 = vld [vmem:[#allocation12 + $0x19c] sm:$0xf]
          %v11689 = vld [vmem:[#allocation12 + $0x1a0] sm:$0xf]
          %v11690 = vld [vmem:[#allocation12 + $0x1a4] sm:$0xf]
          %v11691 = vld [vmem:[#allocation12 + $0x1a8] sm:$0xf]
          %v11692 = vld [vmem:[#allocation12 + $0x1ac] sm:$0xf]
          %v11693 = vld [vmem:[#allocation12 + $0x1b0] sm:$0xf]
          %v11694 = vld [vmem:[#allocation12 + $0x1b4] sm:$0xf]
          %v11695 = vld [vmem:[#allocation12 + $0x1b8] sm:$0xf]
          %v11696 = vld [vmem:[#allocation12 + $0x1bc] sm:$0xf]
          %v11697 = vld [vmem:[#allocation12 + $0x1c0] sm:$0xf]
          %v11698 = vld [vmem:[#allocation12 + $0x1c4] sm:$0xf]
          %v11699 = vld [vmem:[#allocation12 + $0x1c8] sm:$0xf]
          %v11700 = vld [vmem:[#allocation12 + $0x1cc] sm:$0xf]
          %v11701 = vld [vmem:[#allocation12 + $0x1d0] sm:$0xf]
          %v11702 = vld [vmem:[#allocation12 + $0x1d4] sm:$0xf]
          %v11703 = vld [vmem:[#allocation12 + $0x1d8] sm:$0xf]
          %v11704 = vld [vmem:[#allocation12 + $0x1dc] sm:$0xf]
          %v11705 = vld [vmem:[#allocation12 + $0x1e0] sm:$0xf]
          %v11706 = vld [vmem:[#allocation12 + $0x1e4] sm:$0xf]
          %v11707 = vld [vmem:[#allocation12 + $0x1e8] sm:$0xf]
          %v11708 = vld [vmem:[#allocation12 + $0x1ec] sm:$0xf]
          %v11709 = vld [vmem:[#allocation12 + $0x1f0] sm:$0xf]
          %v11710 = vld [vmem:[#allocation12 + $0x1f4] sm:$0xf]
          %v11711 = vld [vmem:[#allocation12 + $0x1f8] sm:$0xf]
          %v11712 = vld [vmem:[#allocation12 + $0x1fc] sm:$0xf]
          %s11713 = scalar_lea.vmem [#allocation3], 32
          %v11714 = vld [vmem:[%s11713] sm:$0xff]
          %v11715 = vld [vmem:[%s11713 + $0x8] sm:$0xff]
          %v11716 = vld [vmem:[%s11713 + $0x10] sm:$0xff]
          %v11717 = vld [vmem:[%s11713 + $0x18] sm:$0xff]
          %v11718 = vld [vmem:[#allocation12 + $0x200] sm:$0xf]
          %v11719 = vld [vmem:[#allocation12 + $0x204] sm:$0xf]
          %v11720 = vld [vmem:[#allocation12 + $0x208] sm:$0xf]
          %v11721 = vld [vmem:[#allocation12 + $0x20c] sm:$0xf]
          %v11722 = vld [vmem:[#allocation12 + $0x210] sm:$0xf]
          %v11723 = vld [vmem:[#allocation12 + $0x214] sm:$0xf]
          %v11724 = vld [vmem:[#allocation12 + $0x218] sm:$0xf]
          %v11725 = vld [vmem:[#allocation12 + $0x21c] sm:$0xf]
          %v11726 = vld [vmem:[#allocation12 + $0x220] sm:$0xf]
          %v11727 = vld [vmem:[#allocation12 + $0x224] sm:$0xf]
          %v11728 = vld [vmem:[#allocation12 + $0x228] sm:$0xf]
          %v11729 = vld [vmem:[#allocation12 + $0x22c] sm:$0xf]
          %v11730 = vld [vmem:[#allocation12 + $0x230] sm:$0xf]
          %v11731 = vld [vmem:[#allocation12 + $0x234] sm:$0xf]
          %v11732 = vld [vmem:[#allocation12 + $0x238] sm:$0xf]
          %v11733 = vld [vmem:[#allocation12 + $0x23c] sm:$0xf]
          %v11734 = vld [vmem:[#allocation12 + $0x240] sm:$0xf]
          %v11735 = vld [vmem:[#allocation12 + $0x244] sm:$0xf]
          %v11736 = vld [vmem:[#allocation12 + $0x248] sm:$0xf]
          %v11737 = vld [vmem:[#allocation12 + $0x24c] sm:$0xf]
          %v11738 = vld [vmem:[#allocation12 + $0x250] sm:$0xf]
          %v11739 = vld [vmem:[#allocation12 + $0x254] sm:$0xf]
          %v11740 = vld [vmem:[#allocation12 + $0x258] sm:$0xf]
          %v11741 = vld [vmem:[#allocation12 + $0x25c] sm:$0xf]
          %v11742 = vld [vmem:[#allocation12 + $0x260] sm:$0xf]
          %v11743 = vld [vmem:[#allocation12 + $0x264] sm:$0xf]
          %v11744 = vld [vmem:[#allocation12 + $0x268] sm:$0xf]
          %v11745 = vld [vmem:[#allocation12 + $0x26c] sm:$0xf]
          %v11746 = vld [vmem:[#allocation12 + $0x270] sm:$0xf]
          %v11747 = vld [vmem:[#allocation12 + $0x274] sm:$0xf]
          %v11748 = vld [vmem:[#allocation12 + $0x278] sm:$0xf]
          %v11749 = vld [vmem:[#allocation12 + $0x27c] sm:$0xf]
          %v11750 = vld [vmem:[#allocation12 + $0x280] sm:$0xf]
          %v11751 = vld [vmem:[#allocation12 + $0x284] sm:$0xf]
          %v11752 = vld [vmem:[#allocation12 + $0x288] sm:$0xf]
          %v11753 = vld [vmem:[#allocation12 + $0x28c] sm:$0xf]
          %v11754 = vld [vmem:[#allocation12 + $0x290] sm:$0xf]
          %v11755 = vld [vmem:[#allocation12 + $0x294] sm:$0xf]
          %v11756 = vld [vmem:[#allocation12 + $0x298] sm:$0xf]
          %v11757 = vld [vmem:[#allocation12 + $0x29c] sm:$0xf]
          %v11758 = vld [vmem:[#allocation12 + $0x2a0] sm:$0xf]
          %v11759 = vld [vmem:[#allocation12 + $0x2a4] sm:$0xf]
          %v11760 = vld [vmem:[#allocation12 + $0x2a8] sm:$0xf]
          %v11761 = vld [vmem:[#allocation12 + $0x2ac] sm:$0xf]
          %v11762 = vld [vmem:[#allocation12 + $0x2b0] sm:$0xf]
          %v11763 = vld [vmem:[#allocation12 + $0x2b4] sm:$0xf]
          %v11764 = vld [vmem:[#allocation12 + $0x2b8] sm:$0xf]
          %v11765 = vld [vmem:[#allocation12 + $0x2bc] sm:$0xf]
          %v11766 = vld [vmem:[#allocation12 + $0x2c0] sm:$0xf]
          %v11767 = vld [vmem:[#allocation12 + $0x2c4] sm:$0xf]
          %v11768 = vld [vmem:[#allocation12 + $0x2c8] sm:$0xf]
          %v11769 = vld [vmem:[#allocation12 + $0x2cc] sm:$0xf]
          %v11770 = vld [vmem:[#allocation12 + $0x2d0] sm:$0xf]
          %v11771 = vld [vmem:[#allocation12 + $0x2d4] sm:$0xf]
          %v11772 = vld [vmem:[#allocation12 + $0x2d8] sm:$0xf]
          %v11773 = vld [vmem:[#allocation12 + $0x2dc] sm:$0xf]
          %v11774 = vld [vmem:[#allocation12 + $0x2e0] sm:$0xf]
          %v11775 = vld [vmem:[#allocation12 + $0x2e4] sm:$0xf]
          %v11776 = vld [vmem:[#allocation12 + $0x2e8] sm:$0xf]
          %v11777 = vld [vmem:[#allocation12 + $0x2ec] sm:$0xf]
          %v11778 = vld [vmem:[#allocation12 + $0x2f0] sm:$0xf]
          %v11779 = vld [vmem:[#allocation12 + $0x2f4] sm:$0xf]
          %v11780 = vld [vmem:[#allocation12 + $0x2f8] sm:$0xf]
          %v11781 = vld [vmem:[#allocation12 + $0x2fc] sm:$0xf]
          %v11782 = vld [vmem:[#allocation12 + $0x300] sm:$0xf]
          %v11783 = vld [vmem:[#allocation12 + $0x304] sm:$0xf]
          %v11784 = vld [vmem:[#allocation12 + $0x308] sm:$0xf]
          %v11785 = vld [vmem:[#allocation12 + $0x30c] sm:$0xf]
          %v11786 = vld [vmem:[#allocation12 + $0x310] sm:$0xf]
          %v11787 = vld [vmem:[#allocation12 + $0x314] sm:$0xf]
          %v11788 = vld [vmem:[#allocation12 + $0x318] sm:$0xf]
          %v11789 = vld [vmem:[#allocation12 + $0x31c] sm:$0xf]
          %v11790 = vld [vmem:[#allocation12 + $0x320] sm:$0xf]
          %v11791 = vld [vmem:[#allocation12 + $0x324] sm:$0xf]
          %v11792 = vld [vmem:[#allocation12 + $0x328] sm:$0xf]
          %v11793 = vld [vmem:[#allocation12 + $0x32c] sm:$0xf]
          %v11794 = vld [vmem:[#allocation12 + $0x330] sm:$0xf]
          %v11795 = vld [vmem:[#allocation12 + $0x334] sm:$0xf]
          %v11796 = vld [vmem:[#allocation12 + $0x338] sm:$0xf]
          %v11797 = vld [vmem:[#allocation12 + $0x33c] sm:$0xf]
          %v11798 = vld [vmem:[#allocation12 + $0x340] sm:$0xf]
          %v11799 = vld [vmem:[#allocation12 + $0x344] sm:$0xf]
          %v11800 = vld [vmem:[#allocation12 + $0x348] sm:$0xf]
          %v11801 = vld [vmem:[#allocation12 + $0x34c] sm:$0xf]
          %v11802 = vld [vmem:[#allocation12 + $0x350] sm:$0xf]
          %v11803 = vld [vmem:[#allocation12 + $0x354] sm:$0xf]
          %v11804 = vld [vmem:[#allocation12 + $0x358] sm:$0xf]
          %v11805 = vld [vmem:[#allocation12 + $0x35c] sm:$0xf]
          %v11806 = vld [vmem:[#allocation12 + $0x360] sm:$0xf]
          %v11807 = vld [vmem:[#allocation12 + $0x364] sm:$0xf]
          %v11808 = vld [vmem:[#allocation12 + $0x368] sm:$0xf]
          %v11809 = vld [vmem:[#allocation12 + $0x36c] sm:$0xf]
          %v11810 = vld [vmem:[#allocation12 + $0x370] sm:$0xf]
          %v11811 = vld [vmem:[#allocation12 + $0x374] sm:$0xf]
          %v11812 = vld [vmem:[#allocation12 + $0x378] sm:$0xf]
          %v11813 = vld [vmem:[#allocation12 + $0x37c] sm:$0xf]
          %v11814 = vld [vmem:[#allocation12 + $0x380] sm:$0xf]
          %v11815 = vld [vmem:[#allocation12 + $0x384] sm:$0xf]
          %v11816 = vld [vmem:[#allocation12 + $0x388] sm:$0xf]
          %v11817 = vld [vmem:[#allocation12 + $0x38c] sm:$0xf]
          %v11818 = vld [vmem:[#allocation12 + $0x390] sm:$0xf]
          %v11819 = vld [vmem:[#allocation12 + $0x394] sm:$0xf]
          %v11820 = vld [vmem:[#allocation12 + $0x398] sm:$0xf]
          %v11821 = vld [vmem:[#allocation12 + $0x39c] sm:$0xf]
          %v11822 = vld [vmem:[#allocation12 + $0x3a0] sm:$0xf]
          %v11823 = vld [vmem:[#allocation12 + $0x3a4] sm:$0xf]
          %v11824 = vld [vmem:[#allocation12 + $0x3a8] sm:$0xf]
          %v11825 = vld [vmem:[#allocation12 + $0x3ac] sm:$0xf]
          %v11826 = vld [vmem:[#allocation12 + $0x3b0] sm:$0xf]
          %v11827 = vld [vmem:[#allocation12 + $0x3b4] sm:$0xf]
          %v11828 = vld [vmem:[#allocation12 + $0x3b8] sm:$0xf]
          %v11829 = vld [vmem:[#allocation12 + $0x3bc] sm:$0xf]
          %v11830 = vld [vmem:[#allocation12 + $0x3c0] sm:$0xf]
          %v11831 = vld [vmem:[#allocation12 + $0x3c4] sm:$0xf]
          %v11832 = vld [vmem:[#allocation12 + $0x3c8] sm:$0xf]
          %v11833 = vld [vmem:[#allocation12 + $0x3cc] sm:$0xf]
          %v11834 = vld [vmem:[#allocation12 + $0x3d0] sm:$0xf]
          %v11835 = vld [vmem:[#allocation12 + $0x3d4] sm:$0xf]
          %v11836 = vld [vmem:[#allocation12 + $0x3d8] sm:$0xf]
          %v11837 = vld [vmem:[#allocation12 + $0x3dc] sm:$0xf]
          %v11838 = vld [vmem:[#allocation12 + $0x3e0] sm:$0xf]
          %v11839 = vld [vmem:[#allocation12 + $0x3e4] sm:$0xf]
          %v11840 = vld [vmem:[#allocation12 + $0x3e8] sm:$0xf]
          %v11841 = vld [vmem:[#allocation12 + $0x3ec] sm:$0xf]
          %v11842 = vld [vmem:[#allocation12 + $0x3f0] sm:$0xf]
          %v11843 = vld [vmem:[#allocation12 + $0x3f4] sm:$0xf]
          %v11844 = vld [vmem:[#allocation12 + $0x3f8] sm:$0xf]
          %v11845 = vld [vmem:[#allocation12 + $0x3fc] sm:$0xf]
          %v11850 = vunpack.c.l.b16 %v11714
          %v11851 = vunpack.c.h.b16 %v11714
          %v11852 = vunpack.c.l.b16 %v11715
          %v11853 = vunpack.c.h.b16 %v11715
          %v11854 = vunpack.c.l.b16 %v11716
          %v11855 = vunpack.c.h.b16 %v11716
          %v11856 = vunpack.c.l.b16 %v11717
          %v11857 = vunpack.c.h.b16 %v11717
          %v11858 = vpack.c.b16 %v11850, %v11850
          %v11859 = vpack.c.b16 %v11851, %v11851
          %v11860 = vpack.c.b16 %v11852, %v11852
          %v11861 = vpack.c.b16 %v11853, %v11853
          %v11862 = vpack.c.b16 %v11854, %v11854
          %v11863 = vpack.c.b16 %v11855, %v11855
          %v11864 = vpack.c.b16 %v11856, %v11856
          %v11865 = vpack.c.b16 %v11857, %v11857
          %v12002 = vunpack.c.l.b16 %v11718
          %v12003 = vunpack.c.l.b16 %v11719
          %v12004 = vunpack.c.l.b16 %v11720
          %v12005 = vunpack.c.l.b16 %v11721
          %v12006 = vunpack.c.l.b16 %v11722
          %v12007 = vunpack.c.l.b16 %v11723
          %v12008 = vunpack.c.l.b16 %v11724
          %v12009 = vunpack.c.l.b16 %v11725
          %v12010 = vunpack.c.l.b16 %v11726
          %v12011 = vunpack.c.l.b16 %v11727
          %v12012 = vunpack.c.l.b16 %v11728
          %v12013 = vunpack.c.l.b16 %v11729
          %v12014 = vunpack.c.l.b16 %v11730
          %v12015 = vunpack.c.l.b16 %v11731
          %v12016 = vunpack.c.l.b16 %v11732
          %v12017 = vunpack.c.l.b16 %v11733
          %v12018 = vunpack.c.l.b16 %v11734
          %v12019 = vunpack.c.l.b16 %v11735
          %v12020 = vunpack.c.l.b16 %v11736
          %v12021 = vunpack.c.l.b16 %v11737
          %v12022 = vunpack.c.l.b16 %v11738
          %v12023 = vunpack.c.l.b16 %v11739
          %v12024 = vunpack.c.l.b16 %v11740
          %v12025 = vunpack.c.l.b16 %v11741
          %v12026 = vunpack.c.l.b16 %v11742
          %v12027 = vunpack.c.l.b16 %v11743
          %v12028 = vunpack.c.l.b16 %v11744
          %v12029 = vunpack.c.l.b16 %v11745
          %v12030 = vunpack.c.l.b16 %v11746
          %v12031 = vunpack.c.l.b16 %v11747
          %v12032 = vunpack.c.l.b16 %v11748
          %v12033 = vunpack.c.l.b16 %v11749
          %v12034 = vunpack.c.l.b16 %v11750
          %v12035 = vunpack.c.l.b16 %v11751
          %v12036 = vunpack.c.l.b16 %v11752
          %v12037 = vunpack.c.l.b16 %v11753
          %v12038 = vunpack.c.l.b16 %v11754
          %v12039 = vunpack.c.l.b16 %v11755
          %v12040 = vunpack.c.l.b16 %v11756
          %v12041 = vunpack.c.l.b16 %v11757
          %v12042 = vunpack.c.l.b16 %v11758
          %v12043 = vunpack.c.l.b16 %v11759
          %v12044 = vunpack.c.l.b16 %v11760
          %v12045 = vunpack.c.l.b16 %v11761
          %v12046 = vunpack.c.l.b16 %v11762
          %v12047 = vunpack.c.l.b16 %v11763
          %v12048 = vunpack.c.l.b16 %v11764
          %v12049 = vunpack.c.l.b16 %v11765
          %v12050 = vunpack.c.l.b16 %v11766
          %v12051 = vunpack.c.l.b16 %v11767
          %v12052 = vunpack.c.l.b16 %v11768
          %v12053 = vunpack.c.l.b16 %v11769
          %v12054 = vunpack.c.l.b16 %v11770
          %v12055 = vunpack.c.l.b16 %v11771
          %v12056 = vunpack.c.l.b16 %v11772
          %v12057 = vunpack.c.l.b16 %v11773
          %v12058 = vunpack.c.l.b16 %v11774
          %v12059 = vunpack.c.l.b16 %v11775
          %v12060 = vunpack.c.l.b16 %v11776
          %v12061 = vunpack.c.l.b16 %v11777
          %v12062 = vunpack.c.l.b16 %v11778
          %v12063 = vunpack.c.l.b16 %v11779
          %v12064 = vunpack.c.l.b16 %v11780
          %v12065 = vunpack.c.l.b16 %v11781
          %v12066 = vunpack.c.l.b16 %v11782
          %v12067 = vunpack.c.l.b16 %v11783
          %v12068 = vunpack.c.l.b16 %v11784
          %v12069 = vunpack.c.l.b16 %v11785
          %v12070 = vunpack.c.l.b16 %v11786
          %v12071 = vunpack.c.l.b16 %v11787
          %v12072 = vunpack.c.l.b16 %v11788
          %v12073 = vunpack.c.l.b16 %v11789
          %v12074 = vunpack.c.l.b16 %v11790
          %v12075 = vunpack.c.l.b16 %v11791
          %v12076 = vunpack.c.l.b16 %v11792
          %v12077 = vunpack.c.l.b16 %v11793
          %v12078 = vunpack.c.l.b16 %v11794
          %v12079 = vunpack.c.l.b16 %v11795
          %v12080 = vunpack.c.l.b16 %v11796
          %v12081 = vunpack.c.l.b16 %v11797
          %v12082 = vunpack.c.l.b16 %v11798
          %v12083 = vunpack.c.l.b16 %v11799
          %v12084 = vunpack.c.l.b16 %v11800
          %v12085 = vunpack.c.l.b16 %v11801
          %v12086 = vunpack.c.l.b16 %v11802
          %v12087 = vunpack.c.l.b16 %v11803
          %v12088 = vunpack.c.l.b16 %v11804
          %v12089 = vunpack.c.l.b16 %v11805
          %v12090 = vunpack.c.l.b16 %v11806
          %v12091 = vunpack.c.l.b16 %v11807
          %v12092 = vunpack.c.l.b16 %v11808
          %v12093 = vunpack.c.l.b16 %v11809
          %v12094 = vunpack.c.l.b16 %v11810
          %v12095 = vunpack.c.l.b16 %v11811
          %v12096 = vunpack.c.l.b16 %v11812
          %v12097 = vunpack.c.l.b16 %v11813
          %v12098 = vunpack.c.l.b16 %v11814
          %v12099 = vunpack.c.l.b16 %v11815
          %v12100 = vunpack.c.l.b16 %v11816
          %v12101 = vunpack.c.l.b16 %v11817
          %v12102 = vunpack.c.l.b16 %v11818
          %v12103 = vunpack.c.l.b16 %v11819
          %v12104 = vunpack.c.l.b16 %v11820
          %v12105 = vunpack.c.l.b16 %v11821
          %v12106 = vunpack.c.l.b16 %v11822
          %v12107 = vunpack.c.l.b16 %v11823
          %v12108 = vunpack.c.l.b16 %v11824
          %v12109 = vunpack.c.l.b16 %v11825
          %v12110 = vunpack.c.l.b16 %v11826
          %v12111 = vunpack.c.l.b16 %v11827
          %v12112 = vunpack.c.l.b16 %v11828
          %v12113 = vunpack.c.l.b16 %v11829
          %v12114 = vunpack.c.l.b16 %v11830
          %v12115 = vunpack.c.l.b16 %v11831
          %v12116 = vunpack.c.l.b16 %v11832
          %v12117 = vunpack.c.l.b16 %v11833
          %v12118 = vunpack.c.l.b16 %v11834
          %v12119 = vunpack.c.l.b16 %v11835
          %v12120 = vunpack.c.l.b16 %v11836
          %v12121 = vunpack.c.l.b16 %v11837
          %v12122 = vunpack.c.l.b16 %v11838
          %v12123 = vunpack.c.l.b16 %v11839
          %v12124 = vunpack.c.l.b16 %v11840
          %v12125 = vunpack.c.l.b16 %v11841
          %v12126 = vunpack.c.l.b16 %v11842
          %v12127 = vunpack.c.l.b16 %v11843
          %v12128 = vunpack.c.l.b16 %v11844
          %v12129 = vunpack.c.l.b16 %v11845
          %v12130 = vpack.c.b16 %v12003, %v12002
          %v12131 = vpack.c.b16 %v12005, %v12004
          %v12132 = vpack.c.b16 %v12007, %v12006
          %v12133 = vpack.c.b16 %v12009, %v12008
          %v12134 = vpack.c.b16 %v12011, %v12010
          %v12135 = vpack.c.b16 %v12013, %v12012
          %v12136 = vpack.c.b16 %v12015, %v12014
          %v12137 = vpack.c.b16 %v12017, %v12016
          %v12138 = vpack.c.b16 %v12019, %v12018
          %v12139 = vpack.c.b16 %v12021, %v12020
          %v12140 = vpack.c.b16 %v12023, %v12022
          %v12141 = vpack.c.b16 %v12025, %v12024
          %v12142 = vpack.c.b16 %v12027, %v12026
          %v12143 = vpack.c.b16 %v12029, %v12028
          %v12144 = vpack.c.b16 %v12031, %v12030
          %v12145 = vpack.c.b16 %v12033, %v12032
          %v12146 = vpack.c.b16 %v12035, %v12034
          %v12147 = vpack.c.b16 %v12037, %v12036
          %v12148 = vpack.c.b16 %v12039, %v12038
          %v12149 = vpack.c.b16 %v12041, %v12040
          %v12150 = vpack.c.b16 %v12043, %v12042
          %v12151 = vpack.c.b16 %v12045, %v12044
          %v12152 = vpack.c.b16 %v12047, %v12046
          %v12153 = vpack.c.b16 %v12049, %v12048
          %v12154 = vpack.c.b16 %v12051, %v12050
          %v12155 = vpack.c.b16 %v12053, %v12052
          %v12156 = vpack.c.b16 %v12055, %v12054
          %v12157 = vpack.c.b16 %v12057, %v12056
          %v12158 = vpack.c.b16 %v12059, %v12058
          %v12159 = vpack.c.b16 %v12061, %v12060
          %v12160 = vpack.c.b16 %v12063, %v12062
          %v12161 = vpack.c.b16 %v12065, %v12064
          %v12162 = vpack.c.b16 %v12067, %v12066
          %v12163 = vpack.c.b16 %v12069, %v12068
          %v12164 = vpack.c.b16 %v12071, %v12070
          %v12165 = vpack.c.b16 %v12073, %v12072
          %v12166 = vpack.c.b16 %v12075, %v12074
          %v12167 = vpack.c.b16 %v12077, %v12076
          %v12168 = vpack.c.b16 %v12079, %v12078
          %v12169 = vpack.c.b16 %v12081, %v12080
          %v12170 = vpack.c.b16 %v12083, %v12082
          %v12171 = vpack.c.b16 %v12085, %v12084
          %v12172 = vpack.c.b16 %v12087, %v12086
          %v12173 = vpack.c.b16 %v12089, %v12088
          %v12174 = vpack.c.b16 %v12091, %v12090
          %v12175 = vpack.c.b16 %v12093, %v12092
          %v12176 = vpack.c.b16 %v12095, %v12094
          %v12177 = vpack.c.b16 %v12097, %v12096
          %v12178 = vpack.c.b16 %v12099, %v12098
          %v12179 = vpack.c.b16 %v12101, %v12100
          %v12180 = vpack.c.b16 %v12103, %v12102
          %v12181 = vpack.c.b16 %v12105, %v12104
          %v12182 = vpack.c.b16 %v12107, %v12106
          %v12183 = vpack.c.b16 %v12109, %v12108
          %v12184 = vpack.c.b16 %v12111, %v12110
          %v12185 = vpack.c.b16 %v12113, %v12112
          %v12186 = vpack.c.b16 %v12115, %v12114
          %v12187 = vpack.c.b16 %v12117, %v12116
          %v12188 = vpack.c.b16 %v12119, %v12118
          %v12189 = vpack.c.b16 %v12121, %v12120
          %v12190 = vpack.c.b16 %v12123, %v12122
          %v12191 = vpack.c.b16 %v12125, %v12124
          %v12192 = vpack.c.b16 %v12127, %v12126
          %v12193 = vpack.c.b16 %v12129, %v12128
          %12258 = vmatprep.subr.bf16.mxu0 0
          %12259 = vmatpush1.bf16.msra.mxu0 %v12130
          %12260 = vmatprep.subr.bf16.mxu0 0
          %12261 = vmatpush1.bf16.msra.mxu0 %v12131
          %12262 = vmatprep.subr.bf16.mxu0 0
          %12263 = vmatpush1.bf16.msra.mxu0 %v12132
          %12264 = vmatprep.subr.bf16.mxu0 0
          %12265 = vmatpush1.bf16.msra.mxu0 %v12133
          %12266 = vmatprep.subr.bf16.mxu0 0
          %12267 = vmatpush1.bf16.msra.mxu0 %v12134
          %12268 = vmatprep.subr.bf16.mxu0 0
          %12269 = vmatpush1.bf16.msra.mxu0 %v12135
          %12270 = vmatprep.subr.bf16.mxu0 0
          %12271 = vmatpush1.bf16.msra.mxu0 %v12136
          %12272 = vmatprep.subr.bf16.mxu0 0
          %12273 = vmatpush1.bf16.msra.mxu0 %v12137
          %12274 = vmatprep.subr.bf16.mxu0 0
          %12275 = vmatpush1.bf16.msra.mxu0 %v12138
          %12276 = vmatprep.subr.bf16.mxu0 0
          %12277 = vmatpush1.bf16.msra.mxu0 %v12139
          %12278 = vmatprep.subr.bf16.mxu0 0
          %12279 = vmatpush1.bf16.msra.mxu0 %v12140
          %12280 = vmatprep.subr.bf16.mxu0 0
          %12281 = vmatpush1.bf16.msra.mxu0 %v12141
          %12282 = vmatprep.subr.bf16.mxu0 0
          %12283 = vmatpush1.bf16.msra.mxu0 %v12142
          %12284 = vmatprep.subr.bf16.mxu0 0
          %12285 = vmatpush1.bf16.msra.mxu0 %v12143
          %12286 = vmatprep.subr.bf16.mxu0 0
          %12287 = vmatpush1.bf16.msra.mxu0 %v12144
          %12288 = vmatprep.subr.bf16.mxu0 0
          %12289 = vmatpush1.bf16.msra.mxu0 %v12145
          %12290 = vmatprep.mubr.bf16.mxu0 %v11859
          %12291 = vmatmul.mubr.bf16.gmra.mrb[0].mxu0 %v11858
          %v12292 = vpop.f32.mrb[0].mxu0
          %v12293 = vadd.f32 0.0, %v12292
          %v12294 = vpop.f32.mrb[0].mxu0
          %v12295 = vpop.f32.mrb[0].mxu0
          %v12296 = vpop.f32.mrb[0].mxu0
          %12297 = vdwg.mxu0
          %12298 = vmatprep.subr.bf16.mxu0 0
          %12299 = vmatpush1.bf16.msra.mxu0 %v12146
          %12300 = vmatprep.subr.bf16.mxu0 0
          %12301 = vmatpush1.bf16.msra.mxu0 %v12147
          %12302 = vmatprep.subr.bf16.mxu0 0
          %12303 = vmatpush1.bf16.msra.mxu0 %v12148
          %12304 = vmatprep.subr.bf16.mxu0 0
          %12305 = vmatpush1.bf16.msra.mxu0 %v12149
          %12306 = vmatprep.subr.bf16.mxu0 0
          %12307 = vmatpush1.bf16.msra.mxu0 %v12150
          %12308 = vmatprep.subr.bf16.mxu0 0
          %12309 = vmatpush1.bf16.msra.mxu0 %v12151
          %12310 = vmatprep.subr.bf16.mxu0 0
          %12311 = vmatpush1.bf16.msra.mxu0 %v12152
          %12312 = vmatprep.subr.bf16.mxu0 0
          %12313 = vmatpush1.bf16.msra.mxu0 %v12153
          %12314 = vmatprep.subr.bf16.mxu0 0
          %12315 = vmatpush1.bf16.msra.mxu0 %v12154
          %12316 = vmatprep.subr.bf16.mxu0 0
          %12317 = vmatpush1.bf16.msra.mxu0 %v12155
          %12318 = vmatprep.subr.bf16.mxu0 0
          %12319 = vmatpush1.bf16.msra.mxu0 %v12156
          %12320 = vmatprep.subr.bf16.mxu0 0
          %12321 = vmatpush1.bf16.msra.mxu0 %v12157
          %12322 = vmatprep.subr.bf16.mxu0 0
          %12323 = vmatpush1.bf16.msra.mxu0 %v12158
          %12324 = vmatprep.subr.bf16.mxu0 0
          %12325 = vmatpush1.bf16.msra.mxu0 %v12159
          %12326 = vmatprep.subr.bf16.mxu0 0
          %12327 = vmatpush1.bf16.msra.mxu0 %v12160
          %12328 = vmatprep.subr.bf16.mxu0 0
          %12329 = vmatpush1.bf16.msra.mxu0 %v12161
          %12330 = vmatprep.mubr.bf16.mxu0 %v11861
          %12331 = vmatmul.mubr.bf16.gmra.mrb[0].mxu0 %v11860
          %v12332 = vpop.f32.mrb[0].mxu0
          %v12333 = vadd.f32 %v12293, %v12332
          %v12334 = vpop.f32.mrb[0].mxu0
          %v12335 = vpop.f32.mrb[0].mxu0
          %v12336 = vpop.f32.mrb[0].mxu0
          %12337 = vdwg.mxu0
          %12338 = vmatprep.subr.bf16.mxu0 0
          %12339 = vmatpush1.bf16.msra.mxu0 %v12162
          %12340 = vmatprep.subr.bf16.mxu0 0
          %12341 = vmatpush1.bf16.msra.mxu0 %v12163
          %12342 = vmatprep.subr.bf16.mxu0 0
          %12343 = vmatpush1.bf16.msra.mxu0 %v12164
          %12344 = vmatprep.subr.bf16.mxu0 0
          %12345 = vmatpush1.bf16.msra.mxu0 %v12165
          %12346 = vmatprep.subr.bf16.mxu0 0
          %12347 = vmatpush1.bf16.msra.mxu0 %v12166
          %12348 = vmatprep.subr.bf16.mxu0 0
          %12349 = vmatpush1.bf16.msra.mxu0 %v12167
          %12350 = vmatprep.subr.bf16.mxu0 0
          %12351 = vmatpush1.bf16.msra.mxu0 %v12168
          %12352 = vmatprep.subr.bf16.mxu0 0
          %12353 = vmatpush1.bf16.msra.mxu0 %v12169
          %12354 = vmatprep.subr.bf16.mxu0 0
          %12355 = vmatpush1.bf16.msra.mxu0 %v12170
          %12356 = vmatprep.subr.bf16.mxu0 0
          %12357 = vmatpush1.bf16.msra.mxu0 %v12171
          %12358 = vmatprep.subr.bf16.mxu0 0
          %12359 = vmatpush1.bf16.msra.mxu0 %v12172
          %12360 = vmatprep.subr.bf16.mxu0 0
          %12361 = vmatpush1.bf16.msra.mxu0 %v12173
          %12362 = vmatprep.subr.bf16.mxu0 0
          %12363 = vmatpush1.bf16.msra.mxu0 %v12174
          %12364 = vmatprep.subr.bf16.mxu0 0
          %12365 = vmatpush1.bf16.msra.mxu0 %v12175
          %12366 = vmatprep.subr.bf16.mxu0 0
          %12367 = vmatpush1.bf16.msra.mxu0 %v12176
          %12368 = vmatprep.subr.bf16.mxu0 0
          %12369 = vmatpush1.bf16.msra.mxu0 %v12177
          %12370 = vmatprep.mubr.bf16.mxu0 %v11863
          %12371 = vmatmul.mubr.bf16.gmra.mrb[0].mxu0 %v11862
          %v12372 = vpop.f32.mrb[0].mxu0
          %v12373 = vadd.f32 %v12333, %v12372
          %v12374 = vpop.f32.mrb[0].mxu0
          %v12375 = vpop.f32.mrb[0].mxu0
          %v12376 = vpop.f32.mrb[0].mxu0
          %12377 = vdwg.mxu0
          %12378 = vmatprep.subr.bf16.mxu0 0
          %12379 = vmatpush1.bf16.msra.mxu0 %v12178
          %12380 = vmatprep.subr.bf16.mxu0 0
          %12381 = vmatpush1.bf16.msra.mxu0 %v12179
          %12382 = vmatprep.subr.bf16.mxu0 0
          %12383 = vmatpush1.bf16.msra.mxu0 %v12180
          %12384 = vmatprep.subr.bf16.mxu0 0
          %12385 = vmatpush1.bf16.msra.mxu0 %v12181
          %12386 = vmatprep.subr.bf16.mxu0 0
          %12387 = vmatpush1.bf16.msra.mxu0 %v12182
          %12388 = vmatprep.subr.bf16.mxu0 0
          %12389 = vmatpush1.bf16.msra.mxu0 %v12183
          %12390 = vmatprep.subr.bf16.mxu0 0
          %12391 = vmatpush1.bf16.msra.mxu0 %v12184
          %12392 = vmatprep.subr.bf16.mxu0 0
          %12393 = vmatpush1.bf16.msra.mxu0 %v12185
          %12394 = vmatprep.subr.bf16.mxu0 0
          %12395 = vmatpush1.bf16.msra.mxu0 %v12186
          %12396 = vmatprep.subr.bf16.mxu0 0
          %12397 = vmatpush1.bf16.msra.mxu0 %v12187
          %12398 = vmatprep.subr.bf16.mxu0 0
          %12399 = vmatpush1.bf16.msra.mxu0 %v12188
          %12400 = vmatprep.subr.bf16.mxu0 0
          %12401 = vmatpush1.bf16.msra.mxu0 %v12189
          %12402 = vmatprep.subr.bf16.mxu0 0
          %12403 = vmatpush1.bf16.msra.mxu0 %v12190
          %12404 = vmatprep.subr.bf16.mxu0 0
          %12405 = vmatpush1.bf16.msra.mxu0 %v12191
          %12406 = vmatprep.subr.bf16.mxu0 0
          %12407 = vmatpush1.bf16.msra.mxu0 %v12192
          %12408 = vmatprep.subr.bf16.mxu0 0
          %12409 = vmatpush1.bf16.msra.mxu0 %v12193
          %12410 = vmatprep.mubr.bf16.mxu0 %v11865
          %12411 = vmatmul.mubr.bf16.gmra.mrb[0].mxu0 %v11864
          %v12412 = vpop.f32.mrb[0].mxu0
          %v12413 = vadd.f32 %v12373, %v12412
          %v12414 = vpop.f32.mrb[0].mxu0
          %v12415 = vpop.f32.mrb[0].mxu0
          %v12416 = vpop.f32.mrb[0].mxu0
          %12417 = vdwg.mxu0
          %v12422 = vunpack.c.l.b16 %v11581
          %v12423 = vunpack.c.h.b16 %v11581
          %v12424 = vunpack.c.l.b16 %v11582
          %v12425 = vunpack.c.h.b16 %v11582
          %v12426 = vunpack.c.l.b16 %v11583
          %v12427 = vunpack.c.h.b16 %v11583
          %v12428 = vunpack.c.l.b16 %v11584
          %v12429 = vunpack.c.h.b16 %v11584
          %v12430 = vpack.c.b16 %v12422, %v12422
          %v12431 = vpack.c.b16 %v12423, %v12423
          %v12432 = vpack.c.b16 %v12424, %v12424
          %v12433 = vpack.c.b16 %v12425, %v12425
          %v12434 = vpack.c.b16 %v12426, %v12426
          %v12435 = vpack.c.b16 %v12427, %v12427
          %v12436 = vpack.c.b16 %v12428, %v12428
          %v12437 = vpack.c.b16 %v12429, %v12429
          %v12574 = vunpack.c.l.b16 %v11585
          %v12575 = vunpack.c.l.b16 %v11586
          %v12576 = vunpack.c.l.b16 %v11587
          %v12577 = vunpack.c.l.b16 %v11588
          %v12578 = vunpack.c.l.b16 %v11589
          %v12579 = vunpack.c.l.b16 %v11590
          %v12580 = vunpack.c.l.b16 %v11591
          %v12581 = vunpack.c.l.b16 %v11592
          %v12582 = vunpack.c.l.b16 %v11593
          %v12583 = vunpack.c.l.b16 %v11594
          %v12584 = vunpack.c.l.b16 %v11595
          %v12585 = vunpack.c.l.b16 %v11596
          %v12586 = vunpack.c.l.b16 %v11597
          %v12587 = vunpack.c.l.b16 %v11598
          %v12588 = vunpack.c.l.b16 %v11599
          %v12589 = vunpack.c.l.b16 %v11600
          %v12590 = vunpack.c.l.b16 %v11601
          %v12591 = vunpack.c.l.b16 %v11602
          %v12592 = vunpack.c.l.b16 %v11603
          %v12593 = vunpack.c.l.b16 %v11604
          %v12594 = vunpack.c.l.b16 %v11605
          %v12595 = vunpack.c.l.b16 %v11606
          %v12596 = vunpack.c.l.b16 %v11607
          %v12597 = vunpack.c.l.b16 %v11608
          %v12598 = vunpack.c.l.b16 %v11609
          %v12599 = vunpack.c.l.b16 %v11610
          %v12600 = vunpack.c.l.b16 %v11611
          %v12601 = vunpack.c.l.b16 %v11612
          %v12602 = vunpack.c.l.b16 %v11613
          %v12603 = vunpack.c.l.b16 %v11614
          %v12604 = vunpack.c.l.b16 %v11615
          %v12605 = vunpack.c.l.b16 %v11616
          %v12606 = vunpack.c.l.b16 %v11617
          %v12607 = vunpack.c.l.b16 %v11618
          %v12608 = vunpack.c.l.b16 %v11619
          %v12609 = vunpack.c.l.b16 %v11620
          %v12610 = vunpack.c.l.b16 %v11621
          %v12611 = vunpack.c.l.b16 %v11622
          %v12612 = vunpack.c.l.b16 %v11623
          %v12613 = vunpack.c.l.b16 %v11624
          %v12614 = vunpack.c.l.b16 %v11625
          %v12615 = vunpack.c.l.b16 %v11626
          %v12616 = vunpack.c.l.b16 %v11627
          %v12617 = vunpack.c.l.b16 %v11628
          %v12618 = vunpack.c.l.b16 %v11629
          %v12619 = vunpack.c.l.b16 %v11630
          %v12620 = vunpack.c.l.b16 %v11631
          %v12621 = vunpack.c.l.b16 %v11632
          %v12622 = vunpack.c.l.b16 %v11633
          %v12623 = vunpack.c.l.b16 %v11634
          %v12624 = vunpack.c.l.b16 %v11635
          %v12625 = vunpack.c.l.b16 %v11636
          %v12626 = vunpack.c.l.b16 %v11637
          %v12627 = vunpack.c.l.b16 %v11638
          %v12628 = vunpack.c.l.b16 %v11639
          %v12629 = vunpack.c.l.b16 %v11640
          %v12630 = vunpack.c.l.b16 %v11641
          %v12631 = vunpack.c.l.b16 %v11642
          %v12632 = vunpack.c.l.b16 %v11643
          %v12633 = vunpack.c.l.b16 %v11644
          %v12634 = vunpack.c.l.b16 %v11645
          %v12635 = vunpack.c.l.b16 %v11646
          %v12636 = vunpack.c.l.b16 %v11647
          %v12637 = vunpack.c.l.b16 %v11648
          %v12638 = vunpack.c.l.b16 %v11649
          %v12639 = vunpack.c.l.b16 %v11650
          %v12640 = vunpack.c.l.b16 %v11651
          %v12641 = vunpack.c.l.b16 %v11652
          %v12642 = vunpack.c.l.b16 %v11653
          %v12643 = vunpack.c.l.b16 %v11654
          %v12644 = vunpack.c.l.b16 %v11655
          %v12645 = vunpack.c.l.b16 %v11656
          %v12646 = vunpack.c.l.b16 %v11657
          %v12647 = vunpack.c.l.b16 %v11658
          %v12648 = vunpack.c.l.b16 %v11659
          %v12649 = vunpack.c.l.b16 %v11660
          %v12650 = vunpack.c.l.b16 %v11661
          %v12651 = vunpack.c.l.b16 %v11662
          %v12652 = vunpack.c.l.b16 %v11663
          %v12653 = vunpack.c.l.b16 %v11664
          %v12654 = vunpack.c.l.b16 %v11665
          %v12655 = vunpack.c.l.b16 %v11666
          %v12656 = vunpack.c.l.b16 %v11667
          %v12657 = vunpack.c.l.b16 %v11668
          %v12658 = vunpack.c.l.b16 %v11669
          %v12659 = vunpack.c.l.b16 %v11670
          %v12660 = vunpack.c.l.b16 %v11671
          %v12661 = vunpack.c.l.b16 %v11672
          %v12662 = vunpack.c.l.b16 %v11673
          %v12663 = vunpack.c.l.b16 %v11674
          %v12664 = vunpack.c.l.b16 %v11675
          %v12665 = vunpack.c.l.b16 %v11676
          %v12666 = vunpack.c.l.b16 %v11677
          %v12667 = vunpack.c.l.b16 %v11678
          %v12668 = vunpack.c.l.b16 %v11679
          %v12669 = vunpack.c.l.b16 %v11680
          %v12670 = vunpack.c.l.b16 %v11681
          %v12671 = vunpack.c.l.b16 %v11682
          %v12672 = vunpack.c.l.b16 %v11683
          %v12673 = vunpack.c.l.b16 %v11684
          %v12674 = vunpack.c.l.b16 %v11685
          %v12675 = vunpack.c.l.b16 %v11686
          %v12676 = vunpack.c.l.b16 %v11687
          %v12677 = vunpack.c.l.b16 %v11688
          %v12678 = vunpack.c.l.b16 %v11689
          %v12679 = vunpack.c.l.b16 %v11690
          %v12680 = vunpack.c.l.b16 %v11691
          %v12681 = vunpack.c.l.b16 %v11692
          %v12682 = vunpack.c.l.b16 %v11693
          %v12683 = vunpack.c.l.b16 %v11694
          %v12684 = vunpack.c.l.b16 %v11695
          %v12685 = vunpack.c.l.b16 %v11696
          %v12686 = vunpack.c.l.b16 %v11697
          %v12687 = vunpack.c.l.b16 %v11698
          %v12688 = vunpack.c.l.b16 %v11699
          %v12689 = vunpack.c.l.b16 %v11700
          %v12690 = vunpack.c.l.b16 %v11701
          %v12691 = vunpack.c.l.b16 %v11702
          %v12692 = vunpack.c.l.b16 %v11703
          %v12693 = vunpack.c.l.b16 %v11704
          %v12694 = vunpack.c.l.b16 %v11705
          %v12695 = vunpack.c.l.b16 %v11706
          %v12696 = vunpack.c.l.b16 %v11707
          %v12697 = vunpack.c.l.b16 %v11708
          %v12698 = vunpack.c.l.b16 %v11709
          %v12699 = vunpack.c.l.b16 %v11710
          %v12700 = vunpack.c.l.b16 %v11711
          %v12701 = vunpack.c.l.b16 %v11712
          %v12702 = vpack.c.b16 %v12575, %v12574
          %v12703 = vpack.c.b16 %v12577, %v12576
          %v12704 = vpack.c.b16 %v12579, %v12578
          %v12705 = vpack.c.b16 %v12581, %v12580
          %v12706 = vpack.c.b16 %v12583, %v12582
          %v12707 = vpack.c.b16 %v12585, %v12584
          %v12708 = vpack.c.b16 %v12587, %v12586
          %v12709 = vpack.c.b16 %v12589, %v12588
          %v12710 = vpack.c.b16 %v12591, %v12590
          %v12711 = vpack.c.b16 %v12593, %v12592
          %v12712 = vpack.c.b16 %v12595, %v12594
          %v12713 = vpack.c.b16 %v12597, %v12596
          %v12714 = vpack.c.b16 %v12599, %v12598
          %v12715 = vpack.c.b16 %v12601, %v12600
          %v12716 = vpack.c.b16 %v12603, %v12602
          %v12717 = vpack.c.b16 %v12605, %v12604
          %v12718 = vpack.c.b16 %v12607, %v12606
          %v12719 = vpack.c.b16 %v12609, %v12608
          %v12720 = vpack.c.b16 %v12611, %v12610
          %v12721 = vpack.c.b16 %v12613, %v12612
          %v12722 = vpack.c.b16 %v12615, %v12614
          %v12723 = vpack.c.b16 %v12617, %v12616
          %v12724 = vpack.c.b16 %v12619, %v12618
          %v12725 = vpack.c.b16 %v12621, %v12620
          %v12726 = vpack.c.b16 %v12623, %v12622
          %v12727 = vpack.c.b16 %v12625, %v12624
          %v12728 = vpack.c.b16 %v12627, %v12626
          %v12729 = vpack.c.b16 %v12629, %v12628
          %v12730 = vpack.c.b16 %v12631, %v12630
          %v12731 = vpack.c.b16 %v12633, %v12632
          %v12732 = vpack.c.b16 %v12635, %v12634
          %v12733 = vpack.c.b16 %v12637, %v12636
          %v12734 = vpack.c.b16 %v12639, %v12638
          %v12735 = vpack.c.b16 %v12641, %v12640
          %v12736 = vpack.c.b16 %v12643, %v12642
          %v12737 = vpack.c.b16 %v12645, %v12644
          %v12738 = vpack.c.b16 %v12647, %v12646
          %v12739 = vpack.c.b16 %v12649, %v12648
          %v12740 = vpack.c.b16 %v12651, %v12650
          %v12741 = vpack.c.b16 %v12653, %v12652
          %v12742 = vpack.c.b16 %v12655, %v12654
          %v12743 = vpack.c.b16 %v12657, %v12656
          %v12744 = vpack.c.b16 %v12659, %v12658
          %v12745 = vpack.c.b16 %v12661, %v12660
          %v12746 = vpack.c.b16 %v12663, %v12662
          %v12747 = vpack.c.b16 %v12665, %v12664
          %v12748 = vpack.c.b16 %v12667, %v12666
          %v12749 = vpack.c.b16 %v12669, %v12668
          %v12750 = vpack.c.b16 %v12671, %v12670
          %v12751 = vpack.c.b16 %v12673, %v12672
          %v12752 = vpack.c.b16 %v12675, %v12674
          %v12753 = vpack.c.b16 %v12677, %v12676
          %v12754 = vpack.c.b16 %v12679, %v12678
          %v12755 = vpack.c.b16 %v12681, %v12680
          %v12756 = vpack.c.b16 %v12683, %v12682
          %v12757 = vpack.c.b16 %v12685, %v12684
          %v12758 = vpack.c.b16 %v12687, %v12686
          %v12759 = vpack.c.b16 %v12689, %v12688
          %v12760 = vpack.c.b16 %v12691, %v12690
          %v12761 = vpack.c.b16 %v12693, %v12692
          %v12762 = vpack.c.b16 %v12695, %v12694
          %v12763 = vpack.c.b16 %v12697, %v12696
          %v12764 = vpack.c.b16 %v12699, %v12698
          %v12765 = vpack.c.b16 %v12701, %v12700
          %12830 = vmatprep.subr.bf16.mxu0 0
          %12831 = vmatpush1.bf16.msra.mxu0 %v12702
          %12832 = vmatprep.subr.bf16.mxu0 0
          %12833 = vmatpush1.bf16.msra.mxu0 %v12703
          %12834 = vmatprep.subr.bf16.mxu0 0
          %12835 = vmatpush1.bf16.msra.mxu0 %v12704
          %12836 = vmatprep.subr.bf16.mxu0 0
          %12837 = vmatpush1.bf16.msra.mxu0 %v12705
          %12838 = vmatprep.subr.bf16.mxu0 0
          %12839 = vmatpush1.bf16.msra.mxu0 %v12706
          %12840 = vmatprep.subr.bf16.mxu0 0
          %12841 = vmatpush1.bf16.msra.mxu0 %v12707
          %12842 = vmatprep.subr.bf16.mxu0 0
          %12843 = vmatpush1.bf16.msra.mxu0 %v12708
          %12844 = vmatprep.subr.bf16.mxu0 0
          %12845 = vmatpush1.bf16.msra.mxu0 %v12709
          %12846 = vmatprep.subr.bf16.mxu0 0
          %12847 = vmatpush1.bf16.msra.mxu0 %v12710
          %12848 = vmatprep.subr.bf16.mxu0 0
          %12849 = vmatpush1.bf16.msra.mxu0 %v12711
          %12850 = vmatprep.subr.bf16.mxu0 0
          %12851 = vmatpush1.bf16.msra.mxu0 %v12712
          %12852 = vmatprep.subr.bf16.mxu0 0
          %12853 = vmatpush1.bf16.msra.mxu0 %v12713
          %12854 = vmatprep.subr.bf16.mxu0 0
          %12855 = vmatpush1.bf16.msra.mxu0 %v12714
          %12856 = vmatprep.subr.bf16.mxu0 0
          %12857 = vmatpush1.bf16.msra.mxu0 %v12715
          %12858 = vmatprep.subr.bf16.mxu0 0
          %12859 = vmatpush1.bf16.msra.mxu0 %v12716
          %12860 = vmatprep.subr.bf16.mxu0 0
          %12861 = vmatpush1.bf16.msra.mxu0 %v12717
          %12862 = vmatprep.mubr.bf16.mxu0 %v12431
          %12863 = vmatmul.mubr.bf16.gmra.mrb[0].mxu0 %v12430
          %v12864 = vpop.f32.mrb[0].mxu0
          %v12865 = vadd.f32 %v12413, %v12864
          %v12866 = vpop.f32.mrb[0].mxu0
          %v12867 = vpop.f32.mrb[0].mxu0
          %v12868 = vpop.f32.mrb[0].mxu0
          %12869 = vdwg.mxu0
          %12870 = vmatprep.subr.bf16.mxu0 0
          %12871 = vmatpush1.bf16.msra.mxu0 %v12718
          %12872 = vmatprep.subr.bf16.mxu0 0
          %12873 = vmatpush1.bf16.msra.mxu0 %v12719
          %12874 = vmatprep.subr.bf16.mxu0 0
          %12875 = vmatpush1.bf16.msra.mxu0 %v12720
          %12876 = vmatprep.subr.bf16.mxu0 0
          %12877 = vmatpush1.bf16.msra.mxu0 %v12721
          %12878 = vmatprep.subr.bf16.mxu0 0
          %12879 = vmatpush1.bf16.msra.mxu0 %v12722
          %12880 = vmatprep.subr.bf16.mxu0 0
          %12881 = vmatpush1.bf16.msra.mxu0 %v12723
          %12882 = vmatprep.subr.bf16.mxu0 0
          %12883 = vmatpush1.bf16.msra.mxu0 %v12724
          %12884 = vmatprep.subr.bf16.mxu0 0
          %12885 = vmatpush1.bf16.msra.mxu0 %v12725
          %12886 = vmatprep.subr.bf16.mxu0 0
          %12887 = vmatpush1.bf16.msra.mxu0 %v12726
          %12888 = vmatprep.subr.bf16.mxu0 0
          %12889 = vmatpush1.bf16.msra.mxu0 %v12727
          %12890 = vmatprep.subr.bf16.mxu0 0
          %12891 = vmatpush1.bf16.msra.mxu0 %v12728
          %12892 = vmatprep.subr.bf16.mxu0 0
          %12893 = vmatpush1.bf16.msra.mxu0 %v12729
          %12894 = vmatprep.subr.bf16.mxu0 0
          %12895 = vmatpush1.bf16.msra.mxu0 %v12730
          %12896 = vmatprep.subr.bf16.mxu0 0
          %12897 = vmatpush1.bf16.msra.mxu0 %v12731
          %12898 = vmatprep.subr.bf16.mxu0 0
          %12899 = vmatpush1.bf16.msra.mxu0 %v12732
          %12900 = vmatprep.subr.bf16.mxu0 0
          %12901 = vmatpush1.bf16.msra.mxu0 %v12733
          %12902 = vmatprep.mubr.bf16.mxu0 %v12433
          %12903 = vmatmul.mubr.bf16.gmra.mrb[0].mxu0 %v12432
          %v12904 = vpop.f32.mrb[0].mxu0
          %v12905 = vadd.f32 %v12865, %v12904
          %v12906 = vpop.f32.mrb[0].mxu0
          %v12907 = vpop.f32.mrb[0].mxu0
          %v12908 = vpop.f32.mrb[0].mxu0
          %12909 = vdwg.mxu0
          %12910 = vmatprep.subr.bf16.mxu0 0
          %12911 = vmatpush1.bf16.msra.mxu0 %v12734
          %12912 = vmatprep.subr.bf16.mxu0 0
          %12913 = vmatpush1.bf16.msra.mxu0 %v12735
          %12914 = vmatprep.subr.bf16.mxu0 0
          %12915 = vmatpush1.bf16.msra.mxu0 %v12736
          %12916 = vmatprep.subr.bf16.mxu0 0
          %12917 = vmatpush1.bf16.msra.mxu0 %v12737
          %12918 = vmatprep.subr.bf16.mxu0 0
          %12919 = vmatpush1.bf16.msra.mxu0 %v12738
          %12920 = vmatprep.subr.bf16.mxu0 0
          %12921 = vmatpush1.bf16.msra.mxu0 %v12739
          %12922 = vmatprep.subr.bf16.mxu0 0
          %12923 = vmatpush1.bf16.msra.mxu0 %v12740
          %12924 = vmatprep.subr.bf16.mxu0 0
          %12925 = vmatpush1.bf16.msra.mxu0 %v12741
          %12926 = vmatprep.subr.bf16.mxu0 0
          %12927 = vmatpush1.bf16.msra.mxu0 %v12742
          %12928 = vmatprep.subr.bf16.mxu0 0
          %12929 = vmatpush1.bf16.msra.mxu0 %v12743
          %12930 = vmatprep.subr.bf16.mxu0 0
          %12931 = vmatpush1.bf16.msra.mxu0 %v12744
          %12932 = vmatprep.subr.bf16.mxu0 0
          %12933 = vmatpush1.bf16.msra.mxu0 %v12745
          %12934 = vmatprep.subr.bf16.mxu0 0
          %12935 = vmatpush1.bf16.msra.mxu0 %v12746
          %12936 = vmatprep.subr.bf16.mxu0 0
          %12937 = vmatpush1.bf16.msra.mxu0 %v12747
          %12938 = vmatprep.subr.bf16.mxu0 0
          %12939 = vmatpush1.bf16.msra.mxu0 %v12748
          %12940 = vmatprep.subr.bf16.mxu0 0
          %12941 = vmatpush1.bf16.msra.mxu0 %v12749
          %12942 = vmatprep.mubr.bf16.mxu0 %v12435
          %12943 = vmatmul.mubr.bf16.gmra.mrb[0].mxu0 %v12434
          %v12944 = vpop.f32.mrb[0].mxu0
          %v12945 = vadd.f32 %v12905, %v12944
          %v12946 = vpop.f32.mrb[0].mxu0
          %v12947 = vpop.f32.mrb[0].mxu0
          %v12948 = vpop.f32.mrb[0].mxu0
          %12949 = vdwg.mxu0
          %12950 = vmatprep.subr.bf16.mxu0 0
          %12951 = vmatpush1.bf16.msra.mxu0 %v12750
          %12952 = vmatprep.subr.bf16.mxu0 0
          %12953 = vmatpush1.bf16.msra.mxu0 %v12751
          %12954 = vmatprep.subr.bf16.mxu0 0
          %12955 = vmatpush1.bf16.msra.mxu0 %v12752
          %12956 = vmatprep.subr.bf16.mxu0 0
          %12957 = vmatpush1.bf16.msra.mxu0 %v12753
          %12958 = vmatprep.subr.bf16.mxu0 0
          %12959 = vmatpush1.bf16.msra.mxu0 %v12754
          %12960 = vmatprep.subr.bf16.mxu0 0
          %12961 = vmatpush1.bf16.msra.mxu0 %v12755
          %12962 = vmatprep.subr.bf16.mxu0 0
          %12963 = vmatpush1.bf16.msra.mxu0 %v12756
          %12964 = vmatprep.subr.bf16.mxu0 0
          %12965 = vmatpush1.bf16.msra.mxu0 %v12757
          %12966 = vmatprep.subr.bf16.mxu0 0
          %12967 = vmatpush1.bf16.msra.mxu0 %v12758
          %12968 = vmatprep.subr.bf16.mxu0 0
          %12969 = vmatpush1.bf16.msra.mxu0 %v12759
          %12970 = vmatprep.subr.bf16.mxu0 0
          %12971 = vmatpush1.bf16.msra.mxu0 %v12760
          %12972 = vmatprep.subr.bf16.mxu0 0
          %12973 = vmatpush1.bf16.msra.mxu0 %v12761
          %12974 = vmatprep.subr.bf16.mxu0 0
          %12975 = vmatpush1.bf16.msra.mxu0 %v12762
          %12976 = vmatprep.subr.bf16.mxu0 0
          %12977 = vmatpush1.bf16.msra.mxu0 %v12763
          %12978 = vmatprep.subr.bf16.mxu0 0
          %12979 = vmatpush1.bf16.msra.mxu0 %v12764
          %12980 = vmatprep.subr.bf16.mxu0 0
          %12981 = vmatpush1.bf16.msra.mxu0 %v12765
          %12982 = vmatprep.mubr.bf16.mxu0 %v12437
          %12983 = vmatmul.mubr.bf16.gmra.mrb[0].mxu0 %v12436
          %v12984 = vpop.f32.mrb[0].mxu0
          %v12985 = vadd.f32 %v12945, %v12984
          %v12986 = vpop.f32.mrb[0].mxu0
          %v12987 = vpop.f32.mrb[0].mxu0
          %v12988 = vpop.f32.mrb[0].mxu0
          %12989 = vdwg.mxu0
          %v12990 = vld [vmem:[#allocation13] sm:$0x1]
          %v12992 = vlaneseq
          %v12993 = vshrl.u32 %v12992, 7
          %v12994 = vsub.s32 0, %v12993
          %v12995 = vrot.slane %v12990, %v12994
          %v12997 = vadd.f32 %v12985, %v12995
          %12998 = vmax.xlane.f32.xlu0 %v12997
          %v12999 = vpop.xlane.xlu0 %12998
          %v13000 = vsub.f32 %v12997, %v12999
          %v13001 = vmul.f32 %v13000, 1.442695
          %v13002 = vpow.pop %v13001
          %13003 = vadd.xlane.f32.xlu0 %v13002
          %v13004 = vpop.xlane.xlu0 %13003
          %v13005 = vrcp.pop %v13004
          %v13006 = vmul.f32 %v13002, %v13005
          %13007 = vst [vmem:[#allocation15] sm:$0xff] %v13006
        $region84: #{my_neural_network_forward.1} parent=47 // pred_fallthru
          _
        // Predicated region
        $region85: #{my_neural_network_forward.1} parent=47 // pred_check
          %p13008 = pneg %p237
        $region86: #{my_neural_network_forward.1} parent=47 // pred_check_branch
          %13010 = sbr.rel (%p13008) target = $region88
        $region87: #{my_neural_network_forward.1} parent=47 // pred_region
          %s13012 = ssub.s32 128, 128
          %13013 = vsyncadd [#allocation6], %s13012
          %s13015 = sshll.u32 [#allocation15], 4
          %s13016 = int_to_ptr.vmem [resolvable:$true] %s13015
          %13018 = dma.vmem_to_hbm [thread:$0]  %s13016, 128, %s7, [#allocation6]
        $region88: #{my_neural_network_forward.1} parent=47 // pred_fallthru
          _
        // Predicated region
        $region89: #{my_neural_network_forward.1} parent=47 // pred_check
          %p13019 = pneg %p237
        $region90: #{my_neural_network_forward.1} parent=47 // pred_check_branch
          %13021 = sbr.rel (%p13019) target = $region92
        $region91: #{my_neural_network_forward.1} parent=47 // pred_region
          %13022 = dma.done [#allocation6], 128
        $region92: #{my_neural_network_forward.1} parent=47 // pred_fallthru
          _
      $region48: #{my_neural_network_forward.1} parent=5 // pred_fallthru
        _
      %p13023 = scmp.le.s32.totalorder 2, %s24
      // Predicated region
      $region93: #{my_neural_network_forward.1} parent=5 // pred_check
        %p13024 = pneg %p13023
      $region94: #{my_neural_network_forward.1} parent=5 // pred_check_branch
        %13026 = sbr.rel (%p13024) target = $region96
      $region95: #{my_neural_network_forward.1} parent=5 // pred_region
        %s13027 = ssub.s32 %s24, 2
      $region96: #{my_neural_network_forward.1} parent=5 // pred_fallthru
        _
    $region6: #{my_neural_network_forward.1} parent=1 // loop_footer
      %s28 = sadd.s32 1, %s24
    $region7: #{my_neural_network_forward.1} parent=1 // loop_footer_branch
      %23 = sbr.rel target = $region3
    $region8: #{my_neural_network_forward.1} parent=1 // loop_exit
      _
    %13028 = vsyncpa [#allocation5], 1
    %s13029 = scalar_lea.sflag [#allocation5], 1
    %13030 = vsyncpa %s13029, 1
    %13031 = vsyncpa [#allocation8], 1
    %s13032 = scalar_lea.sflag [#allocation8], 1
    %13033 = vsyncpa %s13032, 1
    %13034 = vsyncpa [#allocation11], 1
    %s13035 = scalar_lea.sflag [#allocation11], 1
    %13036 = vsyncpa %s13035, 1
    %13037 = vsyncpa [#allocation14], 1
    %13038 = vsyncpa [#allocation6], 1
    %s13039 = scalar_lea.sflag [#allocation6], 1
    %13040 = vsyncpa %s13039, 1

</llo_original>
